<compile_context>
chip_gen: v7x
topology: tpu7x:2x2x1
jax: 0.10.0
libtpu: 0.0.40
codegen_flags: <defaults>
</compile_context>

<pallas_src>
import functools
import math

import jax
import jax.numpy as jnp
import numpy as np
from jax import lax
from jax.experimental import pallas as pl
from jax.experimental.pallas import tpu as pltpu


# --------------------------------------------------------------------------
# Configuration (the module's __init__ reads these; defined in-script).
# --------------------------------------------------------------------------
CONFIG = {
    'speckle': {'nscreens': 8},
    'preproc': {'resize': 16, 'ensemble': 1},
    'scnn': {
        'KERNEL_SIZES': [3, 3],
        'PADDINGS': [1, 1],
        'STRIDES': [1, 1],
        'FEATURE_FIELDS': [2, 4],
        'POOL_INDICES': [1],
        'SIGMA': [0.66],
        'POOL_STRIDES': [2],
        'POOL_PADDINGS': [0],
    },
    'final_block': [
        {'type': 'Linear', 'in_features': -1, 'out_features': 32},
        {'type': 'ReLU'},
        {'type': 'Linear', 'in_features': 32, 'out_features': 'nscreens'},
    ],
}
SYMMETRY = 'C4'
SYMMETRY_MAP = {'C8': 8, 'C16': 16, 'C4': 4, 'C6': 6, 'C10': 10, 'C12': 12}


def compute_new_features(nfeatures, kernel_size, padding, stride):
    return int((nfeatures - kernel_size + 2 * padding) / stride) + 1


def separable_pool_matrix(sigma, stride, padding, size_in):
    """1-D blur+downsample matrix for the antialiased avg pool (normalized Gaussian)."""
    k = 2 * int(round(3 * sigma)) + 1
    r = np.arange(k, dtype=np.float64) - (k - 1) / 2.0
    g1 = np.exp(-r ** 2 / (2.0 * sigma ** 2))
    g1 = g1 / g1.sum()
    size_out = compute_new_features(size_in, k, padding, stride)
    S = np.zeros((size_out, size_in), np.float64)
    for o in range(size_out):
        start = o * stride - padding
        for t in range(k):
            idx = start + t
            if 0 <= idx < size_in:          # zero padding contributes nothing
                S[o, idx] += g1[t]
    return S.astype(np.float32), g1.astype(np.float32), k, size_out


# --------------------------------------------------------------------------
# The fused Pallas kernel: one grid step == one batch element, fully in VMEM.
# --------------------------------------------------------------------------
def _fused_scnn_kernel(x_ref, w1_ref, s1_ref, w2_ref, s2_ref, pA_ref, pB_ref,
                       w1t_ref, b1_ref, w2t_ref, b2_ref,
                       o_ref, a1p_ref, yp_ref,
                       *, k1, k2, p2, H1, W1, H2, W2, C1, C2, NG, NF):
    # ---- conv block 1: trivial field (Cin=1) -> C1, stride 1, BN folded, ReLU
    # The input block is the pre-padded image; the 9 taps accumulate on the VPU
    # as broadcast multiply-adds (Cin == 1, so no matmul is needed).
    y1 = jnp.zeros((H1, W1, C1), jnp.float32)
    for ky in range(k1):
        for kx in range(k1):
            tap = ky * k1 + kx
            slab = x_ref[0, ky:ky + H1, kx:kx + W1, :]          # (H1, W1, 1)
            y1 = y1 + slab * w1_ref[tap:tap + 1, :]             # -> (H1, W1, C1)
    y1 = jnp.maximum(y1 + s1_ref[...], 0.0)

    # Zero-padded VMEM copy of the conv1 output (halo for conv block 2).
    a1p_ref[...] = jnp.zeros_like(a1p_ref)
    a1p_ref[p2:p2 + H1, p2:p2 + W1, :] = y1

    # ---- conv block 2: C1 -> C2, stride 1, in-kernel im2col (9 shifted slabs),
    # one small MXU matmul per tap, BN folded into the weights, ReLU.
    y2 = jnp.zeros((H2 * W2, C2), jnp.float32)
    for ky in range(k2):
        for kx in range(k2):
            tap = ky * k2 + kx
            slab = a1p_ref[ky:ky + H2, kx:kx + W2, :]           # (H2, W2, C1)
            y2 = y2 + jnp.dot(slab.reshape(H2 * W2, C1), w2_ref[tap],
                              preferred_element_type=jnp.float32)
    y2 = jnp.maximum(y2 + s2_ref[...], 0.0)                     # (H2*W2, C2)

    # ---- antialiased Gaussian avg pool: separable blur + stride expressed as two
    # small matmuls with host-precomputed kron matrices (exact, depthwise).
    t = jnp.dot(pA_ref[...], y2, preferred_element_type=jnp.float32)       # (H3*W2, C2)
    yp_ref[...] = jnp.dot(pB_ref[...], t, preferred_element_type=jnp.float32)  # (H3*W3, C2)

    # ---- GroupPooling (max over each field's NG group channels) fused with the
    # fully-connected head (Linear -> ReLU -> Linear), all in VMEM / registers.
    h1 = b1_ref[...]                                            # (HID, 1)
    for f in range(NF):
        gf = jnp.max(yp_ref[:, f * NG:(f + 1) * NG], axis=1, keepdims=True)  # (Q, 1)
        h1 = h1 + jnp.dot(w1t_ref[f], gf, preferred_element_type=jnp.float32)
    h1 = jnp.maximum(h1, 0.0)
    o_ref[0] = jnp.dot(w2t_ref[...], h1,
                       preferred_element_type=jnp.float32) + b2_ref[...]    # (out, 1)


def steerable_cnn_forward(params, x_nchw):
    """Forward pass; x_nchw: (B, 1, H, W) float32 (PyTorch layout)."""
    p = params
    B = x_nchw.shape[0]
    x = jnp.transpose(x_nchw, (0, 2, 3, 1))                     # NHWC, 1 channel
    xpad = jnp.pad(x, ((0, 0), (p['p1'],) * 2, (p['p1'],) * 2, (0, 0)))
    Hp = p['H0'] + 2 * p['p1']

    kern = functools.partial(
        _fused_scnn_kernel, k1=p['k1'], k2=p['k2'], p2=p['p2'],
        H1=p['H1'], W1=p['W1'], H2=p['H2'], W2=p['W2'],
        C1=p['C1'], C2=p['C2'], NG=p['N'], NF=p['F'])

    out = pl.pallas_call(
        kern,
        out_shape=jax.ShapeDtypeStruct((B, p['out_size'], 1), jnp.float32),
        grid=(B,),
        in_specs=[
            pl.BlockSpec((1, Hp, Hp, 1), lambda b: (b, 0, 0, 0)),
            pl.BlockSpec(p['w1k'].shape, lambda b: (0, 0)),
            pl.BlockSpec(p['s1k'].shape, lambda b: (0, 0)),
            pl.BlockSpec(p['w2k'].shape, lambda b: (0, 0, 0)),
            pl.BlockSpec(p['s2k'].shape, lambda b: (0, 0)),
            pl.BlockSpec(p['pA'].shape, lambda b: (0, 0)),
            pl.BlockSpec(p['pB'].shape, lambda b: (0, 0)),
            pl.BlockSpec(p['w1t'].shape, lambda b: (0, 0, 0)),
            pl.BlockSpec(p['b1c'].shape, lambda b: (0, 0)),
            pl.BlockSpec(p['w2t'].shape, lambda b: (0, 0)),
            pl.BlockSpec(p['b2c'].shape, lambda b: (0, 0)),
        ],
        out_specs=pl.BlockSpec((1, p['out_size'], 1), lambda b: (b, 0, 0)),
        scratch_shapes=[
            pltpu.VMEM((p['H1'] + 2 * p['p2'], p['W1'] + 2 * p['p2'], p['C1']),
                       jnp.float32),                            # padded conv1 output
            pltpu.VMEM((p['H3'] * p['W3'], p['C2']), jnp.float32),  # pooled activations
        ],
        compiler_params=pltpu.CompilerParams(
            dimension_semantics=("parallel",)),                 # both v7x cores busy
    )(xpad, p['w1k'], p['s1k'], p['w2k'], p['s2k'], p['pA'], p['pB'],
      p['w1t'], p['b1c'], p['w2t'], p['b2c'])
    return out[:, :, 0]


# --------------------------------------------------------------------------
# Parameter construction (mirrors SteerableCNN.__init__ for this CONFIG).
# --------------------------------------------------------------------------
def init_params(config, symmetry, key):
    N = SYMMETRY_MAP[symmetry]
    scnn = config['scnn']
    nscreens = config['speckle']['nscreens']
    res = config['preproc']['resize']
    ensemble = config['preproc'].get('ensemble', 1)

    ks, pads, strides = scnn['KERNEL_SIZES'], scnn['PADDINGS'], scnn['STRIDES']
    fields = scnn['FEATURE_FIELDS']
    # The fused kernel is specialised to the architecture this CONFIG describes.
    # TODO(synk): other depths / strided convs / extra final_block layers would need
    # a different fused kernel body.
    assert len(ks) == 2 and scnn['POOL_INDICES'] == [1] and all(s == 1 for s in strides)
    assert [d['type'] for d in config['final_block']] == ['Linear', 'ReLU', 'Linear']

    k1, p1 = ks[0], pads[0]
    k2, p2 = ks[1], pads[1]
    C0, C1, C2 = 1, fields[0] * N, fields[1] * N
    H0 = res
    H1 = compute_new_features(H0, k1, p1, 1)
    H2 = compute_new_features(H1, k2, p2, 1)

    sigma = scnn['SIGMA'][0]
    pst, ppad = scnn['POOL_STRIDES'][0], scnn['POOL_PADDINGS'][0]
    S_h, g1, pk, H3 = separable_pool_matrix(sigma, pst, ppad, H2)
    if H3 < 1:
        raise ValueError('The number of features is too small.')
    pA = jnp.asarray(np.kron(S_h, np.eye(H2, dtype=np.float32)), jnp.float32)  # (H3*W2, H2*W2)
    pB = jnp.asarray(np.kron(np.eye(H3, dtype=np.float32), S_h), jnp.float32)  # (H3*W3, H3*W2)
    g2 = jnp.asarray(np.outer(g1, g1), jnp.float32)                             # reference filter

    key, kw1, kg1, kb1, kw2, kg2, kb2 = jax.random.split(key, 7)
    # TODO(synk): R2Conv's equivariant basis expansion is not reproduced; the dense
    # (Cout, Cin, k, k) filters are synthetic, the dense-conv forward compute is identical.
    Wc1 = jax.random.normal(kw1, (C1, C0, k1, k1), jnp.float32) / math.sqrt(C0 * k1 * k1)
    gamma1 = 1.0 + 0.1 * jax.random.normal(kg1, (fields[0],), jnp.float32)
    beta1 = 0.1 * jax.random.normal(kb1, (fields[0],), jnp.float32)
    scale1 = jnp.repeat(gamma1, N) / math.sqrt(1.0 + 1e-5)   # eval-mode BN: mean 0, var 1
    shift1 = jnp.repeat(beta1, N)

    Wc2 = jax.random.normal(kw2, (C2, C1, k2, k2), jnp.float32) / math.sqrt(C1 * k2 * k2)
    gamma2 = 1.0 + 0.1 * jax.random.normal(kg2, (fields[1],), jnp.float32)
    beta2 = 0.1 * jax.random.normal(kb2, (fields[1],), jnp.float32)
    scale2 = jnp.repeat(gamma2, N) / math.sqrt(1.0 + 1e-5)
    shift2 = jnp.repeat(beta2, N)

    # BN scale folded into the conv weights (kernel only adds the shift).
    w1k = jnp.transpose(Wc1 * scale1[:, None, None, None], (2, 3, 1, 0)).reshape(k1 * k1 * C0, C1)
    s1k = shift1.reshape(1, C1)
    w2k = jnp.transpose(Wc2 * scale2[:, None, None, None], (2, 3, 1, 0)).reshape(k2 * k2, C1, C2)
    s2k = shift2.reshape(1, C2)

    F = fields[-1]
    Q = H3 * H3
    nc = F * Q
    out_size = nscreens + 1 if ensemble > 1 else nscreens

    # final fully connected block (mirrors create_final_block for Linear/ReLU)
    linears = []
    n_initial = nc
    for layer_cfg in config['final_block']:
        lc = dict(layer_cfg)
        ltype = lc.pop('type')
        if ltype == 'Linear':
            if n_initial != -1:
                lc['in_features'] = n_initial
                n_initial = -1
            if lc['out_features'] == 'nscreens':
                lc['out_features'] = out_size
            n_in, n_out = lc.pop('in_features'), lc.pop('out_features')
            key, kw, kb = jax.random.split(key, 3)
            bound = 1.0 / math.sqrt(n_in)
            wl = jax.random.uniform(kw, (n_in, n_out), jnp.float32, -bound, bound)
            bl = jax.random.uniform(kb, (n_out,), jnp.float32, -bound, bound)
            linears.append((wl, bl))
        # ReLU is fused inside the Pallas kernel between the two Linears
    (W1_fc, b1_fc), (W2_fc, b2_fc) = linears
    HID = W1_fc.shape[1]
    # Head weights pre-arranged for the in-kernel column-vector formulation; the
    # PyTorch NCHW flatten order (f, h, w) is folded into the weight layout.
    w1t = jnp.transpose(W1_fc.reshape(F, Q, HID), (0, 2, 1))    # (F, HID, Q)
    b1c = b1_fc.reshape(HID, 1)
    w2t = W2_fc.T                                               # (out, HID)
    b2c = b2_fc.reshape(out_size, 1)

    return dict(
        N=N, F=F, out_size=out_size,
        H0=H0, H1=H1, W1=H1, H2=H2, W2=H2, H3=H3, W3=H3,
        k1=k1, p1=p1, k2=k2, p2=p2, C1=C1, C2=C2,
        pst=pst, ppad=ppad, pk=pk,
        # kernel-ready tensors
        w1k=w1k, s1k=s1k, w2k=w2k, s2k=s2k, pA=pA, pB=pB,
        w1t=w1t, b1c=b1c, w2t=w2t, b2c=b2c,
        # raw pieces for the pure-JAX reference
        Wc1=Wc1, Wc2=Wc2, scale1=scale1, shift1=shift1, scale2=scale2, shift2=shift2,
        g2=g2, W1_fc=W1_fc, b1_fc=b1_fc, W2_fc=W2_fc, b2_fc=b2_fc)


# --------------------------------------------------------------------------
# Pure-JAX reference (lax.conv) for a correctness check.
# --------------------------------------------------------------------------
def reference_forward(params, x_nchw):
    p = params
    dn = ('NCHW', 'OIHW', 'NCHW')
    y = lax.conv_general_dilated(x_nchw, p['Wc1'], (1, 1),
                                 [(p['p1'],) * 2] * 2, dimension_numbers=dn,
                                 precision=lax.Precision.HIGHEST)
    y = y * p['scale1'].reshape(1, -1, 1, 1) + p['shift1'].reshape(1, -1, 1, 1)
    y = jnp.maximum(y, 0.0)
    y = lax.conv_general_dilated(y, p['Wc2'], (1, 1),
                                 [(p['p2'],) * 2] * 2, dimension_numbers=dn,
                                 precision=lax.Precision.HIGHEST)
    y = y * p['scale2'].reshape(1, -1, 1, 1) + p['shift2'].reshape(1, -1, 1, 1)
    y = jnp.maximum(y, 0.0)
    C = y.shape[1]
    gk = jnp.tile(p['g2'][None, None, :, :], (C, 1, 1, 1))      # depthwise Gaussian
    y = lax.conv_general_dilated(y, gk, (p['pst'],) * 2, [(p['ppad'],) * 2] * 2,
                                 dimension_numbers=dn, feature_group_count=C,
                                 precision=lax.Precision.HIGHEST)
    B, C, Hh, Ww = y.shape
    Fnum = C // p['N']
    g = jnp.max(y.reshape(B, Fnum, p['N'], Hh, Ww), axis=2)
    flat = g.reshape(B, -1)
    h = jnp.maximum(flat @ p['W1_fc'] + p['b1_fc'], 0.0)
    return h @ p['W2_fc'] + p['b2_fc']


# --------------------------------------------------------------------------
if __name__ == "__main__":
    key = jax.random.PRNGKey(0)
    key, kx, kp = jax.random.split(key, 3)

    B = 2
    res = CONFIG['preproc']['resize']
    x = jax.random.normal(kx, (B, 1, res, res), jnp.float32)   # NCHW, trivial field

    params = init_params(CONFIG, SYMMETRY, kp)

    fwd = jax.jit(lambda inp: steerable_cnn_forward(params, inp))
    out = jax.block_until_ready(fwd(x))

    assert out.shape == (B, params['out_size'])
    ref = reference_forward(params, x)
    np.testing.assert_allclose(np.asarray(out), np.asarray(ref), rtol=1e-2, atol=1e-2)

    print("KERNEL_OK")
</pallas_src>

<mosaic_0001>
module attributes {stable_mosaic.version = 11 : i64} {
  func.func @_fused_scnn_kernel(%arg0: i32, %arg1: memref<1x18x18x1xf32, #tpu.memory_space<vmem>>, %arg2: memref<9x8xf32, #tpu.memory_space<vmem>>, %arg3: memref<1x8xf32, #tpu.memory_space<vmem>>, %arg4: memref<9x8x16xf32, #tpu.memory_space<vmem>>, %arg5: memref<1x16xf32, #tpu.memory_space<vmem>>, %arg6: memref<96x256xf32, #tpu.memory_space<vmem>>, %arg7: memref<36x96xf32, #tpu.memory_space<vmem>>, %arg8: memref<4x32x36xf32, #tpu.memory_space<vmem>>, %arg9: memref<32x1xf32, #tpu.memory_space<vmem>>, %arg10: memref<8x32xf32, #tpu.memory_space<vmem>>, %arg11: memref<8x1xf32, #tpu.memory_space<vmem>>, %arg12: memref<1x8x1xf32, #tpu.memory_space<vmem>>, %arg13: memref<18x18x8xf32, #tpu.memory_space<vmem>>, %arg14: memref<36x16xf32, #tpu.memory_space<vmem>>) attributes {dimension_semantics = [#tpu.dimension_semantics<parallel>], iteration_bounds = array<i64: 2>, scalar_prefetch = 0 : i64, scratch_operands = 2 : i64, tpu.core_type = #tpu.core_type<tc>, window_params = [{transform_indices = @transform_0, window_bounds = array<i64: 1, 18, 18, 1>}, {pipeline_mode = #tpu.pipeline_mode<synchronous>, transform_indices = @transform_1, window_bounds = array<i64: 9, 8>}, {pipeline_mode = #tpu.pipeline_mode<synchronous>, transform_indices = @transform_2, window_bounds = array<i64: 1, 8>}, {pipeline_mode = #tpu.pipeline_mode<synchronous>, transform_indices = @transform_3, window_bounds = array<i64: 9, 8, 16>}, {pipeline_mode = #tpu.pipeline_mode<synchronous>, transform_indices = @transform_4, window_bounds = array<i64: 1, 16>}, {pipeline_mode = #tpu.pipeline_mode<synchronous>, transform_indices = @transform_5, window_bounds = array<i64: 96, 256>}, {pipeline_mode = #tpu.pipeline_mode<synchronous>, transform_indices = @transform_6, window_bounds = array<i64: 36, 96>}, {pipeline_mode = #tpu.pipeline_mode<synchronous>, transform_indices = @transform_7, window_bounds = array<i64: 4, 32, 36>}, {pipeline_mode = #tpu.pipeline_mode<synchronous>, transform_indices = @transform_8, window_bounds = array<i64: 32, 1>}, {pipeline_mode = #tpu.pipeline_mode<synchronous>, transform_indices = @transform_9, window_bounds = array<i64: 8, 32>}, {pipeline_mode = #tpu.pipeline_mode<synchronous>, transform_indices = @transform_10, window_bounds = array<i64: 8, 1>}, {transform_indices = @transform_11, window_bounds = array<i64: 1, 8, 1>}]} {
    %cst = arith.constant 0.000000e+00 : f32
    %0 = vector.broadcast %cst : f32 to vector<16x16x8xf32>
    %c0 = arith.constant 0 : index
    %c0_0 = arith.constant 0 : index
    %c0_1 = arith.constant 0 : index
    %c0_2 = arith.constant 0 : index
    %1 = vector.load %arg1[%c0, %c0_0, %c0_1, %c0_2] : memref<1x18x18x1xf32, #tpu.memory_space<vmem>>, vector<1x16x16x1xf32>
    %2 = vector.shape_cast %1 : vector<1x16x16x1xf32> to vector<16x16x1xf32>
    %c0_3 = arith.constant 0 : index
    %c0_4 = arith.constant 0 : index
    %3 = vector.load %arg2[%c0_3, %c0_4] : memref<9x8xf32, #tpu.memory_space<vmem>>, vector<1x8xf32>
    %4 = vector.shape_cast %3 : vector<1x8xf32> to vector<1x1x8xf32>
    %5 = vector.broadcast %2 : vector<16x16x1xf32> to vector<16x16x8xf32>
    %6 = vector.broadcast %4 : vector<1x1x8xf32> to vector<16x16x8xf32>
    %7 = arith.mulf %5, %6 : vector<16x16x8xf32>
    %8 = arith.addf %0, %7 : vector<16x16x8xf32>
    %c0_5 = arith.constant 0 : index
    %c0_6 = arith.constant 0 : index
    %c1 = arith.constant 1 : index
    %c0_7 = arith.constant 0 : index
    %9 = vector.load %arg1[%c0_5, %c0_6, %c1, %c0_7] : memref<1x18x18x1xf32, #tpu.memory_space<vmem>>, vector<1x16x16x1xf32>
    %10 = vector.shape_cast %9 : vector<1x16x16x1xf32> to vector<16x16x1xf32>
    %c1_8 = arith.constant 1 : index
    %c0_9 = arith.constant 0 : index
    %11 = vector.load %arg2[%c1_8, %c0_9] : memref<9x8xf32, #tpu.memory_space<vmem>>, vector<1x8xf32>
    %12 = vector.shape_cast %11 : vector<1x8xf32> to vector<1x1x8xf32>
    %13 = vector.broadcast %10 : vector<16x16x1xf32> to vector<16x16x8xf32>
    %14 = vector.broadcast %12 : vector<1x1x8xf32> to vector<16x16x8xf32>
    %15 = arith.mulf %13, %14 : vector<16x16x8xf32>
    %16 = arith.addf %8, %15 : vector<16x16x8xf32>
    %c0_10 = arith.constant 0 : index
    %c0_11 = arith.constant 0 : index
    %c2 = arith.constant 2 : index
    %c0_12 = arith.constant 0 : index
    %17 = vector.load %arg1[%c0_10, %c0_11, %c2, %c0_12] : memref<1x18x18x1xf32, #tpu.memory_space<vmem>>, vector<1x16x16x1xf32>
    %18 = vector.shape_cast %17 : vector<1x16x16x1xf32> to vector<16x16x1xf32>
    %c2_13 = arith.constant 2 : index
    %c0_14 = arith.constant 0 : index
    %19 = vector.load %arg2[%c2_13, %c0_14] : memref<9x8xf32, #tpu.memory_space<vmem>>, vector<1x8xf32>
    %20 = vector.shape_cast %19 : vector<1x8xf32> to vector<1x1x8xf32>
    %21 = vector.broadcast %18 : vector<16x16x1xf32> to vector<16x16x8xf32>
    %22 = vector.broadcast %20 : vector<1x1x8xf32> to vector<16x16x8xf32>
    %23 = arith.mulf %21, %22 : vector<16x16x8xf32>
    %24 = arith.addf %16, %23 : vector<16x16x8xf32>
    %c0_15 = arith.constant 0 : index
    %c1_16 = arith.constant 1 : index
    %c0_17 = arith.constant 0 : index
    %c0_18 = arith.constant 0 : index
    %25 = vector.load %arg1[%c0_15, %c1_16, %c0_17, %c0_18] : memref<1x18x18x1xf32, #tpu.memory_space<vmem>>, vector<1x16x16x1xf32>
    %26 = vector.shape_cast %25 : vector<1x16x16x1xf32> to vector<16x16x1xf32>
    %c3 = arith.constant 3 : index
    %c0_19 = arith.constant 0 : index
    %27 = vector.load %arg2[%c3, %c0_19] : memref<9x8xf32, #tpu.memory_space<vmem>>, vector<1x8xf32>
    %28 = vector.shape_cast %27 : vector<1x8xf32> to vector<1x1x8xf32>
    %29 = vector.broadcast %26 : vector<16x16x1xf32> to vector<16x16x8xf32>
    %30 = vector.broadcast %28 : vector<1x1x8xf32> to vector<16x16x8xf32>
    %31 = arith.mulf %29, %30 : vector<16x16x8xf32>
    %32 = arith.addf %24, %31 : vector<16x16x8xf32>
    %c0_20 = arith.constant 0 : index
    %c1_21 = arith.constant 1 : index
    %c1_22 = arith.constant 1 : index
    %c0_23 = arith.constant 0 : index
    %33 = vector.load %arg1[%c0_20, %c1_21, %c1_22, %c0_23] : memref<1x18x18x1xf32, #tpu.memory_space<vmem>>, vector<1x16x16x1xf32>
    %34 = vector.shape_cast %33 : vector<1x16x16x1xf32> to vector<16x16x1xf32>
    %c4 = arith.constant 4 : index
    %c0_24 = arith.constant 0 : index
    %35 = vector.load %arg2[%c4, %c0_24] : memref<9x8xf32, #tpu.memory_space<vmem>>, vector<1x8xf32>
    %36 = vector.shape_cast %35 : vector<1x8xf32> to vector<1x1x8xf32>
    %37 = vector.broadcast %34 : vector<16x16x1xf32> to vector<16x16x8xf32>
    %38 = vector.broadcast %36 : vector<1x1x8xf32> to vector<16x16x8xf32>
    %39 = arith.mulf %37, %38 : vector<16x16x8xf32>
    %40 = arith.addf %32, %39 : vector<16x16x8xf32>
    %c0_25 = arith.constant 0 : index
    %c1_26 = arith.constant 1 : index
    %c2_27 = arith.constant 2 : index
    %c0_28 = arith.constant 0 : index
    %41 = vector.load %arg1[%c0_25, %c1_26, %c2_27, %c0_28] : memref<1x18x18x1xf32, #tpu.memory_space<vmem>>, vector<1x16x16x1xf32>
    %42 = vector.shape_cast %41 : vector<1x16x16x1xf32> to vector<16x16x1xf32>
    %c5 = arith.constant 5 : index
    %c0_29 = arith.constant 0 : index
    %43 = vector.load %arg2[%c5, %c0_29] : memref<9x8xf32, #tpu.memory_space<vmem>>, vector<1x8xf32>
    %44 = vector.shape_cast %43 : vector<1x8xf32> to vector<1x1x8xf32>
    %45 = vector.broadcast %42 : vector<16x16x1xf32> to vector<16x16x8xf32>
    %46 = vector.broadcast %44 : vector<1x1x8xf32> to vector<16x16x8xf32>
    %47 = arith.mulf %45, %46 : vector<16x16x8xf32>
    %48 = arith.addf %40, %47 : vector<16x16x8xf32>
    %c0_30 = arith.constant 0 : index
    %c2_31 = arith.constant 2 : index
    %c0_32 = arith.constant 0 : index
    %c0_33 = arith.constant 0 : index
    %49 = vector.load %arg1[%c0_30, %c2_31, %c0_32, %c0_33] : memref<1x18x18x1xf32, #tpu.memory_space<vmem>>, vector<1x16x16x1xf32>
    %50 = vector.shape_cast %49 : vector<1x16x16x1xf32> to vector<16x16x1xf32>
    %c6 = arith.constant 6 : index
    %c0_34 = arith.constant 0 : index
    %51 = vector.load %arg2[%c6, %c0_34] : memref<9x8xf32, #tpu.memory_space<vmem>>, vector<1x8xf32>
    %52 = vector.shape_cast %51 : vector<1x8xf32> to vector<1x1x8xf32>
    %53 = vector.broadcast %50 : vector<16x16x1xf32> to vector<16x16x8xf32>
    %54 = vector.broadcast %52 : vector<1x1x8xf32> to vector<16x16x8xf32>
    %55 = arith.mulf %53, %54 : vector<16x16x8xf32>
    %56 = arith.addf %48, %55 : vector<16x16x8xf32>
    %c0_35 = arith.constant 0 : index
    %c2_36 = arith.constant 2 : index
    %c1_37 = arith.constant 1 : index
    %c0_38 = arith.constant 0 : index
    %57 = vector.load %arg1[%c0_35, %c2_36, %c1_37, %c0_38] : memref<1x18x18x1xf32, #tpu.memory_space<vmem>>, vector<1x16x16x1xf32>
    %58 = vector.shape_cast %57 : vector<1x16x16x1xf32> to vector<16x16x1xf32>
    %c7 = arith.constant 7 : index
    %c0_39 = arith.constant 0 : index
    %59 = vector.load %arg2[%c7, %c0_39] : memref<9x8xf32, #tpu.memory_space<vmem>>, vector<1x8xf32>
    %60 = vector.shape_cast %59 : vector<1x8xf32> to vector<1x1x8xf32>
    %61 = vector.broadcast %58 : vector<16x16x1xf32> to vector<16x16x8xf32>
    %62 = vector.broadcast %60 : vector<1x1x8xf32> to vector<16x16x8xf32>
    %63 = arith.mulf %61, %62 : vector<16x16x8xf32>
    %64 = arith.addf %56, %63 : vector<16x16x8xf32>
    %c0_40 = arith.constant 0 : index
    %c2_41 = arith.constant 2 : index
    %c2_42 = arith.constant 2 : index
    %c0_43 = arith.constant 0 : index
    %65 = vector.load %arg1[%c0_40, %c2_41, %c2_42, %c0_43] : memref<1x18x18x1xf32, #tpu.memory_space<vmem>>, vector<1x16x16x1xf32>
    %66 = vector.shape_cast %65 : vector<1x16x16x1xf32> to vector<16x16x1xf32>
    %c8 = arith.constant 8 : index
    %c0_44 = arith.constant 0 : index
    %67 = vector.load %arg2[%c8, %c0_44] : memref<9x8xf32, #tpu.memory_space<vmem>>, vector<1x8xf32>
    %68 = vector.shape_cast %67 : vector<1x8xf32> to vector<1x1x8xf32>
    %69 = vector.broadcast %66 : vector<16x16x1xf32> to vector<16x16x8xf32>
    %70 = vector.broadcast %68 : vector<1x1x8xf32> to vector<16x16x8xf32>
    %71 = arith.mulf %69, %70 : vector<16x16x8xf32>
    %72 = arith.addf %64, %71 : vector<16x16x8xf32>
    %c0_45 = arith.constant 0 : index
    %c0_46 = arith.constant 0 : index
    %73 = vector.load %arg3[%c0_45, %c0_46] : memref<1x8xf32, #tpu.memory_space<vmem>>, vector<1x8xf32>
    %74 = vector.shape_cast %73 : vector<1x8xf32> to vector<1x1x8xf32>
    %75 = vector.broadcast %74 : vector<1x1x8xf32> to vector<16x16x8xf32>
    %76 = arith.addf %72, %75 : vector<16x16x8xf32>
    %cst_47 = arith.constant 0.000000e+00 : f32
    %77 = vector.broadcast %cst_47 : f32 to vector<16x16x8xf32>
    %78 = arith.maximumf %76, %77 : vector<16x16x8xf32>
    %cst_48 = arith.constant 0.000000e+00 : f32
    %79 = vector.broadcast %cst_48 : f32 to vector<18x18x8xf32>
    %c0_49 = arith.constant 0 : index
    %c0_50 = arith.constant 0 : index
    %c0_51 = arith.constant 0 : index
    %80 = vector.load %arg13[%c0_49, %c0_50, %c0_51] : memref<18x18x8xf32, #tpu.memory_space<vmem>>, vector<18x18x8xf32>
    tpu.vector_store %arg13[%c0_49, %c0_50, %c0_51], %79 {strides = array<i32>} : memref<18x18x8xf32, #tpu.memory_space<vmem>>, vector<18x18x8xf32>,
    %c1_52 = arith.constant 1 : index
    %c1_53 = arith.constant 1 : index
    %c0_54 = arith.constant 0 : index
    %81 = vector.load %arg13[%c1_52, %c1_53, %c0_54] : memref<18x18x8xf32, #tpu.memory_space<vmem>>, vector<16x16x8xf32>
    tpu.vector_store %arg13[%c1_52, %c1_53, %c0_54], %78 {strides = array<i32>} : memref<18x18x8xf32, #tpu.memory_space<vmem>>, vector<16x16x8xf32>,
    %cst_55 = arith.constant 0.000000e+00 : f32
    %82 = vector.broadcast %cst_55 : f32 to vector<256x16xf32>
    %c0_56 = arith.constant 0 : index
    %c0_57 = arith.constant 0 : index
    %c0_58 = arith.constant 0 : index
    %83 = vector.load %arg13[%c0_56, %c0_57, %c0_58] : memref<18x18x8xf32, #tpu.memory_space<vmem>>, vector<16x16x8xf32>
    %84 = vector.shape_cast %83 : vector<16x16x8xf32> to vector<256x8xf32>
    %c0_59 = arith.constant 0 : index
    %c0_60 = arith.constant 0 : index
    %c0_61 = arith.constant 0 : index
    %85 = vector.load %arg4[%c0_59, %c0_60, %c0_61] : memref<9x8x16xf32, #tpu.memory_space<vmem>>, vector<1x8x16xf32>
    %86 = vector.shape_cast %85 : vector<1x8x16xf32> to vector<8x16xf32>
    %cst_62 = arith.constant dense<0.000000e+00> : vector<256x16xf32>
    %87 = tpu.matmul %84, %86, %cst_62 {dimension_numbers = #tpu.dot_dimension_numbers<[1], [0], [0], [1], [0, 0, 1, 1], [], []>} : vector<256x8xf32>, vector<8x16xf32>, vector<256x16xf32> -> vector<256x16xf32>
    %88 = arith.addf %82, %87 : vector<256x16xf32>
    %c0_63 = arith.constant 0 : index
    %c1_64 = arith.constant 1 : index
    %c0_65 = arith.constant 0 : index
    %89 = vector.load %arg13[%c0_63, %c1_64, %c0_65] : memref<18x18x8xf32, #tpu.memory_space<vmem>>, vector<16x16x8xf32>
    %90 = vector.shape_cast %89 : vector<16x16x8xf32> to vector<256x8xf32>
    %c1_66 = arith.constant 1 : index
    %c0_67 = arith.constant 0 : index
    %c0_68 = arith.constant 0 : index
    %91 = vector.load %arg4[%c1_66, %c0_67, %c0_68] : memref<9x8x16xf32, #tpu.memory_space<vmem>>, vector<1x8x16xf32>
    %92 = vector.shape_cast %91 : vector<1x8x16xf32> to vector<8x16xf32>
    %cst_69 = arith.constant dense<0.000000e+00> : vector<256x16xf32>
    %93 = tpu.matmul %90, %92, %cst_69 {dimension_numbers = #tpu.dot_dimension_numbers<[1], [0], [0], [1], [0, 0, 1, 1], [], []>} : vector<256x8xf32>, vector<8x16xf32>, vector<256x16xf32> -> vector<256x16xf32>
    %94 = arith.addf %88, %93 : vector<256x16xf32>
    %c0_70 = arith.constant 0 : index
    %c2_71 = arith.constant 2 : index
    %c0_72 = arith.constant 0 : index
    %95 = vector.load %arg13[%c0_70, %c2_71, %c0_72] : memref<18x18x8xf32, #tpu.memory_space<vmem>>, vector<16x16x8xf32>
    %96 = vector.shape_cast %95 : vector<16x16x8xf32> to vector<256x8xf32>
    %c2_73 = arith.constant 2 : index
    %c0_74 = arith.constant 0 : index
    %c0_75 = arith.constant 0 : index
    %97 = vector.load %arg4[%c2_73, %c0_74, %c0_75] : memref<9x8x16xf32, #tpu.memory_space<vmem>>, vector<1x8x16xf32>
    %98 = vector.shape_cast %97 : vector<1x8x16xf32> to vector<8x16xf32>
    %cst_76 = arith.constant dense<0.000000e+00> : vector<256x16xf32>
    %99 = tpu.matmul %96, %98, %cst_76 {dimension_numbers = #tpu.dot_dimension_numbers<[1], [0], [0], [1], [0, 0, 1, 1], [], []>} : vector<256x8xf32>, vector<8x16xf32>, vector<256x16xf32> -> vector<256x16xf32>
    %100 = arith.addf %94, %99 : vector<256x16xf32>
    %c1_77 = arith.constant 1 : index
    %c0_78 = arith.constant 0 : index
    %c0_79 = arith.constant 0 : index
    %101 = vector.load %arg13[%c1_77, %c0_78, %c0_79] : memref<18x18x8xf32, #tpu.memory_space<vmem>>, vector<16x16x8xf32>
    %102 = vector.shape_cast %101 : vector<16x16x8xf32> to vector<256x8xf32>
    %c3_80 = arith.constant 3 : index
    %c0_81 = arith.constant 0 : index
    %c0_82 = arith.constant 0 : index
    %103 = vector.load %arg4[%c3_80, %c0_81, %c0_82] : memref<9x8x16xf32, #tpu.memory_space<vmem>>, vector<1x8x16xf32>
    %104 = vector.shape_cast %103 : vector<1x8x16xf32> to vector<8x16xf32>
    %cst_83 = arith.constant dense<0.000000e+00> : vector<256x16xf32>
    %105 = tpu.matmul %102, %104, %cst_83 {dimension_numbers = #tpu.dot_dimension_numbers<[1], [0], [0], [1], [0, 0, 1, 1], [], []>} : vector<256x8xf32>, vector<8x16xf32>, vector<256x16xf32> -> vector<256x16xf32>
    %106 = arith.addf %100, %105 : vector<256x16xf32>
    %c1_84 = arith.constant 1 : index
    %c1_85 = arith.constant 1 : index
    %c0_86 = arith.constant 0 : index
    %107 = vector.load %arg13[%c1_84, %c1_85, %c0_86] : memref<18x18x8xf32, #tpu.memory_space<vmem>>, vector<16x16x8xf32>
    %108 = vector.shape_cast %107 : vector<16x16x8xf32> to vector<256x8xf32>
    %c4_87 = arith.constant 4 : index
    %c0_88 = arith.constant 0 : index
    %c0_89 = arith.constant 0 : index
    %109 = vector.load %arg4[%c4_87, %c0_88, %c0_89] : memref<9x8x16xf32, #tpu.memory_space<vmem>>, vector<1x8x16xf32>
    %110 = vector.shape_cast %109 : vector<1x8x16xf32> to vector<8x16xf32>
    %cst_90 = arith.constant dense<0.000000e+00> : vector<256x16xf32>
    %111 = tpu.matmul %108, %110, %cst_90 {dimension_numbers = #tpu.dot_dimension_numbers<[1], [0], [0], [1], [0, 0, 1, 1], [], []>} : vector<256x8xf32>, vector<8x16xf32>, vector<256x16xf32> -> vector<256x16xf32>
    %112 = arith.addf %106, %111 : vector<256x16xf32>
    %c1_91 = arith.constant 1 : index
    %c2_92 = arith.constant 2 : index
    %c0_93 = arith.constant 0 : index
    %113 = vector.load %arg13[%c1_91, %c2_92, %c0_93] : memref<18x18x8xf32, #tpu.memory_space<vmem>>, vector<16x16x8xf32>
    %114 = vector.shape_cast %113 : vector<16x16x8xf32> to vector<256x8xf32>
    %c5_94 = arith.constant 5 : index
    %c0_95 = arith.constant 0 : index
    %c0_96 = arith.constant 0 : index
    %115 = vector.load %arg4[%c5_94, %c0_95, %c0_96] : memref<9x8x16xf32, #tpu.memory_space<vmem>>, vector<1x8x16xf32>
    %116 = vector.shape_cast %115 : vector<1x8x16xf32> to vector<8x16xf32>
    %cst_97 = arith.constant dense<0.000000e+00> : vector<256x16xf32>
    %117 = tpu.matmul %114, %116, %cst_97 {dimension_numbers = #tpu.dot_dimension_numbers<[1], [0], [0], [1], [0, 0, 1, 1], [], []>} : vector<256x8xf32>, vector<8x16xf32>, vector<256x16xf32> -> vector<256x16xf32>
    %118 = arith.addf %112, %117 : vector<256x16xf32>
    %c2_98 = arith.constant 2 : index
    %c0_99 = arith.constant 0 : index
    %c0_100 = arith.constant 0 : index
    %119 = vector.load %arg13[%c2_98, %c0_99, %c0_100] : memref<18x18x8xf32, #tpu.memory_space<vmem>>, vector<16x16x8xf32>
    %120 = vector.shape_cast %119 : vector<16x16x8xf32> to vector<256x8xf32>
    %c6_101 = arith.constant 6 : index
    %c0_102 = arith.constant 0 : index
    %c0_103 = arith.constant 0 : index
    %121 = vector.load %arg4[%c6_101, %c0_102, %c0_103] : memref<9x8x16xf32, #tpu.memory_space<vmem>>, vector<1x8x16xf32>
    %122 = vector.shape_cast %121 : vector<1x8x16xf32> to vector<8x16xf32>
    %cst_104 = arith.constant dense<0.000000e+00> : vector<256x16xf32>
    %123 = tpu.matmul %120, %122, %cst_104 {dimension_numbers = #tpu.dot_dimension_numbers<[1], [0], [0], [1], [0, 0, 1, 1], [], []>} : vector<256x8xf32>, vector<8x16xf32>, vector<256x16xf32> -> vector<256x16xf32>
    %124 = arith.addf %118, %123 : vector<256x16xf32>
    %c2_105 = arith.constant 2 : index
    %c1_106 = arith.constant 1 : index
    %c0_107 = arith.constant 0 : index
    %125 = vector.load %arg13[%c2_105, %c1_106, %c0_107] : memref<18x18x8xf32, #tpu.memory_space<vmem>>, vector<16x16x8xf32>
    %126 = vector.shape_cast %125 : vector<16x16x8xf32> to vector<256x8xf32>
    %c7_108 = arith.constant 7 : index
    %c0_109 = arith.constant 0 : index
    %c0_110 = arith.constant 0 : index
    %127 = vector.load %arg4[%c7_108, %c0_109, %c0_110] : memref<9x8x16xf32, #tpu.memory_space<vmem>>, vector<1x8x16xf32>
    %128 = vector.shape_cast %127 : vector<1x8x16xf32> to vector<8x16xf32>
    %cst_111 = arith.constant dense<0.000000e+00> : vector<256x16xf32>
    %129 = tpu.matmul %126, %128, %cst_111 {dimension_numbers = #tpu.dot_dimension_numbers<[1], [0], [0], [1], [0, 0, 1, 1], [], []>} : vector<256x8xf32>, vector<8x16xf32>, vector<256x16xf32> -> vector<256x16xf32>
    %130 = arith.addf %124, %129 : vector<256x16xf32>
    %c2_112 = arith.constant 2 : index
    %c2_113 = arith.constant 2 : index
    %c0_114 = arith.constant 0 : index
    %131 = vector.load %arg13[%c2_112, %c2_113, %c0_114] : memref<18x18x8xf32, #tpu.memory_space<vmem>>, vector<16x16x8xf32>
    %132 = vector.shape_cast %131 : vector<16x16x8xf32> to vector<256x8xf32>
    %c8_115 = arith.constant 8 : index
    %c0_116 = arith.constant 0 : index
    %c0_117 = arith.constant 0 : index
    %133 = vector.load %arg4[%c8_115, %c0_116, %c0_117] : memref<9x8x16xf32, #tpu.memory_space<vmem>>, vector<1x8x16xf32>
    %134 = vector.shape_cast %133 : vector<1x8x16xf32> to vector<8x16xf32>
    %cst_118 = arith.constant dense<0.000000e+00> : vector<256x16xf32>
    %135 = tpu.matmul %132, %134, %cst_118 {dimension_numbers = #tpu.dot_dimension_numbers<[1], [0], [0], [1], [0, 0, 1, 1], [], []>} : vector<256x8xf32>, vector<8x16xf32>, vector<256x16xf32> -> vector<256x16xf32>
    %136 = arith.addf %130, %135 : vector<256x16xf32>
    %c0_119 = arith.constant 0 : index
    %c0_120 = arith.constant 0 : index
    %137 = vector.load %arg5[%c0_119, %c0_120] : memref<1x16xf32, #tpu.memory_space<vmem>>, vector<1x16xf32>
    %138 = vector.broadcast %137 : vector<1x16xf32> to vector<256x16xf32>
    %139 = arith.addf %136, %138 : vector<256x16xf32>
    %cst_121 = arith.constant 0.000000e+00 : f32
    %140 = vector.broadcast %cst_121 : f32 to vector<256x16xf32>
    %141 = arith.maximumf %139, %140 : vector<256x16xf32>
    %c0_122 = arith.constant 0 : index
    %c0_123 = arith.constant 0 : index
    %142 = vector.load %arg6[%c0_122, %c0_123] : memref<96x256xf32, #tpu.memory_space<vmem>>, vector<96x256xf32>
    %cst_124 = arith.constant dense<0.000000e+00> : vector<96x16xf32>
    %143 = tpu.matmul %142, %141, %cst_124 {dimension_numbers = #tpu.dot_dimension_numbers<[1], [0], [0], [1], [0, 0, 1, 1], [], []>} : vector<96x256xf32>, vector<256x16xf32>, vector<96x16xf32> -> vector<96x16xf32>
    %c0_125 = arith.constant 0 : index
    %c0_126 = arith.constant 0 : index
    %144 = vector.load %arg7[%c0_125, %c0_126] : memref<36x96xf32, #tpu.memory_space<vmem>>, vector<36x96xf32>
    %cst_127 = arith.constant dense<0.000000e+00> : vector<36x16xf32>
    %145 = tpu.matmul %144, %143, %cst_127 {dimension_numbers = #tpu.dot_dimension_numbers<[1], [0], [0], [1], [0, 0, 1, 1], [], []>} : vector<36x96xf32>, vector<96x16xf32>, vector<36x16xf32> -> vector<36x16xf32>
    %c0_128 = arith.constant 0 : index
    %c0_129 = arith.constant 0 : index
    %146 = vector.load %arg14[%c0_128, %c0_129] : memref<36x16xf32, #tpu.memory_space<vmem>>, vector<36x16xf32>
    tpu.vector_store %arg14[%c0_128, %c0_129], %145 {strides = array<i32>} : memref<36x16xf32, #tpu.memory_space<vmem>>, vector<36x16xf32>,
    %c0_130 = arith.constant 0 : index
    %c0_131 = arith.constant 0 : index
    %147 = vector.load %arg9[%c0_130, %c0_131] : memref<32x1xf32, #tpu.memory_space<vmem>>, vector<32x1xf32>
    %c0_132 = arith.constant 0 : index
    %c0_133 = arith.constant 0 : index
    %148 = vector.load %arg14[%c0_132, %c0_133] : memref<36x16xf32, #tpu.memory_space<vmem>>, vector<36x4xf32>
    %cst_134 = arith.constant dense<0xFF800000> : vector<36xf32>
    %149 = vector.multi_reduction <maximumf>, %148, %cst_134 [1] : vector<36x4xf32> to vector<36xf32>
    %150 = vector.shape_cast %149 : vector<36xf32> to vector<36x1xf32>
    %c0_135 = arith.constant 0 : index
    %c0_136 = arith.constant 0 : index
    %c0_137 = arith.constant 0 : index
    %151 = vector.load %arg8[%c0_135, %c0_136, %c0_137] : memref<4x32x36xf32, #tpu.memory_space<vmem>>, vector<1x32x36xf32>
    %152 = vector.shape_cast %151 : vector<1x32x36xf32> to vector<32x36xf32>
    %cst_138 = arith.constant dense<0.000000e+00> : vector<32x1xf32>
    %153 = tpu.matmul %152, %150, %cst_138 {dimension_numbers = #tpu.dot_dimension_numbers<[1], [0], [0], [1], [0, 0, 1, 1], [], []>} : vector<32x36xf32>, vector<36x1xf32>, vector<32x1xf32> -> vector<32x1xf32>
    %154 = arith.addf %147, %153 : vector<32x1xf32>
    %c0_139 = arith.constant 0 : index
    %c4_140 = arith.constant 4 : index
    %155 = vector.load %arg14[%c0_139, %c4_140] : memref<36x16xf32, #tpu.memory_space<vmem>>, vector<36x4xf32>
    %cst_141 = arith.constant dense<0xFF800000> : vector<36xf32>
    %156 = vector.multi_reduction <maximumf>, %155, %cst_141 [1] : vector<36x4xf32> to vector<36xf32>
    %157 = vector.shape_cast %156 : vector<36xf32> to vector<36x1xf32>
    %c1_142 = arith.constant 1 : index
    %c0_143 = arith.constant 0 : index
    %c0_144 = arith.constant 0 : index
    %158 = vector.load %arg8[%c1_142, %c0_143, %c0_144] : memref<4x32x36xf32, #tpu.memory_space<vmem>>, vector<1x32x36xf32>
    %159 = vector.shape_cast %158 : vector<1x32x36xf32> to vector<32x36xf32>
    %cst_145 = arith.constant dense<0.000000e+00> : vector<32x1xf32>
    %160 = tpu.matmul %159, %157, %cst_145 {dimension_numbers = #tpu.dot_dimension_numbers<[1], [0], [0], [1], [0, 0, 1, 1], [], []>} : vector<32x36xf32>, vector<36x1xf32>, vector<32x1xf32> -> vector<32x1xf32>
    %161 = arith.addf %154, %160 : vector<32x1xf32>
    %c0_146 = arith.constant 0 : index
    %c8_147 = arith.constant 8 : index
    %162 = vector.load %arg14[%c0_146, %c8_147] : memref<36x16xf32, #tpu.memory_space<vmem>>, vector<36x4xf32>
    %cst_148 = arith.constant dense<0xFF800000> : vector<36xf32>
    %163 = vector.multi_reduction <maximumf>, %162, %cst_148 [1] : vector<36x4xf32> to vector<36xf32>
    %164 = vector.shape_cast %163 : vector<36xf32> to vector<36x1xf32>
    %c2_149 = arith.constant 2 : index
    %c0_150 = arith.constant 0 : index
    %c0_151 = arith.constant 0 : index
    %165 = vector.load %arg8[%c2_149, %c0_150, %c0_151] : memref<4x32x36xf32, #tpu.memory_space<vmem>>, vector<1x32x36xf32>
    %166 = vector.shape_cast %165 : vector<1x32x36xf32> to vector<32x36xf32>
    %cst_152 = arith.constant dense<0.000000e+00> : vector<32x1xf32>
    %167 = tpu.matmul %166, %164, %cst_152 {dimension_numbers = #tpu.dot_dimension_numbers<[1], [0], [0], [1], [0, 0, 1, 1], [], []>} : vector<32x36xf32>, vector<36x1xf32>, vector<32x1xf32> -> vector<32x1xf32>
    %168 = arith.addf %161, %167 : vector<32x1xf32>
    %c0_153 = arith.constant 0 : index
    %c12 = arith.constant 12 : index
    %169 = vector.load %arg14[%c0_153, %c12] : memref<36x16xf32, #tpu.memory_space<vmem>>, vector<36x4xf32>
    %cst_154 = arith.constant dense<0xFF800000> : vector<36xf32>
    %170 = vector.multi_reduction <maximumf>, %169, %cst_154 [1] : vector<36x4xf32> to vector<36xf32>
    %171 = vector.shape_cast %170 : vector<36xf32> to vector<36x1xf32>
    %c3_155 = arith.constant 3 : index
    %c0_156 = arith.constant 0 : index
    %c0_157 = arith.constant 0 : index
    %172 = vector.load %arg8[%c3_155, %c0_156, %c0_157] : memref<4x32x36xf32, #tpu.memory_space<vmem>>, vector<1x32x36xf32>
    %173 = vector.shape_cast %172 : vector<1x32x36xf32> to vector<32x36xf32>
    %cst_158 = arith.constant dense<0.000000e+00> : vector<32x1xf32>
    %174 = tpu.matmul %173, %171, %cst_158 {dimension_numbers = #tpu.dot_dimension_numbers<[1], [0], [0], [1], [0, 0, 1, 1], [], []>} : vector<32x36xf32>, vector<36x1xf32>, vector<32x1xf32> -> vector<32x1xf32>
    %175 = arith.addf %168, %174 : vector<32x1xf32>
    %cst_159 = arith.constant 0.000000e+00 : f32
    %176 = vector.broadcast %cst_159 : f32 to vector<32x1xf32>
    %177 = arith.maximumf %175, %176 : vector<32x1xf32>
    %c0_160 = arith.constant 0 : index
    %c0_161 = arith.constant 0 : index
    %178 = vector.load %arg10[%c0_160, %c0_161] : memref<8x32xf32, #tpu.memory_space<vmem>>, vector<8x32xf32>
    %cst_162 = arith.constant dense<0.000000e+00> : vector<8x1xf32>
    %179 = tpu.matmul %178, %177, %cst_162 {dimension_numbers = #tpu.dot_dimension_numbers<[1], [0], [0], [1], [0, 0, 1, 1], [], []>} : vector<8x32xf32>, vector<32x1xf32>, vector<8x1xf32> -> vector<8x1xf32>
    %c0_163 = arith.constant 0 : index
    %c0_164 = arith.constant 0 : index
    %180 = vector.load %arg11[%c0_163, %c0_164] : memref<8x1xf32, #tpu.memory_space<vmem>>, vector<8x1xf32>
    %181 = arith.addf %179, %180 : vector<8x1xf32>
    %c0_165 = arith.constant 0 : index
    %c0_166 = arith.constant 0 : index
    %c0_167 = arith.constant 0 : index
    %182 = vector.load %arg12[%c0_165, %c0_166, %c0_167] : memref<1x8x1xf32, #tpu.memory_space<vmem>>, vector<1x8x1xf32>
    %183 = vector.shape_cast %182 : vector<1x8x1xf32> to vector<8x1xf32>
    %184 = vector.shape_cast %181 : vector<8x1xf32> to vector<1x8x1xf32>
    tpu.vector_store %arg12[%c0_165, %c0_166, %c0_167], %184 {strides = array<i32>} : memref<1x8x1xf32, #tpu.memory_space<vmem>>, vector<1x8x1xf32>,
    return
  }
  func.func @transform_0(%arg0: i32) -> (i32, i32, i32, i32) {
    %c0_i32 = arith.constant 0 : i32
    %c0_i32_0 = arith.constant 0 : i32
    %c0_i32_1 = arith.constant 0 : i32
    %c0_i32_2 = arith.constant 0 : i32
    return %arg0, %c0_i32, %c0_i32_0, %c0_i32_1 : i32, i32, i32, i32
  }
  func.func @transform_1(%arg0: i32) -> (i32, i32) {
    %c0_i32 = arith.constant 0 : i32
    %c0_i32_0 = arith.constant 0 : i32
    %c0_i32_1 = arith.constant 0 : i32
    return %c0_i32, %c0_i32_0 : i32, i32
  }
  func.func @transform_2(%arg0: i32) -> (i32, i32) {
    %c0_i32 = arith.constant 0 : i32
    %c0_i32_0 = arith.constant 0 : i32
    %c0_i32_1 = arith.constant 0 : i32
    return %c0_i32, %c0_i32_0 : i32, i32
  }
  func.func @transform_3(%arg0: i32) -> (i32, i32, i32) {
    %c0_i32 = arith.constant 0 : i32
    %c0_i32_0 = arith.constant 0 : i32
    %c0_i32_1 = arith.constant 0 : i32
    %c0_i32_2 = arith.constant 0 : i32
    return %c0_i32, %c0_i32_0, %c0_i32_1 : i32, i32, i32
  }
  func.func @transform_4(%arg0: i32) -> (i32, i32) {
    %c0_i32 = arith.constant 0 : i32
    %c0_i32_0 = arith.constant 0 : i32
    %c0_i32_1 = arith.constant 0 : i32
    return %c0_i32, %c0_i32_0 : i32, i32
  }
  func.func @transform_5(%arg0: i32) -> (i32, i32) {
    %c0_i32 = arith.constant 0 : i32
    %c0_i32_0 = arith.constant 0 : i32
    %c0_i32_1 = arith.constant 0 : i32
    return %c0_i32, %c0_i32_0 : i32, i32
  }
  func.func @transform_6(%arg0: i32) -> (i32, i32) {
    %c0_i32 = arith.constant 0 : i32
    %c0_i32_0 = arith.constant 0 : i32
    %c0_i32_1 = arith.constant 0 : i32
    return %c0_i32, %c0_i32_0 : i32, i32
  }
  func.func @transform_7(%arg0: i32) -> (i32, i32, i32) {
    %c0_i32 = arith.constant 0 : i32
    %c0_i32_0 = arith.constant 0 : i32
    %c0_i32_1 = arith.constant 0 : i32
    %c0_i32_2 = arith.constant 0 : i32
    return %c0_i32, %c0_i32_0, %c0_i32_1 : i32, i32, i32
  }
  func.func @transform_8(%arg0: i32) -> (i32, i32) {
    %c0_i32 = arith.constant 0 : i32
    %c0_i32_0 = arith.constant 0 : i32
    %c0_i32_1 = arith.constant 0 : i32
    return %c0_i32, %c0_i32_0 : i32, i32
  }
  func.func @transform_9(%arg0: i32) -> (i32, i32) {
    %c0_i32 = arith.constant 0 : i32
    %c0_i32_0 = arith.constant 0 : i32
    %c0_i32_1 = arith.constant 0 : i32
    return %c0_i32, %c0_i32_0 : i32, i32
  }
  func.func @transform_10(%arg0: i32) -> (i32, i32) {
    %c0_i32 = arith.constant 0 : i32
    %c0_i32_0 = arith.constant 0 : i32
    %c0_i32_1 = arith.constant 0 : i32
    return %c0_i32, %c0_i32_0 : i32, i32
  }
  func.func @transform_11(%arg0: i32) -> (i32, i32, i32) {
    %c0_i32 = arith.constant 0 : i32
    %c0_i32_0 = arith.constant 0 : i32
    %c0_i32_1 = arith.constant 0 : i32
    return %arg0, %c0_i32, %c0_i32_0 : i32, i32, i32
  }
}

</mosaic_0001>

<llo_original>
// kernel: _lambda_.1
$region0: #{_lambda_.1}
  #allocation0 [shape = 'u32[]', space=smem, size = 0x4, offset = 0x4, fixed_abs, tag = 'smem constant byte address 0x4 - core index']
  #allocation1 [shape = 'u32[144,128]{1,0:T(1,128)}', space=vmem, size = 0x12000, scoped, tag = 'internal scratch']
  #allocation2 [shape = 'f32[18,18,8]{2,1,0:T(8,128)}', space=vmem, size = 0x36000, scoped, tag = 'scratch operand']
  #allocation3 [shape = 'f32[36,16]{1,0:T(8,128)}', space=vmem, size = 0x5000, scoped, tag = 'scratch operand']
  %s0 = inlined_call_operand.vmem [shape: f32[2,18,18,1], index: 0, kind: input, shape index: {}]
  %s1 = inlined_call_operand.vmem [shape: f32[9,8], index: 1, kind: input, shape index: {}]
  %s2 = inlined_call_operand.vmem [shape: f32[1,8], index: 2, kind: input, shape index: {}]
  %s3 = inlined_call_operand.vmem [shape: f32[9,8,16], index: 3, kind: input, shape index: {}]
  %s4 = inlined_call_operand.vmem [shape: f32[1,16], index: 4, kind: input, shape index: {}]
  %s5 = inlined_call_operand.vmem [shape: f32[96,256], index: 5, kind: input, shape index: {}]
  %s6 = inlined_call_operand.vmem [shape: f32[36,96], index: 6, kind: input, shape index: {}]
  %s7 = inlined_call_operand.vmem [shape: f32[4,32,36], index: 7, kind: input, shape index: {}]
  %s8 = inlined_call_operand.vmem [shape: f32[32,1], index: 8, kind: input, shape index: {}]
  %s9 = inlined_call_operand.vmem [shape: f32[8,32], index: 9, kind: input, shape index: {}]
  %s10 = inlined_call_operand.vmem [shape: f32[8,1], index: 10, kind: input, shape index: {}]
  %s11 = inlined_call_operand.vmem [shape: f32[2,8,1], index: 11, kind: output, shape index: {}]
  %s12 = sld [smem:[#allocation0]]
  $region77: #{_lambda_.1} parent=0
    _
  %s14 = ssub.s32 1, %s12
  %s15 = scalar_select 0, %s14, %s12
  loop: start=0, step=1, limit=4
  $region2: #{_lambda_.1} parent=0 // loop_pre_header
    _
  $region3: #{_lambda_.1} parent=0 // loop_header
    %s17 = sphi 0, %s21
    %p18 = scmp.ge.s32.totalorder %s17, 4
    %s27 = sphi 0, %s29
    %s30 = sphi 0, %s27
    %s31 = sphi 0, %s30
    %s47 = sphi 0, %s31
    %s51 = sphi 0, %s51
    %s53 = sphi 0, %s51
    %s54 = sphi 0, %s53
    %s68 = sphi 0, %s54
    %s72 = sphi 0, %s72
    %s74 = sphi 0, %s72
    %s75 = sphi 0, %s74
    %s89 = sphi 0, %s75
    %s93 = sphi 0, %s93
    %s95 = sphi 0, %s93
    %s96 = sphi 0, %s95
    %s110 = sphi 0, %s96
    %s114 = sphi 0, %s114
    %s116 = sphi 0, %s114
    %s117 = sphi 0, %s116
    %s131 = sphi 0, %s117
    %s135 = sphi 0, %s135
    %s137 = sphi 0, %s135
    %s138 = sphi 0, %s137
    %s152 = sphi 0, %s138
    %s156 = sphi 0, %s156
    %s158 = sphi 0, %s156
    %s159 = sphi 0, %s158
    %s173 = sphi 0, %s159
    %s177 = sphi 0, %s177
    %s179 = sphi 0, %s177
    %s180 = sphi 0, %s179
    %s194 = sphi 0, %s180
    %s198 = sphi 0, %s198
    %s200 = sphi 0, %s198
    %s201 = sphi 0, %s200
    %s215 = sphi 0, %s201
    %s219 = sphi 0, %s219
    %s221 = sphi 0, %s219
    %s222 = sphi 0, %s221
    %s236 = sphi 0, %s222
    %s240 = sphi 0, %s240
    %s242 = sphi 0, %s240
    %s243 = sphi 0, %s242
    %s257 = sphi 0, %s243
    %s263 = sphi 0, %s265
    %s266 = sphi 0, %s263
    %s267 = sphi 0, %s266
    %s283 = sphi 0, %s267
  $region4: #{_lambda_.1} parent=0 // loop_header_branch
    %20 = sbr.rel (%p18) target = $region8
  $region5: #{_lambda_.1} parent=0 // loop_body
    %s22 = ssub.s32 %s17, 1
    %s23 = ssub.s32 %s17, 2
    %s24 = sadd.s32 %s17, 1
    %s25 = ssub.s32 %s17, %s24
    %p26 = scmp.eq.s32.totalorder %s25, 0
    %s28 = sadd.s32 %s27, 1
    %s29 = scalar_select %p26, %s27, %s28
    %p32 = pneg %p26
    %p33 = scmp.eq.s32.totalorder %s17, 1
    %p34 = por %p32, %p33
    %p35 = scmp.ne.s32.totalorder %s27, %s30
    %p36 = scmp.eq.s32.totalorder %s17, 0
    %p37 = por %p35, %p36
    %p38 = scmp.ne.s32.totalorder %s27, %s30
    %p39 = scmp.eq.s32.totalorder %s22, 1
    %p40 = por %p38, %p39
    %p41 = scmp.ne.s32.totalorder %s30, %s31
    %p42 = scmp.eq.s32.totalorder %s22, 0
    %p43 = por %p41, %p42
    %p44 = scmp.ne.s32.totalorder %s30, %s31
    %p45 = scmp.eq.s32.totalorder %s23, 1
    %p46 = por %p44, %p45
    %p48 = scmp.ne.s32.totalorder %s31, %s47
    %p49 = scmp.eq.s32.totalorder %s23, 0
    %p50 = por %p48, %p49
    %s52 = sadd.s32 %s51, 1
    %p55 = scmp.eq.s32.totalorder %s17, 1
    %p56 = scmp.ne.s32.totalorder %s51, %s53
    %p57 = scmp.eq.s32.totalorder %s17, 0
    %p58 = por %p56, %p57
    %p59 = scmp.ne.s32.totalorder %s51, %s53
    %p60 = scmp.eq.s32.totalorder %s22, 1
    %p61 = por %p59, %p60
    %p62 = scmp.ne.s32.totalorder %s53, %s54
    %p63 = scmp.eq.s32.totalorder %s22, 0
    %p64 = por %p62, %p63
    %p65 = scmp.ne.s32.totalorder %s53, %s54
    %p66 = scmp.eq.s32.totalorder %s23, 1
    %p67 = por %p65, %p66
    %p69 = scmp.ne.s32.totalorder %s54, %s68
    %p70 = scmp.eq.s32.totalorder %s23, 0
    %p71 = por %p69, %p70
    %s73 = sadd.s32 %s72, 1
    %p76 = scmp.eq.s32.totalorder %s17, 1
    %p77 = scmp.ne.s32.totalorder %s72, %s74
    %p78 = scmp.eq.s32.totalorder %s17, 0
    %p79 = por %p77, %p78
    %p80 = scmp.ne.s32.totalorder %s72, %s74
    %p81 = scmp.eq.s32.totalorder %s22, 1
    %p82 = por %p80, %p81
    %p83 = scmp.ne.s32.totalorder %s74, %s75
    %p84 = scmp.eq.s32.totalorder %s22, 0
    %p85 = por %p83, %p84
    %p86 = scmp.ne.s32.totalorder %s74, %s75
    %p87 = scmp.eq.s32.totalorder %s23, 1
    %p88 = por %p86, %p87
    %p90 = scmp.ne.s32.totalorder %s75, %s89
    %p91 = scmp.eq.s32.totalorder %s23, 0
    %p92 = por %p90, %p91
    %s94 = sadd.s32 %s93, 1
    %p97 = scmp.eq.s32.totalorder %s17, 1
    %p98 = scmp.ne.s32.totalorder %s93, %s95
    %p99 = scmp.eq.s32.totalorder %s17, 0
    %p100 = por %p98, %p99
    %p101 = scmp.ne.s32.totalorder %s93, %s95
    %p102 = scmp.eq.s32.totalorder %s22, 1
    %p103 = por %p101, %p102
    %p104 = scmp.ne.s32.totalorder %s95, %s96
    %p105 = scmp.eq.s32.totalorder %s22, 0
    %p106 = por %p104, %p105
    %p107 = scmp.ne.s32.totalorder %s95, %s96
    %p108 = scmp.eq.s32.totalorder %s23, 1
    %p109 = por %p107, %p108
    %p111 = scmp.ne.s32.totalorder %s96, %s110
    %p112 = scmp.eq.s32.totalorder %s23, 0
    %p113 = por %p111, %p112
    %s115 = sadd.s32 %s114, 1
    %p118 = scmp.eq.s32.totalorder %s17, 1
    %p119 = scmp.ne.s32.totalorder %s114, %s116
    %p120 = scmp.eq.s32.totalorder %s17, 0
    %p121 = por %p119, %p120
    %p122 = scmp.ne.s32.totalorder %s114, %s116
    %p123 = scmp.eq.s32.totalorder %s22, 1
    %p124 = por %p122, %p123
    %p125 = scmp.ne.s32.totalorder %s116, %s117
    %p126 = scmp.eq.s32.totalorder %s22, 0
    %p127 = por %p125, %p126
    %p128 = scmp.ne.s32.totalorder %s116, %s117
    %p129 = scmp.eq.s32.totalorder %s23, 1
    %p130 = por %p128, %p129
    %p132 = scmp.ne.s32.totalorder %s117, %s131
    %p133 = scmp.eq.s32.totalorder %s23, 0
    %p134 = por %p132, %p133
    %s136 = sadd.s32 %s135, 1
    %p139 = scmp.eq.s32.totalorder %s17, 1
    %p140 = scmp.ne.s32.totalorder %s135, %s137
    %p141 = scmp.eq.s32.totalorder %s17, 0
    %p142 = por %p140, %p141
    %p143 = scmp.ne.s32.totalorder %s135, %s137
    %p144 = scmp.eq.s32.totalorder %s22, 1
    %p145 = por %p143, %p144
    %p146 = scmp.ne.s32.totalorder %s137, %s138
    %p147 = scmp.eq.s32.totalorder %s22, 0
    %p148 = por %p146, %p147
    %p149 = scmp.ne.s32.totalorder %s137, %s138
    %p150 = scmp.eq.s32.totalorder %s23, 1
    %p151 = por %p149, %p150
    %p153 = scmp.ne.s32.totalorder %s138, %s152
    %p154 = scmp.eq.s32.totalorder %s23, 0
    %p155 = por %p153, %p154
    %s157 = sadd.s32 %s156, 1
    %p160 = scmp.eq.s32.totalorder %s17, 1
    %p161 = scmp.ne.s32.totalorder %s156, %s158
    %p162 = scmp.eq.s32.totalorder %s17, 0
    %p163 = por %p161, %p162
    %p164 = scmp.ne.s32.totalorder %s156, %s158
    %p165 = scmp.eq.s32.totalorder %s22, 1
    %p166 = por %p164, %p165
    %p167 = scmp.ne.s32.totalorder %s158, %s159
    %p168 = scmp.eq.s32.totalorder %s22, 0
    %p169 = por %p167, %p168
    %p170 = scmp.ne.s32.totalorder %s158, %s159
    %p171 = scmp.eq.s32.totalorder %s23, 1
    %p172 = por %p170, %p171
    %p174 = scmp.ne.s32.totalorder %s159, %s173
    %p175 = scmp.eq.s32.totalorder %s23, 0
    %p176 = por %p174, %p175
    %s178 = sadd.s32 %s177, 1
    %p181 = scmp.eq.s32.totalorder %s17, 1
    %p182 = scmp.ne.s32.totalorder %s177, %s179
    %p183 = scmp.eq.s32.totalorder %s17, 0
    %p184 = por %p182, %p183
    %p185 = scmp.ne.s32.totalorder %s177, %s179
    %p186 = scmp.eq.s32.totalorder %s22, 1
    %p187 = por %p185, %p186
    %p188 = scmp.ne.s32.totalorder %s179, %s180
    %p189 = scmp.eq.s32.totalorder %s22, 0
    %p190 = por %p188, %p189
    %p191 = scmp.ne.s32.totalorder %s179, %s180
    %p192 = scmp.eq.s32.totalorder %s23, 1
    %p193 = por %p191, %p192
    %p195 = scmp.ne.s32.totalorder %s180, %s194
    %p196 = scmp.eq.s32.totalorder %s23, 0
    %p197 = por %p195, %p196
    %s199 = sadd.s32 %s198, 1
    %p202 = scmp.eq.s32.totalorder %s17, 1
    %p203 = scmp.ne.s32.totalorder %s198, %s200
    %p204 = scmp.eq.s32.totalorder %s17, 0
    %p205 = por %p203, %p204
    %p206 = scmp.ne.s32.totalorder %s198, %s200
    %p207 = scmp.eq.s32.totalorder %s22, 1
    %p208 = por %p206, %p207
    %p209 = scmp.ne.s32.totalorder %s200, %s201
    %p210 = scmp.eq.s32.totalorder %s22, 0
    %p211 = por %p209, %p210
    %p212 = scmp.ne.s32.totalorder %s200, %s201
    %p213 = scmp.eq.s32.totalorder %s23, 1
    %p214 = por %p212, %p213
    %p216 = scmp.ne.s32.totalorder %s201, %s215
    %p217 = scmp.eq.s32.totalorder %s23, 0
    %p218 = por %p216, %p217
    %s220 = sadd.s32 %s219, 1
    %p223 = scmp.eq.s32.totalorder %s17, 1
    %p224 = scmp.ne.s32.totalorder %s219, %s221
    %p225 = scmp.eq.s32.totalorder %s17, 0
    %p226 = por %p224, %p225
    %p227 = scmp.ne.s32.totalorder %s219, %s221
    %p228 = scmp.eq.s32.totalorder %s22, 1
    %p229 = por %p227, %p228
    %p230 = scmp.ne.s32.totalorder %s221, %s222
    %p231 = scmp.eq.s32.totalorder %s22, 0
    %p232 = por %p230, %p231
    %p233 = scmp.ne.s32.totalorder %s221, %s222
    %p234 = scmp.eq.s32.totalorder %s23, 1
    %p235 = por %p233, %p234
    %p237 = scmp.ne.s32.totalorder %s222, %s236
    %p238 = scmp.eq.s32.totalorder %s23, 0
    %p239 = por %p237, %p238
    %s241 = sadd.s32 %s240, 1
    %p244 = scmp.eq.s32.totalorder %s17, 1
    %p245 = scmp.ne.s32.totalorder %s240, %s242
    %p246 = scmp.eq.s32.totalorder %s17, 0
    %p247 = por %p245, %p246
    %p248 = scmp.ne.s32.totalorder %s240, %s242
    %p249 = scmp.eq.s32.totalorder %s22, 1
    %p250 = por %p248, %p249
    %p251 = scmp.ne.s32.totalorder %s242, %s243
    %p252 = scmp.eq.s32.totalorder %s22, 0
    %p253 = por %p251, %p252
    %p254 = scmp.ne.s32.totalorder %s242, %s243
    %p255 = scmp.eq.s32.totalorder %s23, 1
    %p256 = por %p254, %p255
    %p258 = scmp.ne.s32.totalorder %s243, %s257
    %p259 = scmp.eq.s32.totalorder %s23, 0
    %p260 = por %p258, %p259
    %s261 = ssub.s32 %s17, %s24
    %p262 = scmp.eq.s32.totalorder %s261, 0
    %s264 = sadd.s32 %s263, 1
    %s265 = scalar_select %p262, %s263, %s264
    %p268 = pneg %p262
    %p269 = scmp.eq.s32.totalorder %s17, 1
    %p270 = por %p268, %p269
    %p271 = scmp.ne.s32.totalorder %s263, %s266
    %p272 = scmp.eq.s32.totalorder %s17, 0
    %p273 = por %p271, %p272
    %p274 = scmp.ne.s32.totalorder %s263, %s266
    %p275 = scmp.eq.s32.totalorder %s22, 1
    %p276 = por %p274, %p275
    %p277 = scmp.ne.s32.totalorder %s266, %s267
    %p278 = scmp.eq.s32.totalorder %s22, 0
    %p279 = por %p277, %p278
    %p280 = scmp.ne.s32.totalorder %s266, %s267
    %p281 = scmp.eq.s32.totalorder %s23, 1
    %p282 = por %p280, %p281
    %p284 = scmp.ne.s32.totalorder %s267, %s283
    %p285 = scmp.eq.s32.totalorder %s23, 0
    %p286 = por %p284, %p285
    %p287 = scmp.le.s32.totalorder 1, %s17
    %p288 = scmp.lt.s32.totalorder %s17, 3
    %p289 = pnand %p287, %p288
    %p290 = pneg %p289
    // Predicated region
    $region9: #{_lambda_.1} parent=5 // pred_check
      _
    $region10: #{_lambda_.1} parent=5 // pred_check_branch
      %292 = sbr.rel (%p289) target = $region12
    $region11: #{_lambda_.1} parent=5 // pred_region
      %s293 = ssub.s32 %s17, 1
      // Predicated region
      $region13: #{_lambda_.1} parent=11 // pred_check
        %p294 = pneg %p64
      $region14: #{_lambda_.1} parent=11 // pred_check_branch
        %296 = sbr.rel (%p294) target = $region16
      $region15: #{_lambda_.1} parent=11 // pred_region
        _
      $region16: #{_lambda_.1} parent=11 // pred_fallthru
        _
      // Predicated region
      $region17: #{_lambda_.1} parent=11 // pred_check
        %p297 = pneg %p85
      $region18: #{_lambda_.1} parent=11 // pred_check_branch
        %299 = sbr.rel (%p297) target = $region20
      $region19: #{_lambda_.1} parent=11 // pred_region
        _
      $region20: #{_lambda_.1} parent=11 // pred_fallthru
        _
      // Predicated region
      $region21: #{_lambda_.1} parent=11 // pred_check
        %p300 = pneg %p106
      $region22: #{_lambda_.1} parent=11 // pred_check_branch
        %302 = sbr.rel (%p300) target = $region24
      $region23: #{_lambda_.1} parent=11 // pred_region
        _
      $region24: #{_lambda_.1} parent=11 // pred_fallthru
        _
      // Predicated region
      $region25: #{_lambda_.1} parent=11 // pred_check
        %p303 = pneg %p127
      $region26: #{_lambda_.1} parent=11 // pred_check_branch
        %305 = sbr.rel (%p303) target = $region28
      $region27: #{_lambda_.1} parent=11 // pred_region
        _
      $region28: #{_lambda_.1} parent=11 // pred_fallthru
        _
      // Predicated region
      $region29: #{_lambda_.1} parent=11 // pred_check
        %p306 = pneg %p148
      $region30: #{_lambda_.1} parent=11 // pred_check_branch
        %308 = sbr.rel (%p306) target = $region32
      $region31: #{_lambda_.1} parent=11 // pred_region
        _
      $region32: #{_lambda_.1} parent=11 // pred_fallthru
        _
      // Predicated region
      $region33: #{_lambda_.1} parent=11 // pred_check
        %p309 = pneg %p169
      $region34: #{_lambda_.1} parent=11 // pred_check_branch
        %311 = sbr.rel (%p309) target = $region36
      $region35: #{_lambda_.1} parent=11 // pred_region
        _
      $region36: #{_lambda_.1} parent=11 // pred_fallthru
        _
      // Predicated region
      $region37: #{_lambda_.1} parent=11 // pred_check
        %p312 = pneg %p190
      $region38: #{_lambda_.1} parent=11 // pred_check_branch
        %314 = sbr.rel (%p312) target = $region40
      $region39: #{_lambda_.1} parent=11 // pred_region
        _
      $region40: #{_lambda_.1} parent=11 // pred_fallthru
        _
      // Predicated region
      $region41: #{_lambda_.1} parent=11 // pred_check
        %p315 = pneg %p211
      $region42: #{_lambda_.1} parent=11 // pred_check_branch
        %317 = sbr.rel (%p315) target = $region44
      $region43: #{_lambda_.1} parent=11 // pred_region
        _
      $region44: #{_lambda_.1} parent=11 // pred_fallthru
        _
      // Predicated region
      $region45: #{_lambda_.1} parent=11 // pred_check
        %p318 = pneg %p232
      $region46: #{_lambda_.1} parent=11 // pred_check_branch
        %320 = sbr.rel (%p318) target = $region48
      $region47: #{_lambda_.1} parent=11 // pred_region
        _
      $region48: #{_lambda_.1} parent=11 // pred_fallthru
        _
      // Predicated region
      $region49: #{_lambda_.1} parent=11 // pred_check
        %p321 = pneg %p253
      $region50: #{_lambda_.1} parent=11 // pred_check_branch
        %323 = sbr.rel (%p321) target = $region52
      $region51: #{_lambda_.1} parent=11 // pred_region
        _
      $region52: #{_lambda_.1} parent=11 // pred_fallthru
        _
    $region12: #{_lambda_.1} parent=5 // pred_fallthru
      _
    %p324 = scmp.lt.s32.totalorder %s17, 2
    // Predicated region
    $region53: #{_lambda_.1} parent=5 // pred_check
      %p325 = pneg %p324
    $region54: #{_lambda_.1} parent=5 // pred_check_branch
      %327 = sbr.rel (%p325) target = $region56
    $region55: #{_lambda_.1} parent=5 // pred_region
      // Predicated region
      $region57: #{_lambda_.1} parent=55 // pred_check
        %p328 = pneg %p37
      $region58: #{_lambda_.1} parent=55 // pred_check_branch
        %330 = sbr.rel (%p328) target = $region60
      $region59: #{_lambda_.1} parent=55 // pred_region
        %p331 = scmp.lt.s32.totalorder %s17, 1
        %s332 = scalar_select %p331, %s17, 1
        %s333 = smul.addr %s332, 54
        %s334 = smul.addr %s333, 8
        %s335 = scalar_lea.vmem %s0, %s334
      $region60: #{_lambda_.1} parent=55 // pred_fallthru
        _
    $region56: #{_lambda_.1} parent=5 // pred_fallthru
      _
    %p336 = scmp.le.s32.totalorder 1, %s17
    %p337 = scmp.lt.s32.totalorder %s17, 3
    %p338 = pnand %p336, %p337
    %p339 = pneg %p338
    // Predicated region
    $region61: #{_lambda_.1} parent=5 // pred_check
      _
    $region62: #{_lambda_.1} parent=5 // pred_check_branch
      %341 = sbr.rel (%p338) target = $region64
    $region63: #{_lambda_.1} parent=5 // pred_region
      %s342 = ssub.s32 %s17, 1
      %p343 = scmp.lt.s32.totalorder %s22, 1
      %s344 = scalar_select %p343, %s22, 1
      %s345 = smul.addr %s344, 54
      %s346 = smul.addr %s345, 8
      %s347 = scalar_lea.vmem %s0, %s346
      %p348 = pneg %p43
      %p349 = pneg %p40
      %p350 = pneg %p64
      %p351 = pneg %p61
      %p352 = pneg %p85
      %p353 = pneg %p82
      %p354 = pneg %p106
      %p355 = pneg %p103
      %p356 = pneg %p127
      %p357 = pneg %p124
      %p358 = pneg %p148
      %p359 = pneg %p145
      %p360 = pneg %p169
      %p361 = pneg %p166
      %p362 = pneg %p190
      %p363 = pneg %p187
      %p364 = pneg %p211
      %p365 = pneg %p208
      %p366 = pneg %p232
      %p367 = pneg %p229
      %p368 = pneg %p253
      %p369 = pneg %p250
      %p370 = pneg %p279
      %p371 = pneg %p276
      %p372 = scmp.lt.s32.totalorder %s22, 1
      %s373 = scalar_select %p372, %s22, 1
      %s374 = smul.addr %s373, 8
      %s375 = scalar_lea.vmem %s11, %s374
      %p376 = scmp.lt.s32.totalorder %s22, 1
      %s377 = scalar_select %p376, %s22, 1
      %s378 = smul.addr %s377, 54
      %s379 = smul.addr %s378, 8
      %s380 = scalar_lea.vmem %s0, %s379
      %p381 = scmp.lt.s32.totalorder %s22, 1
      %s382 = scalar_select %p381, %s22, 1
      %s383 = smul.addr %s382, 8
      %s384 = scalar_lea.vmem %s11, %s383
      %v385 = vld [vmem:[%s380] sm:$0xff]
      %v386 = vld [vmem:[%s380 + $0x8] sm:$0xff]
      %v387 = vld [vmem:[%s380 + $0x18] sm:$0xff]
      %v388 = vld [vmem:[%s380 + $0x20] sm:$0xff]
      %v389 = vld [vmem:[%s380 + $0x30] sm:$0xff]
      %v390 = vld [vmem:[%s380 + $0x38] sm:$0xff]
      %v391 = vld [vmem:[%s380 + $0x48] sm:$0xff]
      %v392 = vld [vmem:[%s380 + $0x50] sm:$0xff]
      %v393 = vld [vmem:[%s380 + $0x60] sm:$0xff]
      %v394 = vld [vmem:[%s380 + $0x68] sm:$0xff]
      %v395 = vld [vmem:[%s380 + $0x78] sm:$0xff]
      %v396 = vld [vmem:[%s380 + $0x80] sm:$0xff]
      %v397 = vld [vmem:[%s380 + $0x90] sm:$0xff]
      %v398 = vld [vmem:[%s380 + $0x98] sm:$0xff]
      %v399 = vld [vmem:[%s380 + $0xa8] sm:$0xff]
      %v400 = vld [vmem:[%s380 + $0xb0] sm:$0xff]
      %v401 = vld [vmem:[%s380 + $0xc0] sm:$0xff]
      %v402 = vld [vmem:[%s380 + $0xc8] sm:$0xff]
      %v403 = vld [vmem:[%s380 + $0xd8] sm:$0xff]
      %v404 = vld [vmem:[%s380 + $0xe0] sm:$0xff]
      %v405 = vld [vmem:[%s380 + $0xf0] sm:$0xff]
      %v406 = vld [vmem:[%s380 + $0xf8] sm:$0xff]
      %v407 = vld [vmem:[%s380 + $0x108] sm:$0xff]
      %v408 = vld [vmem:[%s380 + $0x110] sm:$0xff]
      %v409 = vld [vmem:[%s380 + $0x120] sm:$0xff]
      %v410 = vld [vmem:[%s380 + $0x128] sm:$0xff]
      %v411 = vld [vmem:[%s380 + $0x138] sm:$0xff]
      %v412 = vld [vmem:[%s380 + $0x140] sm:$0xff]
      %v413 = vld [vmem:[%s380 + $0x150] sm:$0xff]
      %v414 = vld [vmem:[%s380 + $0x158] sm:$0xff]
      %v415 = vld [vmem:[%s380 + $0x168] sm:$0xff]
      %v416 = vld [vmem:[%s380 + $0x170] sm:$0xff]
      %v417 = vld [vmem:[%s1] sm:$0x1]
      %419 = vset.pattern.permute.xlu0 0
      %420 = vperm.xlu0 %419, %v385
      %v421 = vpop.permute.xlu0 %420
      %424 = vset.pattern.permute.xlu0 0
      %425 = vperm.xlu0 %424, %v386
      %v426 = vpop.permute.xlu0 %425
      %429 = vset.pattern.permute.xlu0 0
      %430 = vperm.xlu0 %429, %v387
      %v431 = vpop.permute.xlu0 %430
      %434 = vset.pattern.permute.xlu0 0
      %435 = vperm.xlu0 %434, %v388
      %v436 = vpop.permute.xlu0 %435
      %439 = vset.pattern.permute.xlu0 0
      %440 = vperm.xlu0 %439, %v389
      %v441 = vpop.permute.xlu0 %440
      %444 = vset.pattern.permute.xlu0 0
      %445 = vperm.xlu0 %444, %v390
      %v446 = vpop.permute.xlu0 %445
      %449 = vset.pattern.permute.xlu0 0
      %450 = vperm.xlu0 %449, %v391
      %v451 = vpop.permute.xlu0 %450
      %454 = vset.pattern.permute.xlu0 0
      %455 = vperm.xlu0 %454, %v392
      %v456 = vpop.permute.xlu0 %455
      %459 = vset.pattern.permute.xlu0 0
      %460 = vperm.xlu0 %459, %v393
      %v461 = vpop.permute.xlu0 %460
      %464 = vset.pattern.permute.xlu0 0
      %465 = vperm.xlu0 %464, %v394
      %v466 = vpop.permute.xlu0 %465
      %469 = vset.pattern.permute.xlu0 0
      %470 = vperm.xlu0 %469, %v395
      %v471 = vpop.permute.xlu0 %470
      %474 = vset.pattern.permute.xlu0 0
      %475 = vperm.xlu0 %474, %v396
      %v476 = vpop.permute.xlu0 %475
      %479 = vset.pattern.permute.xlu0 0
      %480 = vperm.xlu0 %479, %v397
      %v481 = vpop.permute.xlu0 %480
      %484 = vset.pattern.permute.xlu0 0
      %485 = vperm.xlu0 %484, %v398
      %v486 = vpop.permute.xlu0 %485
      %489 = vset.pattern.permute.xlu0 0
      %490 = vperm.xlu0 %489, %v399
      %v491 = vpop.permute.xlu0 %490
      %494 = vset.pattern.permute.xlu0 0
      %495 = vperm.xlu0 %494, %v400
      %v496 = vpop.permute.xlu0 %495
      %499 = vset.pattern.permute.xlu0 0
      %500 = vperm.xlu0 %499, %v401
      %v501 = vpop.permute.xlu0 %500
      %504 = vset.pattern.permute.xlu0 0
      %505 = vperm.xlu0 %504, %v402
      %v506 = vpop.permute.xlu0 %505
      %509 = vset.pattern.permute.xlu0 0
      %510 = vperm.xlu0 %509, %v403
      %v511 = vpop.permute.xlu0 %510
      %514 = vset.pattern.permute.xlu0 0
      %515 = vperm.xlu0 %514, %v404
      %v516 = vpop.permute.xlu0 %515
      %519 = vset.pattern.permute.xlu0 0
      %520 = vperm.xlu0 %519, %v405
      %v521 = vpop.permute.xlu0 %520
      %524 = vset.pattern.permute.xlu0 0
      %525 = vperm.xlu0 %524, %v406
      %v526 = vpop.permute.xlu0 %525
      %529 = vset.pattern.permute.xlu0 0
      %530 = vperm.xlu0 %529, %v407
      %v531 = vpop.permute.xlu0 %530
      %534 = vset.pattern.permute.xlu0 0
      %535 = vperm.xlu0 %534, %v408
      %v536 = vpop.permute.xlu0 %535
      %539 = vset.pattern.permute.xlu0 0
      %540 = vperm.xlu0 %539, %v409
      %v541 = vpop.permute.xlu0 %540
      %544 = vset.pattern.permute.xlu0 0
      %545 = vperm.xlu0 %544, %v410
      %v546 = vpop.permute.xlu0 %545
      %549 = vset.pattern.permute.xlu0 0
      %550 = vperm.xlu0 %549, %v411
      %v551 = vpop.permute.xlu0 %550
      %554 = vset.pattern.permute.xlu0 0
      %555 = vperm.xlu0 %554, %v412
      %v556 = vpop.permute.xlu0 %555
      %559 = vset.pattern.permute.xlu0 0
      %560 = vperm.xlu0 %559, %v413
      %v561 = vpop.permute.xlu0 %560
      %564 = vset.pattern.permute.xlu0 0
      %565 = vperm.xlu0 %564, %v414
      %v566 = vpop.permute.xlu0 %565
      %569 = vset.pattern.permute.xlu0 0
      %570 = vperm.xlu0 %569, %v415
      %v571 = vpop.permute.xlu0 %570
      %574 = vset.pattern.permute.xlu0 0
      %575 = vperm.xlu0 %574, %v416
      %v576 = vpop.permute.xlu0 %575
      %v578 = vlaneseq
      %v579 = vshrl.u32 %v578, 7
      %v580 = vsub.s32 0, %v579
      %v581 = vrot.slane %v417, %v580
      %v582 = vmul.f32 %v421, %v581
      %v583 = vmul.f32 %v426, %v581
      %v584 = vmul.f32 %v431, %v581
      %v585 = vmul.f32 %v436, %v581
      %v586 = vmul.f32 %v441, %v581
      %v587 = vmul.f32 %v446, %v581
      %v588 = vmul.f32 %v451, %v581
      %v589 = vmul.f32 %v456, %v581
      %v590 = vmul.f32 %v461, %v581
      %v591 = vmul.f32 %v466, %v581
      %v592 = vmul.f32 %v471, %v581
      %v593 = vmul.f32 %v476, %v581
      %v594 = vmul.f32 %v481, %v581
      %v595 = vmul.f32 %v486, %v581
      %v596 = vmul.f32 %v491, %v581
      %v597 = vmul.f32 %v496, %v581
      %v598 = vmul.f32 %v501, %v581
      %v599 = vmul.f32 %v506, %v581
      %v600 = vmul.f32 %v511, %v581
      %v601 = vmul.f32 %v516, %v581
      %v602 = vmul.f32 %v521, %v581
      %v603 = vmul.f32 %v526, %v581
      %v604 = vmul.f32 %v531, %v581
      %v605 = vmul.f32 %v536, %v581
      %v606 = vmul.f32 %v541, %v581
      %v607 = vmul.f32 %v546, %v581
      %v608 = vmul.f32 %v551, %v581
      %v609 = vmul.f32 %v556, %v581
      %v610 = vmul.f32 %v561, %v581
      %v611 = vmul.f32 %v566, %v581
      %v612 = vmul.f32 %v571, %v581
      %v613 = vmul.f32 %v576, %v581
      %v614 = vadd.f32 %v582, 0.0
      %v615 = vadd.f32 %v583, 0.0
      %v616 = vadd.f32 %v584, 0.0
      %v617 = vadd.f32 %v585, 0.0
      %v618 = vadd.f32 %v586, 0.0
      %v619 = vadd.f32 %v587, 0.0
      %v620 = vadd.f32 %v588, 0.0
      %v621 = vadd.f32 %v589, 0.0
      %v622 = vadd.f32 %v590, 0.0
      %v623 = vadd.f32 %v591, 0.0
      %v624 = vadd.f32 %v592, 0.0
      %v625 = vadd.f32 %v593, 0.0
      %v626 = vadd.f32 %v594, 0.0
      %v627 = vadd.f32 %v595, 0.0
      %v628 = vadd.f32 %v596, 0.0
      %v629 = vadd.f32 %v597, 0.0
      %v630 = vadd.f32 %v598, 0.0
      %v631 = vadd.f32 %v599, 0.0
      %v632 = vadd.f32 %v600, 0.0
      %v633 = vadd.f32 %v601, 0.0
      %v634 = vadd.f32 %v602, 0.0
      %v635 = vadd.f32 %v603, 0.0
      %v636 = vadd.f32 %v604, 0.0
      %v637 = vadd.f32 %v605, 0.0
      %v638 = vadd.f32 %v606, 0.0
      %v639 = vadd.f32 %v607, 0.0
      %v640 = vadd.f32 %v608, 0.0
      %v641 = vadd.f32 %v609, 0.0
      %v642 = vadd.f32 %v610, 0.0
      %v643 = vadd.f32 %v611, 0.0
      %v644 = vadd.f32 %v612, 0.0
      %v645 = vadd.f32 %v613, 0.0
      %v646 = vld [vmem:[%s380 + $0x1] sm:$0xff]
      %v647 = vld [vmem:[%s380 + $0x9] sm:$0xff]
      %v648 = vld [vmem:[%s380 + $0x19] sm:$0xff]
      %v649 = vld [vmem:[%s380 + $0x21] sm:$0xff]
      %v650 = vld [vmem:[%s380 + $0x31] sm:$0xff]
      %v651 = vld [vmem:[%s380 + $0x39] sm:$0xff]
      %v652 = vld [vmem:[%s380 + $0x49] sm:$0xff]
      %v653 = vld [vmem:[%s380 + $0x51] sm:$0xff]
      %v654 = vld [vmem:[%s380 + $0x61] sm:$0xff]
      %v655 = vld [vmem:[%s380 + $0x69] sm:$0xff]
      %v656 = vld [vmem:[%s380 + $0x79] sm:$0xff]
      %v657 = vld [vmem:[%s380 + $0x81] sm:$0xff]
      %v658 = vld [vmem:[%s380 + $0x91] sm:$0xff]
      %v659 = vld [vmem:[%s380 + $0x99] sm:$0xff]
      %v660 = vld [vmem:[%s380 + $0xa9] sm:$0xff]
      %v661 = vld [vmem:[%s380 + $0xb1] sm:$0xff]
      %v662 = vld [vmem:[%s380 + $0xc1] sm:$0xff]
      %v663 = vld [vmem:[%s380 + $0xc9] sm:$0xff]
      %v664 = vld [vmem:[%s380 + $0xd9] sm:$0xff]
      %v665 = vld [vmem:[%s380 + $0xe1] sm:$0xff]
      %v666 = vld [vmem:[%s380 + $0xf1] sm:$0xff]
      %v667 = vld [vmem:[%s380 + $0xf9] sm:$0xff]
      %v668 = vld [vmem:[%s380 + $0x109] sm:$0xff]
      %v669 = vld [vmem:[%s380 + $0x111] sm:$0xff]
      %v670 = vld [vmem:[%s380 + $0x121] sm:$0xff]
      %v671 = vld [vmem:[%s380 + $0x129] sm:$0xff]
      %v672 = vld [vmem:[%s380 + $0x139] sm:$0xff]
      %v673 = vld [vmem:[%s380 + $0x141] sm:$0xff]
      %v674 = vld [vmem:[%s380 + $0x151] sm:$0xff]
      %v675 = vld [vmem:[%s380 + $0x159] sm:$0xff]
      %v676 = vld [vmem:[%s380 + $0x169] sm:$0xff]
      %v677 = vld [vmem:[%s380 + $0x171] sm:$0xff]
      %v678 = vld [vmem:[%s1 + $0x1] sm:$0x1]
      %680 = vset.pattern.permute.xlu0 0
      %681 = vperm.xlu0 %680, %v646
      %v682 = vpop.permute.xlu0 %681
      %685 = vset.pattern.permute.xlu0 0
      %686 = vperm.xlu0 %685, %v647
      %v687 = vpop.permute.xlu0 %686
      %690 = vset.pattern.permute.xlu0 0
      %691 = vperm.xlu0 %690, %v648
      %v692 = vpop.permute.xlu0 %691
      %695 = vset.pattern.permute.xlu0 0
      %696 = vperm.xlu0 %695, %v649
      %v697 = vpop.permute.xlu0 %696
      %700 = vset.pattern.permute.xlu0 0
      %701 = vperm.xlu0 %700, %v650
      %v702 = vpop.permute.xlu0 %701
      %705 = vset.pattern.permute.xlu0 0
      %706 = vperm.xlu0 %705, %v651
      %v707 = vpop.permute.xlu0 %706
      %710 = vset.pattern.permute.xlu0 0
      %711 = vperm.xlu0 %710, %v652
      %v712 = vpop.permute.xlu0 %711
      %715 = vset.pattern.permute.xlu0 0
      %716 = vperm.xlu0 %715, %v653
      %v717 = vpop.permute.xlu0 %716
      %720 = vset.pattern.permute.xlu0 0
      %721 = vperm.xlu0 %720, %v654
      %v722 = vpop.permute.xlu0 %721
      %725 = vset.pattern.permute.xlu0 0
      %726 = vperm.xlu0 %725, %v655
      %v727 = vpop.permute.xlu0 %726
      %730 = vset.pattern.permute.xlu0 0
      %731 = vperm.xlu0 %730, %v656
      %v732 = vpop.permute.xlu0 %731
      %735 = vset.pattern.permute.xlu0 0
      %736 = vperm.xlu0 %735, %v657
      %v737 = vpop.permute.xlu0 %736
      %740 = vset.pattern.permute.xlu0 0
      %741 = vperm.xlu0 %740, %v658
      %v742 = vpop.permute.xlu0 %741
      %745 = vset.pattern.permute.xlu0 0
      %746 = vperm.xlu0 %745, %v659
      %v747 = vpop.permute.xlu0 %746
      %750 = vset.pattern.permute.xlu0 0
      %751 = vperm.xlu0 %750, %v660
      %v752 = vpop.permute.xlu0 %751
      %755 = vset.pattern.permute.xlu0 0
      %756 = vperm.xlu0 %755, %v661
      %v757 = vpop.permute.xlu0 %756
      %760 = vset.pattern.permute.xlu0 0
      %761 = vperm.xlu0 %760, %v662
      %v762 = vpop.permute.xlu0 %761
      %765 = vset.pattern.permute.xlu0 0
      %766 = vperm.xlu0 %765, %v663
      %v767 = vpop.permute.xlu0 %766
      %770 = vset.pattern.permute.xlu0 0
      %771 = vperm.xlu0 %770, %v664
      %v772 = vpop.permute.xlu0 %771
      %775 = vset.pattern.permute.xlu0 0
      %776 = vperm.xlu0 %775, %v665
      %v777 = vpop.permute.xlu0 %776
      %780 = vset.pattern.permute.xlu0 0
      %781 = vperm.xlu0 %780, %v666
      %v782 = vpop.permute.xlu0 %781
      %785 = vset.pattern.permute.xlu0 0
      %786 = vperm.xlu0 %785, %v667
      %v787 = vpop.permute.xlu0 %786
      %790 = vset.pattern.permute.xlu0 0
      %791 = vperm.xlu0 %790, %v668
      %v792 = vpop.permute.xlu0 %791
      %795 = vset.pattern.permute.xlu0 0
      %796 = vperm.xlu0 %795, %v669
      %v797 = vpop.permute.xlu0 %796
      %800 = vset.pattern.permute.xlu0 0
      %801 = vperm.xlu0 %800, %v670
      %v802 = vpop.permute.xlu0 %801
      %805 = vset.pattern.permute.xlu0 0
      %806 = vperm.xlu0 %805, %v671
      %v807 = vpop.permute.xlu0 %806
      %810 = vset.pattern.permute.xlu0 0
      %811 = vperm.xlu0 %810, %v672
      %v812 = vpop.permute.xlu0 %811
      %815 = vset.pattern.permute.xlu0 0
      %816 = vperm.xlu0 %815, %v673
      %v817 = vpop.permute.xlu0 %816
      %820 = vset.pattern.permute.xlu0 0
      %821 = vperm.xlu0 %820, %v674
      %v822 = vpop.permute.xlu0 %821
      %825 = vset.pattern.permute.xlu0 0
      %826 = vperm.xlu0 %825, %v675
      %v827 = vpop.permute.xlu0 %826
      %830 = vset.pattern.permute.xlu0 0
      %831 = vperm.xlu0 %830, %v676
      %v832 = vpop.permute.xlu0 %831
      %835 = vset.pattern.permute.xlu0 0
      %836 = vperm.xlu0 %835, %v677
      %v837 = vpop.permute.xlu0 %836
      %v839 = vlaneseq
      %v840 = vshrl.u32 %v839, 7
      %v841 = vsub.s32 0, %v840
      %v842 = vrot.slane %v678, %v841
      %v843 = vmul.f32 %v682, %v842
      %v844 = vmul.f32 %v687, %v842
      %v845 = vmul.f32 %v692, %v842
      %v846 = vmul.f32 %v697, %v842
      %v847 = vmul.f32 %v702, %v842
      %v848 = vmul.f32 %v707, %v842
      %v849 = vmul.f32 %v712, %v842
      %v850 = vmul.f32 %v717, %v842
      %v851 = vmul.f32 %v722, %v842
      %v852 = vmul.f32 %v727, %v842
      %v853 = vmul.f32 %v732, %v842
      %v854 = vmul.f32 %v737, %v842
      %v855 = vmul.f32 %v742, %v842
      %v856 = vmul.f32 %v747, %v842
      %v857 = vmul.f32 %v752, %v842
      %v858 = vmul.f32 %v757, %v842
      %v859 = vmul.f32 %v762, %v842
      %v860 = vmul.f32 %v767, %v842
      %v861 = vmul.f32 %v772, %v842
      %v862 = vmul.f32 %v777, %v842
      %v863 = vmul.f32 %v782, %v842
      %v864 = vmul.f32 %v787, %v842
      %v865 = vmul.f32 %v792, %v842
      %v866 = vmul.f32 %v797, %v842
      %v867 = vmul.f32 %v802, %v842
      %v868 = vmul.f32 %v807, %v842
      %v869 = vmul.f32 %v812, %v842
      %v870 = vmul.f32 %v817, %v842
      %v871 = vmul.f32 %v822, %v842
      %v872 = vmul.f32 %v827, %v842
      %v873 = vmul.f32 %v832, %v842
      %v874 = vmul.f32 %v837, %v842
      %v875 = vadd.f32 %v614, %v843
      %v876 = vadd.f32 %v615, %v844
      %v877 = vadd.f32 %v616, %v845
      %v878 = vadd.f32 %v617, %v846
      %v879 = vadd.f32 %v618, %v847
      %v880 = vadd.f32 %v619, %v848
      %v881 = vadd.f32 %v620, %v849
      %v882 = vadd.f32 %v621, %v850
      %v883 = vadd.f32 %v622, %v851
      %v884 = vadd.f32 %v623, %v852
      %v885 = vadd.f32 %v624, %v853
      %v886 = vadd.f32 %v625, %v854
      %v887 = vadd.f32 %v626, %v855
      %v888 = vadd.f32 %v627, %v856
      %v889 = vadd.f32 %v628, %v857
      %v890 = vadd.f32 %v629, %v858
      %v891 = vadd.f32 %v630, %v859
      %v892 = vadd.f32 %v631, %v860
      %v893 = vadd.f32 %v632, %v861
      %v894 = vadd.f32 %v633, %v862
      %v895 = vadd.f32 %v634, %v863
      %v896 = vadd.f32 %v635, %v864
      %v897 = vadd.f32 %v636, %v865
      %v898 = vadd.f32 %v637, %v866
      %v899 = vadd.f32 %v638, %v867
      %v900 = vadd.f32 %v639, %v868
      %v901 = vadd.f32 %v640, %v869
      %v902 = vadd.f32 %v641, %v870
      %v903 = vadd.f32 %v642, %v871
      %v904 = vadd.f32 %v643, %v872
      %v905 = vadd.f32 %v644, %v873
      %v906 = vadd.f32 %v645, %v874
      %v907 = vld [vmem:[%s380 + $0x2] sm:$0xff]
      %v908 = vld [vmem:[%s380 + $0xa] sm:$0xff]
      %v909 = vld [vmem:[%s380 + $0x1a] sm:$0xff]
      %v910 = vld [vmem:[%s380 + $0x22] sm:$0xff]
      %v911 = vld [vmem:[%s380 + $0x32] sm:$0xff]
      %v912 = vld [vmem:[%s380 + $0x3a] sm:$0xff]
      %v913 = vld [vmem:[%s380 + $0x4a] sm:$0xff]
      %v914 = vld [vmem:[%s380 + $0x52] sm:$0xff]
      %v915 = vld [vmem:[%s380 + $0x62] sm:$0xff]
      %v916 = vld [vmem:[%s380 + $0x6a] sm:$0xff]
      %v917 = vld [vmem:[%s380 + $0x7a] sm:$0xff]
      %v918 = vld [vmem:[%s380 + $0x82] sm:$0xff]
      %v919 = vld [vmem:[%s380 + $0x92] sm:$0xff]
      %v920 = vld [vmem:[%s380 + $0x9a] sm:$0xff]
      %v921 = vld [vmem:[%s380 + $0xaa] sm:$0xff]
      %v922 = vld [vmem:[%s380 + $0xb2] sm:$0xff]
      %v923 = vld [vmem:[%s380 + $0xc2] sm:$0xff]
      %v924 = vld [vmem:[%s380 + $0xca] sm:$0xff]
      %v925 = vld [vmem:[%s380 + $0xda] sm:$0xff]
      %v926 = vld [vmem:[%s380 + $0xe2] sm:$0xff]
      %v927 = vld [vmem:[%s380 + $0xf2] sm:$0xff]
      %v928 = vld [vmem:[%s380 + $0xfa] sm:$0xff]
      %v929 = vld [vmem:[%s380 + $0x10a] sm:$0xff]
      %v930 = vld [vmem:[%s380 + $0x112] sm:$0xff]
      %v931 = vld [vmem:[%s380 + $0x122] sm:$0xff]
      %v932 = vld [vmem:[%s380 + $0x12a] sm:$0xff]
      %v933 = vld [vmem:[%s380 + $0x13a] sm:$0xff]
      %v934 = vld [vmem:[%s380 + $0x142] sm:$0xff]
      %v935 = vld [vmem:[%s380 + $0x152] sm:$0xff]
      %v936 = vld [vmem:[%s380 + $0x15a] sm:$0xff]
      %v937 = vld [vmem:[%s380 + $0x16a] sm:$0xff]
      %v938 = vld [vmem:[%s380 + $0x172] sm:$0xff]
      %v939 = vld [vmem:[%s1 + $0x2] sm:$0x1]
      %941 = vset.pattern.permute.xlu0 0
      %942 = vperm.xlu0 %941, %v907
      %v943 = vpop.permute.xlu0 %942
      %946 = vset.pattern.permute.xlu0 0
      %947 = vperm.xlu0 %946, %v908
      %v948 = vpop.permute.xlu0 %947
      %951 = vset.pattern.permute.xlu0 0
      %952 = vperm.xlu0 %951, %v909
      %v953 = vpop.permute.xlu0 %952
      %956 = vset.pattern.permute.xlu0 0
      %957 = vperm.xlu0 %956, %v910
      %v958 = vpop.permute.xlu0 %957
      %961 = vset.pattern.permute.xlu0 0
      %962 = vperm.xlu0 %961, %v911
      %v963 = vpop.permute.xlu0 %962
      %966 = vset.pattern.permute.xlu0 0
      %967 = vperm.xlu0 %966, %v912
      %v968 = vpop.permute.xlu0 %967
      %971 = vset.pattern.permute.xlu0 0
      %972 = vperm.xlu0 %971, %v913
      %v973 = vpop.permute.xlu0 %972
      %976 = vset.pattern.permute.xlu0 0
      %977 = vperm.xlu0 %976, %v914
      %v978 = vpop.permute.xlu0 %977
      %981 = vset.pattern.permute.xlu0 0
      %982 = vperm.xlu0 %981, %v915
      %v983 = vpop.permute.xlu0 %982
      %986 = vset.pattern.permute.xlu0 0
      %987 = vperm.xlu0 %986, %v916
      %v988 = vpop.permute.xlu0 %987
      %991 = vset.pattern.permute.xlu0 0
      %992 = vperm.xlu0 %991, %v917
      %v993 = vpop.permute.xlu0 %992
      %996 = vset.pattern.permute.xlu0 0
      %997 = vperm.xlu0 %996, %v918
      %v998 = vpop.permute.xlu0 %997
      %1001 = vset.pattern.permute.xlu0 0
      %1002 = vperm.xlu0 %1001, %v919
      %v1003 = vpop.permute.xlu0 %1002
      %1006 = vset.pattern.permute.xlu0 0
      %1007 = vperm.xlu0 %1006, %v920
      %v1008 = vpop.permute.xlu0 %1007
      %1011 = vset.pattern.permute.xlu0 0
      %1012 = vperm.xlu0 %1011, %v921
      %v1013 = vpop.permute.xlu0 %1012
      %1016 = vset.pattern.permute.xlu0 0
      %1017 = vperm.xlu0 %1016, %v922
      %v1018 = vpop.permute.xlu0 %1017
      %1021 = vset.pattern.permute.xlu0 0
      %1022 = vperm.xlu0 %1021, %v923
      %v1023 = vpop.permute.xlu0 %1022
      %1026 = vset.pattern.permute.xlu0 0
      %1027 = vperm.xlu0 %1026, %v924
      %v1028 = vpop.permute.xlu0 %1027
      %1031 = vset.pattern.permute.xlu0 0
      %1032 = vperm.xlu0 %1031, %v925
      %v1033 = vpop.permute.xlu0 %1032
      %1036 = vset.pattern.permute.xlu0 0
      %1037 = vperm.xlu0 %1036, %v926
      %v1038 = vpop.permute.xlu0 %1037
      %1041 = vset.pattern.permute.xlu0 0
      %1042 = vperm.xlu0 %1041, %v927
      %v1043 = vpop.permute.xlu0 %1042
      %1046 = vset.pattern.permute.xlu0 0
      %1047 = vperm.xlu0 %1046, %v928
      %v1048 = vpop.permute.xlu0 %1047
      %1051 = vset.pattern.permute.xlu0 0
      %1052 = vperm.xlu0 %1051, %v929
      %v1053 = vpop.permute.xlu0 %1052
      %1056 = vset.pattern.permute.xlu0 0
      %1057 = vperm.xlu0 %1056, %v930
      %v1058 = vpop.permute.xlu0 %1057
      %1061 = vset.pattern.permute.xlu0 0
      %1062 = vperm.xlu0 %1061, %v931
      %v1063 = vpop.permute.xlu0 %1062
      %1066 = vset.pattern.permute.xlu0 0
      %1067 = vperm.xlu0 %1066, %v932
      %v1068 = vpop.permute.xlu0 %1067
      %1071 = vset.pattern.permute.xlu0 0
      %1072 = vperm.xlu0 %1071, %v933
      %v1073 = vpop.permute.xlu0 %1072
      %1076 = vset.pattern.permute.xlu0 0
      %1077 = vperm.xlu0 %1076, %v934
      %v1078 = vpop.permute.xlu0 %1077
      %1081 = vset.pattern.permute.xlu0 0
      %1082 = vperm.xlu0 %1081, %v935
      %v1083 = vpop.permute.xlu0 %1082
      %1086 = vset.pattern.permute.xlu0 0
      %1087 = vperm.xlu0 %1086, %v936
      %v1088 = vpop.permute.xlu0 %1087
      %1091 = vset.pattern.permute.xlu0 0
      %1092 = vperm.xlu0 %1091, %v937
      %v1093 = vpop.permute.xlu0 %1092
      %1096 = vset.pattern.permute.xlu0 0
      %1097 = vperm.xlu0 %1096, %v938
      %v1098 = vpop.permute.xlu0 %1097
      %v1100 = vlaneseq
      %v1101 = vshrl.u32 %v1100, 7
      %v1102 = vsub.s32 0, %v1101
      %v1103 = vrot.slane %v939, %v1102
      %v1104 = vmul.f32 %v943, %v1103
      %v1105 = vmul.f32 %v948, %v1103
      %v1106 = vmul.f32 %v953, %v1103
      %v1107 = vmul.f32 %v958, %v1103
      %v1108 = vmul.f32 %v963, %v1103
      %v1109 = vmul.f32 %v968, %v1103
      %v1110 = vmul.f32 %v973, %v1103
      %v1111 = vmul.f32 %v978, %v1103
      %v1112 = vmul.f32 %v983, %v1103
      %v1113 = vmul.f32 %v988, %v1103
      %v1114 = vmul.f32 %v993, %v1103
      %v1115 = vmul.f32 %v998, %v1103
      %v1116 = vmul.f32 %v1003, %v1103
      %v1117 = vmul.f32 %v1008, %v1103
      %v1118 = vmul.f32 %v1013, %v1103
      %v1119 = vmul.f32 %v1018, %v1103
      %v1120 = vmul.f32 %v1023, %v1103
      %v1121 = vmul.f32 %v1028, %v1103
      %v1122 = vmul.f32 %v1033, %v1103
      %v1123 = vmul.f32 %v1038, %v1103
      %v1124 = vmul.f32 %v1043, %v1103
      %v1125 = vmul.f32 %v1048, %v1103
      %v1126 = vmul.f32 %v1053, %v1103
      %v1127 = vmul.f32 %v1058, %v1103
      %v1128 = vmul.f32 %v1063, %v1103
      %v1129 = vmul.f32 %v1068, %v1103
      %v1130 = vmul.f32 %v1073, %v1103
      %v1131 = vmul.f32 %v1078, %v1103
      %v1132 = vmul.f32 %v1083, %v1103
      %v1133 = vmul.f32 %v1088, %v1103
      %v1134 = vmul.f32 %v1093, %v1103
      %v1135 = vmul.f32 %v1098, %v1103
      %v1136 = vadd.f32 %v875, %v1104
      %v1137 = vadd.f32 %v876, %v1105
      %v1138 = vadd.f32 %v877, %v1106
      %v1139 = vadd.f32 %v878, %v1107
      %v1140 = vadd.f32 %v879, %v1108
      %v1141 = vadd.f32 %v880, %v1109
      %v1142 = vadd.f32 %v881, %v1110
      %v1143 = vadd.f32 %v882, %v1111
      %v1144 = vadd.f32 %v883, %v1112
      %v1145 = vadd.f32 %v884, %v1113
      %v1146 = vadd.f32 %v885, %v1114
      %v1147 = vadd.f32 %v886, %v1115
      %v1148 = vadd.f32 %v887, %v1116
      %v1149 = vadd.f32 %v888, %v1117
      %v1150 = vadd.f32 %v889, %v1118
      %v1151 = vadd.f32 %v890, %v1119
      %v1152 = vadd.f32 %v891, %v1120
      %v1153 = vadd.f32 %v892, %v1121
      %v1154 = vadd.f32 %v893, %v1122
      %v1155 = vadd.f32 %v894, %v1123
      %v1156 = vadd.f32 %v895, %v1124
      %v1157 = vadd.f32 %v896, %v1125
      %v1158 = vadd.f32 %v897, %v1126
      %v1159 = vadd.f32 %v898, %v1127
      %v1160 = vadd.f32 %v899, %v1128
      %v1161 = vadd.f32 %v900, %v1129
      %v1162 = vadd.f32 %v901, %v1130
      %v1163 = vadd.f32 %v902, %v1131
      %v1164 = vadd.f32 %v903, %v1132
      %v1165 = vadd.f32 %v904, %v1133
      %v1166 = vadd.f32 %v905, %v1134
      %v1167 = vadd.f32 %v906, %v1135
      %s1168 = scalar_lea.vmem %s380, 24
      %v1169 = vld [vmem:[%s1168] sm:$0xff]
      %v1170 = vld [vmem:[%s1168 + $0x8] sm:$0xff]
      %v1171 = vld [vmem:[%s1168 + $0x18] sm:$0xff]
      %v1172 = vld [vmem:[%s1168 + $0x20] sm:$0xff]
      %v1173 = vld [vmem:[%s1168 + $0x30] sm:$0xff]
      %v1174 = vld [vmem:[%s1168 + $0x38] sm:$0xff]
      %v1175 = vld [vmem:[%s1168 + $0x48] sm:$0xff]
      %v1176 = vld [vmem:[%s1168 + $0x50] sm:$0xff]
      %v1177 = vld [vmem:[%s1168 + $0x60] sm:$0xff]
      %v1178 = vld [vmem:[%s1168 + $0x68] sm:$0xff]
      %v1179 = vld [vmem:[%s1168 + $0x78] sm:$0xff]
      %v1180 = vld [vmem:[%s1168 + $0x80] sm:$0xff]
      %v1181 = vld [vmem:[%s1168 + $0x90] sm:$0xff]
      %v1182 = vld [vmem:[%s1168 + $0x98] sm:$0xff]
      %v1183 = vld [vmem:[%s1168 + $0xa8] sm:$0xff]
      %v1184 = vld [vmem:[%s1168 + $0xb0] sm:$0xff]
      %v1185 = vld [vmem:[%s1168 + $0xc0] sm:$0xff]
      %v1186 = vld [vmem:[%s1168 + $0xc8] sm:$0xff]
      %v1187 = vld [vmem:[%s1168 + $0xd8] sm:$0xff]
      %v1188 = vld [vmem:[%s1168 + $0xe0] sm:$0xff]
      %v1189 = vld [vmem:[%s1168 + $0xf0] sm:$0xff]
      %v1190 = vld [vmem:[%s1168 + $0xf8] sm:$0xff]
      %v1191 = vld [vmem:[%s1168 + $0x108] sm:$0xff]
      %v1192 = vld [vmem:[%s1168 + $0x110] sm:$0xff]
      %v1193 = vld [vmem:[%s1168 + $0x120] sm:$0xff]
      %v1194 = vld [vmem:[%s1168 + $0x128] sm:$0xff]
      %v1195 = vld [vmem:[%s1168 + $0x138] sm:$0xff]
      %v1196 = vld [vmem:[%s1168 + $0x140] sm:$0xff]
      %v1197 = vld [vmem:[%s1168 + $0x150] sm:$0xff]
      %v1198 = vld [vmem:[%s1168 + $0x158] sm:$0xff]
      %v1199 = vld [vmem:[%s1168 + $0x168] sm:$0xff]
      %v1200 = vld [vmem:[%s1168 + $0x170] sm:$0xff]
      %v1201 = vld [vmem:[%s1 + $0x3] sm:$0x1]
      %1203 = vset.pattern.permute.xlu0 0
      %1204 = vperm.xlu0 %1203, %v1169
      %v1205 = vpop.permute.xlu0 %1204
      %1208 = vset.pattern.permute.xlu0 0
      %1209 = vperm.xlu0 %1208, %v1170
      %v1210 = vpop.permute.xlu0 %1209
      %1213 = vset.pattern.permute.xlu0 0
      %1214 = vperm.xlu0 %1213, %v1171
      %v1215 = vpop.permute.xlu0 %1214
      %1218 = vset.pattern.permute.xlu0 0
      %1219 = vperm.xlu0 %1218, %v1172
      %v1220 = vpop.permute.xlu0 %1219
      %1223 = vset.pattern.permute.xlu0 0
      %1224 = vperm.xlu0 %1223, %v1173
      %v1225 = vpop.permute.xlu0 %1224
      %1228 = vset.pattern.permute.xlu0 0
      %1229 = vperm.xlu0 %1228, %v1174
      %v1230 = vpop.permute.xlu0 %1229
      %1233 = vset.pattern.permute.xlu0 0
      %1234 = vperm.xlu0 %1233, %v1175
      %v1235 = vpop.permute.xlu0 %1234
      %1238 = vset.pattern.permute.xlu0 0
      %1239 = vperm.xlu0 %1238, %v1176
      %v1240 = vpop.permute.xlu0 %1239
      %1243 = vset.pattern.permute.xlu0 0
      %1244 = vperm.xlu0 %1243, %v1177
      %v1245 = vpop.permute.xlu0 %1244
      %1248 = vset.pattern.permute.xlu0 0
      %1249 = vperm.xlu0 %1248, %v1178
      %v1250 = vpop.permute.xlu0 %1249
      %1253 = vset.pattern.permute.xlu0 0
      %1254 = vperm.xlu0 %1253, %v1179
      %v1255 = vpop.permute.xlu0 %1254
      %1258 = vset.pattern.permute.xlu0 0
      %1259 = vperm.xlu0 %1258, %v1180
      %v1260 = vpop.permute.xlu0 %1259
      %1263 = vset.pattern.permute.xlu0 0
      %1264 = vperm.xlu0 %1263, %v1181
      %v1265 = vpop.permute.xlu0 %1264
      %1268 = vset.pattern.permute.xlu0 0
      %1269 = vperm.xlu0 %1268, %v1182
      %v1270 = vpop.permute.xlu0 %1269
      %1273 = vset.pattern.permute.xlu0 0
      %1274 = vperm.xlu0 %1273, %v1183
      %v1275 = vpop.permute.xlu0 %1274
      %1278 = vset.pattern.permute.xlu0 0
      %1279 = vperm.xlu0 %1278, %v1184
      %v1280 = vpop.permute.xlu0 %1279
      %1283 = vset.pattern.permute.xlu0 0
      %1284 = vperm.xlu0 %1283, %v1185
      %v1285 = vpop.permute.xlu0 %1284
      %1288 = vset.pattern.permute.xlu0 0
      %1289 = vperm.xlu0 %1288, %v1186
      %v1290 = vpop.permute.xlu0 %1289
      %1293 = vset.pattern.permute.xlu0 0
      %1294 = vperm.xlu0 %1293, %v1187
      %v1295 = vpop.permute.xlu0 %1294
      %1298 = vset.pattern.permute.xlu0 0
      %1299 = vperm.xlu0 %1298, %v1188
      %v1300 = vpop.permute.xlu0 %1299
      %1303 = vset.pattern.permute.xlu0 0
      %1304 = vperm.xlu0 %1303, %v1189
      %v1305 = vpop.permute.xlu0 %1304
      %1308 = vset.pattern.permute.xlu0 0
      %1309 = vperm.xlu0 %1308, %v1190
      %v1310 = vpop.permute.xlu0 %1309
      %1313 = vset.pattern.permute.xlu0 0
      %1314 = vperm.xlu0 %1313, %v1191
      %v1315 = vpop.permute.xlu0 %1314
      %1318 = vset.pattern.permute.xlu0 0
      %1319 = vperm.xlu0 %1318, %v1192
      %v1320 = vpop.permute.xlu0 %1319
      %1323 = vset.pattern.permute.xlu0 0
      %1324 = vperm.xlu0 %1323, %v1193
      %v1325 = vpop.permute.xlu0 %1324
      %1328 = vset.pattern.permute.xlu0 0
      %1329 = vperm.xlu0 %1328, %v1194
      %v1330 = vpop.permute.xlu0 %1329
      %1333 = vset.pattern.permute.xlu0 0
      %1334 = vperm.xlu0 %1333, %v1195
      %v1335 = vpop.permute.xlu0 %1334
      %1338 = vset.pattern.permute.xlu0 0
      %1339 = vperm.xlu0 %1338, %v1196
      %v1340 = vpop.permute.xlu0 %1339
      %1343 = vset.pattern.permute.xlu0 0
      %1344 = vperm.xlu0 %1343, %v1197
      %v1345 = vpop.permute.xlu0 %1344
      %1348 = vset.pattern.permute.xlu0 0
      %1349 = vperm.xlu0 %1348, %v1198
      %v1350 = vpop.permute.xlu0 %1349
      %1353 = vset.pattern.permute.xlu0 0
      %1354 = vperm.xlu0 %1353, %v1199
      %v1355 = vpop.permute.xlu0 %1354
      %1358 = vset.pattern.permute.xlu0 0
      %1359 = vperm.xlu0 %1358, %v1200
      %v1360 = vpop.permute.xlu0 %1359
      %v1362 = vlaneseq
      %v1363 = vshrl.u32 %v1362, 7
      %v1364 = vsub.s32 0, %v1363
      %v1365 = vrot.slane %v1201, %v1364
      %v1366 = vmul.f32 %v1205, %v1365
      %v1367 = vmul.f32 %v1210, %v1365
      %v1368 = vmul.f32 %v1215, %v1365
      %v1369 = vmul.f32 %v1220, %v1365
      %v1370 = vmul.f32 %v1225, %v1365
      %v1371 = vmul.f32 %v1230, %v1365
      %v1372 = vmul.f32 %v1235, %v1365
      %v1373 = vmul.f32 %v1240, %v1365
      %v1374 = vmul.f32 %v1245, %v1365
      %v1375 = vmul.f32 %v1250, %v1365
      %v1376 = vmul.f32 %v1255, %v1365
      %v1377 = vmul.f32 %v1260, %v1365
      %v1378 = vmul.f32 %v1265, %v1365
      %v1379 = vmul.f32 %v1270, %v1365
      %v1380 = vmul.f32 %v1275, %v1365
      %v1381 = vmul.f32 %v1280, %v1365
      %v1382 = vmul.f32 %v1285, %v1365
      %v1383 = vmul.f32 %v1290, %v1365
      %v1384 = vmul.f32 %v1295, %v1365
      %v1385 = vmul.f32 %v1300, %v1365
      %v1386 = vmul.f32 %v1305, %v1365
      %v1387 = vmul.f32 %v1310, %v1365
      %v1388 = vmul.f32 %v1315, %v1365
      %v1389 = vmul.f32 %v1320, %v1365
      %v1390 = vmul.f32 %v1325, %v1365
      %v1391 = vmul.f32 %v1330, %v1365
      %v1392 = vmul.f32 %v1335, %v1365
      %v1393 = vmul.f32 %v1340, %v1365
      %v1394 = vmul.f32 %v1345, %v1365
      %v1395 = vmul.f32 %v1350, %v1365
      %v1396 = vmul.f32 %v1355, %v1365
      %v1397 = vmul.f32 %v1360, %v1365
      %v1398 = vadd.f32 %v1136, %v1366
      %v1399 = vadd.f32 %v1137, %v1367
      %v1400 = vadd.f32 %v1138, %v1368
      %v1401 = vadd.f32 %v1139, %v1369
      %v1402 = vadd.f32 %v1140, %v1370
      %v1403 = vadd.f32 %v1141, %v1371
      %v1404 = vadd.f32 %v1142, %v1372
      %v1405 = vadd.f32 %v1143, %v1373
      %v1406 = vadd.f32 %v1144, %v1374
      %v1407 = vadd.f32 %v1145, %v1375
      %v1408 = vadd.f32 %v1146, %v1376
      %v1409 = vadd.f32 %v1147, %v1377
      %v1410 = vadd.f32 %v1148, %v1378
      %v1411 = vadd.f32 %v1149, %v1379
      %v1412 = vadd.f32 %v1150, %v1380
      %v1413 = vadd.f32 %v1151, %v1381
      %v1414 = vadd.f32 %v1152, %v1382
      %v1415 = vadd.f32 %v1153, %v1383
      %v1416 = vadd.f32 %v1154, %v1384
      %v1417 = vadd.f32 %v1155, %v1385
      %v1418 = vadd.f32 %v1156, %v1386
      %v1419 = vadd.f32 %v1157, %v1387
      %v1420 = vadd.f32 %v1158, %v1388
      %v1421 = vadd.f32 %v1159, %v1389
      %v1422 = vadd.f32 %v1160, %v1390
      %v1423 = vadd.f32 %v1161, %v1391
      %v1424 = vadd.f32 %v1162, %v1392
      %v1425 = vadd.f32 %v1163, %v1393
      %v1426 = vadd.f32 %v1164, %v1394
      %v1427 = vadd.f32 %v1165, %v1395
      %v1428 = vadd.f32 %v1166, %v1396
      %v1429 = vadd.f32 %v1167, %v1397
      %v1430 = vld [vmem:[%s1168 + $0x1] sm:$0xff]
      %v1431 = vld [vmem:[%s1168 + $0x9] sm:$0xff]
      %v1432 = vld [vmem:[%s1168 + $0x19] sm:$0xff]
      %v1433 = vld [vmem:[%s1168 + $0x21] sm:$0xff]
      %v1434 = vld [vmem:[%s1168 + $0x31] sm:$0xff]
      %v1435 = vld [vmem:[%s1168 + $0x39] sm:$0xff]
      %v1436 = vld [vmem:[%s1168 + $0x49] sm:$0xff]
      %v1437 = vld [vmem:[%s1168 + $0x51] sm:$0xff]
      %v1438 = vld [vmem:[%s1168 + $0x61] sm:$0xff]
      %v1439 = vld [vmem:[%s1168 + $0x69] sm:$0xff]
      %v1440 = vld [vmem:[%s1168 + $0x79] sm:$0xff]
      %v1441 = vld [vmem:[%s1168 + $0x81] sm:$0xff]
      %v1442 = vld [vmem:[%s1168 + $0x91] sm:$0xff]
      %v1443 = vld [vmem:[%s1168 + $0x99] sm:$0xff]
      %v1444 = vld [vmem:[%s1168 + $0xa9] sm:$0xff]
      %v1445 = vld [vmem:[%s1168 + $0xb1] sm:$0xff]
      %v1446 = vld [vmem:[%s1168 + $0xc1] sm:$0xff]
      %v1447 = vld [vmem:[%s1168 + $0xc9] sm:$0xff]
      %v1448 = vld [vmem:[%s1168 + $0xd9] sm:$0xff]
      %v1449 = vld [vmem:[%s1168 + $0xe1] sm:$0xff]
      %v1450 = vld [vmem:[%s1168 + $0xf1] sm:$0xff]
      %v1451 = vld [vmem:[%s1168 + $0xf9] sm:$0xff]
      %v1452 = vld [vmem:[%s1168 + $0x109] sm:$0xff]
      %v1453 = vld [vmem:[%s1168 + $0x111] sm:$0xff]
      %v1454 = vld [vmem:[%s1168 + $0x121] sm:$0xff]
      %v1455 = vld [vmem:[%s1168 + $0x129] sm:$0xff]
      %v1456 = vld [vmem:[%s1168 + $0x139] sm:$0xff]
      %v1457 = vld [vmem:[%s1168 + $0x141] sm:$0xff]
      %v1458 = vld [vmem:[%s1168 + $0x151] sm:$0xff]
      %v1459 = vld [vmem:[%s1168 + $0x159] sm:$0xff]
      %v1460 = vld [vmem:[%s1168 + $0x169] sm:$0xff]
      %v1461 = vld [vmem:[%s1168 + $0x171] sm:$0xff]
      %v1462 = vld [vmem:[%s1 + $0x4] sm:$0x1]
      %1464 = vset.pattern.permute.xlu0 0
      %1465 = vperm.xlu0 %1464, %v1430
      %v1466 = vpop.permute.xlu0 %1465
      %1469 = vset.pattern.permute.xlu0 0
      %1470 = vperm.xlu0 %1469, %v1431
      %v1471 = vpop.permute.xlu0 %1470
      %1474 = vset.pattern.permute.xlu0 0
      %1475 = vperm.xlu0 %1474, %v1432
      %v1476 = vpop.permute.xlu0 %1475
      %1479 = vset.pattern.permute.xlu0 0
      %1480 = vperm.xlu0 %1479, %v1433
      %v1481 = vpop.permute.xlu0 %1480
      %1484 = vset.pattern.permute.xlu0 0
      %1485 = vperm.xlu0 %1484, %v1434
      %v1486 = vpop.permute.xlu0 %1485
      %1489 = vset.pattern.permute.xlu0 0
      %1490 = vperm.xlu0 %1489, %v1435
      %v1491 = vpop.permute.xlu0 %1490
      %1494 = vset.pattern.permute.xlu0 0
      %1495 = vperm.xlu0 %1494, %v1436
      %v1496 = vpop.permute.xlu0 %1495
      %1499 = vset.pattern.permute.xlu0 0
      %1500 = vperm.xlu0 %1499, %v1437
      %v1501 = vpop.permute.xlu0 %1500
      %1504 = vset.pattern.permute.xlu0 0
      %1505 = vperm.xlu0 %1504, %v1438
      %v1506 = vpop.permute.xlu0 %1505
      %1509 = vset.pattern.permute.xlu0 0
      %1510 = vperm.xlu0 %1509, %v1439
      %v1511 = vpop.permute.xlu0 %1510
      %1514 = vset.pattern.permute.xlu0 0
      %1515 = vperm.xlu0 %1514, %v1440
      %v1516 = vpop.permute.xlu0 %1515
      %1519 = vset.pattern.permute.xlu0 0
      %1520 = vperm.xlu0 %1519, %v1441
      %v1521 = vpop.permute.xlu0 %1520
      %1524 = vset.pattern.permute.xlu0 0
      %1525 = vperm.xlu0 %1524, %v1442
      %v1526 = vpop.permute.xlu0 %1525
      %1529 = vset.pattern.permute.xlu0 0
      %1530 = vperm.xlu0 %1529, %v1443
      %v1531 = vpop.permute.xlu0 %1530
      %1534 = vset.pattern.permute.xlu0 0
      %1535 = vperm.xlu0 %1534, %v1444
      %v1536 = vpop.permute.xlu0 %1535
      %1539 = vset.pattern.permute.xlu0 0
      %1540 = vperm.xlu0 %1539, %v1445
      %v1541 = vpop.permute.xlu0 %1540
      %1544 = vset.pattern.permute.xlu0 0
      %1545 = vperm.xlu0 %1544, %v1446
      %v1546 = vpop.permute.xlu0 %1545
      %1549 = vset.pattern.permute.xlu0 0
      %1550 = vperm.xlu0 %1549, %v1447
      %v1551 = vpop.permute.xlu0 %1550
      %1554 = vset.pattern.permute.xlu0 0
      %1555 = vperm.xlu0 %1554, %v1448
      %v1556 = vpop.permute.xlu0 %1555
      %1559 = vset.pattern.permute.xlu0 0
      %1560 = vperm.xlu0 %1559, %v1449
      %v1561 = vpop.permute.xlu0 %1560
      %1564 = vset.pattern.permute.xlu0 0
      %1565 = vperm.xlu0 %1564, %v1450
      %v1566 = vpop.permute.xlu0 %1565
      %1569 = vset.pattern.permute.xlu0 0
      %1570 = vperm.xlu0 %1569, %v1451
      %v1571 = vpop.permute.xlu0 %1570
      %1574 = vset.pattern.permute.xlu0 0
      %1575 = vperm.xlu0 %1574, %v1452
      %v1576 = vpop.permute.xlu0 %1575
      %1579 = vset.pattern.permute.xlu0 0
      %1580 = vperm.xlu0 %1579, %v1453
      %v1581 = vpop.permute.xlu0 %1580
      %1584 = vset.pattern.permute.xlu0 0
      %1585 = vperm.xlu0 %1584, %v1454
      %v1586 = vpop.permute.xlu0 %1585
      %1589 = vset.pattern.permute.xlu0 0
      %1590 = vperm.xlu0 %1589, %v1455
      %v1591 = vpop.permute.xlu0 %1590
      %1594 = vset.pattern.permute.xlu0 0
      %1595 = vperm.xlu0 %1594, %v1456
      %v1596 = vpop.permute.xlu0 %1595
      %1599 = vset.pattern.permute.xlu0 0
      %1600 = vperm.xlu0 %1599, %v1457
      %v1601 = vpop.permute.xlu0 %1600
      %1604 = vset.pattern.permute.xlu0 0
      %1605 = vperm.xlu0 %1604, %v1458
      %v1606 = vpop.permute.xlu0 %1605
      %1609 = vset.pattern.permute.xlu0 0
      %1610 = vperm.xlu0 %1609, %v1459
      %v1611 = vpop.permute.xlu0 %1610
      %1614 = vset.pattern.permute.xlu0 0
      %1615 = vperm.xlu0 %1614, %v1460
      %v1616 = vpop.permute.xlu0 %1615
      %1619 = vset.pattern.permute.xlu0 0
      %1620 = vperm.xlu0 %1619, %v1461
      %v1621 = vpop.permute.xlu0 %1620
      %v1623 = vlaneseq
      %v1624 = vshrl.u32 %v1623, 7
      %v1625 = vsub.s32 0, %v1624
      %v1626 = vrot.slane %v1462, %v1625
      %v1627 = vmul.f32 %v1466, %v1626
      %v1628 = vmul.f32 %v1471, %v1626
      %v1629 = vmul.f32 %v1476, %v1626
      %v1630 = vmul.f32 %v1481, %v1626
      %v1631 = vmul.f32 %v1486, %v1626
      %v1632 = vmul.f32 %v1491, %v1626
      %v1633 = vmul.f32 %v1496, %v1626
      %v1634 = vmul.f32 %v1501, %v1626
      %v1635 = vmul.f32 %v1506, %v1626
      %v1636 = vmul.f32 %v1511, %v1626
      %v1637 = vmul.f32 %v1516, %v1626
      %v1638 = vmul.f32 %v1521, %v1626
      %v1639 = vmul.f32 %v1526, %v1626
      %v1640 = vmul.f32 %v1531, %v1626
      %v1641 = vmul.f32 %v1536, %v1626
      %v1642 = vmul.f32 %v1541, %v1626
      %v1643 = vmul.f32 %v1546, %v1626
      %v1644 = vmul.f32 %v1551, %v1626
      %v1645 = vmul.f32 %v1556, %v1626
      %v1646 = vmul.f32 %v1561, %v1626
      %v1647 = vmul.f32 %v1566, %v1626
      %v1648 = vmul.f32 %v1571, %v1626
      %v1649 = vmul.f32 %v1576, %v1626
      %v1650 = vmul.f32 %v1581, %v1626
      %v1651 = vmul.f32 %v1586, %v1626
      %v1652 = vmul.f32 %v1591, %v1626
      %v1653 = vmul.f32 %v1596, %v1626
      %v1654 = vmul.f32 %v1601, %v1626
      %v1655 = vmul.f32 %v1606, %v1626
      %v1656 = vmul.f32 %v1611, %v1626
      %v1657 = vmul.f32 %v1616, %v1626
      %v1658 = vmul.f32 %v1621, %v1626
      %v1659 = vadd.f32 %v1398, %v1627
      %v1660 = vadd.f32 %v1399, %v1628
      %v1661 = vadd.f32 %v1400, %v1629
      %v1662 = vadd.f32 %v1401, %v1630
      %v1663 = vadd.f32 %v1402, %v1631
      %v1664 = vadd.f32 %v1403, %v1632
      %v1665 = vadd.f32 %v1404, %v1633
      %v1666 = vadd.f32 %v1405, %v1634
      %v1667 = vadd.f32 %v1406, %v1635
      %v1668 = vadd.f32 %v1407, %v1636
      %v1669 = vadd.f32 %v1408, %v1637
      %v1670 = vadd.f32 %v1409, %v1638
      %v1671 = vadd.f32 %v1410, %v1639
      %v1672 = vadd.f32 %v1411, %v1640
      %v1673 = vadd.f32 %v1412, %v1641
      %v1674 = vadd.f32 %v1413, %v1642
      %v1675 = vadd.f32 %v1414, %v1643
      %v1676 = vadd.f32 %v1415, %v1644
      %v1677 = vadd.f32 %v1416, %v1645
      %v1678 = vadd.f32 %v1417, %v1646
      %v1679 = vadd.f32 %v1418, %v1647
      %v1680 = vadd.f32 %v1419, %v1648
      %v1681 = vadd.f32 %v1420, %v1649
      %v1682 = vadd.f32 %v1421, %v1650
      %v1683 = vadd.f32 %v1422, %v1651
      %v1684 = vadd.f32 %v1423, %v1652
      %v1685 = vadd.f32 %v1424, %v1653
      %v1686 = vadd.f32 %v1425, %v1654
      %v1687 = vadd.f32 %v1426, %v1655
      %v1688 = vadd.f32 %v1427, %v1656
      %v1689 = vadd.f32 %v1428, %v1657
      %v1690 = vadd.f32 %v1429, %v1658
      %v1691 = vld [vmem:[%s1168 + $0x2] sm:$0xff]
      %v1692 = vld [vmem:[%s1168 + $0xa] sm:$0xff]
      %v1693 = vld [vmem:[%s1168 + $0x1a] sm:$0xff]
      %v1694 = vld [vmem:[%s1168 + $0x22] sm:$0xff]
      %v1695 = vld [vmem:[%s1168 + $0x32] sm:$0xff]
      %v1696 = vld [vmem:[%s1168 + $0x3a] sm:$0xff]
      %v1697 = vld [vmem:[%s1168 + $0x4a] sm:$0xff]
      %v1698 = vld [vmem:[%s1168 + $0x52] sm:$0xff]
      %v1699 = vld [vmem:[%s1168 + $0x62] sm:$0xff]
      %v1700 = vld [vmem:[%s1168 + $0x6a] sm:$0xff]
      %v1701 = vld [vmem:[%s1168 + $0x7a] sm:$0xff]
      %v1702 = vld [vmem:[%s1168 + $0x82] sm:$0xff]
      %v1703 = vld [vmem:[%s1168 + $0x92] sm:$0xff]
      %v1704 = vld [vmem:[%s1168 + $0x9a] sm:$0xff]
      %v1705 = vld [vmem:[%s1168 + $0xaa] sm:$0xff]
      %v1706 = vld [vmem:[%s1168 + $0xb2] sm:$0xff]
      %v1707 = vld [vmem:[%s1168 + $0xc2] sm:$0xff]
      %v1708 = vld [vmem:[%s1168 + $0xca] sm:$0xff]
      %v1709 = vld [vmem:[%s1168 + $0xda] sm:$0xff]
      %v1710 = vld [vmem:[%s1168 + $0xe2] sm:$0xff]
      %v1711 = vld [vmem:[%s1168 + $0xf2] sm:$0xff]
      %v1712 = vld [vmem:[%s1168 + $0xfa] sm:$0xff]
      %v1713 = vld [vmem:[%s1168 + $0x10a] sm:$0xff]
      %v1714 = vld [vmem:[%s1168 + $0x112] sm:$0xff]
      %v1715 = vld [vmem:[%s1168 + $0x122] sm:$0xff]
      %v1716 = vld [vmem:[%s1168 + $0x12a] sm:$0xff]
      %v1717 = vld [vmem:[%s1168 + $0x13a] sm:$0xff]
      %v1718 = vld [vmem:[%s1168 + $0x142] sm:$0xff]
      %v1719 = vld [vmem:[%s1168 + $0x152] sm:$0xff]
      %v1720 = vld [vmem:[%s1168 + $0x15a] sm:$0xff]
      %v1721 = vld [vmem:[%s1168 + $0x16a] sm:$0xff]
      %v1722 = vld [vmem:[%s1168 + $0x172] sm:$0xff]
      %v1723 = vld [vmem:[%s1 + $0x5] sm:$0x1]
      %1725 = vset.pattern.permute.xlu0 0
      %1726 = vperm.xlu0 %1725, %v1691
      %v1727 = vpop.permute.xlu0 %1726
      %1730 = vset.pattern.permute.xlu0 0
      %1731 = vperm.xlu0 %1730, %v1692
      %v1732 = vpop.permute.xlu0 %1731
      %1735 = vset.pattern.permute.xlu0 0
      %1736 = vperm.xlu0 %1735, %v1693
      %v1737 = vpop.permute.xlu0 %1736
      %1740 = vset.pattern.permute.xlu0 0
      %1741 = vperm.xlu0 %1740, %v1694
      %v1742 = vpop.permute.xlu0 %1741
      %1745 = vset.pattern.permute.xlu0 0
      %1746 = vperm.xlu0 %1745, %v1695
      %v1747 = vpop.permute.xlu0 %1746
      %1750 = vset.pattern.permute.xlu0 0
      %1751 = vperm.xlu0 %1750, %v1696
      %v1752 = vpop.permute.xlu0 %1751
      %1755 = vset.pattern.permute.xlu0 0
      %1756 = vperm.xlu0 %1755, %v1697
      %v1757 = vpop.permute.xlu0 %1756
      %1760 = vset.pattern.permute.xlu0 0
      %1761 = vperm.xlu0 %1760, %v1698
      %v1762 = vpop.permute.xlu0 %1761
      %1765 = vset.pattern.permute.xlu0 0
      %1766 = vperm.xlu0 %1765, %v1699
      %v1767 = vpop.permute.xlu0 %1766
      %1770 = vset.pattern.permute.xlu0 0
      %1771 = vperm.xlu0 %1770, %v1700
      %v1772 = vpop.permute.xlu0 %1771
      %1775 = vset.pattern.permute.xlu0 0
      %1776 = vperm.xlu0 %1775, %v1701
      %v1777 = vpop.permute.xlu0 %1776
      %1780 = vset.pattern.permute.xlu0 0
      %1781 = vperm.xlu0 %1780, %v1702
      %v1782 = vpop.permute.xlu0 %1781
      %1785 = vset.pattern.permute.xlu0 0
      %1786 = vperm.xlu0 %1785, %v1703
      %v1787 = vpop.permute.xlu0 %1786
      %1790 = vset.pattern.permute.xlu0 0
      %1791 = vperm.xlu0 %1790, %v1704
      %v1792 = vpop.permute.xlu0 %1791
      %1795 = vset.pattern.permute.xlu0 0
      %1796 = vperm.xlu0 %1795, %v1705
      %v1797 = vpop.permute.xlu0 %1796
      %1800 = vset.pattern.permute.xlu0 0
      %1801 = vperm.xlu0 %1800, %v1706
      %v1802 = vpop.permute.xlu0 %1801
      %1805 = vset.pattern.permute.xlu0 0
      %1806 = vperm.xlu0 %1805, %v1707
      %v1807 = vpop.permute.xlu0 %1806
      %1810 = vset.pattern.permute.xlu0 0
      %1811 = vperm.xlu0 %1810, %v1708
      %v1812 = vpop.permute.xlu0 %1811
      %1815 = vset.pattern.permute.xlu0 0
      %1816 = vperm.xlu0 %1815, %v1709
      %v1817 = vpop.permute.xlu0 %1816
      %1820 = vset.pattern.permute.xlu0 0
      %1821 = vperm.xlu0 %1820, %v1710
      %v1822 = vpop.permute.xlu0 %1821
      %1825 = vset.pattern.permute.xlu0 0
      %1826 = vperm.xlu0 %1825, %v1711
      %v1827 = vpop.permute.xlu0 %1826
      %1830 = vset.pattern.permute.xlu0 0
      %1831 = vperm.xlu0 %1830, %v1712
      %v1832 = vpop.permute.xlu0 %1831
      %1835 = vset.pattern.permute.xlu0 0
      %1836 = vperm.xlu0 %1835, %v1713
      %v1837 = vpop.permute.xlu0 %1836
      %1840 = vset.pattern.permute.xlu0 0
      %1841 = vperm.xlu0 %1840, %v1714
      %v1842 = vpop.permute.xlu0 %1841
      %1845 = vset.pattern.permute.xlu0 0
      %1846 = vperm.xlu0 %1845, %v1715
      %v1847 = vpop.permute.xlu0 %1846
      %1850 = vset.pattern.permute.xlu0 0
      %1851 = vperm.xlu0 %1850, %v1716
      %v1852 = vpop.permute.xlu0 %1851
      %1855 = vset.pattern.permute.xlu0 0
      %1856 = vperm.xlu0 %1855, %v1717
      %v1857 = vpop.permute.xlu0 %1856
      %1860 = vset.pattern.permute.xlu0 0
      %1861 = vperm.xlu0 %1860, %v1718
      %v1862 = vpop.permute.xlu0 %1861
      %1865 = vset.pattern.permute.xlu0 0
      %1866 = vperm.xlu0 %1865, %v1719
      %v1867 = vpop.permute.xlu0 %1866
      %1870 = vset.pattern.permute.xlu0 0
      %1871 = vperm.xlu0 %1870, %v1720
      %v1872 = vpop.permute.xlu0 %1871
      %1875 = vset.pattern.permute.xlu0 0
      %1876 = vperm.xlu0 %1875, %v1721
      %v1877 = vpop.permute.xlu0 %1876
      %1880 = vset.pattern.permute.xlu0 0
      %1881 = vperm.xlu0 %1880, %v1722
      %v1882 = vpop.permute.xlu0 %1881
      %v1884 = vlaneseq
      %v1885 = vshrl.u32 %v1884, 7
      %v1886 = vsub.s32 0, %v1885
      %v1887 = vrot.slane %v1723, %v1886
      %v1888 = vmul.f32 %v1727, %v1887
      %v1889 = vmul.f32 %v1732, %v1887
      %v1890 = vmul.f32 %v1737, %v1887
      %v1891 = vmul.f32 %v1742, %v1887
      %v1892 = vmul.f32 %v1747, %v1887
      %v1893 = vmul.f32 %v1752, %v1887
      %v1894 = vmul.f32 %v1757, %v1887
      %v1895 = vmul.f32 %v1762, %v1887
      %v1896 = vmul.f32 %v1767, %v1887
      %v1897 = vmul.f32 %v1772, %v1887
      %v1898 = vmul.f32 %v1777, %v1887
      %v1899 = vmul.f32 %v1782, %v1887
      %v1900 = vmul.f32 %v1787, %v1887
      %v1901 = vmul.f32 %v1792, %v1887
      %v1902 = vmul.f32 %v1797, %v1887
      %v1903 = vmul.f32 %v1802, %v1887
      %v1904 = vmul.f32 %v1807, %v1887
      %v1905 = vmul.f32 %v1812, %v1887
      %v1906 = vmul.f32 %v1817, %v1887
      %v1907 = vmul.f32 %v1822, %v1887
      %v1908 = vmul.f32 %v1827, %v1887
      %v1909 = vmul.f32 %v1832, %v1887
      %v1910 = vmul.f32 %v1837, %v1887
      %v1911 = vmul.f32 %v1842, %v1887
      %v1912 = vmul.f32 %v1847, %v1887
      %v1913 = vmul.f32 %v1852, %v1887
      %v1914 = vmul.f32 %v1857, %v1887
      %v1915 = vmul.f32 %v1862, %v1887
      %v1916 = vmul.f32 %v1867, %v1887
      %v1917 = vmul.f32 %v1872, %v1887
      %v1918 = vmul.f32 %v1877, %v1887
      %v1919 = vmul.f32 %v1882, %v1887
      %v1920 = vadd.f32 %v1659, %v1888
      %v1921 = vadd.f32 %v1660, %v1889
      %v1922 = vadd.f32 %v1661, %v1890
      %v1923 = vadd.f32 %v1662, %v1891
      %v1924 = vadd.f32 %v1663, %v1892
      %v1925 = vadd.f32 %v1664, %v1893
      %v1926 = vadd.f32 %v1665, %v1894
      %v1927 = vadd.f32 %v1666, %v1895
      %v1928 = vadd.f32 %v1667, %v1896
      %v1929 = vadd.f32 %v1668, %v1897
      %v1930 = vadd.f32 %v1669, %v1898
      %v1931 = vadd.f32 %v1670, %v1899
      %v1932 = vadd.f32 %v1671, %v1900
      %v1933 = vadd.f32 %v1672, %v1901
      %v1934 = vadd.f32 %v1673, %v1902
      %v1935 = vadd.f32 %v1674, %v1903
      %v1936 = vadd.f32 %v1675, %v1904
      %v1937 = vadd.f32 %v1676, %v1905
      %v1938 = vadd.f32 %v1677, %v1906
      %v1939 = vadd.f32 %v1678, %v1907
      %v1940 = vadd.f32 %v1679, %v1908
      %v1941 = vadd.f32 %v1680, %v1909
      %v1942 = vadd.f32 %v1681, %v1910
      %v1943 = vadd.f32 %v1682, %v1911
      %v1944 = vadd.f32 %v1683, %v1912
      %v1945 = vadd.f32 %v1684, %v1913
      %v1946 = vadd.f32 %v1685, %v1914
      %v1947 = vadd.f32 %v1686, %v1915
      %v1948 = vadd.f32 %v1687, %v1916
      %v1949 = vadd.f32 %v1688, %v1917
      %v1950 = vadd.f32 %v1689, %v1918
      %v1951 = vadd.f32 %v1690, %v1919
      %s1952 = scalar_lea.vmem %s380, 48
      %v1953 = vld [vmem:[%s1952] sm:$0xff]
      %v1954 = vld [vmem:[%s1952 + $0x8] sm:$0xff]
      %v1955 = vld [vmem:[%s1952 + $0x18] sm:$0xff]
      %v1956 = vld [vmem:[%s1952 + $0x20] sm:$0xff]
      %v1957 = vld [vmem:[%s1952 + $0x30] sm:$0xff]
      %v1958 = vld [vmem:[%s1952 + $0x38] sm:$0xff]
      %v1959 = vld [vmem:[%s1952 + $0x48] sm:$0xff]
      %v1960 = vld [vmem:[%s1952 + $0x50] sm:$0xff]
      %v1961 = vld [vmem:[%s1952 + $0x60] sm:$0xff]
      %v1962 = vld [vmem:[%s1952 + $0x68] sm:$0xff]
      %v1963 = vld [vmem:[%s1952 + $0x78] sm:$0xff]
      %v1964 = vld [vmem:[%s1952 + $0x80] sm:$0xff]
      %v1965 = vld [vmem:[%s1952 + $0x90] sm:$0xff]
      %v1966 = vld [vmem:[%s1952 + $0x98] sm:$0xff]
      %v1967 = vld [vmem:[%s1952 + $0xa8] sm:$0xff]
      %v1968 = vld [vmem:[%s1952 + $0xb0] sm:$0xff]
      %v1969 = vld [vmem:[%s1952 + $0xc0] sm:$0xff]
      %v1970 = vld [vmem:[%s1952 + $0xc8] sm:$0xff]
      %v1971 = vld [vmem:[%s1952 + $0xd8] sm:$0xff]
      %v1972 = vld [vmem:[%s1952 + $0xe0] sm:$0xff]
      %v1973 = vld [vmem:[%s1952 + $0xf0] sm:$0xff]
      %v1974 = vld [vmem:[%s1952 + $0xf8] sm:$0xff]
      %v1975 = vld [vmem:[%s1952 + $0x108] sm:$0xff]
      %v1976 = vld [vmem:[%s1952 + $0x110] sm:$0xff]
      %v1977 = vld [vmem:[%s1952 + $0x120] sm:$0xff]
      %v1978 = vld [vmem:[%s1952 + $0x128] sm:$0xff]
      %v1979 = vld [vmem:[%s1952 + $0x138] sm:$0xff]
      %v1980 = vld [vmem:[%s1952 + $0x140] sm:$0xff]
      %v1981 = vld [vmem:[%s1952 + $0x150] sm:$0xff]
      %v1982 = vld [vmem:[%s1952 + $0x158] sm:$0xff]
      %v1983 = vld [vmem:[%s1952 + $0x168] sm:$0xff]
      %v1984 = vld [vmem:[%s1952 + $0x170] sm:$0xff]
      %v1985 = vld [vmem:[%s1 + $0x6] sm:$0x1]
      %1987 = vset.pattern.permute.xlu0 0
      %1988 = vperm.xlu0 %1987, %v1953
      %v1989 = vpop.permute.xlu0 %1988
      %1992 = vset.pattern.permute.xlu0 0
      %1993 = vperm.xlu0 %1992, %v1954
      %v1994 = vpop.permute.xlu0 %1993
      %1997 = vset.pattern.permute.xlu0 0
      %1998 = vperm.xlu0 %1997, %v1955
      %v1999 = vpop.permute.xlu0 %1998
      %2002 = vset.pattern.permute.xlu0 0
      %2003 = vperm.xlu0 %2002, %v1956
      %v2004 = vpop.permute.xlu0 %2003
      %2007 = vset.pattern.permute.xlu0 0
      %2008 = vperm.xlu0 %2007, %v1957
      %v2009 = vpop.permute.xlu0 %2008
      %2012 = vset.pattern.permute.xlu0 0
      %2013 = vperm.xlu0 %2012, %v1958
      %v2014 = vpop.permute.xlu0 %2013
      %2017 = vset.pattern.permute.xlu0 0
      %2018 = vperm.xlu0 %2017, %v1959
      %v2019 = vpop.permute.xlu0 %2018
      %2022 = vset.pattern.permute.xlu0 0
      %2023 = vperm.xlu0 %2022, %v1960
      %v2024 = vpop.permute.xlu0 %2023
      %2027 = vset.pattern.permute.xlu0 0
      %2028 = vperm.xlu0 %2027, %v1961
      %v2029 = vpop.permute.xlu0 %2028
      %2032 = vset.pattern.permute.xlu0 0
      %2033 = vperm.xlu0 %2032, %v1962
      %v2034 = vpop.permute.xlu0 %2033
      %2037 = vset.pattern.permute.xlu0 0
      %2038 = vperm.xlu0 %2037, %v1963
      %v2039 = vpop.permute.xlu0 %2038
      %2042 = vset.pattern.permute.xlu0 0
      %2043 = vperm.xlu0 %2042, %v1964
      %v2044 = vpop.permute.xlu0 %2043
      %2047 = vset.pattern.permute.xlu0 0
      %2048 = vperm.xlu0 %2047, %v1965
      %v2049 = vpop.permute.xlu0 %2048
      %2052 = vset.pattern.permute.xlu0 0
      %2053 = vperm.xlu0 %2052, %v1966
      %v2054 = vpop.permute.xlu0 %2053
      %2057 = vset.pattern.permute.xlu0 0
      %2058 = vperm.xlu0 %2057, %v1967
      %v2059 = vpop.permute.xlu0 %2058
      %2062 = vset.pattern.permute.xlu0 0
      %2063 = vperm.xlu0 %2062, %v1968
      %v2064 = vpop.permute.xlu0 %2063
      %2067 = vset.pattern.permute.xlu0 0
      %2068 = vperm.xlu0 %2067, %v1969
      %v2069 = vpop.permute.xlu0 %2068
      %2072 = vset.pattern.permute.xlu0 0
      %2073 = vperm.xlu0 %2072, %v1970
      %v2074 = vpop.permute.xlu0 %2073
      %2077 = vset.pattern.permute.xlu0 0
      %2078 = vperm.xlu0 %2077, %v1971
      %v2079 = vpop.permute.xlu0 %2078
      %2082 = vset.pattern.permute.xlu0 0
      %2083 = vperm.xlu0 %2082, %v1972
      %v2084 = vpop.permute.xlu0 %2083
      %2087 = vset.pattern.permute.xlu0 0
      %2088 = vperm.xlu0 %2087, %v1973
      %v2089 = vpop.permute.xlu0 %2088
      %2092 = vset.pattern.permute.xlu0 0
      %2093 = vperm.xlu0 %2092, %v1974
      %v2094 = vpop.permute.xlu0 %2093
      %2097 = vset.pattern.permute.xlu0 0
      %2098 = vperm.xlu0 %2097, %v1975
      %v2099 = vpop.permute.xlu0 %2098
      %2102 = vset.pattern.permute.xlu0 0
      %2103 = vperm.xlu0 %2102, %v1976
      %v2104 = vpop.permute.xlu0 %2103
      %2107 = vset.pattern.permute.xlu0 0
      %2108 = vperm.xlu0 %2107, %v1977
      %v2109 = vpop.permute.xlu0 %2108
      %2112 = vset.pattern.permute.xlu0 0
      %2113 = vperm.xlu0 %2112, %v1978
      %v2114 = vpop.permute.xlu0 %2113
      %2117 = vset.pattern.permute.xlu0 0
      %2118 = vperm.xlu0 %2117, %v1979
      %v2119 = vpop.permute.xlu0 %2118
      %2122 = vset.pattern.permute.xlu0 0
      %2123 = vperm.xlu0 %2122, %v1980
      %v2124 = vpop.permute.xlu0 %2123
      %2127 = vset.pattern.permute.xlu0 0
      %2128 = vperm.xlu0 %2127, %v1981
      %v2129 = vpop.permute.xlu0 %2128
      %2132 = vset.pattern.permute.xlu0 0
      %2133 = vperm.xlu0 %2132, %v1982
      %v2134 = vpop.permute.xlu0 %2133
      %2137 = vset.pattern.permute.xlu0 0
      %2138 = vperm.xlu0 %2137, %v1983
      %v2139 = vpop.permute.xlu0 %2138
      %2142 = vset.pattern.permute.xlu0 0
      %2143 = vperm.xlu0 %2142, %v1984
      %v2144 = vpop.permute.xlu0 %2143
      %v2146 = vlaneseq
      %v2147 = vshrl.u32 %v2146, 7
      %v2148 = vsub.s32 0, %v2147
      %v2149 = vrot.slane %v1985, %v2148
      %v2150 = vmul.f32 %v1989, %v2149
      %v2151 = vmul.f32 %v1994, %v2149
      %v2152 = vmul.f32 %v1999, %v2149
      %v2153 = vmul.f32 %v2004, %v2149
      %v2154 = vmul.f32 %v2009, %v2149
      %v2155 = vmul.f32 %v2014, %v2149
      %v2156 = vmul.f32 %v2019, %v2149
      %v2157 = vmul.f32 %v2024, %v2149
      %v2158 = vmul.f32 %v2029, %v2149
      %v2159 = vmul.f32 %v2034, %v2149
      %v2160 = vmul.f32 %v2039, %v2149
      %v2161 = vmul.f32 %v2044, %v2149
      %v2162 = vmul.f32 %v2049, %v2149
      %v2163 = vmul.f32 %v2054, %v2149
      %v2164 = vmul.f32 %v2059, %v2149
      %v2165 = vmul.f32 %v2064, %v2149
      %v2166 = vmul.f32 %v2069, %v2149
      %v2167 = vmul.f32 %v2074, %v2149
      %v2168 = vmul.f32 %v2079, %v2149
      %v2169 = vmul.f32 %v2084, %v2149
      %v2170 = vmul.f32 %v2089, %v2149
      %v2171 = vmul.f32 %v2094, %v2149
      %v2172 = vmul.f32 %v2099, %v2149
      %v2173 = vmul.f32 %v2104, %v2149
      %v2174 = vmul.f32 %v2109, %v2149
      %v2175 = vmul.f32 %v2114, %v2149
      %v2176 = vmul.f32 %v2119, %v2149
      %v2177 = vmul.f32 %v2124, %v2149
      %v2178 = vmul.f32 %v2129, %v2149
      %v2179 = vmul.f32 %v2134, %v2149
      %v2180 = vmul.f32 %v2139, %v2149
      %v2181 = vmul.f32 %v2144, %v2149
      %v2182 = vadd.f32 %v1920, %v2150
      %v2183 = vadd.f32 %v1921, %v2151
      %v2184 = vadd.f32 %v1922, %v2152
      %v2185 = vadd.f32 %v1923, %v2153
      %v2186 = vadd.f32 %v1924, %v2154
      %v2187 = vadd.f32 %v1925, %v2155
      %v2188 = vadd.f32 %v1926, %v2156
      %v2189 = vadd.f32 %v1927, %v2157
      %v2190 = vadd.f32 %v1928, %v2158
      %v2191 = vadd.f32 %v1929, %v2159
      %v2192 = vadd.f32 %v1930, %v2160
      %v2193 = vadd.f32 %v1931, %v2161
      %v2194 = vadd.f32 %v1932, %v2162
      %v2195 = vadd.f32 %v1933, %v2163
      %v2196 = vadd.f32 %v1934, %v2164
      %v2197 = vadd.f32 %v1935, %v2165
      %v2198 = vadd.f32 %v1936, %v2166
      %v2199 = vadd.f32 %v1937, %v2167
      %v2200 = vadd.f32 %v1938, %v2168
      %v2201 = vadd.f32 %v1939, %v2169
      %v2202 = vadd.f32 %v1940, %v2170
      %v2203 = vadd.f32 %v1941, %v2171
      %v2204 = vadd.f32 %v1942, %v2172
      %v2205 = vadd.f32 %v1943, %v2173
      %v2206 = vadd.f32 %v1944, %v2174
      %v2207 = vadd.f32 %v1945, %v2175
      %v2208 = vadd.f32 %v1946, %v2176
      %v2209 = vadd.f32 %v1947, %v2177
      %v2210 = vadd.f32 %v1948, %v2178
      %v2211 = vadd.f32 %v1949, %v2179
      %v2212 = vadd.f32 %v1950, %v2180
      %v2213 = vadd.f32 %v1951, %v2181
      %v2214 = vld [vmem:[%s1952 + $0x1] sm:$0xff]
      %v2215 = vld [vmem:[%s1952 + $0x9] sm:$0xff]
      %v2216 = vld [vmem:[%s1952 + $0x19] sm:$0xff]
      %v2217 = vld [vmem:[%s1952 + $0x21] sm:$0xff]
      %v2218 = vld [vmem:[%s1952 + $0x31] sm:$0xff]
      %v2219 = vld [vmem:[%s1952 + $0x39] sm:$0xff]
      %v2220 = vld [vmem:[%s1952 + $0x49] sm:$0xff]
      %v2221 = vld [vmem:[%s1952 + $0x51] sm:$0xff]
      %v2222 = vld [vmem:[%s1952 + $0x61] sm:$0xff]
      %v2223 = vld [vmem:[%s1952 + $0x69] sm:$0xff]
      %v2224 = vld [vmem:[%s1952 + $0x79] sm:$0xff]
      %v2225 = vld [vmem:[%s1952 + $0x81] sm:$0xff]
      %v2226 = vld [vmem:[%s1952 + $0x91] sm:$0xff]
      %v2227 = vld [vmem:[%s1952 + $0x99] sm:$0xff]
      %v2228 = vld [vmem:[%s1952 + $0xa9] sm:$0xff]
      %v2229 = vld [vmem:[%s1952 + $0xb1] sm:$0xff]
      %v2230 = vld [vmem:[%s1952 + $0xc1] sm:$0xff]
      %v2231 = vld [vmem:[%s1952 + $0xc9] sm:$0xff]
      %v2232 = vld [vmem:[%s1952 + $0xd9] sm:$0xff]
      %v2233 = vld [vmem:[%s1952 + $0xe1] sm:$0xff]
      %v2234 = vld [vmem:[%s1952 + $0xf1] sm:$0xff]
      %v2235 = vld [vmem:[%s1952 + $0xf9] sm:$0xff]
      %v2236 = vld [vmem:[%s1952 + $0x109] sm:$0xff]
      %v2237 = vld [vmem:[%s1952 + $0x111] sm:$0xff]
      %v2238 = vld [vmem:[%s1952 + $0x121] sm:$0xff]
      %v2239 = vld [vmem:[%s1952 + $0x129] sm:$0xff]
      %v2240 = vld [vmem:[%s1952 + $0x139] sm:$0xff]
      %v2241 = vld [vmem:[%s1952 + $0x141] sm:$0xff]
      %v2242 = vld [vmem:[%s1952 + $0x151] sm:$0xff]
      %v2243 = vld [vmem:[%s1952 + $0x159] sm:$0xff]
      %v2244 = vld [vmem:[%s1952 + $0x169] sm:$0xff]
      %v2245 = vld [vmem:[%s1952 + $0x171] sm:$0xff]
      %v2246 = vld [vmem:[%s1 + $0x7] sm:$0x1]
      %2248 = vset.pattern.permute.xlu0 0
      %2249 = vperm.xlu0 %2248, %v2214
      %v2250 = vpop.permute.xlu0 %2249
      %2253 = vset.pattern.permute.xlu0 0
      %2254 = vperm.xlu0 %2253, %v2215
      %v2255 = vpop.permute.xlu0 %2254
      %2258 = vset.pattern.permute.xlu0 0
      %2259 = vperm.xlu0 %2258, %v2216
      %v2260 = vpop.permute.xlu0 %2259
      %2263 = vset.pattern.permute.xlu0 0
      %2264 = vperm.xlu0 %2263, %v2217
      %v2265 = vpop.permute.xlu0 %2264
      %2268 = vset.pattern.permute.xlu0 0
      %2269 = vperm.xlu0 %2268, %v2218
      %v2270 = vpop.permute.xlu0 %2269
      %2273 = vset.pattern.permute.xlu0 0
      %2274 = vperm.xlu0 %2273, %v2219
      %v2275 = vpop.permute.xlu0 %2274
      %2278 = vset.pattern.permute.xlu0 0
      %2279 = vperm.xlu0 %2278, %v2220
      %v2280 = vpop.permute.xlu0 %2279
      %2283 = vset.pattern.permute.xlu0 0
      %2284 = vperm.xlu0 %2283, %v2221
      %v2285 = vpop.permute.xlu0 %2284
      %2288 = vset.pattern.permute.xlu0 0
      %2289 = vperm.xlu0 %2288, %v2222
      %v2290 = vpop.permute.xlu0 %2289
      %2293 = vset.pattern.permute.xlu0 0
      %2294 = vperm.xlu0 %2293, %v2223
      %v2295 = vpop.permute.xlu0 %2294
      %2298 = vset.pattern.permute.xlu0 0
      %2299 = vperm.xlu0 %2298, %v2224
      %v2300 = vpop.permute.xlu0 %2299
      %2303 = vset.pattern.permute.xlu0 0
      %2304 = vperm.xlu0 %2303, %v2225
      %v2305 = vpop.permute.xlu0 %2304
      %2308 = vset.pattern.permute.xlu0 0
      %2309 = vperm.xlu0 %2308, %v2226
      %v2310 = vpop.permute.xlu0 %2309
      %2313 = vset.pattern.permute.xlu0 0
      %2314 = vperm.xlu0 %2313, %v2227
      %v2315 = vpop.permute.xlu0 %2314
      %2318 = vset.pattern.permute.xlu0 0
      %2319 = vperm.xlu0 %2318, %v2228
      %v2320 = vpop.permute.xlu0 %2319
      %2323 = vset.pattern.permute.xlu0 0
      %2324 = vperm.xlu0 %2323, %v2229
      %v2325 = vpop.permute.xlu0 %2324
      %2328 = vset.pattern.permute.xlu0 0
      %2329 = vperm.xlu0 %2328, %v2230
      %v2330 = vpop.permute.xlu0 %2329
      %2333 = vset.pattern.permute.xlu0 0
      %2334 = vperm.xlu0 %2333, %v2231
      %v2335 = vpop.permute.xlu0 %2334
      %2338 = vset.pattern.permute.xlu0 0
      %2339 = vperm.xlu0 %2338, %v2232
      %v2340 = vpop.permute.xlu0 %2339
      %2343 = vset.pattern.permute.xlu0 0
      %2344 = vperm.xlu0 %2343, %v2233
      %v2345 = vpop.permute.xlu0 %2344
      %2348 = vset.pattern.permute.xlu0 0
      %2349 = vperm.xlu0 %2348, %v2234
      %v2350 = vpop.permute.xlu0 %2349
      %2353 = vset.pattern.permute.xlu0 0
      %2354 = vperm.xlu0 %2353, %v2235
      %v2355 = vpop.permute.xlu0 %2354
      %2358 = vset.pattern.permute.xlu0 0
      %2359 = vperm.xlu0 %2358, %v2236
      %v2360 = vpop.permute.xlu0 %2359
      %2363 = vset.pattern.permute.xlu0 0
      %2364 = vperm.xlu0 %2363, %v2237
      %v2365 = vpop.permute.xlu0 %2364
      %2368 = vset.pattern.permute.xlu0 0
      %2369 = vperm.xlu0 %2368, %v2238
      %v2370 = vpop.permute.xlu0 %2369
      %2373 = vset.pattern.permute.xlu0 0
      %2374 = vperm.xlu0 %2373, %v2239
      %v2375 = vpop.permute.xlu0 %2374
      %2378 = vset.pattern.permute.xlu0 0
      %2379 = vperm.xlu0 %2378, %v2240
      %v2380 = vpop.permute.xlu0 %2379
      %2383 = vset.pattern.permute.xlu0 0
      %2384 = vperm.xlu0 %2383, %v2241
      %v2385 = vpop.permute.xlu0 %2384
      %2388 = vset.pattern.permute.xlu0 0
      %2389 = vperm.xlu0 %2388, %v2242
      %v2390 = vpop.permute.xlu0 %2389
      %2393 = vset.pattern.permute.xlu0 0
      %2394 = vperm.xlu0 %2393, %v2243
      %v2395 = vpop.permute.xlu0 %2394
      %2398 = vset.pattern.permute.xlu0 0
      %2399 = vperm.xlu0 %2398, %v2244
      %v2400 = vpop.permute.xlu0 %2399
      %2403 = vset.pattern.permute.xlu0 0
      %2404 = vperm.xlu0 %2403, %v2245
      %v2405 = vpop.permute.xlu0 %2404
      %v2407 = vlaneseq
      %v2408 = vshrl.u32 %v2407, 7
      %v2409 = vsub.s32 0, %v2408
      %v2410 = vrot.slane %v2246, %v2409
      %v2411 = vmul.f32 %v2250, %v2410
      %v2412 = vmul.f32 %v2255, %v2410
      %v2413 = vmul.f32 %v2260, %v2410
      %v2414 = vmul.f32 %v2265, %v2410
      %v2415 = vmul.f32 %v2270, %v2410
      %v2416 = vmul.f32 %v2275, %v2410
      %v2417 = vmul.f32 %v2280, %v2410
      %v2418 = vmul.f32 %v2285, %v2410
      %v2419 = vmul.f32 %v2290, %v2410
      %v2420 = vmul.f32 %v2295, %v2410
      %v2421 = vmul.f32 %v2300, %v2410
      %v2422 = vmul.f32 %v2305, %v2410
      %v2423 = vmul.f32 %v2310, %v2410
      %v2424 = vmul.f32 %v2315, %v2410
      %v2425 = vmul.f32 %v2320, %v2410
      %v2426 = vmul.f32 %v2325, %v2410
      %v2427 = vmul.f32 %v2330, %v2410
      %v2428 = vmul.f32 %v2335, %v2410
      %v2429 = vmul.f32 %v2340, %v2410
      %v2430 = vmul.f32 %v2345, %v2410
      %v2431 = vmul.f32 %v2350, %v2410
      %v2432 = vmul.f32 %v2355, %v2410
      %v2433 = vmul.f32 %v2360, %v2410
      %v2434 = vmul.f32 %v2365, %v2410
      %v2435 = vmul.f32 %v2370, %v2410
      %v2436 = vmul.f32 %v2375, %v2410
      %v2437 = vmul.f32 %v2380, %v2410
      %v2438 = vmul.f32 %v2385, %v2410
      %v2439 = vmul.f32 %v2390, %v2410
      %v2440 = vmul.f32 %v2395, %v2410
      %v2441 = vmul.f32 %v2400, %v2410
      %v2442 = vmul.f32 %v2405, %v2410
      %v2443 = vadd.f32 %v2182, %v2411
      %v2444 = vadd.f32 %v2183, %v2412
      %v2445 = vadd.f32 %v2184, %v2413
      %v2446 = vadd.f32 %v2185, %v2414
      %v2447 = vadd.f32 %v2186, %v2415
      %v2448 = vadd.f32 %v2187, %v2416
      %v2449 = vadd.f32 %v2188, %v2417
      %v2450 = vadd.f32 %v2189, %v2418
      %v2451 = vadd.f32 %v2190, %v2419
      %v2452 = vadd.f32 %v2191, %v2420
      %v2453 = vadd.f32 %v2192, %v2421
      %v2454 = vadd.f32 %v2193, %v2422
      %v2455 = vadd.f32 %v2194, %v2423
      %v2456 = vadd.f32 %v2195, %v2424
      %v2457 = vadd.f32 %v2196, %v2425
      %v2458 = vadd.f32 %v2197, %v2426
      %v2459 = vadd.f32 %v2198, %v2427
      %v2460 = vadd.f32 %v2199, %v2428
      %v2461 = vadd.f32 %v2200, %v2429
      %v2462 = vadd.f32 %v2201, %v2430
      %v2463 = vadd.f32 %v2202, %v2431
      %v2464 = vadd.f32 %v2203, %v2432
      %v2465 = vadd.f32 %v2204, %v2433
      %v2466 = vadd.f32 %v2205, %v2434
      %v2467 = vadd.f32 %v2206, %v2435
      %v2468 = vadd.f32 %v2207, %v2436
      %v2469 = vadd.f32 %v2208, %v2437
      %v2470 = vadd.f32 %v2209, %v2438
      %v2471 = vadd.f32 %v2210, %v2439
      %v2472 = vadd.f32 %v2211, %v2440
      %v2473 = vadd.f32 %v2212, %v2441
      %v2474 = vadd.f32 %v2213, %v2442
      %v2475 = vld [vmem:[%s1952 + $0x2] sm:$0xff]
      %v2476 = vld [vmem:[%s1952 + $0xa] sm:$0xff]
      %v2477 = vld [vmem:[%s1952 + $0x1a] sm:$0xff]
      %v2478 = vld [vmem:[%s1952 + $0x22] sm:$0xff]
      %v2479 = vld [vmem:[%s1952 + $0x32] sm:$0xff]
      %v2480 = vld [vmem:[%s1952 + $0x3a] sm:$0xff]
      %v2481 = vld [vmem:[%s1952 + $0x4a] sm:$0xff]
      %v2482 = vld [vmem:[%s1952 + $0x52] sm:$0xff]
      %v2483 = vld [vmem:[%s1952 + $0x62] sm:$0xff]
      %v2484 = vld [vmem:[%s1952 + $0x6a] sm:$0xff]
      %v2485 = vld [vmem:[%s1952 + $0x7a] sm:$0xff]
      %v2486 = vld [vmem:[%s1952 + $0x82] sm:$0xff]
      %v2487 = vld [vmem:[%s1952 + $0x92] sm:$0xff]
      %v2488 = vld [vmem:[%s1952 + $0x9a] sm:$0xff]
      %v2489 = vld [vmem:[%s1952 + $0xaa] sm:$0xff]
      %v2490 = vld [vmem:[%s1952 + $0xb2] sm:$0xff]
      %v2491 = vld [vmem:[%s1952 + $0xc2] sm:$0xff]
      %v2492 = vld [vmem:[%s1952 + $0xca] sm:$0xff]
      %v2493 = vld [vmem:[%s1952 + $0xda] sm:$0xff]
      %v2494 = vld [vmem:[%s1952 + $0xe2] sm:$0xff]
      %v2495 = vld [vmem:[%s1952 + $0xf2] sm:$0xff]
      %v2496 = vld [vmem:[%s1952 + $0xfa] sm:$0xff]
      %v2497 = vld [vmem:[%s1952 + $0x10a] sm:$0xff]
      %v2498 = vld [vmem:[%s1952 + $0x112] sm:$0xff]
      %v2499 = vld [vmem:[%s1952 + $0x122] sm:$0xff]
      %v2500 = vld [vmem:[%s1952 + $0x12a] sm:$0xff]
      %v2501 = vld [vmem:[%s1952 + $0x13a] sm:$0xff]
      %v2502 = vld [vmem:[%s1952 + $0x142] sm:$0xff]
      %v2503 = vld [vmem:[%s1952 + $0x152] sm:$0xff]
      %v2504 = vld [vmem:[%s1952 + $0x15a] sm:$0xff]
      %v2505 = vld [vmem:[%s1952 + $0x16a] sm:$0xff]
      %v2506 = vld [vmem:[%s1952 + $0x172] sm:$0xff]
      %v2507 = vld [vmem:[%s1 + $0x8] sm:$0x1]
      %2509 = vset.pattern.permute.xlu0 0
      %2510 = vperm.xlu0 %2509, %v2475
      %v2511 = vpop.permute.xlu0 %2510
      %2514 = vset.pattern.permute.xlu0 0
      %2515 = vperm.xlu0 %2514, %v2476
      %v2516 = vpop.permute.xlu0 %2515
      %2519 = vset.pattern.permute.xlu0 0
      %2520 = vperm.xlu0 %2519, %v2477
      %v2521 = vpop.permute.xlu0 %2520
      %2524 = vset.pattern.permute.xlu0 0
      %2525 = vperm.xlu0 %2524, %v2478
      %v2526 = vpop.permute.xlu0 %2525
      %2529 = vset.pattern.permute.xlu0 0
      %2530 = vperm.xlu0 %2529, %v2479
      %v2531 = vpop.permute.xlu0 %2530
      %2534 = vset.pattern.permute.xlu0 0
      %2535 = vperm.xlu0 %2534, %v2480
      %v2536 = vpop.permute.xlu0 %2535
      %2539 = vset.pattern.permute.xlu0 0
      %2540 = vperm.xlu0 %2539, %v2481
      %v2541 = vpop.permute.xlu0 %2540
      %2544 = vset.pattern.permute.xlu0 0
      %2545 = vperm.xlu0 %2544, %v2482
      %v2546 = vpop.permute.xlu0 %2545
      %2549 = vset.pattern.permute.xlu0 0
      %2550 = vperm.xlu0 %2549, %v2483
      %v2551 = vpop.permute.xlu0 %2550
      %2554 = vset.pattern.permute.xlu0 0
      %2555 = vperm.xlu0 %2554, %v2484
      %v2556 = vpop.permute.xlu0 %2555
      %2559 = vset.pattern.permute.xlu0 0
      %2560 = vperm.xlu0 %2559, %v2485
      %v2561 = vpop.permute.xlu0 %2560
      %2564 = vset.pattern.permute.xlu0 0
      %2565 = vperm.xlu0 %2564, %v2486
      %v2566 = vpop.permute.xlu0 %2565
      %2569 = vset.pattern.permute.xlu0 0
      %2570 = vperm.xlu0 %2569, %v2487
      %v2571 = vpop.permute.xlu0 %2570
      %2574 = vset.pattern.permute.xlu0 0
      %2575 = vperm.xlu0 %2574, %v2488
      %v2576 = vpop.permute.xlu0 %2575
      %2579 = vset.pattern.permute.xlu0 0
      %2580 = vperm.xlu0 %2579, %v2489
      %v2581 = vpop.permute.xlu0 %2580
      %2584 = vset.pattern.permute.xlu0 0
      %2585 = vperm.xlu0 %2584, %v2490
      %v2586 = vpop.permute.xlu0 %2585
      %2589 = vset.pattern.permute.xlu0 0
      %2590 = vperm.xlu0 %2589, %v2491
      %v2591 = vpop.permute.xlu0 %2590
      %2594 = vset.pattern.permute.xlu0 0
      %2595 = vperm.xlu0 %2594, %v2492
      %v2596 = vpop.permute.xlu0 %2595
      %2599 = vset.pattern.permute.xlu0 0
      %2600 = vperm.xlu0 %2599, %v2493
      %v2601 = vpop.permute.xlu0 %2600
      %2604 = vset.pattern.permute.xlu0 0
      %2605 = vperm.xlu0 %2604, %v2494
      %v2606 = vpop.permute.xlu0 %2605
      %2609 = vset.pattern.permute.xlu0 0
      %2610 = vperm.xlu0 %2609, %v2495
      %v2611 = vpop.permute.xlu0 %2610
      %2614 = vset.pattern.permute.xlu0 0
      %2615 = vperm.xlu0 %2614, %v2496
      %v2616 = vpop.permute.xlu0 %2615
      %2619 = vset.pattern.permute.xlu0 0
      %2620 = vperm.xlu0 %2619, %v2497
      %v2621 = vpop.permute.xlu0 %2620
      %2624 = vset.pattern.permute.xlu0 0
      %2625 = vperm.xlu0 %2624, %v2498
      %v2626 = vpop.permute.xlu0 %2625
      %2629 = vset.pattern.permute.xlu0 0
      %2630 = vperm.xlu0 %2629, %v2499
      %v2631 = vpop.permute.xlu0 %2630
      %2634 = vset.pattern.permute.xlu0 0
      %2635 = vperm.xlu0 %2634, %v2500
      %v2636 = vpop.permute.xlu0 %2635
      %2639 = vset.pattern.permute.xlu0 0
      %2640 = vperm.xlu0 %2639, %v2501
      %v2641 = vpop.permute.xlu0 %2640
      %2644 = vset.pattern.permute.xlu0 0
      %2645 = vperm.xlu0 %2644, %v2502
      %v2646 = vpop.permute.xlu0 %2645
      %2649 = vset.pattern.permute.xlu0 0
      %2650 = vperm.xlu0 %2649, %v2503
      %v2651 = vpop.permute.xlu0 %2650
      %2654 = vset.pattern.permute.xlu0 0
      %2655 = vperm.xlu0 %2654, %v2504
      %v2656 = vpop.permute.xlu0 %2655
      %2659 = vset.pattern.permute.xlu0 0
      %2660 = vperm.xlu0 %2659, %v2505
      %v2661 = vpop.permute.xlu0 %2660
      %2664 = vset.pattern.permute.xlu0 0
      %2665 = vperm.xlu0 %2664, %v2506
      %v2666 = vpop.permute.xlu0 %2665
      %v2668 = vlaneseq
      %v2669 = vshrl.u32 %v2668, 7
      %v2670 = vsub.s32 0, %v2669
      %v2671 = vrot.slane %v2507, %v2670
      %v2672 = vmul.f32 %v2511, %v2671
      %v2673 = vmul.f32 %v2516, %v2671
      %v2674 = vmul.f32 %v2521, %v2671
      %v2675 = vmul.f32 %v2526, %v2671
      %v2676 = vmul.f32 %v2531, %v2671
      %v2677 = vmul.f32 %v2536, %v2671
      %v2678 = vmul.f32 %v2541, %v2671
      %v2679 = vmul.f32 %v2546, %v2671
      %v2680 = vmul.f32 %v2551, %v2671
      %v2681 = vmul.f32 %v2556, %v2671
      %v2682 = vmul.f32 %v2561, %v2671
      %v2683 = vmul.f32 %v2566, %v2671
      %v2684 = vmul.f32 %v2571, %v2671
      %v2685 = vmul.f32 %v2576, %v2671
      %v2686 = vmul.f32 %v2581, %v2671
      %v2687 = vmul.f32 %v2586, %v2671
      %v2688 = vmul.f32 %v2591, %v2671
      %v2689 = vmul.f32 %v2596, %v2671
      %v2690 = vmul.f32 %v2601, %v2671
      %v2691 = vmul.f32 %v2606, %v2671
      %v2692 = vmul.f32 %v2611, %v2671
      %v2693 = vmul.f32 %v2616, %v2671
      %v2694 = vmul.f32 %v2621, %v2671
      %v2695 = vmul.f32 %v2626, %v2671
      %v2696 = vmul.f32 %v2631, %v2671
      %v2697 = vmul.f32 %v2636, %v2671
      %v2698 = vmul.f32 %v2641, %v2671
      %v2699 = vmul.f32 %v2646, %v2671
      %v2700 = vmul.f32 %v2651, %v2671
      %v2701 = vmul.f32 %v2656, %v2671
      %v2702 = vmul.f32 %v2661, %v2671
      %v2703 = vmul.f32 %v2666, %v2671
      %v2704 = vadd.f32 %v2443, %v2672
      %v2705 = vadd.f32 %v2444, %v2673
      %v2706 = vadd.f32 %v2445, %v2674
      %v2707 = vadd.f32 %v2446, %v2675
      %v2708 = vadd.f32 %v2447, %v2676
      %v2709 = vadd.f32 %v2448, %v2677
      %v2710 = vadd.f32 %v2449, %v2678
      %v2711 = vadd.f32 %v2450, %v2679
      %v2712 = vadd.f32 %v2451, %v2680
      %v2713 = vadd.f32 %v2452, %v2681
      %v2714 = vadd.f32 %v2453, %v2682
      %v2715 = vadd.f32 %v2454, %v2683
      %v2716 = vadd.f32 %v2455, %v2684
      %v2717 = vadd.f32 %v2456, %v2685
      %v2718 = vadd.f32 %v2457, %v2686
      %v2719 = vadd.f32 %v2458, %v2687
      %v2720 = vadd.f32 %v2459, %v2688
      %v2721 = vadd.f32 %v2460, %v2689
      %v2722 = vadd.f32 %v2461, %v2690
      %v2723 = vadd.f32 %v2462, %v2691
      %v2724 = vadd.f32 %v2463, %v2692
      %v2725 = vadd.f32 %v2464, %v2693
      %v2726 = vadd.f32 %v2465, %v2694
      %v2727 = vadd.f32 %v2466, %v2695
      %v2728 = vadd.f32 %v2467, %v2696
      %v2729 = vadd.f32 %v2468, %v2697
      %v2730 = vadd.f32 %v2469, %v2698
      %v2731 = vadd.f32 %v2470, %v2699
      %v2732 = vadd.f32 %v2471, %v2700
      %v2733 = vadd.f32 %v2472, %v2701
      %v2734 = vadd.f32 %v2473, %v2702
      %v2735 = vadd.f32 %v2474, %v2703
      %v2736 = vld [vmem:[%s2] sm:$0x1]
      %v2738 = vlaneseq
      %v2739 = vshrl.u32 %v2738, 7
      %v2740 = vsub.s32 0, %v2739
      %v2741 = vrot.slane %v2736, %v2740
      %v2743 = vadd.f32 %v2704, %v2741
      %v2744 = vadd.f32 %v2705, %v2741
      %v2745 = vadd.f32 %v2706, %v2741
      %v2746 = vadd.f32 %v2707, %v2741
      %v2747 = vadd.f32 %v2708, %v2741
      %v2748 = vadd.f32 %v2709, %v2741
      %v2749 = vadd.f32 %v2710, %v2741
      %v2750 = vadd.f32 %v2711, %v2741
      %v2751 = vadd.f32 %v2712, %v2741
      %v2752 = vadd.f32 %v2713, %v2741
      %v2753 = vadd.f32 %v2714, %v2741
      %v2754 = vadd.f32 %v2715, %v2741
      %v2755 = vadd.f32 %v2716, %v2741
      %v2756 = vadd.f32 %v2717, %v2741
      %v2757 = vadd.f32 %v2718, %v2741
      %v2758 = vadd.f32 %v2719, %v2741
      %v2759 = vadd.f32 %v2720, %v2741
      %v2760 = vadd.f32 %v2721, %v2741
      %v2761 = vadd.f32 %v2722, %v2741
      %v2762 = vadd.f32 %v2723, %v2741
      %v2763 = vadd.f32 %v2724, %v2741
      %v2764 = vadd.f32 %v2725, %v2741
      %v2765 = vadd.f32 %v2726, %v2741
      %v2766 = vadd.f32 %v2727, %v2741
      %v2767 = vadd.f32 %v2728, %v2741
      %v2768 = vadd.f32 %v2729, %v2741
      %v2769 = vadd.f32 %v2730, %v2741
      %v2770 = vadd.f32 %v2731, %v2741
      %v2771 = vadd.f32 %v2732, %v2741
      %v2772 = vadd.f32 %v2733, %v2741
      %v2773 = vadd.f32 %v2734, %v2741
      %v2774 = vadd.f32 %v2735, %v2741
      %v2775 = vmax.f32 %v2743, 0.0
      %v2776 = vmax.f32 %v2744, 0.0
      %v2777 = vmax.f32 %v2745, 0.0
      %v2778 = vmax.f32 %v2746, 0.0
      %v2779 = vmax.f32 %v2747, 0.0
      %v2780 = vmax.f32 %v2748, 0.0
      %v2781 = vmax.f32 %v2749, 0.0
      %v2782 = vmax.f32 %v2750, 0.0
      %v2783 = vmax.f32 %v2751, 0.0
      %v2784 = vmax.f32 %v2752, 0.0
      %v2785 = vmax.f32 %v2753, 0.0
      %v2786 = vmax.f32 %v2754, 0.0
      %v2787 = vmax.f32 %v2755, 0.0
      %v2788 = vmax.f32 %v2756, 0.0
      %v2789 = vmax.f32 %v2757, 0.0
      %v2790 = vmax.f32 %v2758, 0.0
      %v2791 = vmax.f32 %v2759, 0.0
      %v2792 = vmax.f32 %v2760, 0.0
      %v2793 = vmax.f32 %v2761, 0.0
      %v2794 = vmax.f32 %v2762, 0.0
      %v2795 = vmax.f32 %v2763, 0.0
      %v2796 = vmax.f32 %v2764, 0.0
      %v2797 = vmax.f32 %v2765, 0.0
      %v2798 = vmax.f32 %v2766, 0.0
      %v2799 = vmax.f32 %v2767, 0.0
      %v2800 = vmax.f32 %v2768, 0.0
      %v2801 = vmax.f32 %v2769, 0.0
      %v2802 = vmax.f32 %v2770, 0.0
      %v2803 = vmax.f32 %v2771, 0.0
      %v2804 = vmax.f32 %v2772, 0.0
      %v2805 = vmax.f32 %v2773, 0.0
      %v2806 = vmax.f32 %v2774, 0.0
      %vm2807 = vcmask 64512
      %2808 = vst.msk [vmem:[#allocation2] sm:$0xff] %vm2807, 0.0
      %2809 = vst.msk [vmem:[#allocation2 + $0x8] sm:$0xff] %vm2807, 0.0
      %vm2810 = vcmask 58368
      %2811 = vst.msk [vmem:[#allocation2 + $0x10] sm:$0x3] %vm2810, 0.0
      %2812 = vst.msk [vmem:[#allocation2 + $0x18] sm:$0xff] %vm2807, 0.0
      %2813 = vst.msk [vmem:[#allocation2 + $0x20] sm:$0xff] %vm2807, 0.0
      %2814 = vst.msk [vmem:[#allocation2 + $0x28] sm:$0x3] %vm2810, 0.0
      %2815 = vst.msk [vmem:[#allocation2 + $0x30] sm:$0xff] %vm2807, 0.0
      %2816 = vst.msk [vmem:[#allocation2 + $0x38] sm:$0xff] %vm2807, 0.0
      %2817 = vst.msk [vmem:[#allocation2 + $0x40] sm:$0x3] %vm2810, 0.0
      %2818 = vst.msk [vmem:[#allocation2 + $0x48] sm:$0xff] %vm2807, 0.0
      %2819 = vst.msk [vmem:[#allocation2 + $0x50] sm:$0xff] %vm2807, 0.0
      %2820 = vst.msk [vmem:[#allocation2 + $0x58] sm:$0x3] %vm2810, 0.0
      %2821 = vst.msk [vmem:[#allocation2 + $0x60] sm:$0xff] %vm2807, 0.0
      %2822 = vst.msk [vmem:[#allocation2 + $0x68] sm:$0xff] %vm2807, 0.0
      %2823 = vst.msk [vmem:[#allocation2 + $0x70] sm:$0x3] %vm2810, 0.0
      %2824 = vst.msk [vmem:[#allocation2 + $0x78] sm:$0xff] %vm2807, 0.0
      %2825 = vst.msk [vmem:[#allocation2 + $0x80] sm:$0xff] %vm2807, 0.0
      %2826 = vst.msk [vmem:[#allocation2 + $0x88] sm:$0x3] %vm2810, 0.0
      %2827 = vst.msk [vmem:[#allocation2 + $0x90] sm:$0xff] %vm2807, 0.0
      %2828 = vst.msk [vmem:[#allocation2 + $0x98] sm:$0xff] %vm2807, 0.0
      %2829 = vst.msk [vmem:[#allocation2 + $0xa0] sm:$0x3] %vm2810, 0.0
      %2830 = vst.msk [vmem:[#allocation2 + $0xa8] sm:$0xff] %vm2807, 0.0
      %2831 = vst.msk [vmem:[#allocation2 + $0xb0] sm:$0xff] %vm2807, 0.0
      %2832 = vst.msk [vmem:[#allocation2 + $0xb8] sm:$0x3] %vm2810, 0.0
      %2833 = vst.msk [vmem:[#allocation2 + $0xc0] sm:$0xff] %vm2807, 0.0
      %2834 = vst.msk [vmem:[#allocation2 + $0xc8] sm:$0xff] %vm2807, 0.0
      %2835 = vst.msk [vmem:[#allocation2 + $0xd0] sm:$0x3] %vm2810, 0.0
      %2836 = vst.msk [vmem:[#allocation2 + $0xd8] sm:$0xff] %vm2807, 0.0
      %2837 = vst.msk [vmem:[#allocation2 + $0xe0] sm:$0xff] %vm2807, 0.0
      %2838 = vst.msk [vmem:[#allocation2 + $0xe8] sm:$0x3] %vm2810, 0.0
      %2839 = vst.msk [vmem:[#allocation2 + $0xf0] sm:$0xff] %vm2807, 0.0
      %2840 = vst.msk [vmem:[#allocation2 + $0xf8] sm:$0xff] %vm2807, 0.0
      %2841 = vst.msk [vmem:[#allocation2 + $0x100] sm:$0x3] %vm2810, 0.0
      %2842 = vst.msk [vmem:[#allocation2 + $0x108] sm:$0xff] %vm2807, 0.0
      %2843 = vst.msk [vmem:[#allocation2 + $0x110] sm:$0xff] %vm2807, 0.0
      %2844 = vst.msk [vmem:[#allocation2 + $0x118] sm:$0x3] %vm2810, 0.0
      %2845 = vst.msk [vmem:[#allocation2 + $0x120] sm:$0xff] %vm2807, 0.0
      %2846 = vst.msk [vmem:[#allocation2 + $0x128] sm:$0xff] %vm2807, 0.0
      %2847 = vst.msk [vmem:[#allocation2 + $0x130] sm:$0x3] %vm2810, 0.0
      %2848 = vst.msk [vmem:[#allocation2 + $0x138] sm:$0xff] %vm2807, 0.0
      %2849 = vst.msk [vmem:[#allocation2 + $0x140] sm:$0xff] %vm2807, 0.0
      %2850 = vst.msk [vmem:[#allocation2 + $0x148] sm:$0x3] %vm2810, 0.0
      %2851 = vst.msk [vmem:[#allocation2 + $0x150] sm:$0xff] %vm2807, 0.0
      %2852 = vst.msk [vmem:[#allocation2 + $0x158] sm:$0xff] %vm2807, 0.0
      %2853 = vst.msk [vmem:[#allocation2 + $0x160] sm:$0x3] %vm2810, 0.0
      %2854 = vst.msk [vmem:[#allocation2 + $0x168] sm:$0xff] %vm2807, 0.0
      %2855 = vst.msk [vmem:[#allocation2 + $0x170] sm:$0xff] %vm2807, 0.0
      %2856 = vst.msk [vmem:[#allocation2 + $0x178] sm:$0x3] %vm2810, 0.0
      %2857 = vst.msk [vmem:[#allocation2 + $0x180] sm:$0xff] %vm2807, 0.0
      %2858 = vst.msk [vmem:[#allocation2 + $0x188] sm:$0xff] %vm2807, 0.0
      %2859 = vst.msk [vmem:[#allocation2 + $0x190] sm:$0x3] %vm2810, 0.0
      %2860 = vst.msk [vmem:[#allocation2 + $0x198] sm:$0xff] %vm2807, 0.0
      %2861 = vst.msk [vmem:[#allocation2 + $0x1a0] sm:$0xff] %vm2807, 0.0
      %2862 = vst.msk [vmem:[#allocation2 + $0x1a8] sm:$0x3] %vm2810, 0.0
      %s2863 = scalar_lea.vmem [#allocation2], 24
      %2864 = vst.msk [vmem:[%s2863 + $0x1] sm:$0xff] %vm2807, %v2775
      %2865 = vst.msk [vmem:[%s2863 + $0x9] sm:$0xff] %vm2807, %v2776
      %2866 = vst.msk [vmem:[%s2863 + $0x19] sm:$0xff] %vm2807, %v2777
      %2867 = vst.msk [vmem:[%s2863 + $0x21] sm:$0xff] %vm2807, %v2778
      %2868 = vst.msk [vmem:[%s2863 + $0x31] sm:$0xff] %vm2807, %v2779
      %2869 = vst.msk [vmem:[%s2863 + $0x39] sm:$0xff] %vm2807, %v2780
      %2870 = vst.msk [vmem:[%s2863 + $0x49] sm:$0xff] %vm2807, %v2781
      %2871 = vst.msk [vmem:[%s2863 + $0x51] sm:$0xff] %vm2807, %v2782
      %2872 = vst.msk [vmem:[%s2863 + $0x61] sm:$0xff] %vm2807, %v2783
      %2873 = vst.msk [vmem:[%s2863 + $0x69] sm:$0xff] %vm2807, %v2784
      %2874 = vst.msk [vmem:[%s2863 + $0x79] sm:$0xff] %vm2807, %v2785
      %2875 = vst.msk [vmem:[%s2863 + $0x81] sm:$0xff] %vm2807, %v2786
      %2876 = vst.msk [vmem:[%s2863 + $0x91] sm:$0xff] %vm2807, %v2787
      %2877 = vst.msk [vmem:[%s2863 + $0x99] sm:$0xff] %vm2807, %v2788
      %2878 = vst.msk [vmem:[%s2863 + $0xa9] sm:$0xff] %vm2807, %v2789
      %2879 = vst.msk [vmem:[%s2863 + $0xb1] sm:$0xff] %vm2807, %v2790
      %2880 = vst.msk [vmem:[%s2863 + $0xc1] sm:$0xff] %vm2807, %v2791
      %2881 = vst.msk [vmem:[%s2863 + $0xc9] sm:$0xff] %vm2807, %v2792
      %2882 = vst.msk [vmem:[%s2863 + $0xd9] sm:$0xff] %vm2807, %v2793
      %2883 = vst.msk [vmem:[%s2863 + $0xe1] sm:$0xff] %vm2807, %v2794
      %2884 = vst.msk [vmem:[%s2863 + $0xf1] sm:$0xff] %vm2807, %v2795
      %2885 = vst.msk [vmem:[%s2863 + $0xf9] sm:$0xff] %vm2807, %v2796
      %2886 = vst.msk [vmem:[%s2863 + $0x109] sm:$0xff] %vm2807, %v2797
      %2887 = vst.msk [vmem:[%s2863 + $0x111] sm:$0xff] %vm2807, %v2798
      %2888 = vst.msk [vmem:[%s2863 + $0x121] sm:$0xff] %vm2807, %v2799
      %2889 = vst.msk [vmem:[%s2863 + $0x129] sm:$0xff] %vm2807, %v2800
      %2890 = vst.msk [vmem:[%s2863 + $0x139] sm:$0xff] %vm2807, %v2801
      %2891 = vst.msk [vmem:[%s2863 + $0x141] sm:$0xff] %vm2807, %v2802
      %2892 = vst.msk [vmem:[%s2863 + $0x151] sm:$0xff] %vm2807, %v2803
      %2893 = vst.msk [vmem:[%s2863 + $0x159] sm:$0xff] %vm2807, %v2804
      %2894 = vst.msk [vmem:[%s2863 + $0x169] sm:$0xff] %vm2807, %v2805
      %2895 = vst.msk [vmem:[%s2863 + $0x171] sm:$0xff] %vm2807, %v2806
      %v2896 = vld [vmem:[#allocation2] sm:$0xff]
      %v2897 = vld [vmem:[#allocation2 + $0x8] sm:$0xff]
      %v2898 = vld [vmem:[#allocation2 + $0x18] sm:$0xff]
      %v2899 = vld [vmem:[#allocation2 + $0x20] sm:$0xff]
      %v2900 = vld [vmem:[#allocation2 + $0x30] sm:$0xff]
      %v2901 = vld [vmem:[#allocation2 + $0x38] sm:$0xff]
      %v2902 = vld [vmem:[#allocation2 + $0x48] sm:$0xff]
      %v2903 = vld [vmem:[#allocation2 + $0x50] sm:$0xff]
      %v2904 = vld [vmem:[#allocation2 + $0x60] sm:$0xff]
      %v2905 = vld [vmem:[#allocation2 + $0x68] sm:$0xff]
      %v2906 = vld [vmem:[#allocation2 + $0x78] sm:$0xff]
      %v2907 = vld [vmem:[#allocation2 + $0x80] sm:$0xff]
      %v2908 = vld [vmem:[#allocation2 + $0x90] sm:$0xff]
      %v2909 = vld [vmem:[#allocation2 + $0x98] sm:$0xff]
      %v2910 = vld [vmem:[#allocation2 + $0xa8] sm:$0xff]
      %v2911 = vld [vmem:[#allocation2 + $0xb0] sm:$0xff]
      %v2912 = vld [vmem:[#allocation2 + $0xc0] sm:$0xff]
      %v2913 = vld [vmem:[#allocation2 + $0xc8] sm:$0xff]
      %v2914 = vld [vmem:[#allocation2 + $0xd8] sm:$0xff]
      %v2915 = vld [vmem:[#allocation2 + $0xe0] sm:$0xff]
      %v2916 = vld [vmem:[#allocation2 + $0xf0] sm:$0xff]
      %v2917 = vld [vmem:[#allocation2 + $0xf8] sm:$0xff]
      %v2918 = vld [vmem:[#allocation2 + $0x108] sm:$0xff]
      %v2919 = vld [vmem:[#allocation2 + $0x110] sm:$0xff]
      %v2920 = vld [vmem:[#allocation2 + $0x120] sm:$0xff]
      %v2921 = vld [vmem:[#allocation2 + $0x128] sm:$0xff]
      %v2922 = vld [vmem:[#allocation2 + $0x138] sm:$0xff]
      %v2923 = vld [vmem:[#allocation2 + $0x140] sm:$0xff]
      %v2924 = vld [vmem:[#allocation2 + $0x150] sm:$0xff]
      %v2925 = vld [vmem:[#allocation2 + $0x158] sm:$0xff]
      %v2926 = vld [vmem:[#allocation2 + $0x168] sm:$0xff]
      %v2927 = vld [vmem:[#allocation2 + $0x170] sm:$0xff]
      %v2928 = vld [vmem:[%s3] sm:$0xff]
      %v2929 = vld [vmem:[#allocation2 + $0x1] sm:$0xff]
      %v2930 = vld [vmem:[#allocation2 + $0x9] sm:$0xff]
      %v2931 = vld [vmem:[#allocation2 + $0x19] sm:$0xff]
      %v2932 = vld [vmem:[#allocation2 + $0x21] sm:$0xff]
      %v2933 = vld [vmem:[#allocation2 + $0x31] sm:$0xff]
      %v2934 = vld [vmem:[#allocation2 + $0x39] sm:$0xff]
      %v2935 = vld [vmem:[#allocation2 + $0x49] sm:$0xff]
      %v2936 = vld [vmem:[#allocation2 + $0x51] sm:$0xff]
      %v2937 = vld [vmem:[#allocation2 + $0x61] sm:$0xff]
      %v2938 = vld [vmem:[#allocation2 + $0x69] sm:$0xff]
      %v2939 = vld [vmem:[#allocation2 + $0x79] sm:$0xff]
      %v2940 = vld [vmem:[#allocation2 + $0x81] sm:$0xff]
      %v2941 = vld [vmem:[#allocation2 + $0x91] sm:$0xff]
      %v2942 = vld [vmem:[#allocation2 + $0x99] sm:$0xff]
      %v2943 = vld [vmem:[#allocation2 + $0xa9] sm:$0xff]
      %v2944 = vld [vmem:[#allocation2 + $0xb1] sm:$0xff]
      %v2945 = vld [vmem:[#allocation2 + $0xc1] sm:$0xff]
      %v2946 = vld [vmem:[#allocation2 + $0xc9] sm:$0xff]
      %v2947 = vld [vmem:[#allocation2 + $0xd9] sm:$0xff]
      %v2948 = vld [vmem:[#allocation2 + $0xe1] sm:$0xff]
      %v2949 = vld [vmem:[#allocation2 + $0xf1] sm:$0xff]
      %v2950 = vld [vmem:[#allocation2 + $0xf9] sm:$0xff]
      %v2951 = vld [vmem:[#allocation2 + $0x109] sm:$0xff]
      %v2952 = vld [vmem:[#allocation2 + $0x111] sm:$0xff]
      %v2953 = vld [vmem:[#allocation2 + $0x121] sm:$0xff]
      %v2954 = vld [vmem:[#allocation2 + $0x129] sm:$0xff]
      %v2955 = vld [vmem:[#allocation2 + $0x139] sm:$0xff]
      %v2956 = vld [vmem:[#allocation2 + $0x141] sm:$0xff]
      %v2957 = vld [vmem:[#allocation2 + $0x151] sm:$0xff]
      %v2958 = vld [vmem:[#allocation2 + $0x159] sm:$0xff]
      %v2959 = vld [vmem:[#allocation2 + $0x169] sm:$0xff]
      %v2960 = vld [vmem:[#allocation2 + $0x171] sm:$0xff]
      %s2961 = scalar_lea.vmem %s3, 8
      %v2962 = vld [vmem:[%s2961] sm:$0xff]
      %v2964 = vsel %vm2807, %v2929, 0
      %v2967 = vsel %vm2807, %v2930, 0
      %v2970 = vsel %vm2807, %v2931, 0
      %v2973 = vsel %vm2807, %v2932, 0
      %v2976 = vsel %vm2807, %v2933, 0
      %v2979 = vsel %vm2807, %v2934, 0
      %v2982 = vsel %vm2807, %v2935, 0
      %v2985 = vsel %vm2807, %v2936, 0
      %v2988 = vsel %vm2807, %v2937, 0
      %v2991 = vsel %vm2807, %v2938, 0
      %v2994 = vsel %vm2807, %v2939, 0
      %v2997 = vsel %vm2807, %v2940, 0
      %v3000 = vsel %vm2807, %v2941, 0
      %v3003 = vsel %vm2807, %v2942, 0
      %v3006 = vsel %vm2807, %v2943, 0
      %v3009 = vsel %vm2807, %v2944, 0
      %v3012 = vsel %vm2807, %v2945, 0
      %v3015 = vsel %vm2807, %v2946, 0
      %v3018 = vsel %vm2807, %v2947, 0
      %v3021 = vsel %vm2807, %v2948, 0
      %v3024 = vsel %vm2807, %v2949, 0
      %v3027 = vsel %vm2807, %v2950, 0
      %v3030 = vsel %vm2807, %v2951, 0
      %v3033 = vsel %vm2807, %v2952, 0
      %v3036 = vsel %vm2807, %v2953, 0
      %v3039 = vsel %vm2807, %v2954, 0
      %v3042 = vsel %vm2807, %v2955, 0
      %v3045 = vsel %vm2807, %v2956, 0
      %v3048 = vsel %vm2807, %v2957, 0
      %v3051 = vsel %vm2807, %v2958, 0
      %v3054 = vsel %vm2807, %v2959, 0
      %v3057 = vsel %vm2807, %v2960, 0
      %3059 = vmatprep.subr.mxu0 0.0
      %3060 = vmatpush1.msra.mxu0 %v2962
      %3061 = vmatprep.subr.mxu0 0.0
      %3062 = vmatpush1.msra.mxu0 0.0
      %3063 = vmatprep.subr.mxu0 0.0
      %3064 = vmatpush1.msra.mxu0 0.0
      %3065 = vmatprep.subr.mxu0 0.0
      %3066 = vmatpush1.msra.mxu0 0.0
      %3067 = vmatprep.subr.mxu0 0.0
      %3068 = vmatpush1.msra.mxu0 0.0
      %3069 = vmatprep.subr.mxu0 0.0
      %3070 = vmatpush1.msra.mxu0 0.0
      %3071 = vmatprep.subr.mxu0 0.0
      %3072 = vmatpush1.msra.mxu0 0.0
      %3073 = vmatprep.subr.mxu0 0.0
      %3074 = vmatpush1.msra.mxu0 0.0
      %3075 = vmatprep.subr.mxu0 0.0
      %3076 = vmatpush1.msra.mxu0 0.0
      %3077 = vmatprep.subr.mxu0 0.0
      %3078 = vmatpush1.msra.mxu0 0.0
      %3079 = vmatprep.subr.mxu0 0.0
      %3080 = vmatpush1.msra.mxu0 0.0
      %3081 = vmatprep.subr.mxu0 0.0
      %3082 = vmatpush1.msra.mxu0 0.0
      %3083 = vmatprep.subr.mxu0 0.0
      %3084 = vmatpush1.msra.mxu0 0.0
      %3085 = vmatprep.subr.mxu0 0.0
      %3086 = vmatpush1.msra.mxu0 0.0
      %3087 = vmatprep.subr.mxu0 0.0
      %3088 = vmatpush1.msra.mxu0 0.0
      %3089 = vmatprep.subr.mxu0 0.0
      %3090 = vmatpush1.msra.mxu0 0.0
      %3091 = vmatprep.subr.mxu0 0.0
      %3092 = vmatpush1.msra.mxu0 0.0
      %3093 = vmatprep.subr.mxu0 0.0
      %3094 = vmatpush1.msra.mxu0 0.0
      %3095 = vmatprep.subr.mxu0 0.0
      %3096 = vmatpush1.msra.mxu0 0.0
      %3097 = vmatprep.subr.mxu0 0.0
      %3098 = vmatpush1.msra.mxu0 0.0
      %3099 = vmatprep.subr.mxu0 0.0
      %3100 = vmatpush1.msra.mxu0 0.0
      %3101 = vmatprep.subr.mxu0 0.0
      %3102 = vmatpush1.msra.mxu0 0.0
      %3103 = vmatprep.subr.mxu0 0.0
      %3104 = vmatpush1.msra.mxu0 0.0
      %3105 = vmatprep.subr.mxu0 0.0
      %3106 = vmatpush1.msra.mxu0 0.0
      %3107 = vmatprep.subr.mxu0 0.0
      %3108 = vmatpush1.msra.mxu0 0.0
      %3109 = vmatprep.subr.mxu0 0.0
      %3110 = vmatpush1.msra.mxu0 0.0
      %3111 = vmatprep.subr.mxu0 0.0
      %3112 = vmatpush1.msra.mxu0 0.0
      %3113 = vmatprep.subr.mxu0 0.0
      %3114 = vmatpush1.msra.mxu0 0.0
      %3115 = vmatprep.subr.mxu0 0.0
      %3116 = vmatpush1.msra.mxu0 0.0
      %3117 = vmatprep.subr.mxu0 0.0
      %3118 = vmatpush1.msra.mxu0 0.0
      %3119 = vmatprep.subr.mxu0 0.0
      %3120 = vmatpush1.msra.mxu0 0.0
      %3121 = vmatprep.subr.mxu0 0.0
      %3122 = vmatpush1.msra.mxu0 0.0
      %3123 = vmatprep.mubr.f32.mxu0 0.0
      %3124 = vmatmul.mubr.f32.gmra.mrb[0].mxu0 %v2964
      %v3125 = vpop.f32.mrb[0].mxu0
      %v3126 = vadd.f32 0.0, %v3125
      %v3127 = vpop.f32.mrb[0].mxu0
      %3128 = vmatprep.mubr.f32.mxu0 0.0
      %3129 = vmatmul.mubr.f32.gmra.mrb[0].mxu0 %v2967
      %v3130 = vpop.f32.mrb[0].mxu0
      %v3131 = vadd.f32 0.0, %v3130
      %v3132 = vpop.f32.mrb[0].mxu0
      %3133 = vmatprep.mubr.f32.mxu0 0.0
      %3134 = vmatmul.mubr.f32.gmra.mrb[0].mxu0 %v2970
      %v3135 = vpop.f32.mrb[0].mxu0
      %v3136 = vadd.f32 0.0, %v3135
      %v3137 = vpop.f32.mrb[0].mxu0
      %3138 = vmatprep.mubr.f32.mxu0 0.0
      %3139 = vmatmul.mubr.f32.gmra.mrb[0].mxu0 %v2973
      %v3140 = vpop.f32.mrb[0].mxu0
      %v3141 = vadd.f32 0.0, %v3140
      %v3142 = vpop.f32.mrb[0].mxu0
      %3143 = vmatprep.mubr.f32.mxu0 0.0
      %3144 = vmatmul.mubr.f32.gmra.mrb[0].mxu0 %v2976
      %v3145 = vpop.f32.mrb[0].mxu0
      %v3146 = vadd.f32 0.0, %v3145
      %v3147 = vpop.f32.mrb[0].mxu0
      %3148 = vmatprep.mubr.f32.mxu0 0.0
      %3149 = vmatmul.mubr.f32.gmra.mrb[0].mxu0 %v2979
      %v3150 = vpop.f32.mrb[0].mxu0
      %v3151 = vadd.f32 0.0, %v3150
      %v3152 = vpop.f32.mrb[0].mxu0
      %3153 = vmatprep.mubr.f32.mxu0 0.0
      %3154 = vmatmul.mubr.f32.gmra.mrb[0].mxu0 %v2982
      %v3155 = vpop.f32.mrb[0].mxu0
      %v3156 = vadd.f32 0.0, %v3155
      %v3157 = vpop.f32.mrb[0].mxu0
      %3158 = vmatprep.mubr.f32.mxu0 0.0
      %3159 = vmatmul.mubr.f32.gmra.mrb[0].mxu0 %v2985
      %v3160 = vpop.f32.mrb[0].mxu0
      %v3161 = vadd.f32 0.0, %v3160
      %v3162 = vpop.f32.mrb[0].mxu0
      %3163 = vmatprep.mubr.f32.mxu0 0.0
      %3164 = vmatmul.mubr.f32.gmra.mrb[0].mxu0 %v2988
      %v3165 = vpop.f32.mrb[0].mxu0
      %v3166 = vadd.f32 0.0, %v3165
      %v3167 = vpop.f32.mrb[0].mxu0
      %3168 = vmatprep.mubr.f32.mxu0 0.0
      %3169 = vmatmul.mubr.f32.gmra.mrb[0].mxu0 %v2991
      %v3170 = vpop.f32.mrb[0].mxu0
      %v3171 = vadd.f32 0.0, %v3170
      %v3172 = vpop.f32.mrb[0].mxu0
      %3173 = vmatprep.mubr.f32.mxu0 0.0
      %3174 = vmatmul.mubr.f32.gmra.mrb[0].mxu0 %v2994
      %v3175 = vpop.f32.mrb[0].mxu0
      %v3176 = vadd.f32 0.0, %v3175
      %v3177 = vpop.f32.mrb[0].mxu0
      %3178 = vmatprep.mubr.f32.mxu0 0.0
      %3179 = vmatmul.mubr.f32.gmra.mrb[0].mxu0 %v2997
      %v3180 = vpop.f32.mrb[0].mxu0
      %v3181 = vadd.f32 0.0, %v3180
      %v3182 = vpop.f32.mrb[0].mxu0
      %3183 = vmatprep.mubr.f32.mxu0 0.0
      %3184 = vmatmul.mubr.f32.gmra.mrb[0].mxu0 %v3000
      %v3185 = vpop.f32.mrb[0].mxu0
      %v3186 = vadd.f32 0.0, %v3185
      %v3187 = vpop.f32.mrb[0].mxu0
      %3188 = vmatprep.mubr.f32.mxu0 0.0
      %3189 = vmatmul.mubr.f32.gmra.mrb[0].mxu0 %v3003
      %v3190 = vpop.f32.mrb[0].mxu0
      %v3191 = vadd.f32 0.0, %v3190
      %v3192 = vpop.f32.mrb[0].mxu0
      %3193 = vmatprep.mubr.f32.mxu0 0.0
      %3194 = vmatmul.mubr.f32.gmra.mrb[0].mxu0 %v3006
      %v3195 = vpop.f32.mrb[0].mxu0
      %v3196 = vadd.f32 0.0, %v3195
      %v3197 = vpop.f32.mrb[0].mxu0
      %3198 = vmatprep.mubr.f32.mxu0 0.0
      %3199 = vmatmul.mubr.f32.gmra.mrb[0].mxu0 %v3009
      %v3200 = vpop.f32.mrb[0].mxu0
      %v3201 = vadd.f32 0.0, %v3200
      %v3202 = vpop.f32.mrb[0].mxu0
      %3203 = vmatprep.mubr.f32.mxu0 0.0
      %3204 = vmatmul.mubr.f32.gmra.mrb[0].mxu0 %v3012
      %v3205 = vpop.f32.mrb[0].mxu0
      %v3206 = vadd.f32 0.0, %v3205
      %v3207 = vpop.f32.mrb[0].mxu0
      %3208 = vmatprep.mubr.f32.mxu0 0.0
      %3209 = vmatmul.mubr.f32.gmra.mrb[0].mxu0 %v3015
      %v3210 = vpop.f32.mrb[0].mxu0
      %v3211 = vadd.f32 0.0, %v3210
      %v3212 = vpop.f32.mrb[0].mxu0
      %3213 = vmatprep.mubr.f32.mxu0 0.0
      %3214 = vmatmul.mubr.f32.gmra.mrb[0].mxu0 %v3018
      %v3215 = vpop.f32.mrb[0].mxu0
      %v3216 = vadd.f32 0.0, %v3215
      %v3217 = vpop.f32.mrb[0].mxu0
      %3218 = vmatprep.mubr.f32.mxu0 0.0
      %3219 = vmatmul.mubr.f32.gmra.mrb[0].mxu0 %v3021
      %v3220 = vpop.f32.mrb[0].mxu0
      %v3221 = vadd.f32 0.0, %v3220
      %v3222 = vpop.f32.mrb[0].mxu0
      %3223 = vmatprep.mubr.f32.mxu0 0.0
      %3224 = vmatmul.mubr.f32.gmra.mrb[0].mxu0 %v3024
      %v3225 = vpop.f32.mrb[0].mxu0
      %v3226 = vadd.f32 0.0, %v3225
      %v3227 = vpop.f32.mrb[0].mxu0
      %3228 = vmatprep.mubr.f32.mxu0 0.0
      %3229 = vmatmul.mubr.f32.gmra.mrb[0].mxu0 %v3027
      %v3230 = vpop.f32.mrb[0].mxu0
      %v3231 = vadd.f32 0.0, %v3230
      %v3232 = vpop.f32.mrb[0].mxu0
      %3233 = vmatprep.mubr.f32.mxu0 0.0
      %3234 = vmatmul.mubr.f32.gmra.mrb[0].mxu0 %v3030
      %v3235 = vpop.f32.mrb[0].mxu0
      %v3236 = vadd.f32 0.0, %v3235
      %v3237 = vpop.f32.mrb[0].mxu0
      %3238 = vmatprep.mubr.f32.mxu0 0.0
      %3239 = vmatmul.mubr.f32.gmra.mrb[0].mxu0 %v3033
      %v3240 = vpop.f32.mrb[0].mxu0
      %v3241 = vadd.f32 0.0, %v3240
      %v3242 = vpop.f32.mrb[0].mxu0
      %3243 = vmatprep.mubr.f32.mxu0 0.0
      %3244 = vmatmul.mubr.f32.gmra.mrb[0].mxu0 %v3036
      %v3245 = vpop.f32.mrb[0].mxu0
      %v3246 = vadd.f32 0.0, %v3245
      %v3247 = vpop.f32.mrb[0].mxu0
      %3248 = vmatprep.mubr.f32.mxu0 0.0
      %3249 = vmatmul.mubr.f32.gmra.mrb[0].mxu0 %v3039
      %v3250 = vpop.f32.mrb[0].mxu0
      %v3251 = vadd.f32 0.0, %v3250
      %v3252 = vpop.f32.mrb[0].mxu0
      %3253 = vmatprep.mubr.f32.mxu0 0.0
      %3254 = vmatmul.mubr.f32.gmra.mrb[0].mxu0 %v3042
      %v3255 = vpop.f32.mrb[0].mxu0
      %v3256 = vadd.f32 0.0, %v3255
      %v3257 = vpop.f32.mrb[0].mxu0
      %3258 = vmatprep.mubr.f32.mxu0 0.0
      %3259 = vmatmul.mubr.f32.gmra.mrb[0].mxu0 %v3045
      %v3260 = vpop.f32.mrb[0].mxu0
      %v3261 = vadd.f32 0.0, %v3260
      %v3262 = vpop.f32.mrb[0].mxu0
      %3263 = vmatprep.mubr.f32.mxu0 0.0
      %3264 = vmatmul.mubr.f32.gmra.mrb[0].mxu0 %v3048
      %v3265 = vpop.f32.mrb[0].mxu0
      %v3266 = vadd.f32 0.0, %v3265
      %v3267 = vpop.f32.mrb[0].mxu0
      %3268 = vmatprep.mubr.f32.mxu0 0.0
      %3269 = vmatmul.mubr.f32.gmra.mrb[0].mxu0 %v3051
      %v3270 = vpop.f32.mrb[0].mxu0
      %v3271 = vadd.f32 0.0, %v3270
      %v3272 = vpop.f32.mrb[0].mxu0
      %3273 = vmatprep.mubr.f32.mxu0 0.0
      %3274 = vmatmul.mubr.f32.gmra.mrb[0].mxu0 %v3054
      %v3275 = vpop.f32.mrb[0].mxu0
      %v3276 = vadd.f32 0.0, %v3275
      %v3277 = vpop.f32.mrb[0].mxu0
      %3278 = vmatprep.mubr.f32.mxu0 0.0
      %3279 = vmatmul.mubr.f32.gmra.mrb[0].mxu0 %v3057
      %v3280 = vpop.f32.mrb[0].mxu0
      %v3281 = vadd.f32 0.0, %v3280
      %v3282 = vpop.f32.mrb[0].mxu0
      %3283 = vdwg.mxu0
      %v3285 = vsel %vm2807, %v2896, 0
      %v3288 = vsel %vm2807, %v2897, 0
      %v3291 = vsel %vm2807, %v2898, 0
      %v3294 = vsel %vm2807, %v2899, 0
      %v3297 = vsel %vm2807, %v2900, 0
      %v3300 = vsel %vm2807, %v2901, 0
      %v3303 = vsel %vm2807, %v2902, 0
      %v3306 = vsel %vm2807, %v2903, 0
      %v3309 = vsel %vm2807, %v2904, 0
      %v3312 = vsel %vm2807, %v2905, 0
      %v3315 = vsel %vm2807, %v2906, 0
      %v3318 = vsel %vm2807, %v2907, 0
      %v3321 = vsel %vm2807, %v2908, 0
      %v3324 = vsel %vm2807, %v2909, 0
      %v3327 = vsel %vm2807, %v2910, 0
      %v3330 = vsel %vm2807, %v2911, 0
      %v3333 = vsel %vm2807, %v2912, 0
      %v3336 = vsel %vm2807, %v2913, 0
      %v3339 = vsel %vm2807, %v2914, 0
      %v3342 = vsel %vm2807, %v2915, 0
      %v3345 = vsel %vm2807, %v2916, 0
      %v3348 = vsel %vm2807, %v2917, 0
      %v3351 = vsel %vm2807, %v2918, 0
      %v3354 = vsel %vm2807, %v2919, 0
      %v3357 = vsel %vm2807, %v2920, 0
      %v3360 = vsel %vm2807, %v2921, 0
      %v3363 = vsel %vm2807, %v2922, 0
      %v3366 = vsel %vm2807, %v2923, 0
      %v3369 = vsel %vm2807, %v2924, 0
      %v3372 = vsel %vm2807, %v2925, 0
      %v3375 = vsel %vm2807, %v2926, 0
      %v3378 = vsel %vm2807, %v2927, 0
      %3380 = vmatprep.subr.mxu0 0.0
      %3381 = vmatpush1.msra.mxu0 %v2928
      %3382 = vmatprep.subr.mxu0 0.0
      %3383 = vmatpush1.msra.mxu0 0.0
      %3384 = vmatprep.subr.mxu0 0.0
      %3385 = vmatpush1.msra.mxu0 0.0
      %3386 = vmatprep.subr.mxu0 0.0
      %3387 = vmatpush1.msra.mxu0 0.0
      %3388 = vmatprep.subr.mxu0 0.0
      %3389 = vmatpush1.msra.mxu0 0.0
      %3390 = vmatprep.subr.mxu0 0.0
      %3391 = vmatpush1.msra.mxu0 0.0
      %3392 = vmatprep.subr.mxu0 0.0
      %3393 = vmatpush1.msra.mxu0 0.0
      %3394 = vmatprep.subr.mxu0 0.0
      %3395 = vmatpush1.msra.mxu0 0.0
      %3396 = vmatprep.subr.mxu0 0.0
      %3397 = vmatpush1.msra.mxu0 0.0
      %3398 = vmatprep.subr.mxu0 0.0
      %3399 = vmatpush1.msra.mxu0 0.0
      %3400 = vmatprep.subr.mxu0 0.0
      %3401 = vmatpush1.msra.mxu0 0.0
      %3402 = vmatprep.subr.mxu0 0.0
      %3403 = vmatpush1.msra.mxu0 0.0
      %3404 = vmatprep.subr.mxu0 0.0
      %3405 = vmatpush1.msra.mxu0 0.0
      %3406 = vmatprep.subr.mxu0 0.0
      %3407 = vmatpush1.msra.mxu0 0.0
      %3408 = vmatprep.subr.mxu0 0.0
      %3409 = vmatpush1.msra.mxu0 0.0
      %3410 = vmatprep.subr.mxu0 0.0
      %3411 = vmatpush1.msra.mxu0 0.0
      %3412 = vmatprep.subr.mxu0 0.0
      %3413 = vmatpush1.msra.mxu0 0.0
      %3414 = vmatprep.subr.mxu0 0.0
      %3415 = vmatpush1.msra.mxu0 0.0
      %3416 = vmatprep.subr.mxu0 0.0
      %3417 = vmatpush1.msra.mxu0 0.0
      %3418 = vmatprep.subr.mxu0 0.0
      %3419 = vmatpush1.msra.mxu0 0.0
      %3420 = vmatprep.subr.mxu0 0.0
      %3421 = vmatpush1.msra.mxu0 0.0
      %3422 = vmatprep.subr.mxu0 0.0
      %3423 = vmatpush1.msra.mxu0 0.0
      %3424 = vmatprep.subr.mxu0 0.0
      %3425 = vmatpush1.msra.mxu0 0.0
      %3426 = vmatprep.subr.mxu0 0.0
      %3427 = vmatpush1.msra.mxu0 0.0
      %3428 = vmatprep.subr.mxu0 0.0
      %3429 = vmatpush1.msra.mxu0 0.0
      %3430 = vmatprep.subr.mxu0 0.0
      %3431 = vmatpush1.msra.mxu0 0.0
      %3432 = vmatprep.subr.mxu0 0.0
      %3433 = vmatpush1.msra.mxu0 0.0
      %3434 = vmatprep.subr.mxu0 0.0
      %3435 = vmatpush1.msra.mxu0 0.0
      %3436 = vmatprep.subr.mxu0 0.0
      %3437 = vmatpush1.msra.mxu0 0.0
      %3438 = vmatprep.subr.mxu0 0.0
      %3439 = vmatpush1.msra.mxu0 0.0
      %3440 = vmatprep.subr.mxu0 0.0
      %3441 = vmatpush1.msra.mxu0 0.0
      %3442 = vmatprep.subr.mxu0 0.0
      %3443 = vmatpush1.msra.mxu0 0.0
      %3444 = vmatprep.mubr.f32.mxu0 0.0
      %3445 = vmatmul.mubr.f32.gmra.mrb[0].mxu0 %v3285
      %v3446 = vpop.f32.mrb[0].mxu0
      %v3447 = vadd.f32 %v3126, %v3446
      %v3448 = vpop.f32.mrb[0].mxu0
      %3449 = vmatprep.mubr.f32.mxu0 0.0
      %3450 = vmatmul.mubr.f32.gmra.mrb[0].mxu0 %v3288
      %v3451 = vpop.f32.mrb[0].mxu0
      %v3452 = vadd.f32 %v3131, %v3451
      %v3453 = vpop.f32.mrb[0].mxu0
      %3454 = vmatprep.mubr.f32.mxu0 0.0
      %3455 = vmatmul.mubr.f32.gmra.mrb[0].mxu0 %v3291
      %v3456 = vpop.f32.mrb[0].mxu0
      %v3457 = vadd.f32 %v3136, %v3456
      %v3458 = vpop.f32.mrb[0].mxu0
      %3459 = vmatprep.mubr.f32.mxu0 0.0
      %3460 = vmatmul.mubr.f32.gmra.mrb[0].mxu0 %v3294
      %v3461 = vpop.f32.mrb[0].mxu0
      %v3462 = vadd.f32 %v3141, %v3461
      %v3463 = vpop.f32.mrb[0].mxu0
      %3464 = vmatprep.mubr.f32.mxu0 0.0
      %3465 = vmatmul.mubr.f32.gmra.mrb[0].mxu0 %v3297
      %v3466 = vpop.f32.mrb[0].mxu0
      %v3467 = vadd.f32 %v3146, %v3466
      %v3468 = vpop.f32.mrb[0].mxu0
      %3469 = vmatprep.mubr.f32.mxu0 0.0
      %3470 = vmatmul.mubr.f32.gmra.mrb[0].mxu0 %v3300
      %v3471 = vpop.f32.mrb[0].mxu0
      %v3472 = vadd.f32 %v3151, %v3471
      %v3473 = vpop.f32.mrb[0].mxu0
      %3474 = vmatprep.mubr.f32.mxu0 0.0
      %3475 = vmatmul.mubr.f32.gmra.mrb[0].mxu0 %v3303
      %v3476 = vpop.f32.mrb[0].mxu0
      %v3477 = vadd.f32 %v3156, %v3476
      %v3478 = vpop.f32.mrb[0].mxu0
      %3479 = vmatprep.mubr.f32.mxu0 0.0
      %3480 = vmatmul.mubr.f32.gmra.mrb[0].mxu0 %v3306
      %v3481 = vpop.f32.mrb[0].mxu0
      %v3482 = vadd.f32 %v3161, %v3481
      %v3483 = vpop.f32.mrb[0].mxu0
      %3484 = vmatprep.mubr.f32.mxu0 0.0
      %3485 = vmatmul.mubr.f32.gmra.mrb[0].mxu0 %v3309
      %v3486 = vpop.f32.mrb[0].mxu0
      %v3487 = vadd.f32 %v3166, %v3486
      %v3488 = vpop.f32.mrb[0].mxu0
      %3489 = vmatprep.mubr.f32.mxu0 0.0
      %3490 = vmatmul.mubr.f32.gmra.mrb[0].mxu0 %v3312
      %v3491 = vpop.f32.mrb[0].mxu0
      %v3492 = vadd.f32 %v3171, %v3491
      %v3493 = vpop.f32.mrb[0].mxu0
      %3494 = vmatprep.mubr.f32.mxu0 0.0
      %3495 = vmatmul.mubr.f32.gmra.mrb[0].mxu0 %v3315
      %v3496 = vpop.f32.mrb[0].mxu0
      %v3497 = vadd.f32 %v3176, %v3496
      %v3498 = vpop.f32.mrb[0].mxu0
      %3499 = vmatprep.mubr.f32.mxu0 0.0
      %3500 = vmatmul.mubr.f32.gmra.mrb[0].mxu0 %v3318
      %v3501 = vpop.f32.mrb[0].mxu0
      %v3502 = vadd.f32 %v3181, %v3501
      %v3503 = vpop.f32.mrb[0].mxu0
      %3504 = vmatprep.mubr.f32.mxu0 0.0
      %3505 = vmatmul.mubr.f32.gmra.mrb[0].mxu0 %v3321
      %v3506 = vpop.f32.mrb[0].mxu0
      %v3507 = vadd.f32 %v3186, %v3506
      %v3508 = vpop.f32.mrb[0].mxu0
      %3509 = vmatprep.mubr.f32.mxu0 0.0
      %3510 = vmatmul.mubr.f32.gmra.mrb[0].mxu0 %v3324
      %v3511 = vpop.f32.mrb[0].mxu0
      %v3512 = vadd.f32 %v3191, %v3511
      %v3513 = vpop.f32.mrb[0].mxu0
      %3514 = vmatprep.mubr.f32.mxu0 0.0
      %3515 = vmatmul.mubr.f32.gmra.mrb[0].mxu0 %v3327
      %v3516 = vpop.f32.mrb[0].mxu0
      %v3517 = vadd.f32 %v3196, %v3516
      %v3518 = vpop.f32.mrb[0].mxu0
      %3519 = vmatprep.mubr.f32.mxu0 0.0
      %3520 = vmatmul.mubr.f32.gmra.mrb[0].mxu0 %v3330
      %v3521 = vpop.f32.mrb[0].mxu0
      %v3522 = vadd.f32 %v3201, %v3521
      %v3523 = vpop.f32.mrb[0].mxu0
      %3524 = vmatprep.mubr.f32.mxu0 0.0
      %3525 = vmatmul.mubr.f32.gmra.mrb[0].mxu0 %v3333
      %v3526 = vpop.f32.mrb[0].mxu0
      %v3527 = vadd.f32 %v3206, %v3526
      %v3528 = vpop.f32.mrb[0].mxu0
      %3529 = vmatprep.mubr.f32.mxu0 0.0
      %3530 = vmatmul.mubr.f32.gmra.mrb[0].mxu0 %v3336
      %v3531 = vpop.f32.mrb[0].mxu0
      %v3532 = vadd.f32 %v3211, %v3531
      %v3533 = vpop.f32.mrb[0].mxu0
      %3534 = vmatprep.mubr.f32.mxu0 0.0
      %3535 = vmatmul.mubr.f32.gmra.mrb[0].mxu0 %v3339
      %v3536 = vpop.f32.mrb[0].mxu0
      %v3537 = vadd.f32 %v3216, %v3536
      %v3538 = vpop.f32.mrb[0].mxu0
      %3539 = vmatprep.mubr.f32.mxu0 0.0
      %3540 = vmatmul.mubr.f32.gmra.mrb[0].mxu0 %v3342
      %v3541 = vpop.f32.mrb[0].mxu0
      %v3542 = vadd.f32 %v3221, %v3541
      %v3543 = vpop.f32.mrb[0].mxu0
      %3544 = vmatprep.mubr.f32.mxu0 0.0
      %3545 = vmatmul.mubr.f32.gmra.mrb[0].mxu0 %v3345
      %v3546 = vpop.f32.mrb[0].mxu0
      %v3547 = vadd.f32 %v3226, %v3546
      %v3548 = vpop.f32.mrb[0].mxu0
      %3549 = vmatprep.mubr.f32.mxu0 0.0
      %3550 = vmatmul.mubr.f32.gmra.mrb[0].mxu0 %v3348
      %v3551 = vpop.f32.mrb[0].mxu0
      %v3552 = vadd.f32 %v3231, %v3551
      %v3553 = vpop.f32.mrb[0].mxu0
      %3554 = vmatprep.mubr.f32.mxu0 0.0
      %3555 = vmatmul.mubr.f32.gmra.mrb[0].mxu0 %v3351
      %v3556 = vpop.f32.mrb[0].mxu0
      %v3557 = vadd.f32 %v3236, %v3556
      %v3558 = vpop.f32.mrb[0].mxu0
      %3559 = vmatprep.mubr.f32.mxu0 0.0
      %3560 = vmatmul.mubr.f32.gmra.mrb[0].mxu0 %v3354
      %v3561 = vpop.f32.mrb[0].mxu0
      %v3562 = vadd.f32 %v3241, %v3561
      %v3563 = vpop.f32.mrb[0].mxu0
      %3564 = vmatprep.mubr.f32.mxu0 0.0
      %3565 = vmatmul.mubr.f32.gmra.mrb[0].mxu0 %v3357
      %v3566 = vpop.f32.mrb[0].mxu0
      %v3567 = vadd.f32 %v3246, %v3566
      %v3568 = vpop.f32.mrb[0].mxu0
      %3569 = vmatprep.mubr.f32.mxu0 0.0
      %3570 = vmatmul.mubr.f32.gmra.mrb[0].mxu0 %v3360
      %v3571 = vpop.f32.mrb[0].mxu0
      %v3572 = vadd.f32 %v3251, %v3571
      %v3573 = vpop.f32.mrb[0].mxu0
      %3574 = vmatprep.mubr.f32.mxu0 0.0
      %3575 = vmatmul.mubr.f32.gmra.mrb[0].mxu0 %v3363
      %v3576 = vpop.f32.mrb[0].mxu0
      %v3577 = vadd.f32 %v3256, %v3576
      %v3578 = vpop.f32.mrb[0].mxu0
      %3579 = vmatprep.mubr.f32.mxu0 0.0
      %3580 = vmatmul.mubr.f32.gmra.mrb[0].mxu0 %v3366
      %v3581 = vpop.f32.mrb[0].mxu0
      %v3582 = vadd.f32 %v3261, %v3581
      %v3583 = vpop.f32.mrb[0].mxu0
      %3584 = vmatprep.mubr.f32.mxu0 0.0
      %3585 = vmatmul.mubr.f32.gmra.mrb[0].mxu0 %v3369
      %v3586 = vpop.f32.mrb[0].mxu0
      %v3587 = vadd.f32 %v3266, %v3586
      %v3588 = vpop.f32.mrb[0].mxu0
      %3589 = vmatprep.mubr.f32.mxu0 0.0
      %3590 = vmatmul.mubr.f32.gmra.mrb[0].mxu0 %v3372
      %v3591 = vpop.f32.mrb[0].mxu0
      %v3592 = vadd.f32 %v3271, %v3591
      %v3593 = vpop.f32.mrb[0].mxu0
      %3594 = vmatprep.mubr.f32.mxu0 0.0
      %3595 = vmatmul.mubr.f32.gmra.mrb[0].mxu0 %v3375
      %v3596 = vpop.f32.mrb[0].mxu0
      %v3597 = vadd.f32 %v3276, %v3596
      %v3598 = vpop.f32.mrb[0].mxu0
      %3599 = vmatprep.mubr.f32.mxu0 0.0
      %3600 = vmatmul.mubr.f32.gmra.mrb[0].mxu0 %v3378
      %v3601 = vpop.f32.mrb[0].mxu0
      %v3602 = vadd.f32 %v3281, %v3601
      %v3603 = vpop.f32.mrb[0].mxu0
      %3604 = vdwg.mxu0
      %v3605 = vld [vmem:[#allocation2 + $0x2] sm:$0xff]
      %v3606 = vld [vmem:[#allocation2 + $0xa] sm:$0xff]
      %v3607 = vld [vmem:[#allocation2 + $0x1a] sm:$0xff]
      %v3608 = vld [vmem:[#allocation2 + $0x22] sm:$0xff]
      %v3609 = vld [vmem:[#allocation2 + $0x32] sm:$0xff]
      %v3610 = vld [vmem:[#allocation2 + $0x3a] sm:$0xff]
      %v3611 = vld [vmem:[#allocation2 + $0x4a] sm:$0xff]
      %v3612 = vld [vmem:[#allocation2 + $0x52] sm:$0xff]
      %v3613 = vld [vmem:[#allocation2 + $0x62] sm:$0xff]
      %v3614 = vld [vmem:[#allocation2 + $0x6a] sm:$0xff]
      %v3615 = vld [vmem:[#allocation2 + $0x7a] sm:$0xff]
      %v3616 = vld [vmem:[#allocation2 + $0x82] sm:$0xff]
      %v3617 = vld [vmem:[#allocation2 + $0x92] sm:$0xff]
      %v3618 = vld [vmem:[#allocation2 + $0x9a] sm:$0xff]
      %v3619 = vld [vmem:[#allocation2 + $0xaa] sm:$0xff]
      %v3620 = vld [vmem:[#allocation2 + $0xb2] sm:$0xff]
      %v3621 = vld [vmem:[#allocation2 + $0xc2] sm:$0xff]
      %v3622 = vld [vmem:[#allocation2 + $0xca] sm:$0xff]
      %v3623 = vld [vmem:[#allocation2 + $0xda] sm:$0xff]
      %v3624 = vld [vmem:[#allocation2 + $0xe2] sm:$0xff]
      %v3625 = vld [vmem:[#allocation2 + $0xf2] sm:$0xff]
      %v3626 = vld [vmem:[#allocation2 + $0xfa] sm:$0xff]
      %v3627 = vld [vmem:[#allocation2 + $0x10a] sm:$0xff]
      %v3628 = vld [vmem:[#allocation2 + $0x112] sm:$0xff]
      %v3629 = vld [vmem:[#allocation2 + $0x122] sm:$0xff]
      %v3630 = vld [vmem:[#allocation2 + $0x12a] sm:$0xff]
      %v3631 = vld [vmem:[#allocation2 + $0x13a] sm:$0xff]
      %v3632 = vld [vmem:[#allocation2 + $0x142] sm:$0xff]
      %v3633 = vld [vmem:[#allocation2 + $0x152] sm:$0xff]
      %v3634 = vld [vmem:[#allocation2 + $0x15a] sm:$0xff]
      %v3635 = vld [vmem:[#allocation2 + $0x16a] sm:$0xff]
      %v3636 = vld [vmem:[#allocation2 + $0x172] sm:$0xff]
      %s3637 = scalar_lea.vmem %s3, 16
      %v3638 = vld [vmem:[%s3637] sm:$0xff]
      %v3640 = vsel %vm2807, %v3605, 0
      %v3643 = vsel %vm2807, %v3606, 0
      %v3646 = vsel %vm2807, %v3607, 0
      %v3649 = vsel %vm2807, %v3608, 0
      %v3652 = vsel %vm2807, %v3609, 0
      %v3655 = vsel %vm2807, %v3610, 0
      %v3658 = vsel %vm2807, %v3611, 0
      %v3661 = vsel %vm2807, %v3612, 0
      %v3664 = vsel %vm2807, %v3613, 0
      %v3667 = vsel %vm2807, %v3614, 0
      %v3670 = vsel %vm2807, %v3615, 0
      %v3673 = vsel %vm2807, %v3616, 0
      %v3676 = vsel %vm2807, %v3617, 0
      %v3679 = vsel %vm2807, %v3618, 0
      %v3682 = vsel %vm2807, %v3619, 0
      %v3685 = vsel %vm2807, %v3620, 0
      %v3688 = vsel %vm2807, %v3621, 0
      %v3691 = vsel %vm2807, %v3622, 0
      %v3694 = vsel %vm2807, %v3623, 0
      %v3697 = vsel %vm2807, %v3624, 0
      %v3700 = vsel %vm2807, %v3625, 0
      %v3703 = vsel %vm2807, %v3626, 0
      %v3706 = vsel %vm2807, %v3627, 0
      %v3709 = vsel %vm2807, %v3628, 0
      %v3712 = vsel %vm2807, %v3629, 0
      %v3715 = vsel %vm2807, %v3630, 0
      %v3718 = vsel %vm2807, %v3631, 0
      %v3721 = vsel %vm2807, %v3632, 0
      %v3724 = vsel %vm2807, %v3633, 0
      %v3727 = vsel %vm2807, %v3634, 0
      %v3730 = vsel %vm2807, %v3635, 0
      %v3733 = vsel %vm2807, %v3636, 0
      %3735 = vmatprep.subr.mxu0 0.0
      %3736 = vmatpush1.msra.mxu0 %v3638
      %3737 = vmatprep.subr.mxu0 0.0
      %3738 = vmatpush1.msra.mxu0 0.0
      %3739 = vmatprep.subr.mxu0 0.0
      %3740 = vmatpush1.msra.mxu0 0.0
      %3741 = vmatprep.subr.mxu0 0.0
      %3742 = vmatpush1.msra.mxu0 0.0
      %3743 = vmatprep.subr.mxu0 0.0
      %3744 = vmatpush1.msra.mxu0 0.0
      %3745 = vmatprep.subr.mxu0 0.0
      %3746 = vmatpush1.msra.mxu0 0.0
      %3747 = vmatprep.subr.mxu0 0.0
      %3748 = vmatpush1.msra.mxu0 0.0
      %3749 = vmatprep.subr.mxu0 0.0
      %3750 = vmatpush1.msra.mxu0 0.0
      %3751 = vmatprep.subr.mxu0 0.0
      %3752 = vmatpush1.msra.mxu0 0.0
      %3753 = vmatprep.subr.mxu0 0.0
      %3754 = vmatpush1.msra.mxu0 0.0
      %3755 = vmatprep.subr.mxu0 0.0
      %3756 = vmatpush1.msra.mxu0 0.0
      %3757 = vmatprep.subr.mxu0 0.0
      %3758 = vmatpush1.msra.mxu0 0.0
      %3759 = vmatprep.subr.mxu0 0.0
      %3760 = vmatpush1.msra.mxu0 0.0
      %3761 = vmatprep.subr.mxu0 0.0
      %3762 = vmatpush1.msra.mxu0 0.0
      %3763 = vmatprep.subr.mxu0 0.0
      %3764 = vmatpush1.msra.mxu0 0.0
      %3765 = vmatprep.subr.mxu0 0.0
      %3766 = vmatpush1.msra.mxu0 0.0
      %3767 = vmatprep.subr.mxu0 0.0
      %3768 = vmatpush1.msra.mxu0 0.0
      %3769 = vmatprep.subr.mxu0 0.0
      %3770 = vmatpush1.msra.mxu0 0.0
      %3771 = vmatprep.subr.mxu0 0.0
      %3772 = vmatpush1.msra.mxu0 0.0
      %3773 = vmatprep.subr.mxu0 0.0
      %3774 = vmatpush1.msra.mxu0 0.0
      %3775 = vmatprep.subr.mxu0 0.0
      %3776 = vmatpush1.msra.mxu0 0.0
      %3777 = vmatprep.subr.mxu0 0.0
      %3778 = vmatpush1.msra.mxu0 0.0
      %3779 = vmatprep.subr.mxu0 0.0
      %3780 = vmatpush1.msra.mxu0 0.0
      %3781 = vmatprep.subr.mxu0 0.0
      %3782 = vmatpush1.msra.mxu0 0.0
      %3783 = vmatprep.subr.mxu0 0.0
      %3784 = vmatpush1.msra.mxu0 0.0
      %3785 = vmatprep.subr.mxu0 0.0
      %3786 = vmatpush1.msra.mxu0 0.0
      %3787 = vmatprep.subr.mxu0 0.0
      %3788 = vmatpush1.msra.mxu0 0.0
      %3789 = vmatprep.subr.mxu0 0.0
      %3790 = vmatpush1.msra.mxu0 0.0
      %3791 = vmatprep.subr.mxu0 0.0
      %3792 = vmatpush1.msra.mxu0 0.0
      %3793 = vmatprep.subr.mxu0 0.0
      %3794 = vmatpush1.msra.mxu0 0.0
      %3795 = vmatprep.subr.mxu0 0.0
      %3796 = vmatpush1.msra.mxu0 0.0
      %3797 = vmatprep.subr.mxu0 0.0
      %3798 = vmatpush1.msra.mxu0 0.0
      %3799 = vmatprep.mubr.f32.mxu0 0.0
      %3800 = vmatmul.mubr.f32.gmra.mrb[0].mxu0 %v3640
      %v3801 = vpop.f32.mrb[0].mxu0
      %v3802 = vadd.f32 0.0, %v3801
      %v3803 = vpop.f32.mrb[0].mxu0
      %3804 = vmatprep.mubr.f32.mxu0 0.0
      %3805 = vmatmul.mubr.f32.gmra.mrb[0].mxu0 %v3643
      %v3806 = vpop.f32.mrb[0].mxu0
      %v3807 = vadd.f32 0.0, %v3806
      %v3808 = vpop.f32.mrb[0].mxu0
      %3809 = vmatprep.mubr.f32.mxu0 0.0
      %3810 = vmatmul.mubr.f32.gmra.mrb[0].mxu0 %v3646
      %v3811 = vpop.f32.mrb[0].mxu0
      %v3812 = vadd.f32 0.0, %v3811
      %v3813 = vpop.f32.mrb[0].mxu0
      %3814 = vmatprep.mubr.f32.mxu0 0.0
      %3815 = vmatmul.mubr.f32.gmra.mrb[0].mxu0 %v3649
      %v3816 = vpop.f32.mrb[0].mxu0
      %v3817 = vadd.f32 0.0, %v3816
      %v3818 = vpop.f32.mrb[0].mxu0
      %3819 = vmatprep.mubr.f32.mxu0 0.0
      %3820 = vmatmul.mubr.f32.gmra.mrb[0].mxu0 %v3652
      %v3821 = vpop.f32.mrb[0].mxu0
      %v3822 = vadd.f32 0.0, %v3821
      %v3823 = vpop.f32.mrb[0].mxu0
      %3824 = vmatprep.mubr.f32.mxu0 0.0
      %3825 = vmatmul.mubr.f32.gmra.mrb[0].mxu0 %v3655
      %v3826 = vpop.f32.mrb[0].mxu0
      %v3827 = vadd.f32 0.0, %v3826
      %v3828 = vpop.f32.mrb[0].mxu0
      %3829 = vmatprep.mubr.f32.mxu0 0.0
      %3830 = vmatmul.mubr.f32.gmra.mrb[0].mxu0 %v3658
      %v3831 = vpop.f32.mrb[0].mxu0
      %v3832 = vadd.f32 0.0, %v3831
      %v3833 = vpop.f32.mrb[0].mxu0
      %3834 = vmatprep.mubr.f32.mxu0 0.0
      %3835 = vmatmul.mubr.f32.gmra.mrb[0].mxu0 %v3661
      %v3836 = vpop.f32.mrb[0].mxu0
      %v3837 = vadd.f32 0.0, %v3836
      %v3838 = vpop.f32.mrb[0].mxu0
      %3839 = vmatprep.mubr.f32.mxu0 0.0
      %3840 = vmatmul.mubr.f32.gmra.mrb[0].mxu0 %v3664
      %v3841 = vpop.f32.mrb[0].mxu0
      %v3842 = vadd.f32 0.0, %v3841
      %v3843 = vpop.f32.mrb[0].mxu0
      %3844 = vmatprep.mubr.f32.mxu0 0.0
      %3845 = vmatmul.mubr.f32.gmra.mrb[0].mxu0 %v3667
      %v3846 = vpop.f32.mrb[0].mxu0
      %v3847 = vadd.f32 0.0, %v3846
      %v3848 = vpop.f32.mrb[0].mxu0
      %3849 = vmatprep.mubr.f32.mxu0 0.0
      %3850 = vmatmul.mubr.f32.gmra.mrb[0].mxu0 %v3670
      %v3851 = vpop.f32.mrb[0].mxu0
      %v3852 = vadd.f32 0.0, %v3851
      %v3853 = vpop.f32.mrb[0].mxu0
      %3854 = vmatprep.mubr.f32.mxu0 0.0
      %3855 = vmatmul.mubr.f32.gmra.mrb[0].mxu0 %v3673
      %v3856 = vpop.f32.mrb[0].mxu0
      %v3857 = vadd.f32 0.0, %v3856
      %v3858 = vpop.f32.mrb[0].mxu0
      %3859 = vmatprep.mubr.f32.mxu0 0.0
      %3860 = vmatmul.mubr.f32.gmra.mrb[0].mxu0 %v3676
      %v3861 = vpop.f32.mrb[0].mxu0
      %v3862 = vadd.f32 0.0, %v3861
      %v3863 = vpop.f32.mrb[0].mxu0
      %3864 = vmatprep.mubr.f32.mxu0 0.0
      %3865 = vmatmul.mubr.f32.gmra.mrb[0].mxu0 %v3679
      %v3866 = vpop.f32.mrb[0].mxu0
      %v3867 = vadd.f32 0.0, %v3866
      %v3868 = vpop.f32.mrb[0].mxu0
      %3869 = vmatprep.mubr.f32.mxu0 0.0
      %3870 = vmatmul.mubr.f32.gmra.mrb[0].mxu0 %v3682
      %v3871 = vpop.f32.mrb[0].mxu0
      %v3872 = vadd.f32 0.0, %v3871
      %v3873 = vpop.f32.mrb[0].mxu0
      %3874 = vmatprep.mubr.f32.mxu0 0.0
      %3875 = vmatmul.mubr.f32.gmra.mrb[0].mxu0 %v3685
      %v3876 = vpop.f32.mrb[0].mxu0
      %v3877 = vadd.f32 0.0, %v3876
      %v3878 = vpop.f32.mrb[0].mxu0
      %3879 = vmatprep.mubr.f32.mxu0 0.0
      %3880 = vmatmul.mubr.f32.gmra.mrb[0].mxu0 %v3688
      %v3881 = vpop.f32.mrb[0].mxu0
      %v3882 = vadd.f32 0.0, %v3881
      %v3883 = vpop.f32.mrb[0].mxu0
      %3884 = vmatprep.mubr.f32.mxu0 0.0
      %3885 = vmatmul.mubr.f32.gmra.mrb[0].mxu0 %v3691
      %v3886 = vpop.f32.mrb[0].mxu0
      %v3887 = vadd.f32 0.0, %v3886
      %v3888 = vpop.f32.mrb[0].mxu0
      %3889 = vmatprep.mubr.f32.mxu0 0.0
      %3890 = vmatmul.mubr.f32.gmra.mrb[0].mxu0 %v3694
      %v3891 = vpop.f32.mrb[0].mxu0
      %v3892 = vadd.f32 0.0, %v3891
      %v3893 = vpop.f32.mrb[0].mxu0
      %3894 = vmatprep.mubr.f32.mxu0 0.0
      %3895 = vmatmul.mubr.f32.gmra.mrb[0].mxu0 %v3697
      %v3896 = vpop.f32.mrb[0].mxu0
      %v3897 = vadd.f32 0.0, %v3896
      %v3898 = vpop.f32.mrb[0].mxu0
      %3899 = vmatprep.mubr.f32.mxu0 0.0
      %3900 = vmatmul.mubr.f32.gmra.mrb[0].mxu0 %v3700
      %v3901 = vpop.f32.mrb[0].mxu0
      %v3902 = vadd.f32 0.0, %v3901
      %v3903 = vpop.f32.mrb[0].mxu0
      %3904 = vmatprep.mubr.f32.mxu0 0.0
      %3905 = vmatmul.mubr.f32.gmra.mrb[0].mxu0 %v3703
      %v3906 = vpop.f32.mrb[0].mxu0
      %v3907 = vadd.f32 0.0, %v3906
      %v3908 = vpop.f32.mrb[0].mxu0
      %3909 = vmatprep.mubr.f32.mxu0 0.0
      %3910 = vmatmul.mubr.f32.gmra.mrb[0].mxu0 %v3706
      %v3911 = vpop.f32.mrb[0].mxu0
      %v3912 = vadd.f32 0.0, %v3911
      %v3913 = vpop.f32.mrb[0].mxu0
      %3914 = vmatprep.mubr.f32.mxu0 0.0
      %3915 = vmatmul.mubr.f32.gmra.mrb[0].mxu0 %v3709
      %v3916 = vpop.f32.mrb[0].mxu0
      %v3917 = vadd.f32 0.0, %v3916
      %v3918 = vpop.f32.mrb[0].mxu0
      %3919 = vmatprep.mubr.f32.mxu0 0.0
      %3920 = vmatmul.mubr.f32.gmra.mrb[0].mxu0 %v3712
      %v3921 = vpop.f32.mrb[0].mxu0
      %v3922 = vadd.f32 0.0, %v3921
      %v3923 = vpop.f32.mrb[0].mxu0
      %3924 = vmatprep.mubr.f32.mxu0 0.0
      %3925 = vmatmul.mubr.f32.gmra.mrb[0].mxu0 %v3715
      %v3926 = vpop.f32.mrb[0].mxu0
      %v3927 = vadd.f32 0.0, %v3926
      %v3928 = vpop.f32.mrb[0].mxu0
      %3929 = vmatprep.mubr.f32.mxu0 0.0
      %3930 = vmatmul.mubr.f32.gmra.mrb[0].mxu0 %v3718
      %v3931 = vpop.f32.mrb[0].mxu0
      %v3932 = vadd.f32 0.0, %v3931
      %v3933 = vpop.f32.mrb[0].mxu0
      %3934 = vmatprep.mubr.f32.mxu0 0.0
      %3935 = vmatmul.mubr.f32.gmra.mrb[0].mxu0 %v3721
      %v3936 = vpop.f32.mrb[0].mxu0
      %v3937 = vadd.f32 0.0, %v3936
      %v3938 = vpop.f32.mrb[0].mxu0
      %3939 = vmatprep.mubr.f32.mxu0 0.0
      %3940 = vmatmul.mubr.f32.gmra.mrb[0].mxu0 %v3724
      %v3941 = vpop.f32.mrb[0].mxu0
      %v3942 = vadd.f32 0.0, %v3941
      %v3943 = vpop.f32.mrb[0].mxu0
      %3944 = vmatprep.mubr.f32.mxu0 0.0
      %3945 = vmatmul.mubr.f32.gmra.mrb[0].mxu0 %v3727
      %v3946 = vpop.f32.mrb[0].mxu0
      %v3947 = vadd.f32 0.0, %v3946
      %v3948 = vpop.f32.mrb[0].mxu0
      %3949 = vmatprep.mubr.f32.mxu0 0.0
      %3950 = vmatmul.mubr.f32.gmra.mrb[0].mxu0 %v3730
      %v3951 = vpop.f32.mrb[0].mxu0
      %v3952 = vadd.f32 0.0, %v3951
      %v3953 = vpop.f32.mrb[0].mxu0
      %3954 = vmatprep.mubr.f32.mxu0 0.0
      %3955 = vmatmul.mubr.f32.gmra.mrb[0].mxu0 %v3733
      %v3956 = vpop.f32.mrb[0].mxu0
      %v3957 = vadd.f32 0.0, %v3956
      %v3958 = vpop.f32.mrb[0].mxu0
      %3959 = vdwg.mxu0
      %v3960 = vadd.f32 %v3447, %v3802
      %v3961 = vadd.f32 %v3452, %v3807
      %v3962 = vadd.f32 %v3457, %v3812
      %v3963 = vadd.f32 %v3462, %v3817
      %v3964 = vadd.f32 %v3467, %v3822
      %v3965 = vadd.f32 %v3472, %v3827
      %v3966 = vadd.f32 %v3477, %v3832
      %v3967 = vadd.f32 %v3482, %v3837
      %v3968 = vadd.f32 %v3487, %v3842
      %v3969 = vadd.f32 %v3492, %v3847
      %v3970 = vadd.f32 %v3497, %v3852
      %v3971 = vadd.f32 %v3502, %v3857
      %v3972 = vadd.f32 %v3507, %v3862
      %v3973 = vadd.f32 %v3512, %v3867
      %v3974 = vadd.f32 %v3517, %v3872
      %v3975 = vadd.f32 %v3522, %v3877
      %v3976 = vadd.f32 %v3527, %v3882
      %v3977 = vadd.f32 %v3532, %v3887
      %v3978 = vadd.f32 %v3537, %v3892
      %v3979 = vadd.f32 %v3542, %v3897
      %v3980 = vadd.f32 %v3547, %v3902
      %v3981 = vadd.f32 %v3552, %v3907
      %v3982 = vadd.f32 %v3557, %v3912
      %v3983 = vadd.f32 %v3562, %v3917
      %v3984 = vadd.f32 %v3567, %v3922
      %v3985 = vadd.f32 %v3572, %v3927
      %v3986 = vadd.f32 %v3577, %v3932
      %v3987 = vadd.f32 %v3582, %v3937
      %v3988 = vadd.f32 %v3587, %v3942
      %v3989 = vadd.f32 %v3592, %v3947
      %v3990 = vadd.f32 %v3597, %v3952
      %v3991 = vadd.f32 %v3602, %v3957
      %v3992 = vld [vmem:[%s2863] sm:$0xff]
      %v3993 = vld [vmem:[%s2863 + $0x8] sm:$0xff]
      %v3994 = vld [vmem:[%s2863 + $0x18] sm:$0xff]
      %v3995 = vld [vmem:[%s2863 + $0x20] sm:$0xff]
      %v3996 = vld [vmem:[%s2863 + $0x30] sm:$0xff]
      %v3997 = vld [vmem:[%s2863 + $0x38] sm:$0xff]
      %v3998 = vld [vmem:[%s2863 + $0x48] sm:$0xff]
      %v3999 = vld [vmem:[%s2863 + $0x50] sm:$0xff]
      %v4000 = vld [vmem:[%s2863 + $0x60] sm:$0xff]
      %v4001 = vld [vmem:[%s2863 + $0x68] sm:$0xff]
      %v4002 = vld [vmem:[%s2863 + $0x78] sm:$0xff]
      %v4003 = vld [vmem:[%s2863 + $0x80] sm:$0xff]
      %v4004 = vld [vmem:[%s2863 + $0x90] sm:$0xff]
      %v4005 = vld [vmem:[%s2863 + $0x98] sm:$0xff]
      %v4006 = vld [vmem:[%s2863 + $0xa8] sm:$0xff]
      %v4007 = vld [vmem:[%s2863 + $0xb0] sm:$0xff]
      %v4008 = vld [vmem:[%s2863 + $0xc0] sm:$0xff]
      %v4009 = vld [vmem:[%s2863 + $0xc8] sm:$0xff]
      %v4010 = vld [vmem:[%s2863 + $0xd8] sm:$0xff]
      %v4011 = vld [vmem:[%s2863 + $0xe0] sm:$0xff]
      %v4012 = vld [vmem:[%s2863 + $0xf0] sm:$0xff]
      %v4013 = vld [vmem:[%s2863 + $0xf8] sm:$0xff]
      %v4014 = vld [vmem:[%s2863 + $0x108] sm:$0xff]
      %v4015 = vld [vmem:[%s2863 + $0x110] sm:$0xff]
      %v4016 = vld [vmem:[%s2863 + $0x120] sm:$0xff]
      %v4017 = vld [vmem:[%s2863 + $0x128] sm:$0xff]
      %v4018 = vld [vmem:[%s2863 + $0x138] sm:$0xff]
      %v4019 = vld [vmem:[%s2863 + $0x140] sm:$0xff]
      %v4020 = vld [vmem:[%s2863 + $0x150] sm:$0xff]
      %v4021 = vld [vmem:[%s2863 + $0x158] sm:$0xff]
      %v4022 = vld [vmem:[%s2863 + $0x168] sm:$0xff]
      %v4023 = vld [vmem:[%s2863 + $0x170] sm:$0xff]
      %s4024 = scalar_lea.vmem %s3, 24
      %v4025 = vld [vmem:[%s4024] sm:$0xff]
      %v4027 = vsel %vm2807, %v3992, 0
      %v4030 = vsel %vm2807, %v3993, 0
      %v4033 = vsel %vm2807, %v3994, 0
      %v4036 = vsel %vm2807, %v3995, 0
      %v4039 = vsel %vm2807, %v3996, 0
      %v4042 = vsel %vm2807, %v3997, 0
      %v4045 = vsel %vm2807, %v3998, 0
      %v4048 = vsel %vm2807, %v3999, 0
      %v4051 = vsel %vm2807, %v4000, 0
      %v4054 = vsel %vm2807, %v4001, 0
      %v4057 = vsel %vm2807, %v4002, 0
      %v4060 = vsel %vm2807, %v4003, 0
      %v4063 = vsel %vm2807, %v4004, 0
      %v4066 = vsel %vm2807, %v4005, 0
      %v4069 = vsel %vm2807, %v4006, 0
      %v4072 = vsel %vm2807, %v4007, 0
      %v4075 = vsel %vm2807, %v4008, 0
      %v4078 = vsel %vm2807, %v4009, 0
      %v4081 = vsel %vm2807, %v4010, 0
      %v4084 = vsel %vm2807, %v4011, 0
      %v4087 = vsel %vm2807, %v4012, 0
      %v4090 = vsel %vm2807, %v4013, 0
      %v4093 = vsel %vm2807, %v4014, 0
      %v4096 = vsel %vm2807, %v4015, 0
      %v4099 = vsel %vm2807, %v4016, 0
      %v4102 = vsel %vm2807, %v4017, 0
      %v4105 = vsel %vm2807, %v4018, 0
      %v4108 = vsel %vm2807, %v4019, 0
      %v4111 = vsel %vm2807, %v4020, 0
      %v4114 = vsel %vm2807, %v4021, 0
      %v4117 = vsel %vm2807, %v4022, 0
      %v4120 = vsel %vm2807, %v4023, 0
      %4122 = vmatprep.subr.mxu0 0.0
      %4123 = vmatpush1.msra.mxu0 %v4025
      %4124 = vmatprep.subr.mxu0 0.0
      %4125 = vmatpush1.msra.mxu0 0.0
      %4126 = vmatprep.subr.mxu0 0.0
      %4127 = vmatpush1.msra.mxu0 0.0
      %4128 = vmatprep.subr.mxu0 0.0
      %4129 = vmatpush1.msra.mxu0 0.0
      %4130 = vmatprep.subr.mxu0 0.0
      %4131 = vmatpush1.msra.mxu0 0.0
      %4132 = vmatprep.subr.mxu0 0.0
      %4133 = vmatpush1.msra.mxu0 0.0
      %4134 = vmatprep.subr.mxu0 0.0
      %4135 = vmatpush1.msra.mxu0 0.0
      %4136 = vmatprep.subr.mxu0 0.0
      %4137 = vmatpush1.msra.mxu0 0.0
      %4138 = vmatprep.subr.mxu0 0.0
      %4139 = vmatpush1.msra.mxu0 0.0
      %4140 = vmatprep.subr.mxu0 0.0
      %4141 = vmatpush1.msra.mxu0 0.0
      %4142 = vmatprep.subr.mxu0 0.0
      %4143 = vmatpush1.msra.mxu0 0.0
      %4144 = vmatprep.subr.mxu0 0.0
      %4145 = vmatpush1.msra.mxu0 0.0
      %4146 = vmatprep.subr.mxu0 0.0
      %4147 = vmatpush1.msra.mxu0 0.0
      %4148 = vmatprep.subr.mxu0 0.0
      %4149 = vmatpush1.msra.mxu0 0.0
      %4150 = vmatprep.subr.mxu0 0.0
      %4151 = vmatpush1.msra.mxu0 0.0
      %4152 = vmatprep.subr.mxu0 0.0
      %4153 = vmatpush1.msra.mxu0 0.0
      %4154 = vmatprep.subr.mxu0 0.0
      %4155 = vmatpush1.msra.mxu0 0.0
      %4156 = vmatprep.subr.mxu0 0.0
      %4157 = vmatpush1.msra.mxu0 0.0
      %4158 = vmatprep.subr.mxu0 0.0
      %4159 = vmatpush1.msra.mxu0 0.0
      %4160 = vmatprep.subr.mxu0 0.0
      %4161 = vmatpush1.msra.mxu0 0.0
      %4162 = vmatprep.subr.mxu0 0.0
      %4163 = vmatpush1.msra.mxu0 0.0
      %4164 = vmatprep.subr.mxu0 0.0
      %4165 = vmatpush1.msra.mxu0 0.0
      %4166 = vmatprep.subr.mxu0 0.0
      %4167 = vmatpush1.msra.mxu0 0.0
      %4168 = vmatprep.subr.mxu0 0.0
      %4169 = vmatpush1.msra.mxu0 0.0
      %4170 = vmatprep.subr.mxu0 0.0
      %4171 = vmatpush1.msra.mxu0 0.0
      %4172 = vmatprep.subr.mxu0 0.0
      %4173 = vmatpush1.msra.mxu0 0.0
      %4174 = vmatprep.subr.mxu0 0.0
      %4175 = vmatpush1.msra.mxu0 0.0
      %4176 = vmatprep.subr.mxu0 0.0
      %4177 = vmatpush1.msra.mxu0 0.0
      %4178 = vmatprep.subr.mxu0 0.0
      %4179 = vmatpush1.msra.mxu0 0.0
      %4180 = vmatprep.subr.mxu0 0.0
      %4181 = vmatpush1.msra.mxu0 0.0
      %4182 = vmatprep.subr.mxu0 0.0
      %4183 = vmatpush1.msra.mxu0 0.0
      %4184 = vmatprep.subr.mxu0 0.0
      %4185 = vmatpush1.msra.mxu0 0.0
      %4186 = vmatprep.mubr.f32.mxu0 0.0
      %4187 = vmatmul.mubr.f32.gmra.mrb[0].mxu0 %v4027
      %v4188 = vpop.f32.mrb[0].mxu0
      %v4189 = vadd.f32 0.0, %v4188
      %v4190 = vpop.f32.mrb[0].mxu0
      %4191 = vmatprep.mubr.f32.mxu0 0.0
      %4192 = vmatmul.mubr.f32.gmra.mrb[0].mxu0 %v4030
      %v4193 = vpop.f32.mrb[0].mxu0
      %v4194 = vadd.f32 0.0, %v4193
      %v4195 = vpop.f32.mrb[0].mxu0
      %4196 = vmatprep.mubr.f32.mxu0 0.0
      %4197 = vmatmul.mubr.f32.gmra.mrb[0].mxu0 %v4033
      %v4198 = vpop.f32.mrb[0].mxu0
      %v4199 = vadd.f32 0.0, %v4198
      %v4200 = vpop.f32.mrb[0].mxu0
      %4201 = vmatprep.mubr.f32.mxu0 0.0
      %4202 = vmatmul.mubr.f32.gmra.mrb[0].mxu0 %v4036
      %v4203 = vpop.f32.mrb[0].mxu0
      %v4204 = vadd.f32 0.0, %v4203
      %v4205 = vpop.f32.mrb[0].mxu0
      %4206 = vmatprep.mubr.f32.mxu0 0.0
      %4207 = vmatmul.mubr.f32.gmra.mrb[0].mxu0 %v4039
      %v4208 = vpop.f32.mrb[0].mxu0
      %v4209 = vadd.f32 0.0, %v4208
      %v4210 = vpop.f32.mrb[0].mxu0
      %4211 = vmatprep.mubr.f32.mxu0 0.0
      %4212 = vmatmul.mubr.f32.gmra.mrb[0].mxu0 %v4042
      %v4213 = vpop.f32.mrb[0].mxu0
      %v4214 = vadd.f32 0.0, %v4213
      %v4215 = vpop.f32.mrb[0].mxu0
      %4216 = vmatprep.mubr.f32.mxu0 0.0
      %4217 = vmatmul.mubr.f32.gmra.mrb[0].mxu0 %v4045
      %v4218 = vpop.f32.mrb[0].mxu0
      %v4219 = vadd.f32 0.0, %v4218
      %v4220 = vpop.f32.mrb[0].mxu0
      %4221 = vmatprep.mubr.f32.mxu0 0.0
      %4222 = vmatmul.mubr.f32.gmra.mrb[0].mxu0 %v4048
      %v4223 = vpop.f32.mrb[0].mxu0
      %v4224 = vadd.f32 0.0, %v4223
      %v4225 = vpop.f32.mrb[0].mxu0
      %4226 = vmatprep.mubr.f32.mxu0 0.0
      %4227 = vmatmul.mubr.f32.gmra.mrb[0].mxu0 %v4051
      %v4228 = vpop.f32.mrb[0].mxu0
      %v4229 = vadd.f32 0.0, %v4228
      %v4230 = vpop.f32.mrb[0].mxu0
      %4231 = vmatprep.mubr.f32.mxu0 0.0
      %4232 = vmatmul.mubr.f32.gmra.mrb[0].mxu0 %v4054
      %v4233 = vpop.f32.mrb[0].mxu0
      %v4234 = vadd.f32 0.0, %v4233
      %v4235 = vpop.f32.mrb[0].mxu0
      %4236 = vmatprep.mubr.f32.mxu0 0.0
      %4237 = vmatmul.mubr.f32.gmra.mrb[0].mxu0 %v4057
      %v4238 = vpop.f32.mrb[0].mxu0
      %v4239 = vadd.f32 0.0, %v4238
      %v4240 = vpop.f32.mrb[0].mxu0
      %4241 = vmatprep.mubr.f32.mxu0 0.0
      %4242 = vmatmul.mubr.f32.gmra.mrb[0].mxu0 %v4060
      %v4243 = vpop.f32.mrb[0].mxu0
      %v4244 = vadd.f32 0.0, %v4243
      %v4245 = vpop.f32.mrb[0].mxu0
      %4246 = vmatprep.mubr.f32.mxu0 0.0
      %4247 = vmatmul.mubr.f32.gmra.mrb[0].mxu0 %v4063
      %v4248 = vpop.f32.mrb[0].mxu0
      %v4249 = vadd.f32 0.0, %v4248
      %v4250 = vpop.f32.mrb[0].mxu0
      %4251 = vmatprep.mubr.f32.mxu0 0.0
      %4252 = vmatmul.mubr.f32.gmra.mrb[0].mxu0 %v4066
      %v4253 = vpop.f32.mrb[0].mxu0
      %v4254 = vadd.f32 0.0, %v4253
      %v4255 = vpop.f32.mrb[0].mxu0
      %4256 = vmatprep.mubr.f32.mxu0 0.0
      %4257 = vmatmul.mubr.f32.gmra.mrb[0].mxu0 %v4069
      %v4258 = vpop.f32.mrb[0].mxu0
      %v4259 = vadd.f32 0.0, %v4258
      %v4260 = vpop.f32.mrb[0].mxu0
      %4261 = vmatprep.mubr.f32.mxu0 0.0
      %4262 = vmatmul.mubr.f32.gmra.mrb[0].mxu0 %v4072
      %v4263 = vpop.f32.mrb[0].mxu0
      %v4264 = vadd.f32 0.0, %v4263
      %v4265 = vpop.f32.mrb[0].mxu0
      %4266 = vmatprep.mubr.f32.mxu0 0.0
      %4267 = vmatmul.mubr.f32.gmra.mrb[0].mxu0 %v4075
      %v4268 = vpop.f32.mrb[0].mxu0
      %v4269 = vadd.f32 0.0, %v4268
      %v4270 = vpop.f32.mrb[0].mxu0
      %4271 = vmatprep.mubr.f32.mxu0 0.0
      %4272 = vmatmul.mubr.f32.gmra.mrb[0].mxu0 %v4078
      %v4273 = vpop.f32.mrb[0].mxu0
      %v4274 = vadd.f32 0.0, %v4273
      %v4275 = vpop.f32.mrb[0].mxu0
      %4276 = vmatprep.mubr.f32.mxu0 0.0
      %4277 = vmatmul.mubr.f32.gmra.mrb[0].mxu0 %v4081
      %v4278 = vpop.f32.mrb[0].mxu0
      %v4279 = vadd.f32 0.0, %v4278
      %v4280 = vpop.f32.mrb[0].mxu0
      %4281 = vmatprep.mubr.f32.mxu0 0.0
      %4282 = vmatmul.mubr.f32.gmra.mrb[0].mxu0 %v4084
      %v4283 = vpop.f32.mrb[0].mxu0
      %v4284 = vadd.f32 0.0, %v4283
      %v4285 = vpop.f32.mrb[0].mxu0
      %4286 = vmatprep.mubr.f32.mxu0 0.0
      %4287 = vmatmul.mubr.f32.gmra.mrb[0].mxu0 %v4087
      %v4288 = vpop.f32.mrb[0].mxu0
      %v4289 = vadd.f32 0.0, %v4288
      %v4290 = vpop.f32.mrb[0].mxu0
      %4291 = vmatprep.mubr.f32.mxu0 0.0
      %4292 = vmatmul.mubr.f32.gmra.mrb[0].mxu0 %v4090
      %v4293 = vpop.f32.mrb[0].mxu0
      %v4294 = vadd.f32 0.0, %v4293
      %v4295 = vpop.f32.mrb[0].mxu0
      %4296 = vmatprep.mubr.f32.mxu0 0.0
      %4297 = vmatmul.mubr.f32.gmra.mrb[0].mxu0 %v4093
      %v4298 = vpop.f32.mrb[0].mxu0
      %v4299 = vadd.f32 0.0, %v4298
      %v4300 = vpop.f32.mrb[0].mxu0
      %4301 = vmatprep.mubr.f32.mxu0 0.0
      %4302 = vmatmul.mubr.f32.gmra.mrb[0].mxu0 %v4096
      %v4303 = vpop.f32.mrb[0].mxu0
      %v4304 = vadd.f32 0.0, %v4303
      %v4305 = vpop.f32.mrb[0].mxu0
      %4306 = vmatprep.mubr.f32.mxu0 0.0
      %4307 = vmatmul.mubr.f32.gmra.mrb[0].mxu0 %v4099
      %v4308 = vpop.f32.mrb[0].mxu0
      %v4309 = vadd.f32 0.0, %v4308
      %v4310 = vpop.f32.mrb[0].mxu0
      %4311 = vmatprep.mubr.f32.mxu0 0.0
      %4312 = vmatmul.mubr.f32.gmra.mrb[0].mxu0 %v4102
      %v4313 = vpop.f32.mrb[0].mxu0
      %v4314 = vadd.f32 0.0, %v4313
      %v4315 = vpop.f32.mrb[0].mxu0
      %4316 = vmatprep.mubr.f32.mxu0 0.0
      %4317 = vmatmul.mubr.f32.gmra.mrb[0].mxu0 %v4105
      %v4318 = vpop.f32.mrb[0].mxu0
      %v4319 = vadd.f32 0.0, %v4318
      %v4320 = vpop.f32.mrb[0].mxu0
      %4321 = vmatprep.mubr.f32.mxu0 0.0
      %4322 = vmatmul.mubr.f32.gmra.mrb[0].mxu0 %v4108
      %v4323 = vpop.f32.mrb[0].mxu0
      %v4324 = vadd.f32 0.0, %v4323
      %v4325 = vpop.f32.mrb[0].mxu0
      %4326 = vmatprep.mubr.f32.mxu0 0.0
      %4327 = vmatmul.mubr.f32.gmra.mrb[0].mxu0 %v4111
      %v4328 = vpop.f32.mrb[0].mxu0
      %v4329 = vadd.f32 0.0, %v4328
      %v4330 = vpop.f32.mrb[0].mxu0
      %4331 = vmatprep.mubr.f32.mxu0 0.0
      %4332 = vmatmul.mubr.f32.gmra.mrb[0].mxu0 %v4114
      %v4333 = vpop.f32.mrb[0].mxu0
      %v4334 = vadd.f32 0.0, %v4333
      %v4335 = vpop.f32.mrb[0].mxu0
      %4336 = vmatprep.mubr.f32.mxu0 0.0
      %4337 = vmatmul.mubr.f32.gmra.mrb[0].mxu0 %v4117
      %v4338 = vpop.f32.mrb[0].mxu0
      %v4339 = vadd.f32 0.0, %v4338
      %v4340 = vpop.f32.mrb[0].mxu0
      %4341 = vmatprep.mubr.f32.mxu0 0.0
      %4342 = vmatmul.mubr.f32.gmra.mrb[0].mxu0 %v4120
      %v4343 = vpop.f32.mrb[0].mxu0
      %v4344 = vadd.f32 0.0, %v4343
      %v4345 = vpop.f32.mrb[0].mxu0
      %4346 = vdwg.mxu0
      %v4347 = vadd.f32 %v3960, %v4189
      %v4348 = vadd.f32 %v3961, %v4194
      %v4349 = vadd.f32 %v3962, %v4199
      %v4350 = vadd.f32 %v3963, %v4204
      %v4351 = vadd.f32 %v3964, %v4209
      %v4352 = vadd.f32 %v3965, %v4214
      %v4353 = vadd.f32 %v3966, %v4219
      %v4354 = vadd.f32 %v3967, %v4224
      %v4355 = vadd.f32 %v3968, %v4229
      %v4356 = vadd.f32 %v3969, %v4234
      %v4357 = vadd.f32 %v3970, %v4239
      %v4358 = vadd.f32 %v3971, %v4244
      %v4359 = vadd.f32 %v3972, %v4249
      %v4360 = vadd.f32 %v3973, %v4254
      %v4361 = vadd.f32 %v3974, %v4259
      %v4362 = vadd.f32 %v3975, %v4264
      %v4363 = vadd.f32 %v3976, %v4269
      %v4364 = vadd.f32 %v3977, %v4274
      %v4365 = vadd.f32 %v3978, %v4279
      %v4366 = vadd.f32 %v3979, %v4284
      %v4367 = vadd.f32 %v3980, %v4289
      %v4368 = vadd.f32 %v3981, %v4294
      %v4369 = vadd.f32 %v3982, %v4299
      %v4370 = vadd.f32 %v3983, %v4304
      %v4371 = vadd.f32 %v3984, %v4309
      %v4372 = vadd.f32 %v3985, %v4314
      %v4373 = vadd.f32 %v3986, %v4319
      %v4374 = vadd.f32 %v3987, %v4324
      %v4375 = vadd.f32 %v3988, %v4329
      %v4376 = vadd.f32 %v3989, %v4334
      %v4377 = vadd.f32 %v3990, %v4339
      %v4378 = vadd.f32 %v3991, %v4344
      %v4379 = vld [vmem:[%s2863 + $0x1] sm:$0xff]
      %v4380 = vld [vmem:[%s2863 + $0x9] sm:$0xff]
      %v4381 = vld [vmem:[%s2863 + $0x19] sm:$0xff]
      %v4382 = vld [vmem:[%s2863 + $0x21] sm:$0xff]
      %v4383 = vld [vmem:[%s2863 + $0x31] sm:$0xff]
      %v4384 = vld [vmem:[%s2863 + $0x39] sm:$0xff]
      %v4385 = vld [vmem:[%s2863 + $0x49] sm:$0xff]
      %v4386 = vld [vmem:[%s2863 + $0x51] sm:$0xff]
      %v4387 = vld [vmem:[%s2863 + $0x61] sm:$0xff]
      %v4388 = vld [vmem:[%s2863 + $0x69] sm:$0xff]
      %v4389 = vld [vmem:[%s2863 + $0x79] sm:$0xff]
      %v4390 = vld [vmem:[%s2863 + $0x81] sm:$0xff]
      %v4391 = vld [vmem:[%s2863 + $0x91] sm:$0xff]
      %v4392 = vld [vmem:[%s2863 + $0x99] sm:$0xff]
      %v4393 = vld [vmem:[%s2863 + $0xa9] sm:$0xff]
      %v4394 = vld [vmem:[%s2863 + $0xb1] sm:$0xff]
      %v4395 = vld [vmem:[%s2863 + $0xc1] sm:$0xff]
      %v4396 = vld [vmem:[%s2863 + $0xc9] sm:$0xff]
      %v4397 = vld [vmem:[%s2863 + $0xd9] sm:$0xff]
      %v4398 = vld [vmem:[%s2863 + $0xe1] sm:$0xff]
      %v4399 = vld [vmem:[%s2863 + $0xf1] sm:$0xff]
      %v4400 = vld [vmem:[%s2863 + $0xf9] sm:$0xff]
      %v4401 = vld [vmem:[%s2863 + $0x109] sm:$0xff]
      %v4402 = vld [vmem:[%s2863 + $0x111] sm:$0xff]
      %v4403 = vld [vmem:[%s2863 + $0x121] sm:$0xff]
      %v4404 = vld [vmem:[%s2863 + $0x129] sm:$0xff]
      %v4405 = vld [vmem:[%s2863 + $0x139] sm:$0xff]
      %v4406 = vld [vmem:[%s2863 + $0x141] sm:$0xff]
      %v4407 = vld [vmem:[%s2863 + $0x151] sm:$0xff]
      %v4408 = vld [vmem:[%s2863 + $0x159] sm:$0xff]
      %v4409 = vld [vmem:[%s2863 + $0x169] sm:$0xff]
      %v4410 = vld [vmem:[%s2863 + $0x171] sm:$0xff]
      %s4411 = scalar_lea.vmem %s3, 32
      %v4412 = vld [vmem:[%s4411] sm:$0xff]
      %v4414 = vsel %vm2807, %v4379, 0
      %v4417 = vsel %vm2807, %v4380, 0
      %v4420 = vsel %vm2807, %v4381, 0
      %v4423 = vsel %vm2807, %v4382, 0
      %v4426 = vsel %vm2807, %v4383, 0
      %v4429 = vsel %vm2807, %v4384, 0
      %v4432 = vsel %vm2807, %v4385, 0
      %v4435 = vsel %vm2807, %v4386, 0
      %v4438 = vsel %vm2807, %v4387, 0
      %v4441 = vsel %vm2807, %v4388, 0
      %v4444 = vsel %vm2807, %v4389, 0
      %v4447 = vsel %vm2807, %v4390, 0
      %v4450 = vsel %vm2807, %v4391, 0
      %v4453 = vsel %vm2807, %v4392, 0
      %v4456 = vsel %vm2807, %v4393, 0
      %v4459 = vsel %vm2807, %v4394, 0
      %v4462 = vsel %vm2807, %v4395, 0
      %v4465 = vsel %vm2807, %v4396, 0
      %v4468 = vsel %vm2807, %v4397, 0
      %v4471 = vsel %vm2807, %v4398, 0
      %v4474 = vsel %vm2807, %v4399, 0
      %v4477 = vsel %vm2807, %v4400, 0
      %v4480 = vsel %vm2807, %v4401, 0
      %v4483 = vsel %vm2807, %v4402, 0
      %v4486 = vsel %vm2807, %v4403, 0
      %v4489 = vsel %vm2807, %v4404, 0
      %v4492 = vsel %vm2807, %v4405, 0
      %v4495 = vsel %vm2807, %v4406, 0
      %v4498 = vsel %vm2807, %v4407, 0
      %v4501 = vsel %vm2807, %v4408, 0
      %v4504 = vsel %vm2807, %v4409, 0
      %v4507 = vsel %vm2807, %v4410, 0
      %4509 = vmatprep.subr.mxu0 0.0
      %4510 = vmatpush1.msra.mxu0 %v4412
      %4511 = vmatprep.subr.mxu0 0.0
      %4512 = vmatpush1.msra.mxu0 0.0
      %4513 = vmatprep.subr.mxu0 0.0
      %4514 = vmatpush1.msra.mxu0 0.0
      %4515 = vmatprep.subr.mxu0 0.0
      %4516 = vmatpush1.msra.mxu0 0.0
      %4517 = vmatprep.subr.mxu0 0.0
      %4518 = vmatpush1.msra.mxu0 0.0
      %4519 = vmatprep.subr.mxu0 0.0
      %4520 = vmatpush1.msra.mxu0 0.0
      %4521 = vmatprep.subr.mxu0 0.0
      %4522 = vmatpush1.msra.mxu0 0.0
      %4523 = vmatprep.subr.mxu0 0.0
      %4524 = vmatpush1.msra.mxu0 0.0
      %4525 = vmatprep.subr.mxu0 0.0
      %4526 = vmatpush1.msra.mxu0 0.0
      %4527 = vmatprep.subr.mxu0 0.0
      %4528 = vmatpush1.msra.mxu0 0.0
      %4529 = vmatprep.subr.mxu0 0.0
      %4530 = vmatpush1.msra.mxu0 0.0
      %4531 = vmatprep.subr.mxu0 0.0
      %4532 = vmatpush1.msra.mxu0 0.0
      %4533 = vmatprep.subr.mxu0 0.0
      %4534 = vmatpush1.msra.mxu0 0.0
      %4535 = vmatprep.subr.mxu0 0.0
      %4536 = vmatpush1.msra.mxu0 0.0
      %4537 = vmatprep.subr.mxu0 0.0
      %4538 = vmatpush1.msra.mxu0 0.0
      %4539 = vmatprep.subr.mxu0 0.0
      %4540 = vmatpush1.msra.mxu0 0.0
      %4541 = vmatprep.subr.mxu0 0.0
      %4542 = vmatpush1.msra.mxu0 0.0
      %4543 = vmatprep.subr.mxu0 0.0
      %4544 = vmatpush1.msra.mxu0 0.0
      %4545 = vmatprep.subr.mxu0 0.0
      %4546 = vmatpush1.msra.mxu0 0.0
      %4547 = vmatprep.subr.mxu0 0.0
      %4548 = vmatpush1.msra.mxu0 0.0
      %4549 = vmatprep.subr.mxu0 0.0
      %4550 = vmatpush1.msra.mxu0 0.0
      %4551 = vmatprep.subr.mxu0 0.0
      %4552 = vmatpush1.msra.mxu0 0.0
      %4553 = vmatprep.subr.mxu0 0.0
      %4554 = vmatpush1.msra.mxu0 0.0
      %4555 = vmatprep.subr.mxu0 0.0
      %4556 = vmatpush1.msra.mxu0 0.0
      %4557 = vmatprep.subr.mxu0 0.0
      %4558 = vmatpush1.msra.mxu0 0.0
      %4559 = vmatprep.subr.mxu0 0.0
      %4560 = vmatpush1.msra.mxu0 0.0
      %4561 = vmatprep.subr.mxu0 0.0
      %4562 = vmatpush1.msra.mxu0 0.0
      %4563 = vmatprep.subr.mxu0 0.0
      %4564 = vmatpush1.msra.mxu0 0.0
      %4565 = vmatprep.subr.mxu0 0.0
      %4566 = vmatpush1.msra.mxu0 0.0
      %4567 = vmatprep.subr.mxu0 0.0
      %4568 = vmatpush1.msra.mxu0 0.0
      %4569 = vmatprep.subr.mxu0 0.0
      %4570 = vmatpush1.msra.mxu0 0.0
      %4571 = vmatprep.subr.mxu0 0.0
      %4572 = vmatpush1.msra.mxu0 0.0
      %4573 = vmatprep.mubr.f32.mxu0 0.0
      %4574 = vmatmul.mubr.f32.gmra.mrb[0].mxu0 %v4414
      %v4575 = vpop.f32.mrb[0].mxu0
      %v4576 = vadd.f32 0.0, %v4575
      %v4577 = vpop.f32.mrb[0].mxu0
      %4578 = vmatprep.mubr.f32.mxu0 0.0
      %4579 = vmatmul.mubr.f32.gmra.mrb[0].mxu0 %v4417
      %v4580 = vpop.f32.mrb[0].mxu0
      %v4581 = vadd.f32 0.0, %v4580
      %v4582 = vpop.f32.mrb[0].mxu0
      %4583 = vmatprep.mubr.f32.mxu0 0.0
      %4584 = vmatmul.mubr.f32.gmra.mrb[0].mxu0 %v4420
      %v4585 = vpop.f32.mrb[0].mxu0
      %v4586 = vadd.f32 0.0, %v4585
      %v4587 = vpop.f32.mrb[0].mxu0
      %4588 = vmatprep.mubr.f32.mxu0 0.0
      %4589 = vmatmul.mubr.f32.gmra.mrb[0].mxu0 %v4423
      %v4590 = vpop.f32.mrb[0].mxu0
      %v4591 = vadd.f32 0.0, %v4590
      %v4592 = vpop.f32.mrb[0].mxu0
      %4593 = vmatprep.mubr.f32.mxu0 0.0
      %4594 = vmatmul.mubr.f32.gmra.mrb[0].mxu0 %v4426
      %v4595 = vpop.f32.mrb[0].mxu0
      %v4596 = vadd.f32 0.0, %v4595
      %v4597 = vpop.f32.mrb[0].mxu0
      %4598 = vmatprep.mubr.f32.mxu0 0.0
      %4599 = vmatmul.mubr.f32.gmra.mrb[0].mxu0 %v4429
      %v4600 = vpop.f32.mrb[0].mxu0
      %v4601 = vadd.f32 0.0, %v4600
      %v4602 = vpop.f32.mrb[0].mxu0
      %4603 = vmatprep.mubr.f32.mxu0 0.0
      %4604 = vmatmul.mubr.f32.gmra.mrb[0].mxu0 %v4432
      %v4605 = vpop.f32.mrb[0].mxu0
      %v4606 = vadd.f32 0.0, %v4605
      %v4607 = vpop.f32.mrb[0].mxu0
      %4608 = vmatprep.mubr.f32.mxu0 0.0
      %4609 = vmatmul.mubr.f32.gmra.mrb[0].mxu0 %v4435
      %v4610 = vpop.f32.mrb[0].mxu0
      %v4611 = vadd.f32 0.0, %v4610
      %v4612 = vpop.f32.mrb[0].mxu0
      %4613 = vmatprep.mubr.f32.mxu0 0.0
      %4614 = vmatmul.mubr.f32.gmra.mrb[0].mxu0 %v4438
      %v4615 = vpop.f32.mrb[0].mxu0
      %v4616 = vadd.f32 0.0, %v4615
      %v4617 = vpop.f32.mrb[0].mxu0
      %4618 = vmatprep.mubr.f32.mxu0 0.0
      %4619 = vmatmul.mubr.f32.gmra.mrb[0].mxu0 %v4441
      %v4620 = vpop.f32.mrb[0].mxu0
      %v4621 = vadd.f32 0.0, %v4620
      %v4622 = vpop.f32.mrb[0].mxu0
      %4623 = vmatprep.mubr.f32.mxu0 0.0
      %4624 = vmatmul.mubr.f32.gmra.mrb[0].mxu0 %v4444
      %v4625 = vpop.f32.mrb[0].mxu0
      %v4626 = vadd.f32 0.0, %v4625
      %v4627 = vpop.f32.mrb[0].mxu0
      %4628 = vmatprep.mubr.f32.mxu0 0.0
      %4629 = vmatmul.mubr.f32.gmra.mrb[0].mxu0 %v4447
      %v4630 = vpop.f32.mrb[0].mxu0
      %v4631 = vadd.f32 0.0, %v4630
      %v4632 = vpop.f32.mrb[0].mxu0
      %4633 = vmatprep.mubr.f32.mxu0 0.0
      %4634 = vmatmul.mubr.f32.gmra.mrb[0].mxu0 %v4450
      %v4635 = vpop.f32.mrb[0].mxu0
      %v4636 = vadd.f32 0.0, %v4635
      %v4637 = vpop.f32.mrb[0].mxu0
      %4638 = vmatprep.mubr.f32.mxu0 0.0
      %4639 = vmatmul.mubr.f32.gmra.mrb[0].mxu0 %v4453
      %v4640 = vpop.f32.mrb[0].mxu0
      %v4641 = vadd.f32 0.0, %v4640
      %v4642 = vpop.f32.mrb[0].mxu0
      %4643 = vmatprep.mubr.f32.mxu0 0.0
      %4644 = vmatmul.mubr.f32.gmra.mrb[0].mxu0 %v4456
      %v4645 = vpop.f32.mrb[0].mxu0
      %v4646 = vadd.f32 0.0, %v4645
      %v4647 = vpop.f32.mrb[0].mxu0
      %4648 = vmatprep.mubr.f32.mxu0 0.0
      %4649 = vmatmul.mubr.f32.gmra.mrb[0].mxu0 %v4459
      %v4650 = vpop.f32.mrb[0].mxu0
      %v4651 = vadd.f32 0.0, %v4650
      %v4652 = vpop.f32.mrb[0].mxu0
      %4653 = vmatprep.mubr.f32.mxu0 0.0
      %4654 = vmatmul.mubr.f32.gmra.mrb[0].mxu0 %v4462
      %v4655 = vpop.f32.mrb[0].mxu0
      %v4656 = vadd.f32 0.0, %v4655
      %v4657 = vpop.f32.mrb[0].mxu0
      %4658 = vmatprep.mubr.f32.mxu0 0.0
      %4659 = vmatmul.mubr.f32.gmra.mrb[0].mxu0 %v4465
      %v4660 = vpop.f32.mrb[0].mxu0
      %v4661 = vadd.f32 0.0, %v4660
      %v4662 = vpop.f32.mrb[0].mxu0
      %4663 = vmatprep.mubr.f32.mxu0 0.0
      %4664 = vmatmul.mubr.f32.gmra.mrb[0].mxu0 %v4468
      %v4665 = vpop.f32.mrb[0].mxu0
      %v4666 = vadd.f32 0.0, %v4665
      %v4667 = vpop.f32.mrb[0].mxu0
      %4668 = vmatprep.mubr.f32.mxu0 0.0
      %4669 = vmatmul.mubr.f32.gmra.mrb[0].mxu0 %v4471
      %v4670 = vpop.f32.mrb[0].mxu0
      %v4671 = vadd.f32 0.0, %v4670
      %v4672 = vpop.f32.mrb[0].mxu0
      %4673 = vmatprep.mubr.f32.mxu0 0.0
      %4674 = vmatmul.mubr.f32.gmra.mrb[0].mxu0 %v4474
      %v4675 = vpop.f32.mrb[0].mxu0
      %v4676 = vadd.f32 0.0, %v4675
      %v4677 = vpop.f32.mrb[0].mxu0
      %4678 = vmatprep.mubr.f32.mxu0 0.0
      %4679 = vmatmul.mubr.f32.gmra.mrb[0].mxu0 %v4477
      %v4680 = vpop.f32.mrb[0].mxu0
      %v4681 = vadd.f32 0.0, %v4680
      %v4682 = vpop.f32.mrb[0].mxu0
      %4683 = vmatprep.mubr.f32.mxu0 0.0
      %4684 = vmatmul.mubr.f32.gmra.mrb[0].mxu0 %v4480
      %v4685 = vpop.f32.mrb[0].mxu0
      %v4686 = vadd.f32 0.0, %v4685
      %v4687 = vpop.f32.mrb[0].mxu0
      %4688 = vmatprep.mubr.f32.mxu0 0.0
      %4689 = vmatmul.mubr.f32.gmra.mrb[0].mxu0 %v4483
      %v4690 = vpop.f32.mrb[0].mxu0
      %v4691 = vadd.f32 0.0, %v4690
      %v4692 = vpop.f32.mrb[0].mxu0
      %4693 = vmatprep.mubr.f32.mxu0 0.0
      %4694 = vmatmul.mubr.f32.gmra.mrb[0].mxu0 %v4486
      %v4695 = vpop.f32.mrb[0].mxu0
      %v4696 = vadd.f32 0.0, %v4695
      %v4697 = vpop.f32.mrb[0].mxu0
      %4698 = vmatprep.mubr.f32.mxu0 0.0
      %4699 = vmatmul.mubr.f32.gmra.mrb[0].mxu0 %v4489
      %v4700 = vpop.f32.mrb[0].mxu0
      %v4701 = vadd.f32 0.0, %v4700
      %v4702 = vpop.f32.mrb[0].mxu0
      %4703 = vmatprep.mubr.f32.mxu0 0.0
      %4704 = vmatmul.mubr.f32.gmra.mrb[0].mxu0 %v4492
      %v4705 = vpop.f32.mrb[0].mxu0
      %v4706 = vadd.f32 0.0, %v4705
      %v4707 = vpop.f32.mrb[0].mxu0
      %4708 = vmatprep.mubr.f32.mxu0 0.0
      %4709 = vmatmul.mubr.f32.gmra.mrb[0].mxu0 %v4495
      %v4710 = vpop.f32.mrb[0].mxu0
      %v4711 = vadd.f32 0.0, %v4710
      %v4712 = vpop.f32.mrb[0].mxu0
      %4713 = vmatprep.mubr.f32.mxu0 0.0
      %4714 = vmatmul.mubr.f32.gmra.mrb[0].mxu0 %v4498
      %v4715 = vpop.f32.mrb[0].mxu0
      %v4716 = vadd.f32 0.0, %v4715
      %v4717 = vpop.f32.mrb[0].mxu0
      %4718 = vmatprep.mubr.f32.mxu0 0.0
      %4719 = vmatmul.mubr.f32.gmra.mrb[0].mxu0 %v4501
      %v4720 = vpop.f32.mrb[0].mxu0
      %v4721 = vadd.f32 0.0, %v4720
      %v4722 = vpop.f32.mrb[0].mxu0
      %4723 = vmatprep.mubr.f32.mxu0 0.0
      %4724 = vmatmul.mubr.f32.gmra.mrb[0].mxu0 %v4504
      %v4725 = vpop.f32.mrb[0].mxu0
      %v4726 = vadd.f32 0.0, %v4725
      %v4727 = vpop.f32.mrb[0].mxu0
      %4728 = vmatprep.mubr.f32.mxu0 0.0
      %4729 = vmatmul.mubr.f32.gmra.mrb[0].mxu0 %v4507
      %v4730 = vpop.f32.mrb[0].mxu0
      %v4731 = vadd.f32 0.0, %v4730
      %v4732 = vpop.f32.mrb[0].mxu0
      %4733 = vdwg.mxu0
      %v4734 = vadd.f32 %v4347, %v4576
      %v4735 = vadd.f32 %v4348, %v4581
      %v4736 = vadd.f32 %v4349, %v4586
      %v4737 = vadd.f32 %v4350, %v4591
      %v4738 = vadd.f32 %v4351, %v4596
      %v4739 = vadd.f32 %v4352, %v4601
      %v4740 = vadd.f32 %v4353, %v4606
      %v4741 = vadd.f32 %v4354, %v4611
      %v4742 = vadd.f32 %v4355, %v4616
      %v4743 = vadd.f32 %v4356, %v4621
      %v4744 = vadd.f32 %v4357, %v4626
      %v4745 = vadd.f32 %v4358, %v4631
      %v4746 = vadd.f32 %v4359, %v4636
      %v4747 = vadd.f32 %v4360, %v4641
      %v4748 = vadd.f32 %v4361, %v4646
      %v4749 = vadd.f32 %v4362, %v4651
      %v4750 = vadd.f32 %v4363, %v4656
      %v4751 = vadd.f32 %v4364, %v4661
      %v4752 = vadd.f32 %v4365, %v4666
      %v4753 = vadd.f32 %v4366, %v4671
      %v4754 = vadd.f32 %v4367, %v4676
      %v4755 = vadd.f32 %v4368, %v4681
      %v4756 = vadd.f32 %v4369, %v4686
      %v4757 = vadd.f32 %v4370, %v4691
      %v4758 = vadd.f32 %v4371, %v4696
      %v4759 = vadd.f32 %v4372, %v4701
      %v4760 = vadd.f32 %v4373, %v4706
      %v4761 = vadd.f32 %v4374, %v4711
      %v4762 = vadd.f32 %v4375, %v4716
      %v4763 = vadd.f32 %v4376, %v4721
      %v4764 = vadd.f32 %v4377, %v4726
      %v4765 = vadd.f32 %v4378, %v4731
      %v4766 = vld [vmem:[%s2863 + $0x2] sm:$0xff]
      %v4767 = vld [vmem:[%s2863 + $0xa] sm:$0xff]
      %v4768 = vld [vmem:[%s2863 + $0x1a] sm:$0xff]
      %v4769 = vld [vmem:[%s2863 + $0x22] sm:$0xff]
      %v4770 = vld [vmem:[%s2863 + $0x32] sm:$0xff]
      %v4771 = vld [vmem:[%s2863 + $0x3a] sm:$0xff]
      %v4772 = vld [vmem:[%s2863 + $0x4a] sm:$0xff]
      %v4773 = vld [vmem:[%s2863 + $0x52] sm:$0xff]
      %v4774 = vld [vmem:[%s2863 + $0x62] sm:$0xff]
      %v4775 = vld [vmem:[%s2863 + $0x6a] sm:$0xff]
      %v4776 = vld [vmem:[%s2863 + $0x7a] sm:$0xff]
      %v4777 = vld [vmem:[%s2863 + $0x82] sm:$0xff]
      %v4778 = vld [vmem:[%s2863 + $0x92] sm:$0xff]
      %v4779 = vld [vmem:[%s2863 + $0x9a] sm:$0xff]
      %v4780 = vld [vmem:[%s2863 + $0xaa] sm:$0xff]
      %v4781 = vld [vmem:[%s2863 + $0xb2] sm:$0xff]
      %v4782 = vld [vmem:[%s2863 + $0xc2] sm:$0xff]
      %v4783 = vld [vmem:[%s2863 + $0xca] sm:$0xff]
      %v4784 = vld [vmem:[%s2863 + $0xda] sm:$0xff]
      %v4785 = vld [vmem:[%s2863 + $0xe2] sm:$0xff]
      %v4786 = vld [vmem:[%s2863 + $0xf2] sm:$0xff]
      %v4787 = vld [vmem:[%s2863 + $0xfa] sm:$0xff]
      %v4788 = vld [vmem:[%s2863 + $0x10a] sm:$0xff]
      %v4789 = vld [vmem:[%s2863 + $0x112] sm:$0xff]
      %v4790 = vld [vmem:[%s2863 + $0x122] sm:$0xff]
      %v4791 = vld [vmem:[%s2863 + $0x12a] sm:$0xff]
      %v4792 = vld [vmem:[%s2863 + $0x13a] sm:$0xff]
      %v4793 = vld [vmem:[%s2863 + $0x142] sm:$0xff]
      %v4794 = vld [vmem:[%s2863 + $0x152] sm:$0xff]
      %v4795 = vld [vmem:[%s2863 + $0x15a] sm:$0xff]
      %v4796 = vld [vmem:[%s2863 + $0x16a] sm:$0xff]
      %v4797 = vld [vmem:[%s2863 + $0x172] sm:$0xff]
      %s4798 = scalar_lea.vmem %s3, 40
      %v4799 = vld [vmem:[%s4798] sm:$0xff]
      %v4801 = vsel %vm2807, %v4766, 0
      %v4804 = vsel %vm2807, %v4767, 0
      %v4807 = vsel %vm2807, %v4768, 0
      %v4810 = vsel %vm2807, %v4769, 0
      %v4813 = vsel %vm2807, %v4770, 0
      %v4816 = vsel %vm2807, %v4771, 0
      %v4819 = vsel %vm2807, %v4772, 0
      %v4822 = vsel %vm2807, %v4773, 0
      %v4825 = vsel %vm2807, %v4774, 0
      %v4828 = vsel %vm2807, %v4775, 0
      %v4831 = vsel %vm2807, %v4776, 0
      %v4834 = vsel %vm2807, %v4777, 0
      %v4837 = vsel %vm2807, %v4778, 0
      %v4840 = vsel %vm2807, %v4779, 0
      %v4843 = vsel %vm2807, %v4780, 0
      %v4846 = vsel %vm2807, %v4781, 0
      %v4849 = vsel %vm2807, %v4782, 0
      %v4852 = vsel %vm2807, %v4783, 0
      %v4855 = vsel %vm2807, %v4784, 0
      %v4858 = vsel %vm2807, %v4785, 0
      %v4861 = vsel %vm2807, %v4786, 0
      %v4864 = vsel %vm2807, %v4787, 0
      %v4867 = vsel %vm2807, %v4788, 0
      %v4870 = vsel %vm2807, %v4789, 0
      %v4873 = vsel %vm2807, %v4790, 0
      %v4876 = vsel %vm2807, %v4791, 0
      %v4879 = vsel %vm2807, %v4792, 0
      %v4882 = vsel %vm2807, %v4793, 0
      %v4885 = vsel %vm2807, %v4794, 0
      %v4888 = vsel %vm2807, %v4795, 0
      %v4891 = vsel %vm2807, %v4796, 0
      %v4894 = vsel %vm2807, %v4797, 0
      %4896 = vmatprep.subr.mxu0 0.0
      %4897 = vmatpush1.msra.mxu0 %v4799
      %4898 = vmatprep.subr.mxu0 0.0
      %4899 = vmatpush1.msra.mxu0 0.0
      %4900 = vmatprep.subr.mxu0 0.0
      %4901 = vmatpush1.msra.mxu0 0.0
      %4902 = vmatprep.subr.mxu0 0.0
      %4903 = vmatpush1.msra.mxu0 0.0
      %4904 = vmatprep.subr.mxu0 0.0
      %4905 = vmatpush1.msra.mxu0 0.0
      %4906 = vmatprep.subr.mxu0 0.0
      %4907 = vmatpush1.msra.mxu0 0.0
      %4908 = vmatprep.subr.mxu0 0.0
      %4909 = vmatpush1.msra.mxu0 0.0
      %4910 = vmatprep.subr.mxu0 0.0
      %4911 = vmatpush1.msra.mxu0 0.0
      %4912 = vmatprep.subr.mxu0 0.0
      %4913 = vmatpush1.msra.mxu0 0.0
      %4914 = vmatprep.subr.mxu0 0.0
      %4915 = vmatpush1.msra.mxu0 0.0
      %4916 = vmatprep.subr.mxu0 0.0
      %4917 = vmatpush1.msra.mxu0 0.0
      %4918 = vmatprep.subr.mxu0 0.0
      %4919 = vmatpush1.msra.mxu0 0.0
      %4920 = vmatprep.subr.mxu0 0.0
      %4921 = vmatpush1.msra.mxu0 0.0
      %4922 = vmatprep.subr.mxu0 0.0
      %4923 = vmatpush1.msra.mxu0 0.0
      %4924 = vmatprep.subr.mxu0 0.0
      %4925 = vmatpush1.msra.mxu0 0.0
      %4926 = vmatprep.subr.mxu0 0.0
      %4927 = vmatpush1.msra.mxu0 0.0
      %4928 = vmatprep.subr.mxu0 0.0
      %4929 = vmatpush1.msra.mxu0 0.0
      %4930 = vmatprep.subr.mxu0 0.0
      %4931 = vmatpush1.msra.mxu0 0.0
      %4932 = vmatprep.subr.mxu0 0.0
      %4933 = vmatpush1.msra.mxu0 0.0
      %4934 = vmatprep.subr.mxu0 0.0
      %4935 = vmatpush1.msra.mxu0 0.0
      %4936 = vmatprep.subr.mxu0 0.0
      %4937 = vmatpush1.msra.mxu0 0.0
      %4938 = vmatprep.subr.mxu0 0.0
      %4939 = vmatpush1.msra.mxu0 0.0
      %4940 = vmatprep.subr.mxu0 0.0
      %4941 = vmatpush1.msra.mxu0 0.0
      %4942 = vmatprep.subr.mxu0 0.0
      %4943 = vmatpush1.msra.mxu0 0.0
      %4944 = vmatprep.subr.mxu0 0.0
      %4945 = vmatpush1.msra.mxu0 0.0
      %4946 = vmatprep.subr.mxu0 0.0
      %4947 = vmatpush1.msra.mxu0 0.0
      %4948 = vmatprep.subr.mxu0 0.0
      %4949 = vmatpush1.msra.mxu0 0.0
      %4950 = vmatprep.subr.mxu0 0.0
      %4951 = vmatpush1.msra.mxu0 0.0
      %4952 = vmatprep.subr.mxu0 0.0
      %4953 = vmatpush1.msra.mxu0 0.0
      %4954 = vmatprep.subr.mxu0 0.0
      %4955 = vmatpush1.msra.mxu0 0.0
      %4956 = vmatprep.subr.mxu0 0.0
      %4957 = vmatpush1.msra.mxu0 0.0
      %4958 = vmatprep.subr.mxu0 0.0
      %4959 = vmatpush1.msra.mxu0 0.0
      %4960 = vmatprep.mubr.f32.mxu0 0.0
      %4961 = vmatmul.mubr.f32.gmra.mrb[0].mxu0 %v4801
      %v4962 = vpop.f32.mrb[0].mxu0
      %v4963 = vadd.f32 0.0, %v4962
      %v4964 = vpop.f32.mrb[0].mxu0
      %4965 = vmatprep.mubr.f32.mxu0 0.0
      %4966 = vmatmul.mubr.f32.gmra.mrb[0].mxu0 %v4804
      %v4967 = vpop.f32.mrb[0].mxu0
      %v4968 = vadd.f32 0.0, %v4967
      %v4969 = vpop.f32.mrb[0].mxu0
      %4970 = vmatprep.mubr.f32.mxu0 0.0
      %4971 = vmatmul.mubr.f32.gmra.mrb[0].mxu0 %v4807
      %v4972 = vpop.f32.mrb[0].mxu0
      %v4973 = vadd.f32 0.0, %v4972
      %v4974 = vpop.f32.mrb[0].mxu0
      %4975 = vmatprep.mubr.f32.mxu0 0.0
      %4976 = vmatmul.mubr.f32.gmra.mrb[0].mxu0 %v4810
      %v4977 = vpop.f32.mrb[0].mxu0
      %v4978 = vadd.f32 0.0, %v4977
      %v4979 = vpop.f32.mrb[0].mxu0
      %4980 = vmatprep.mubr.f32.mxu0 0.0
      %4981 = vmatmul.mubr.f32.gmra.mrb[0].mxu0 %v4813
      %v4982 = vpop.f32.mrb[0].mxu0
      %v4983 = vadd.f32 0.0, %v4982
      %v4984 = vpop.f32.mrb[0].mxu0
      %4985 = vmatprep.mubr.f32.mxu0 0.0
      %4986 = vmatmul.mubr.f32.gmra.mrb[0].mxu0 %v4816
      %v4987 = vpop.f32.mrb[0].mxu0
      %v4988 = vadd.f32 0.0, %v4987
      %v4989 = vpop.f32.mrb[0].mxu0
      %4990 = vmatprep.mubr.f32.mxu0 0.0
      %4991 = vmatmul.mubr.f32.gmra.mrb[0].mxu0 %v4819
      %v4992 = vpop.f32.mrb[0].mxu0
      %v4993 = vadd.f32 0.0, %v4992
      %v4994 = vpop.f32.mrb[0].mxu0
      %4995 = vmatprep.mubr.f32.mxu0 0.0
      %4996 = vmatmul.mubr.f32.gmra.mrb[0].mxu0 %v4822
      %v4997 = vpop.f32.mrb[0].mxu0
      %v4998 = vadd.f32 0.0, %v4997
      %v4999 = vpop.f32.mrb[0].mxu0
      %5000 = vmatprep.mubr.f32.mxu0 0.0
      %5001 = vmatmul.mubr.f32.gmra.mrb[0].mxu0 %v4825
      %v5002 = vpop.f32.mrb[0].mxu0
      %v5003 = vadd.f32 0.0, %v5002
      %v5004 = vpop.f32.mrb[0].mxu0
      %5005 = vmatprep.mubr.f32.mxu0 0.0
      %5006 = vmatmul.mubr.f32.gmra.mrb[0].mxu0 %v4828
      %v5007 = vpop.f32.mrb[0].mxu0
      %v5008 = vadd.f32 0.0, %v5007
      %v5009 = vpop.f32.mrb[0].mxu0
      %5010 = vmatprep.mubr.f32.mxu0 0.0
      %5011 = vmatmul.mubr.f32.gmra.mrb[0].mxu0 %v4831
      %v5012 = vpop.f32.mrb[0].mxu0
      %v5013 = vadd.f32 0.0, %v5012
      %v5014 = vpop.f32.mrb[0].mxu0
      %5015 = vmatprep.mubr.f32.mxu0 0.0
      %5016 = vmatmul.mubr.f32.gmra.mrb[0].mxu0 %v4834
      %v5017 = vpop.f32.mrb[0].mxu0
      %v5018 = vadd.f32 0.0, %v5017
      %v5019 = vpop.f32.mrb[0].mxu0
      %5020 = vmatprep.mubr.f32.mxu0 0.0
      %5021 = vmatmul.mubr.f32.gmra.mrb[0].mxu0 %v4837
      %v5022 = vpop.f32.mrb[0].mxu0
      %v5023 = vadd.f32 0.0, %v5022
      %v5024 = vpop.f32.mrb[0].mxu0
      %5025 = vmatprep.mubr.f32.mxu0 0.0
      %5026 = vmatmul.mubr.f32.gmra.mrb[0].mxu0 %v4840
      %v5027 = vpop.f32.mrb[0].mxu0
      %v5028 = vadd.f32 0.0, %v5027
      %v5029 = vpop.f32.mrb[0].mxu0
      %5030 = vmatprep.mubr.f32.mxu0 0.0
      %5031 = vmatmul.mubr.f32.gmra.mrb[0].mxu0 %v4843
      %v5032 = vpop.f32.mrb[0].mxu0
      %v5033 = vadd.f32 0.0, %v5032
      %v5034 = vpop.f32.mrb[0].mxu0
      %5035 = vmatprep.mubr.f32.mxu0 0.0
      %5036 = vmatmul.mubr.f32.gmra.mrb[0].mxu0 %v4846
      %v5037 = vpop.f32.mrb[0].mxu0
      %v5038 = vadd.f32 0.0, %v5037
      %v5039 = vpop.f32.mrb[0].mxu0
      %5040 = vmatprep.mubr.f32.mxu0 0.0
      %5041 = vmatmul.mubr.f32.gmra.mrb[0].mxu0 %v4849
      %v5042 = vpop.f32.mrb[0].mxu0
      %v5043 = vadd.f32 0.0, %v5042
      %v5044 = vpop.f32.mrb[0].mxu0
      %5045 = vmatprep.mubr.f32.mxu0 0.0
      %5046 = vmatmul.mubr.f32.gmra.mrb[0].mxu0 %v4852
      %v5047 = vpop.f32.mrb[0].mxu0
      %v5048 = vadd.f32 0.0, %v5047
      %v5049 = vpop.f32.mrb[0].mxu0
      %5050 = vmatprep.mubr.f32.mxu0 0.0
      %5051 = vmatmul.mubr.f32.gmra.mrb[0].mxu0 %v4855
      %v5052 = vpop.f32.mrb[0].mxu0
      %v5053 = vadd.f32 0.0, %v5052
      %v5054 = vpop.f32.mrb[0].mxu0
      %5055 = vmatprep.mubr.f32.mxu0 0.0
      %5056 = vmatmul.mubr.f32.gmra.mrb[0].mxu0 %v4858
      %v5057 = vpop.f32.mrb[0].mxu0
      %v5058 = vadd.f32 0.0, %v5057
      %v5059 = vpop.f32.mrb[0].mxu0
      %5060 = vmatprep.mubr.f32.mxu0 0.0
      %5061 = vmatmul.mubr.f32.gmra.mrb[0].mxu0 %v4861
      %v5062 = vpop.f32.mrb[0].mxu0
      %v5063 = vadd.f32 0.0, %v5062
      %v5064 = vpop.f32.mrb[0].mxu0
      %5065 = vmatprep.mubr.f32.mxu0 0.0
      %5066 = vmatmul.mubr.f32.gmra.mrb[0].mxu0 %v4864
      %v5067 = vpop.f32.mrb[0].mxu0
      %v5068 = vadd.f32 0.0, %v5067
      %v5069 = vpop.f32.mrb[0].mxu0
      %5070 = vmatprep.mubr.f32.mxu0 0.0
      %5071 = vmatmul.mubr.f32.gmra.mrb[0].mxu0 %v4867
      %v5072 = vpop.f32.mrb[0].mxu0
      %v5073 = vadd.f32 0.0, %v5072
      %v5074 = vpop.f32.mrb[0].mxu0
      %5075 = vmatprep.mubr.f32.mxu0 0.0
      %5076 = vmatmul.mubr.f32.gmra.mrb[0].mxu0 %v4870
      %v5077 = vpop.f32.mrb[0].mxu0
      %v5078 = vadd.f32 0.0, %v5077
      %v5079 = vpop.f32.mrb[0].mxu0
      %5080 = vmatprep.mubr.f32.mxu0 0.0
      %5081 = vmatmul.mubr.f32.gmra.mrb[0].mxu0 %v4873
      %v5082 = vpop.f32.mrb[0].mxu0
      %v5083 = vadd.f32 0.0, %v5082
      %v5084 = vpop.f32.mrb[0].mxu0
      %5085 = vmatprep.mubr.f32.mxu0 0.0
      %5086 = vmatmul.mubr.f32.gmra.mrb[0].mxu0 %v4876
      %v5087 = vpop.f32.mrb[0].mxu0
      %v5088 = vadd.f32 0.0, %v5087
      %v5089 = vpop.f32.mrb[0].mxu0
      %5090 = vmatprep.mubr.f32.mxu0 0.0
      %5091 = vmatmul.mubr.f32.gmra.mrb[0].mxu0 %v4879
      %v5092 = vpop.f32.mrb[0].mxu0
      %v5093 = vadd.f32 0.0, %v5092
      %v5094 = vpop.f32.mrb[0].mxu0
      %5095 = vmatprep.mubr.f32.mxu0 0.0
      %5096 = vmatmul.mubr.f32.gmra.mrb[0].mxu0 %v4882
      %v5097 = vpop.f32.mrb[0].mxu0
      %v5098 = vadd.f32 0.0, %v5097
      %v5099 = vpop.f32.mrb[0].mxu0
      %5100 = vmatprep.mubr.f32.mxu0 0.0
      %5101 = vmatmul.mubr.f32.gmra.mrb[0].mxu0 %v4885
      %v5102 = vpop.f32.mrb[0].mxu0
      %v5103 = vadd.f32 0.0, %v5102
      %v5104 = vpop.f32.mrb[0].mxu0
      %5105 = vmatprep.mubr.f32.mxu0 0.0
      %5106 = vmatmul.mubr.f32.gmra.mrb[0].mxu0 %v4888
      %v5107 = vpop.f32.mrb[0].mxu0
      %v5108 = vadd.f32 0.0, %v5107
      %v5109 = vpop.f32.mrb[0].mxu0
      %5110 = vmatprep.mubr.f32.mxu0 0.0
      %5111 = vmatmul.mubr.f32.gmra.mrb[0].mxu0 %v4891
      %v5112 = vpop.f32.mrb[0].mxu0
      %v5113 = vadd.f32 0.0, %v5112
      %v5114 = vpop.f32.mrb[0].mxu0
      %5115 = vmatprep.mubr.f32.mxu0 0.0
      %5116 = vmatmul.mubr.f32.gmra.mrb[0].mxu0 %v4894
      %v5117 = vpop.f32.mrb[0].mxu0
      %v5118 = vadd.f32 0.0, %v5117
      %v5119 = vpop.f32.mrb[0].mxu0
      %5120 = vdwg.mxu0
      %v5121 = vadd.f32 %v4734, %v4963
      %v5122 = vadd.f32 %v4735, %v4968
      %v5123 = vadd.f32 %v4736, %v4973
      %v5124 = vadd.f32 %v4737, %v4978
      %v5125 = vadd.f32 %v4738, %v4983
      %v5126 = vadd.f32 %v4739, %v4988
      %v5127 = vadd.f32 %v4740, %v4993
      %v5128 = vadd.f32 %v4741, %v4998
      %v5129 = vadd.f32 %v4742, %v5003
      %v5130 = vadd.f32 %v4743, %v5008
      %v5131 = vadd.f32 %v4744, %v5013
      %v5132 = vadd.f32 %v4745, %v5018
      %v5133 = vadd.f32 %v4746, %v5023
      %v5134 = vadd.f32 %v4747, %v5028
      %v5135 = vadd.f32 %v4748, %v5033
      %v5136 = vadd.f32 %v4749, %v5038
      %v5137 = vadd.f32 %v4750, %v5043
      %v5138 = vadd.f32 %v4751, %v5048
      %v5139 = vadd.f32 %v4752, %v5053
      %v5140 = vadd.f32 %v4753, %v5058
      %v5141 = vadd.f32 %v4754, %v5063
      %v5142 = vadd.f32 %v4755, %v5068
      %v5143 = vadd.f32 %v4756, %v5073
      %v5144 = vadd.f32 %v4757, %v5078
      %v5145 = vadd.f32 %v4758, %v5083
      %v5146 = vadd.f32 %v4759, %v5088
      %v5147 = vadd.f32 %v4760, %v5093
      %v5148 = vadd.f32 %v4761, %v5098
      %v5149 = vadd.f32 %v4762, %v5103
      %v5150 = vadd.f32 %v4763, %v5108
      %v5151 = vadd.f32 %v4764, %v5113
      %v5152 = vadd.f32 %v4765, %v5118
      %s5153 = scalar_lea.vmem [#allocation2], 48
      %v5154 = vld [vmem:[%s5153] sm:$0xff]
      %v5155 = vld [vmem:[%s5153 + $0x8] sm:$0xff]
      %v5156 = vld [vmem:[%s5153 + $0x18] sm:$0xff]
      %v5157 = vld [vmem:[%s5153 + $0x20] sm:$0xff]
      %v5158 = vld [vmem:[%s5153 + $0x30] sm:$0xff]
      %v5159 = vld [vmem:[%s5153 + $0x38] sm:$0xff]
      %v5160 = vld [vmem:[%s5153 + $0x48] sm:$0xff]
      %v5161 = vld [vmem:[%s5153 + $0x50] sm:$0xff]
      %v5162 = vld [vmem:[%s5153 + $0x60] sm:$0xff]
      %v5163 = vld [vmem:[%s5153 + $0x68] sm:$0xff]
      %v5164 = vld [vmem:[%s5153 + $0x78] sm:$0xff]
      %v5165 = vld [vmem:[%s5153 + $0x80] sm:$0xff]
      %v5166 = vld [vmem:[%s5153 + $0x90] sm:$0xff]
      %v5167 = vld [vmem:[%s5153 + $0x98] sm:$0xff]
      %v5168 = vld [vmem:[%s5153 + $0xa8] sm:$0xff]
      %v5169 = vld [vmem:[%s5153 + $0xb0] sm:$0xff]
      %v5170 = vld [vmem:[%s5153 + $0xc0] sm:$0xff]
      %v5171 = vld [vmem:[%s5153 + $0xc8] sm:$0xff]
      %v5172 = vld [vmem:[%s5153 + $0xd8] sm:$0xff]
      %v5173 = vld [vmem:[%s5153 + $0xe0] sm:$0xff]
      %v5174 = vld [vmem:[%s5153 + $0xf0] sm:$0xff]
      %v5175 = vld [vmem:[%s5153 + $0xf8] sm:$0xff]
      %v5176 = vld [vmem:[%s5153 + $0x108] sm:$0xff]
      %v5177 = vld [vmem:[%s5153 + $0x110] sm:$0xff]
      %v5178 = vld [vmem:[%s5153 + $0x120] sm:$0xff]
      %v5179 = vld [vmem:[%s5153 + $0x128] sm:$0xff]
      %v5180 = vld [vmem:[%s5153 + $0x138] sm:$0xff]
      %v5181 = vld [vmem:[%s5153 + $0x140] sm:$0xff]
      %v5182 = vld [vmem:[%s5153 + $0x150] sm:$0xff]
      %v5183 = vld [vmem:[%s5153 + $0x158] sm:$0xff]
      %v5184 = vld [vmem:[%s5153 + $0x168] sm:$0xff]
      %v5185 = vld [vmem:[%s5153 + $0x170] sm:$0xff]
      %s5186 = scalar_lea.vmem %s3, 48
      %v5187 = vld [vmem:[%s5186] sm:$0xff]
      %v5189 = vsel %vm2807, %v5154, 0
      %v5192 = vsel %vm2807, %v5155, 0
      %v5195 = vsel %vm2807, %v5156, 0
      %v5198 = vsel %vm2807, %v5157, 0
      %v5201 = vsel %vm2807, %v5158, 0
      %v5204 = vsel %vm2807, %v5159, 0
      %v5207 = vsel %vm2807, %v5160, 0
      %v5210 = vsel %vm2807, %v5161, 0
      %v5213 = vsel %vm2807, %v5162, 0
      %v5216 = vsel %vm2807, %v5163, 0
      %v5219 = vsel %vm2807, %v5164, 0
      %v5222 = vsel %vm2807, %v5165, 0
      %v5225 = vsel %vm2807, %v5166, 0
      %v5228 = vsel %vm2807, %v5167, 0
      %v5231 = vsel %vm2807, %v5168, 0
      %v5234 = vsel %vm2807, %v5169, 0
      %v5237 = vsel %vm2807, %v5170, 0
      %v5240 = vsel %vm2807, %v5171, 0
      %v5243 = vsel %vm2807, %v5172, 0
      %v5246 = vsel %vm2807, %v5173, 0
      %v5249 = vsel %vm2807, %v5174, 0
      %v5252 = vsel %vm2807, %v5175, 0
      %v5255 = vsel %vm2807, %v5176, 0
      %v5258 = vsel %vm2807, %v5177, 0
      %v5261 = vsel %vm2807, %v5178, 0
      %v5264 = vsel %vm2807, %v5179, 0
      %v5267 = vsel %vm2807, %v5180, 0
      %v5270 = vsel %vm2807, %v5181, 0
      %v5273 = vsel %vm2807, %v5182, 0
      %v5276 = vsel %vm2807, %v5183, 0
      %v5279 = vsel %vm2807, %v5184, 0
      %v5282 = vsel %vm2807, %v5185, 0
      %5284 = vmatprep.subr.mxu0 0.0
      %5285 = vmatpush1.msra.mxu0 %v5187
      %5286 = vmatprep.subr.mxu0 0.0
      %5287 = vmatpush1.msra.mxu0 0.0
      %5288 = vmatprep.subr.mxu0 0.0
      %5289 = vmatpush1.msra.mxu0 0.0
      %5290 = vmatprep.subr.mxu0 0.0
      %5291 = vmatpush1.msra.mxu0 0.0
      %5292 = vmatprep.subr.mxu0 0.0
      %5293 = vmatpush1.msra.mxu0 0.0
      %5294 = vmatprep.subr.mxu0 0.0
      %5295 = vmatpush1.msra.mxu0 0.0
      %5296 = vmatprep.subr.mxu0 0.0
      %5297 = vmatpush1.msra.mxu0 0.0
      %5298 = vmatprep.subr.mxu0 0.0
      %5299 = vmatpush1.msra.mxu0 0.0
      %5300 = vmatprep.subr.mxu0 0.0
      %5301 = vmatpush1.msra.mxu0 0.0
      %5302 = vmatprep.subr.mxu0 0.0
      %5303 = vmatpush1.msra.mxu0 0.0
      %5304 = vmatprep.subr.mxu0 0.0
      %5305 = vmatpush1.msra.mxu0 0.0
      %5306 = vmatprep.subr.mxu0 0.0
      %5307 = vmatpush1.msra.mxu0 0.0
      %5308 = vmatprep.subr.mxu0 0.0
      %5309 = vmatpush1.msra.mxu0 0.0
      %5310 = vmatprep.subr.mxu0 0.0
      %5311 = vmatpush1.msra.mxu0 0.0
      %5312 = vmatprep.subr.mxu0 0.0
      %5313 = vmatpush1.msra.mxu0 0.0
      %5314 = vmatprep.subr.mxu0 0.0
      %5315 = vmatpush1.msra.mxu0 0.0
      %5316 = vmatprep.subr.mxu0 0.0
      %5317 = vmatpush1.msra.mxu0 0.0
      %5318 = vmatprep.subr.mxu0 0.0
      %5319 = vmatpush1.msra.mxu0 0.0
      %5320 = vmatprep.subr.mxu0 0.0
      %5321 = vmatpush1.msra.mxu0 0.0
      %5322 = vmatprep.subr.mxu0 0.0
      %5323 = vmatpush1.msra.mxu0 0.0
      %5324 = vmatprep.subr.mxu0 0.0
      %5325 = vmatpush1.msra.mxu0 0.0
      %5326 = vmatprep.subr.mxu0 0.0
      %5327 = vmatpush1.msra.mxu0 0.0
      %5328 = vmatprep.subr.mxu0 0.0
      %5329 = vmatpush1.msra.mxu0 0.0
      %5330 = vmatprep.subr.mxu0 0.0
      %5331 = vmatpush1.msra.mxu0 0.0
      %5332 = vmatprep.subr.mxu0 0.0
      %5333 = vmatpush1.msra.mxu0 0.0
      %5334 = vmatprep.subr.mxu0 0.0
      %5335 = vmatpush1.msra.mxu0 0.0
      %5336 = vmatprep.subr.mxu0 0.0
      %5337 = vmatpush1.msra.mxu0 0.0
      %5338 = vmatprep.subr.mxu0 0.0
      %5339 = vmatpush1.msra.mxu0 0.0
      %5340 = vmatprep.subr.mxu0 0.0
      %5341 = vmatpush1.msra.mxu0 0.0
      %5342 = vmatprep.subr.mxu0 0.0
      %5343 = vmatpush1.msra.mxu0 0.0
      %5344 = vmatprep.subr.mxu0 0.0
      %5345 = vmatpush1.msra.mxu0 0.0
      %5346 = vmatprep.subr.mxu0 0.0
      %5347 = vmatpush1.msra.mxu0 0.0
      %5348 = vmatprep.mubr.f32.mxu0 0.0
      %5349 = vmatmul.mubr.f32.gmra.mrb[0].mxu0 %v5189
      %v5350 = vpop.f32.mrb[0].mxu0
      %v5351 = vadd.f32 0.0, %v5350
      %v5352 = vpop.f32.mrb[0].mxu0
      %5353 = vmatprep.mubr.f32.mxu0 0.0
      %5354 = vmatmul.mubr.f32.gmra.mrb[0].mxu0 %v5192
      %v5355 = vpop.f32.mrb[0].mxu0
      %v5356 = vadd.f32 0.0, %v5355
      %v5357 = vpop.f32.mrb[0].mxu0
      %5358 = vmatprep.mubr.f32.mxu0 0.0
      %5359 = vmatmul.mubr.f32.gmra.mrb[0].mxu0 %v5195
      %v5360 = vpop.f32.mrb[0].mxu0
      %v5361 = vadd.f32 0.0, %v5360
      %v5362 = vpop.f32.mrb[0].mxu0
      %5363 = vmatprep.mubr.f32.mxu0 0.0
      %5364 = vmatmul.mubr.f32.gmra.mrb[0].mxu0 %v5198
      %v5365 = vpop.f32.mrb[0].mxu0
      %v5366 = vadd.f32 0.0, %v5365
      %v5367 = vpop.f32.mrb[0].mxu0
      %5368 = vmatprep.mubr.f32.mxu0 0.0
      %5369 = vmatmul.mubr.f32.gmra.mrb[0].mxu0 %v5201
      %v5370 = vpop.f32.mrb[0].mxu0
      %v5371 = vadd.f32 0.0, %v5370
      %v5372 = vpop.f32.mrb[0].mxu0
      %5373 = vmatprep.mubr.f32.mxu0 0.0
      %5374 = vmatmul.mubr.f32.gmra.mrb[0].mxu0 %v5204
      %v5375 = vpop.f32.mrb[0].mxu0
      %v5376 = vadd.f32 0.0, %v5375
      %v5377 = vpop.f32.mrb[0].mxu0
      %5378 = vmatprep.mubr.f32.mxu0 0.0
      %5379 = vmatmul.mubr.f32.gmra.mrb[0].mxu0 %v5207
      %v5380 = vpop.f32.mrb[0].mxu0
      %v5381 = vadd.f32 0.0, %v5380
      %v5382 = vpop.f32.mrb[0].mxu0
      %5383 = vmatprep.mubr.f32.mxu0 0.0
      %5384 = vmatmul.mubr.f32.gmra.mrb[0].mxu0 %v5210
      %v5385 = vpop.f32.mrb[0].mxu0
      %v5386 = vadd.f32 0.0, %v5385
      %v5387 = vpop.f32.mrb[0].mxu0
      %5388 = vmatprep.mubr.f32.mxu0 0.0
      %5389 = vmatmul.mubr.f32.gmra.mrb[0].mxu0 %v5213
      %v5390 = vpop.f32.mrb[0].mxu0
      %v5391 = vadd.f32 0.0, %v5390
      %v5392 = vpop.f32.mrb[0].mxu0
      %5393 = vmatprep.mubr.f32.mxu0 0.0
      %5394 = vmatmul.mubr.f32.gmra.mrb[0].mxu0 %v5216
      %v5395 = vpop.f32.mrb[0].mxu0
      %v5396 = vadd.f32 0.0, %v5395
      %v5397 = vpop.f32.mrb[0].mxu0
      %5398 = vmatprep.mubr.f32.mxu0 0.0
      %5399 = vmatmul.mubr.f32.gmra.mrb[0].mxu0 %v5219
      %v5400 = vpop.f32.mrb[0].mxu0
      %v5401 = vadd.f32 0.0, %v5400
      %v5402 = vpop.f32.mrb[0].mxu0
      %5403 = vmatprep.mubr.f32.mxu0 0.0
      %5404 = vmatmul.mubr.f32.gmra.mrb[0].mxu0 %v5222
      %v5405 = vpop.f32.mrb[0].mxu0
      %v5406 = vadd.f32 0.0, %v5405
      %v5407 = vpop.f32.mrb[0].mxu0
      %5408 = vmatprep.mubr.f32.mxu0 0.0
      %5409 = vmatmul.mubr.f32.gmra.mrb[0].mxu0 %v5225
      %v5410 = vpop.f32.mrb[0].mxu0
      %v5411 = vadd.f32 0.0, %v5410
      %v5412 = vpop.f32.mrb[0].mxu0
      %5413 = vmatprep.mubr.f32.mxu0 0.0
      %5414 = vmatmul.mubr.f32.gmra.mrb[0].mxu0 %v5228
      %v5415 = vpop.f32.mrb[0].mxu0
      %v5416 = vadd.f32 0.0, %v5415
      %v5417 = vpop.f32.mrb[0].mxu0
      %5418 = vmatprep.mubr.f32.mxu0 0.0
      %5419 = vmatmul.mubr.f32.gmra.mrb[0].mxu0 %v5231
      %v5420 = vpop.f32.mrb[0].mxu0
      %v5421 = vadd.f32 0.0, %v5420
      %v5422 = vpop.f32.mrb[0].mxu0
      %5423 = vmatprep.mubr.f32.mxu0 0.0
      %5424 = vmatmul.mubr.f32.gmra.mrb[0].mxu0 %v5234
      %v5425 = vpop.f32.mrb[0].mxu0
      %v5426 = vadd.f32 0.0, %v5425
      %v5427 = vpop.f32.mrb[0].mxu0
      %5428 = vmatprep.mubr.f32.mxu0 0.0
      %5429 = vmatmul.mubr.f32.gmra.mrb[0].mxu0 %v5237
      %v5430 = vpop.f32.mrb[0].mxu0
      %v5431 = vadd.f32 0.0, %v5430
      %v5432 = vpop.f32.mrb[0].mxu0
      %5433 = vmatprep.mubr.f32.mxu0 0.0
      %5434 = vmatmul.mubr.f32.gmra.mrb[0].mxu0 %v5240
      %v5435 = vpop.f32.mrb[0].mxu0
      %v5436 = vadd.f32 0.0, %v5435
      %v5437 = vpop.f32.mrb[0].mxu0
      %5438 = vmatprep.mubr.f32.mxu0 0.0
      %5439 = vmatmul.mubr.f32.gmra.mrb[0].mxu0 %v5243
      %v5440 = vpop.f32.mrb[0].mxu0
      %v5441 = vadd.f32 0.0, %v5440
      %v5442 = vpop.f32.mrb[0].mxu0
      %5443 = vmatprep.mubr.f32.mxu0 0.0
      %5444 = vmatmul.mubr.f32.gmra.mrb[0].mxu0 %v5246
      %v5445 = vpop.f32.mrb[0].mxu0
      %v5446 = vadd.f32 0.0, %v5445
      %v5447 = vpop.f32.mrb[0].mxu0
      %5448 = vmatprep.mubr.f32.mxu0 0.0
      %5449 = vmatmul.mubr.f32.gmra.mrb[0].mxu0 %v5249
      %v5450 = vpop.f32.mrb[0].mxu0
      %v5451 = vadd.f32 0.0, %v5450
      %v5452 = vpop.f32.mrb[0].mxu0
      %5453 = vmatprep.mubr.f32.mxu0 0.0
      %5454 = vmatmul.mubr.f32.gmra.mrb[0].mxu0 %v5252
      %v5455 = vpop.f32.mrb[0].mxu0
      %v5456 = vadd.f32 0.0, %v5455
      %v5457 = vpop.f32.mrb[0].mxu0
      %5458 = vmatprep.mubr.f32.mxu0 0.0
      %5459 = vmatmul.mubr.f32.gmra.mrb[0].mxu0 %v5255
      %v5460 = vpop.f32.mrb[0].mxu0
      %v5461 = vadd.f32 0.0, %v5460
      %v5462 = vpop.f32.mrb[0].mxu0
      %5463 = vmatprep.mubr.f32.mxu0 0.0
      %5464 = vmatmul.mubr.f32.gmra.mrb[0].mxu0 %v5258
      %v5465 = vpop.f32.mrb[0].mxu0
      %v5466 = vadd.f32 0.0, %v5465
      %v5467 = vpop.f32.mrb[0].mxu0
      %5468 = vmatprep.mubr.f32.mxu0 0.0
      %5469 = vmatmul.mubr.f32.gmra.mrb[0].mxu0 %v5261
      %v5470 = vpop.f32.mrb[0].mxu0
      %v5471 = vadd.f32 0.0, %v5470
      %v5472 = vpop.f32.mrb[0].mxu0
      %5473 = vmatprep.mubr.f32.mxu0 0.0
      %5474 = vmatmul.mubr.f32.gmra.mrb[0].mxu0 %v5264
      %v5475 = vpop.f32.mrb[0].mxu0
      %v5476 = vadd.f32 0.0, %v5475
      %v5477 = vpop.f32.mrb[0].mxu0
      %5478 = vmatprep.mubr.f32.mxu0 0.0
      %5479 = vmatmul.mubr.f32.gmra.mrb[0].mxu0 %v5267
      %v5480 = vpop.f32.mrb[0].mxu0
      %v5481 = vadd.f32 0.0, %v5480
      %v5482 = vpop.f32.mrb[0].mxu0
      %5483 = vmatprep.mubr.f32.mxu0 0.0
      %5484 = vmatmul.mubr.f32.gmra.mrb[0].mxu0 %v5270
      %v5485 = vpop.f32.mrb[0].mxu0
      %v5486 = vadd.f32 0.0, %v5485
      %v5487 = vpop.f32.mrb[0].mxu0
      %5488 = vmatprep.mubr.f32.mxu0 0.0
      %5489 = vmatmul.mubr.f32.gmra.mrb[0].mxu0 %v5273
      %v5490 = vpop.f32.mrb[0].mxu0
      %v5491 = vadd.f32 0.0, %v5490
      %v5492 = vpop.f32.mrb[0].mxu0
      %5493 = vmatprep.mubr.f32.mxu0 0.0
      %5494 = vmatmul.mubr.f32.gmra.mrb[0].mxu0 %v5276
      %v5495 = vpop.f32.mrb[0].mxu0
      %v5496 = vadd.f32 0.0, %v5495
      %v5497 = vpop.f32.mrb[0].mxu0
      %5498 = vmatprep.mubr.f32.mxu0 0.0
      %5499 = vmatmul.mubr.f32.gmra.mrb[0].mxu0 %v5279
      %v5500 = vpop.f32.mrb[0].mxu0
      %v5501 = vadd.f32 0.0, %v5500
      %v5502 = vpop.f32.mrb[0].mxu0
      %5503 = vmatprep.mubr.f32.mxu0 0.0
      %5504 = vmatmul.mubr.f32.gmra.mrb[0].mxu0 %v5282
      %v5505 = vpop.f32.mrb[0].mxu0
      %v5506 = vadd.f32 0.0, %v5505
      %v5507 = vpop.f32.mrb[0].mxu0
      %5508 = vdwg.mxu0
      %v5509 = vadd.f32 %v5121, %v5351
      %v5510 = vadd.f32 %v5122, %v5356
      %v5511 = vadd.f32 %v5123, %v5361
      %v5512 = vadd.f32 %v5124, %v5366
      %v5513 = vadd.f32 %v5125, %v5371
      %v5514 = vadd.f32 %v5126, %v5376
      %v5515 = vadd.f32 %v5127, %v5381
      %v5516 = vadd.f32 %v5128, %v5386
      %v5517 = vadd.f32 %v5129, %v5391
      %v5518 = vadd.f32 %v5130, %v5396
      %v5519 = vadd.f32 %v5131, %v5401
      %v5520 = vadd.f32 %v5132, %v5406
      %v5521 = vadd.f32 %v5133, %v5411
      %v5522 = vadd.f32 %v5134, %v5416
      %v5523 = vadd.f32 %v5135, %v5421
      %v5524 = vadd.f32 %v5136, %v5426
      %v5525 = vadd.f32 %v5137, %v5431
      %v5526 = vadd.f32 %v5138, %v5436
      %v5527 = vadd.f32 %v5139, %v5441
      %v5528 = vadd.f32 %v5140, %v5446
      %v5529 = vadd.f32 %v5141, %v5451
      %v5530 = vadd.f32 %v5142, %v5456
      %v5531 = vadd.f32 %v5143, %v5461
      %v5532 = vadd.f32 %v5144, %v5466
      %v5533 = vadd.f32 %v5145, %v5471
      %v5534 = vadd.f32 %v5146, %v5476
      %v5535 = vadd.f32 %v5147, %v5481
      %v5536 = vadd.f32 %v5148, %v5486
      %v5537 = vadd.f32 %v5149, %v5491
      %v5538 = vadd.f32 %v5150, %v5496
      %v5539 = vadd.f32 %v5151, %v5501
      %v5540 = vadd.f32 %v5152, %v5506
      %v5541 = vld [vmem:[%s5153 + $0x1] sm:$0xff]
      %v5542 = vld [vmem:[%s5153 + $0x9] sm:$0xff]
      %v5543 = vld [vmem:[%s5153 + $0x19] sm:$0xff]
      %v5544 = vld [vmem:[%s5153 + $0x21] sm:$0xff]
      %v5545 = vld [vmem:[%s5153 + $0x31] sm:$0xff]
      %v5546 = vld [vmem:[%s5153 + $0x39] sm:$0xff]
      %v5547 = vld [vmem:[%s5153 + $0x49] sm:$0xff]
      %v5548 = vld [vmem:[%s5153 + $0x51] sm:$0xff]
      %v5549 = vld [vmem:[%s5153 + $0x61] sm:$0xff]
      %v5550 = vld [vmem:[%s5153 + $0x69] sm:$0xff]
      %v5551 = vld [vmem:[%s5153 + $0x79] sm:$0xff]
      %v5552 = vld [vmem:[%s5153 + $0x81] sm:$0xff]
      %v5553 = vld [vmem:[%s5153 + $0x91] sm:$0xff]
      %v5554 = vld [vmem:[%s5153 + $0x99] sm:$0xff]
      %v5555 = vld [vmem:[%s5153 + $0xa9] sm:$0xff]
      %v5556 = vld [vmem:[%s5153 + $0xb1] sm:$0xff]
      %v5557 = vld [vmem:[%s5153 + $0xc1] sm:$0xff]
      %v5558 = vld [vmem:[%s5153 + $0xc9] sm:$0xff]
      %v5559 = vld [vmem:[%s5153 + $0xd9] sm:$0xff]
      %v5560 = vld [vmem:[%s5153 + $0xe1] sm:$0xff]
      %v5561 = vld [vmem:[%s5153 + $0xf1] sm:$0xff]
      %v5562 = vld [vmem:[%s5153 + $0xf9] sm:$0xff]
      %v5563 = vld [vmem:[%s5153 + $0x109] sm:$0xff]
      %v5564 = vld [vmem:[%s5153 + $0x111] sm:$0xff]
      %v5565 = vld [vmem:[%s5153 + $0x121] sm:$0xff]
      %v5566 = vld [vmem:[%s5153 + $0x129] sm:$0xff]
      %v5567 = vld [vmem:[%s5153 + $0x139] sm:$0xff]
      %v5568 = vld [vmem:[%s5153 + $0x141] sm:$0xff]
      %v5569 = vld [vmem:[%s5153 + $0x151] sm:$0xff]
      %v5570 = vld [vmem:[%s5153 + $0x159] sm:$0xff]
      %v5571 = vld [vmem:[%s5153 + $0x169] sm:$0xff]
      %v5572 = vld [vmem:[%s5153 + $0x171] sm:$0xff]
      %s5573 = scalar_lea.vmem %s3, 56
      %v5574 = vld [vmem:[%s5573] sm:$0xff]
      %v5576 = vsel %vm2807, %v5541, 0
      %v5579 = vsel %vm2807, %v5542, 0
      %v5582 = vsel %vm2807, %v5543, 0
      %v5585 = vsel %vm2807, %v5544, 0
      %v5588 = vsel %vm2807, %v5545, 0
      %v5591 = vsel %vm2807, %v5546, 0
      %v5594 = vsel %vm2807, %v5547, 0
      %v5597 = vsel %vm2807, %v5548, 0
      %v5600 = vsel %vm2807, %v5549, 0
      %v5603 = vsel %vm2807, %v5550, 0
      %v5606 = vsel %vm2807, %v5551, 0
      %v5609 = vsel %vm2807, %v5552, 0
      %v5612 = vsel %vm2807, %v5553, 0
      %v5615 = vsel %vm2807, %v5554, 0
      %v5618 = vsel %vm2807, %v5555, 0
      %v5621 = vsel %vm2807, %v5556, 0
      %v5624 = vsel %vm2807, %v5557, 0
      %v5627 = vsel %vm2807, %v5558, 0
      %v5630 = vsel %vm2807, %v5559, 0
      %v5633 = vsel %vm2807, %v5560, 0
      %v5636 = vsel %vm2807, %v5561, 0
      %v5639 = vsel %vm2807, %v5562, 0
      %v5642 = vsel %vm2807, %v5563, 0
      %v5645 = vsel %vm2807, %v5564, 0
      %v5648 = vsel %vm2807, %v5565, 0
      %v5651 = vsel %vm2807, %v5566, 0
      %v5654 = vsel %vm2807, %v5567, 0
      %v5657 = vsel %vm2807, %v5568, 0
      %v5660 = vsel %vm2807, %v5569, 0
      %v5663 = vsel %vm2807, %v5570, 0
      %v5666 = vsel %vm2807, %v5571, 0
      %v5669 = vsel %vm2807, %v5572, 0
      %5671 = vmatprep.subr.mxu0 0.0
      %5672 = vmatpush1.msra.mxu0 %v5574
      %5673 = vmatprep.subr.mxu0 0.0
      %5674 = vmatpush1.msra.mxu0 0.0
      %5675 = vmatprep.subr.mxu0 0.0
      %5676 = vmatpush1.msra.mxu0 0.0
      %5677 = vmatprep.subr.mxu0 0.0
      %5678 = vmatpush1.msra.mxu0 0.0
      %5679 = vmatprep.subr.mxu0 0.0
      %5680 = vmatpush1.msra.mxu0 0.0
      %5681 = vmatprep.subr.mxu0 0.0
      %5682 = vmatpush1.msra.mxu0 0.0
      %5683 = vmatprep.subr.mxu0 0.0
      %5684 = vmatpush1.msra.mxu0 0.0
      %5685 = vmatprep.subr.mxu0 0.0
      %5686 = vmatpush1.msra.mxu0 0.0
      %5687 = vmatprep.subr.mxu0 0.0
      %5688 = vmatpush1.msra.mxu0 0.0
      %5689 = vmatprep.subr.mxu0 0.0
      %5690 = vmatpush1.msra.mxu0 0.0
      %5691 = vmatprep.subr.mxu0 0.0
      %5692 = vmatpush1.msra.mxu0 0.0
      %5693 = vmatprep.subr.mxu0 0.0
      %5694 = vmatpush1.msra.mxu0 0.0
      %5695 = vmatprep.subr.mxu0 0.0
      %5696 = vmatpush1.msra.mxu0 0.0
      %5697 = vmatprep.subr.mxu0 0.0
      %5698 = vmatpush1.msra.mxu0 0.0
      %5699 = vmatprep.subr.mxu0 0.0
      %5700 = vmatpush1.msra.mxu0 0.0
      %5701 = vmatprep.subr.mxu0 0.0
      %5702 = vmatpush1.msra.mxu0 0.0
      %5703 = vmatprep.subr.mxu0 0.0
      %5704 = vmatpush1.msra.mxu0 0.0
      %5705 = vmatprep.subr.mxu0 0.0
      %5706 = vmatpush1.msra.mxu0 0.0
      %5707 = vmatprep.subr.mxu0 0.0
      %5708 = vmatpush1.msra.mxu0 0.0
      %5709 = vmatprep.subr.mxu0 0.0
      %5710 = vmatpush1.msra.mxu0 0.0
      %5711 = vmatprep.subr.mxu0 0.0
      %5712 = vmatpush1.msra.mxu0 0.0
      %5713 = vmatprep.subr.mxu0 0.0
      %5714 = vmatpush1.msra.mxu0 0.0
      %5715 = vmatprep.subr.mxu0 0.0
      %5716 = vmatpush1.msra.mxu0 0.0
      %5717 = vmatprep.subr.mxu0 0.0
      %5718 = vmatpush1.msra.mxu0 0.0
      %5719 = vmatprep.subr.mxu0 0.0
      %5720 = vmatpush1.msra.mxu0 0.0
      %5721 = vmatprep.subr.mxu0 0.0
      %5722 = vmatpush1.msra.mxu0 0.0
      %5723 = vmatprep.subr.mxu0 0.0
      %5724 = vmatpush1.msra.mxu0 0.0
      %5725 = vmatprep.subr.mxu0 0.0
      %5726 = vmatpush1.msra.mxu0 0.0
      %5727 = vmatprep.subr.mxu0 0.0
      %5728 = vmatpush1.msra.mxu0 0.0
      %5729 = vmatprep.subr.mxu0 0.0
      %5730 = vmatpush1.msra.mxu0 0.0
      %5731 = vmatprep.subr.mxu0 0.0
      %5732 = vmatpush1.msra.mxu0 0.0
      %5733 = vmatprep.subr.mxu0 0.0
      %5734 = vmatpush1.msra.mxu0 0.0
      %5735 = vmatprep.mubr.f32.mxu0 0.0
      %5736 = vmatmul.mubr.f32.gmra.mrb[0].mxu0 %v5576
      %v5737 = vpop.f32.mrb[0].mxu0
      %v5738 = vadd.f32 0.0, %v5737
      %v5739 = vpop.f32.mrb[0].mxu0
      %5740 = vmatprep.mubr.f32.mxu0 0.0
      %5741 = vmatmul.mubr.f32.gmra.mrb[0].mxu0 %v5579
      %v5742 = vpop.f32.mrb[0].mxu0
      %v5743 = vadd.f32 0.0, %v5742
      %v5744 = vpop.f32.mrb[0].mxu0
      %5745 = vmatprep.mubr.f32.mxu0 0.0
      %5746 = vmatmul.mubr.f32.gmra.mrb[0].mxu0 %v5582
      %v5747 = vpop.f32.mrb[0].mxu0
      %v5748 = vadd.f32 0.0, %v5747
      %v5749 = vpop.f32.mrb[0].mxu0
      %5750 = vmatprep.mubr.f32.mxu0 0.0
      %5751 = vmatmul.mubr.f32.gmra.mrb[0].mxu0 %v5585
      %v5752 = vpop.f32.mrb[0].mxu0
      %v5753 = vadd.f32 0.0, %v5752
      %v5754 = vpop.f32.mrb[0].mxu0
      %5755 = vmatprep.mubr.f32.mxu0 0.0
      %5756 = vmatmul.mubr.f32.gmra.mrb[0].mxu0 %v5588
      %v5757 = vpop.f32.mrb[0].mxu0
      %v5758 = vadd.f32 0.0, %v5757
      %v5759 = vpop.f32.mrb[0].mxu0
      %5760 = vmatprep.mubr.f32.mxu0 0.0
      %5761 = vmatmul.mubr.f32.gmra.mrb[0].mxu0 %v5591
      %v5762 = vpop.f32.mrb[0].mxu0
      %v5763 = vadd.f32 0.0, %v5762
      %v5764 = vpop.f32.mrb[0].mxu0
      %5765 = vmatprep.mubr.f32.mxu0 0.0
      %5766 = vmatmul.mubr.f32.gmra.mrb[0].mxu0 %v5594
      %v5767 = vpop.f32.mrb[0].mxu0
      %v5768 = vadd.f32 0.0, %v5767
      %v5769 = vpop.f32.mrb[0].mxu0
      %5770 = vmatprep.mubr.f32.mxu0 0.0
      %5771 = vmatmul.mubr.f32.gmra.mrb[0].mxu0 %v5597
      %v5772 = vpop.f32.mrb[0].mxu0
      %v5773 = vadd.f32 0.0, %v5772
      %v5774 = vpop.f32.mrb[0].mxu0
      %5775 = vmatprep.mubr.f32.mxu0 0.0
      %5776 = vmatmul.mubr.f32.gmra.mrb[0].mxu0 %v5600
      %v5777 = vpop.f32.mrb[0].mxu0
      %v5778 = vadd.f32 0.0, %v5777
      %v5779 = vpop.f32.mrb[0].mxu0
      %5780 = vmatprep.mubr.f32.mxu0 0.0
      %5781 = vmatmul.mubr.f32.gmra.mrb[0].mxu0 %v5603
      %v5782 = vpop.f32.mrb[0].mxu0
      %v5783 = vadd.f32 0.0, %v5782
      %v5784 = vpop.f32.mrb[0].mxu0
      %5785 = vmatprep.mubr.f32.mxu0 0.0
      %5786 = vmatmul.mubr.f32.gmra.mrb[0].mxu0 %v5606
      %v5787 = vpop.f32.mrb[0].mxu0
      %v5788 = vadd.f32 0.0, %v5787
      %v5789 = vpop.f32.mrb[0].mxu0
      %5790 = vmatprep.mubr.f32.mxu0 0.0
      %5791 = vmatmul.mubr.f32.gmra.mrb[0].mxu0 %v5609
      %v5792 = vpop.f32.mrb[0].mxu0
      %v5793 = vadd.f32 0.0, %v5792
      %v5794 = vpop.f32.mrb[0].mxu0
      %5795 = vmatprep.mubr.f32.mxu0 0.0
      %5796 = vmatmul.mubr.f32.gmra.mrb[0].mxu0 %v5612
      %v5797 = vpop.f32.mrb[0].mxu0
      %v5798 = vadd.f32 0.0, %v5797
      %v5799 = vpop.f32.mrb[0].mxu0
      %5800 = vmatprep.mubr.f32.mxu0 0.0
      %5801 = vmatmul.mubr.f32.gmra.mrb[0].mxu0 %v5615
      %v5802 = vpop.f32.mrb[0].mxu0
      %v5803 = vadd.f32 0.0, %v5802
      %v5804 = vpop.f32.mrb[0].mxu0
      %5805 = vmatprep.mubr.f32.mxu0 0.0
      %5806 = vmatmul.mubr.f32.gmra.mrb[0].mxu0 %v5618
      %v5807 = vpop.f32.mrb[0].mxu0
      %v5808 = vadd.f32 0.0, %v5807
      %v5809 = vpop.f32.mrb[0].mxu0
      %5810 = vmatprep.mubr.f32.mxu0 0.0
      %5811 = vmatmul.mubr.f32.gmra.mrb[0].mxu0 %v5621
      %v5812 = vpop.f32.mrb[0].mxu0
      %v5813 = vadd.f32 0.0, %v5812
      %v5814 = vpop.f32.mrb[0].mxu0
      %5815 = vmatprep.mubr.f32.mxu0 0.0
      %5816 = vmatmul.mubr.f32.gmra.mrb[0].mxu0 %v5624
      %v5817 = vpop.f32.mrb[0].mxu0
      %v5818 = vadd.f32 0.0, %v5817
      %v5819 = vpop.f32.mrb[0].mxu0
      %5820 = vmatprep.mubr.f32.mxu0 0.0
      %5821 = vmatmul.mubr.f32.gmra.mrb[0].mxu0 %v5627
      %v5822 = vpop.f32.mrb[0].mxu0
      %v5823 = vadd.f32 0.0, %v5822
      %v5824 = vpop.f32.mrb[0].mxu0
      %5825 = vmatprep.mubr.f32.mxu0 0.0
      %5826 = vmatmul.mubr.f32.gmra.mrb[0].mxu0 %v5630
      %v5827 = vpop.f32.mrb[0].mxu0
      %v5828 = vadd.f32 0.0, %v5827
      %v5829 = vpop.f32.mrb[0].mxu0
      %5830 = vmatprep.mubr.f32.mxu0 0.0
      %5831 = vmatmul.mubr.f32.gmra.mrb[0].mxu0 %v5633
      %v5832 = vpop.f32.mrb[0].mxu0
      %v5833 = vadd.f32 0.0, %v5832
      %v5834 = vpop.f32.mrb[0].mxu0
      %5835 = vmatprep.mubr.f32.mxu0 0.0
      %5836 = vmatmul.mubr.f32.gmra.mrb[0].mxu0 %v5636
      %v5837 = vpop.f32.mrb[0].mxu0
      %v5838 = vadd.f32 0.0, %v5837
      %v5839 = vpop.f32.mrb[0].mxu0
      %5840 = vmatprep.mubr.f32.mxu0 0.0
      %5841 = vmatmul.mubr.f32.gmra.mrb[0].mxu0 %v5639
      %v5842 = vpop.f32.mrb[0].mxu0
      %v5843 = vadd.f32 0.0, %v5842
      %v5844 = vpop.f32.mrb[0].mxu0
      %5845 = vmatprep.mubr.f32.mxu0 0.0
      %5846 = vmatmul.mubr.f32.gmra.mrb[0].mxu0 %v5642
      %v5847 = vpop.f32.mrb[0].mxu0
      %v5848 = vadd.f32 0.0, %v5847
      %v5849 = vpop.f32.mrb[0].mxu0
      %5850 = vmatprep.mubr.f32.mxu0 0.0
      %5851 = vmatmul.mubr.f32.gmra.mrb[0].mxu0 %v5645
      %v5852 = vpop.f32.mrb[0].mxu0
      %v5853 = vadd.f32 0.0, %v5852
      %v5854 = vpop.f32.mrb[0].mxu0
      %5855 = vmatprep.mubr.f32.mxu0 0.0
      %5856 = vmatmul.mubr.f32.gmra.mrb[0].mxu0 %v5648
      %v5857 = vpop.f32.mrb[0].mxu0
      %v5858 = vadd.f32 0.0, %v5857
      %v5859 = vpop.f32.mrb[0].mxu0
      %5860 = vmatprep.mubr.f32.mxu0 0.0
      %5861 = vmatmul.mubr.f32.gmra.mrb[0].mxu0 %v5651
      %v5862 = vpop.f32.mrb[0].mxu0
      %v5863 = vadd.f32 0.0, %v5862
      %v5864 = vpop.f32.mrb[0].mxu0
      %5865 = vmatprep.mubr.f32.mxu0 0.0
      %5866 = vmatmul.mubr.f32.gmra.mrb[0].mxu0 %v5654
      %v5867 = vpop.f32.mrb[0].mxu0
      %v5868 = vadd.f32 0.0, %v5867
      %v5869 = vpop.f32.mrb[0].mxu0
      %5870 = vmatprep.mubr.f32.mxu0 0.0
      %5871 = vmatmul.mubr.f32.gmra.mrb[0].mxu0 %v5657
      %v5872 = vpop.f32.mrb[0].mxu0
      %v5873 = vadd.f32 0.0, %v5872
      %v5874 = vpop.f32.mrb[0].mxu0
      %5875 = vmatprep.mubr.f32.mxu0 0.0
      %5876 = vmatmul.mubr.f32.gmra.mrb[0].mxu0 %v5660
      %v5877 = vpop.f32.mrb[0].mxu0
      %v5878 = vadd.f32 0.0, %v5877
      %v5879 = vpop.f32.mrb[0].mxu0
      %5880 = vmatprep.mubr.f32.mxu0 0.0
      %5881 = vmatmul.mubr.f32.gmra.mrb[0].mxu0 %v5663
      %v5882 = vpop.f32.mrb[0].mxu0
      %v5883 = vadd.f32 0.0, %v5882
      %v5884 = vpop.f32.mrb[0].mxu0
      %5885 = vmatprep.mubr.f32.mxu0 0.0
      %5886 = vmatmul.mubr.f32.gmra.mrb[0].mxu0 %v5666
      %v5887 = vpop.f32.mrb[0].mxu0
      %v5888 = vadd.f32 0.0, %v5887
      %v5889 = vpop.f32.mrb[0].mxu0
      %5890 = vmatprep.mubr.f32.mxu0 0.0
      %5891 = vmatmul.mubr.f32.gmra.mrb[0].mxu0 %v5669
      %v5892 = vpop.f32.mrb[0].mxu0
      %v5893 = vadd.f32 0.0, %v5892
      %v5894 = vpop.f32.mrb[0].mxu0
      %5895 = vdwg.mxu0
      %v5896 = vadd.f32 %v5509, %v5738
      %v5897 = vadd.f32 %v5510, %v5743
      %v5898 = vadd.f32 %v5511, %v5748
      %v5899 = vadd.f32 %v5512, %v5753
      %v5900 = vadd.f32 %v5513, %v5758
      %v5901 = vadd.f32 %v5514, %v5763
      %v5902 = vadd.f32 %v5515, %v5768
      %v5903 = vadd.f32 %v5516, %v5773
      %v5904 = vadd.f32 %v5517, %v5778
      %v5905 = vadd.f32 %v5518, %v5783
      %v5906 = vadd.f32 %v5519, %v5788
      %v5907 = vadd.f32 %v5520, %v5793
      %v5908 = vadd.f32 %v5521, %v5798
      %v5909 = vadd.f32 %v5522, %v5803
      %v5910 = vadd.f32 %v5523, %v5808
      %v5911 = vadd.f32 %v5524, %v5813
      %v5912 = vadd.f32 %v5525, %v5818
      %v5913 = vadd.f32 %v5526, %v5823
      %v5914 = vadd.f32 %v5527, %v5828
      %v5915 = vadd.f32 %v5528, %v5833
      %v5916 = vadd.f32 %v5529, %v5838
      %v5917 = vadd.f32 %v5530, %v5843
      %v5918 = vadd.f32 %v5531, %v5848
      %v5919 = vadd.f32 %v5532, %v5853
      %v5920 = vadd.f32 %v5533, %v5858
      %v5921 = vadd.f32 %v5534, %v5863
      %v5922 = vadd.f32 %v5535, %v5868
      %v5923 = vadd.f32 %v5536, %v5873
      %v5924 = vadd.f32 %v5537, %v5878
      %v5925 = vadd.f32 %v5538, %v5883
      %v5926 = vadd.f32 %v5539, %v5888
      %v5927 = vadd.f32 %v5540, %v5893
      %v5928 = vld [vmem:[%s5153 + $0x2] sm:$0xff]
      %v5929 = vld [vmem:[%s5153 + $0xa] sm:$0xff]
      %v5930 = vld [vmem:[%s5153 + $0x1a] sm:$0xff]
      %v5931 = vld [vmem:[%s5153 + $0x22] sm:$0xff]
      %v5932 = vld [vmem:[%s5153 + $0x32] sm:$0xff]
      %v5933 = vld [vmem:[%s5153 + $0x3a] sm:$0xff]
      %v5934 = vld [vmem:[%s5153 + $0x4a] sm:$0xff]
      %v5935 = vld [vmem:[%s5153 + $0x52] sm:$0xff]
      %v5936 = vld [vmem:[%s5153 + $0x62] sm:$0xff]
      %v5937 = vld [vmem:[%s5153 + $0x6a] sm:$0xff]
      %v5938 = vld [vmem:[%s5153 + $0x7a] sm:$0xff]
      %v5939 = vld [vmem:[%s5153 + $0x82] sm:$0xff]
      %v5940 = vld [vmem:[%s5153 + $0x92] sm:$0xff]
      %v5941 = vld [vmem:[%s5153 + $0x9a] sm:$0xff]
      %v5942 = vld [vmem:[%s5153 + $0xaa] sm:$0xff]
      %v5943 = vld [vmem:[%s5153 + $0xb2] sm:$0xff]
      %v5944 = vld [vmem:[%s5153 + $0xc2] sm:$0xff]
      %v5945 = vld [vmem:[%s5153 + $0xca] sm:$0xff]
      %v5946 = vld [vmem:[%s5153 + $0xda] sm:$0xff]
      %v5947 = vld [vmem:[%s5153 + $0xe2] sm:$0xff]
      %v5948 = vld [vmem:[%s5153 + $0xf2] sm:$0xff]
      %v5949 = vld [vmem:[%s5153 + $0xfa] sm:$0xff]
      %v5950 = vld [vmem:[%s5153 + $0x10a] sm:$0xff]
      %v5951 = vld [vmem:[%s5153 + $0x112] sm:$0xff]
      %v5952 = vld [vmem:[%s5153 + $0x122] sm:$0xff]
      %v5953 = vld [vmem:[%s5153 + $0x12a] sm:$0xff]
      %v5954 = vld [vmem:[%s5153 + $0x13a] sm:$0xff]
      %v5955 = vld [vmem:[%s5153 + $0x142] sm:$0xff]
      %v5956 = vld [vmem:[%s5153 + $0x152] sm:$0xff]
      %v5957 = vld [vmem:[%s5153 + $0x15a] sm:$0xff]
      %v5958 = vld [vmem:[%s5153 + $0x16a] sm:$0xff]
      %v5959 = vld [vmem:[%s5153 + $0x172] sm:$0xff]
      %s5960 = scalar_lea.vmem %s3, 64
      %v5961 = vld [vmem:[%s5960] sm:$0xff]
      %v5963 = vsel %vm2807, %v5928, 0
      %v5966 = vsel %vm2807, %v5929, 0
      %v5969 = vsel %vm2807, %v5930, 0
      %v5972 = vsel %vm2807, %v5931, 0
      %v5975 = vsel %vm2807, %v5932, 0
      %v5978 = vsel %vm2807, %v5933, 0
      %v5981 = vsel %vm2807, %v5934, 0
      %v5984 = vsel %vm2807, %v5935, 0
      %v5987 = vsel %vm2807, %v5936, 0
      %v5990 = vsel %vm2807, %v5937, 0
      %v5993 = vsel %vm2807, %v5938, 0
      %v5996 = vsel %vm2807, %v5939, 0
      %v5999 = vsel %vm2807, %v5940, 0
      %v6002 = vsel %vm2807, %v5941, 0
      %v6005 = vsel %vm2807, %v5942, 0
      %v6008 = vsel %vm2807, %v5943, 0
      %v6011 = vsel %vm2807, %v5944, 0
      %v6014 = vsel %vm2807, %v5945, 0
      %v6017 = vsel %vm2807, %v5946, 0
      %v6020 = vsel %vm2807, %v5947, 0
      %v6023 = vsel %vm2807, %v5948, 0
      %v6026 = vsel %vm2807, %v5949, 0
      %v6029 = vsel %vm2807, %v5950, 0
      %v6032 = vsel %vm2807, %v5951, 0
      %v6035 = vsel %vm2807, %v5952, 0
      %v6038 = vsel %vm2807, %v5953, 0
      %v6041 = vsel %vm2807, %v5954, 0
      %v6044 = vsel %vm2807, %v5955, 0
      %v6047 = vsel %vm2807, %v5956, 0
      %v6050 = vsel %vm2807, %v5957, 0
      %v6053 = vsel %vm2807, %v5958, 0
      %v6056 = vsel %vm2807, %v5959, 0
      %6058 = vmatprep.subr.mxu0 0.0
      %6059 = vmatpush1.msra.mxu0 %v5961
      %6060 = vmatprep.subr.mxu0 0.0
      %6061 = vmatpush1.msra.mxu0 0.0
      %6062 = vmatprep.subr.mxu0 0.0
      %6063 = vmatpush1.msra.mxu0 0.0
      %6064 = vmatprep.subr.mxu0 0.0
      %6065 = vmatpush1.msra.mxu0 0.0
      %6066 = vmatprep.subr.mxu0 0.0
      %6067 = vmatpush1.msra.mxu0 0.0
      %6068 = vmatprep.subr.mxu0 0.0
      %6069 = vmatpush1.msra.mxu0 0.0
      %6070 = vmatprep.subr.mxu0 0.0
      %6071 = vmatpush1.msra.mxu0 0.0
      %6072 = vmatprep.subr.mxu0 0.0
      %6073 = vmatpush1.msra.mxu0 0.0
      %6074 = vmatprep.subr.mxu0 0.0
      %6075 = vmatpush1.msra.mxu0 0.0
      %6076 = vmatprep.subr.mxu0 0.0
      %6077 = vmatpush1.msra.mxu0 0.0
      %6078 = vmatprep.subr.mxu0 0.0
      %6079 = vmatpush1.msra.mxu0 0.0
      %6080 = vmatprep.subr.mxu0 0.0
      %6081 = vmatpush1.msra.mxu0 0.0
      %6082 = vmatprep.subr.mxu0 0.0
      %6083 = vmatpush1.msra.mxu0 0.0
      %6084 = vmatprep.subr.mxu0 0.0
      %6085 = vmatpush1.msra.mxu0 0.0
      %6086 = vmatprep.subr.mxu0 0.0
      %6087 = vmatpush1.msra.mxu0 0.0
      %6088 = vmatprep.subr.mxu0 0.0
      %6089 = vmatpush1.msra.mxu0 0.0
      %6090 = vmatprep.subr.mxu0 0.0
      %6091 = vmatpush1.msra.mxu0 0.0
      %6092 = vmatprep.subr.mxu0 0.0
      %6093 = vmatpush1.msra.mxu0 0.0
      %6094 = vmatprep.subr.mxu0 0.0
      %6095 = vmatpush1.msra.mxu0 0.0
      %6096 = vmatprep.subr.mxu0 0.0
      %6097 = vmatpush1.msra.mxu0 0.0
      %6098 = vmatprep.subr.mxu0 0.0
      %6099 = vmatpush1.msra.mxu0 0.0
      %6100 = vmatprep.subr.mxu0 0.0
      %6101 = vmatpush1.msra.mxu0 0.0
      %6102 = vmatprep.subr.mxu0 0.0
      %6103 = vmatpush1.msra.mxu0 0.0
      %6104 = vmatprep.subr.mxu0 0.0
      %6105 = vmatpush1.msra.mxu0 0.0
      %6106 = vmatprep.subr.mxu0 0.0
      %6107 = vmatpush1.msra.mxu0 0.0
      %6108 = vmatprep.subr.mxu0 0.0
      %6109 = vmatpush1.msra.mxu0 0.0
      %6110 = vmatprep.subr.mxu0 0.0
      %6111 = vmatpush1.msra.mxu0 0.0
      %6112 = vmatprep.subr.mxu0 0.0
      %6113 = vmatpush1.msra.mxu0 0.0
      %6114 = vmatprep.subr.mxu0 0.0
      %6115 = vmatpush1.msra.mxu0 0.0
      %6116 = vmatprep.subr.mxu0 0.0
      %6117 = vmatpush1.msra.mxu0 0.0
      %6118 = vmatprep.subr.mxu0 0.0
      %6119 = vmatpush1.msra.mxu0 0.0
      %6120 = vmatprep.subr.mxu0 0.0
      %6121 = vmatpush1.msra.mxu0 0.0
      %6122 = vmatprep.mubr.f32.mxu0 0.0
      %6123 = vmatmul.mubr.f32.gmra.mrb[0].mxu0 %v5963
      %v6124 = vpop.f32.mrb[0].mxu0
      %v6125 = vadd.f32 0.0, %v6124
      %v6126 = vpop.f32.mrb[0].mxu0
      %6127 = vmatprep.mubr.f32.mxu0 0.0
      %6128 = vmatmul.mubr.f32.gmra.mrb[0].mxu0 %v5966
      %v6129 = vpop.f32.mrb[0].mxu0
      %v6130 = vadd.f32 0.0, %v6129
      %v6131 = vpop.f32.mrb[0].mxu0
      %6132 = vmatprep.mubr.f32.mxu0 0.0
      %6133 = vmatmul.mubr.f32.gmra.mrb[0].mxu0 %v5969
      %v6134 = vpop.f32.mrb[0].mxu0
      %v6135 = vadd.f32 0.0, %v6134
      %v6136 = vpop.f32.mrb[0].mxu0
      %6137 = vmatprep.mubr.f32.mxu0 0.0
      %6138 = vmatmul.mubr.f32.gmra.mrb[0].mxu0 %v5972
      %v6139 = vpop.f32.mrb[0].mxu0
      %v6140 = vadd.f32 0.0, %v6139
      %v6141 = vpop.f32.mrb[0].mxu0
      %6142 = vmatprep.mubr.f32.mxu0 0.0
      %6143 = vmatmul.mubr.f32.gmra.mrb[0].mxu0 %v5975
      %v6144 = vpop.f32.mrb[0].mxu0
      %v6145 = vadd.f32 0.0, %v6144
      %v6146 = vpop.f32.mrb[0].mxu0
      %6147 = vmatprep.mubr.f32.mxu0 0.0
      %6148 = vmatmul.mubr.f32.gmra.mrb[0].mxu0 %v5978
      %v6149 = vpop.f32.mrb[0].mxu0
      %v6150 = vadd.f32 0.0, %v6149
      %v6151 = vpop.f32.mrb[0].mxu0
      %6152 = vmatprep.mubr.f32.mxu0 0.0
      %6153 = vmatmul.mubr.f32.gmra.mrb[0].mxu0 %v5981
      %v6154 = vpop.f32.mrb[0].mxu0
      %v6155 = vadd.f32 0.0, %v6154
      %v6156 = vpop.f32.mrb[0].mxu0
      %6157 = vmatprep.mubr.f32.mxu0 0.0
      %6158 = vmatmul.mubr.f32.gmra.mrb[0].mxu0 %v5984
      %v6159 = vpop.f32.mrb[0].mxu0
      %v6160 = vadd.f32 0.0, %v6159
      %v6161 = vpop.f32.mrb[0].mxu0
      %6162 = vmatprep.mubr.f32.mxu0 0.0
      %6163 = vmatmul.mubr.f32.gmra.mrb[0].mxu0 %v5987
      %v6164 = vpop.f32.mrb[0].mxu0
      %v6165 = vadd.f32 0.0, %v6164
      %v6166 = vpop.f32.mrb[0].mxu0
      %6167 = vmatprep.mubr.f32.mxu0 0.0
      %6168 = vmatmul.mubr.f32.gmra.mrb[0].mxu0 %v5990
      %v6169 = vpop.f32.mrb[0].mxu0
      %v6170 = vadd.f32 0.0, %v6169
      %v6171 = vpop.f32.mrb[0].mxu0
      %6172 = vmatprep.mubr.f32.mxu0 0.0
      %6173 = vmatmul.mubr.f32.gmra.mrb[0].mxu0 %v5993
      %v6174 = vpop.f32.mrb[0].mxu0
      %v6175 = vadd.f32 0.0, %v6174
      %v6176 = vpop.f32.mrb[0].mxu0
      %6177 = vmatprep.mubr.f32.mxu0 0.0
      %6178 = vmatmul.mubr.f32.gmra.mrb[0].mxu0 %v5996
      %v6179 = vpop.f32.mrb[0].mxu0
      %v6180 = vadd.f32 0.0, %v6179
      %v6181 = vpop.f32.mrb[0].mxu0
      %6182 = vmatprep.mubr.f32.mxu0 0.0
      %6183 = vmatmul.mubr.f32.gmra.mrb[0].mxu0 %v5999
      %v6184 = vpop.f32.mrb[0].mxu0
      %v6185 = vadd.f32 0.0, %v6184
      %v6186 = vpop.f32.mrb[0].mxu0
      %6187 = vmatprep.mubr.f32.mxu0 0.0
      %6188 = vmatmul.mubr.f32.gmra.mrb[0].mxu0 %v6002
      %v6189 = vpop.f32.mrb[0].mxu0
      %v6190 = vadd.f32 0.0, %v6189
      %v6191 = vpop.f32.mrb[0].mxu0
      %6192 = vmatprep.mubr.f32.mxu0 0.0
      %6193 = vmatmul.mubr.f32.gmra.mrb[0].mxu0 %v6005
      %v6194 = vpop.f32.mrb[0].mxu0
      %v6195 = vadd.f32 0.0, %v6194
      %v6196 = vpop.f32.mrb[0].mxu0
      %6197 = vmatprep.mubr.f32.mxu0 0.0
      %6198 = vmatmul.mubr.f32.gmra.mrb[0].mxu0 %v6008
      %v6199 = vpop.f32.mrb[0].mxu0
      %v6200 = vadd.f32 0.0, %v6199
      %v6201 = vpop.f32.mrb[0].mxu0
      %6202 = vmatprep.mubr.f32.mxu0 0.0
      %6203 = vmatmul.mubr.f32.gmra.mrb[0].mxu0 %v6011
      %v6204 = vpop.f32.mrb[0].mxu0
      %v6205 = vadd.f32 0.0, %v6204
      %v6206 = vpop.f32.mrb[0].mxu0
      %6207 = vmatprep.mubr.f32.mxu0 0.0
      %6208 = vmatmul.mubr.f32.gmra.mrb[0].mxu0 %v6014
      %v6209 = vpop.f32.mrb[0].mxu0
      %v6210 = vadd.f32 0.0, %v6209
      %v6211 = vpop.f32.mrb[0].mxu0
      %6212 = vmatprep.mubr.f32.mxu0 0.0
      %6213 = vmatmul.mubr.f32.gmra.mrb[0].mxu0 %v6017
      %v6214 = vpop.f32.mrb[0].mxu0
      %v6215 = vadd.f32 0.0, %v6214
      %v6216 = vpop.f32.mrb[0].mxu0
      %6217 = vmatprep.mubr.f32.mxu0 0.0
      %6218 = vmatmul.mubr.f32.gmra.mrb[0].mxu0 %v6020
      %v6219 = vpop.f32.mrb[0].mxu0
      %v6220 = vadd.f32 0.0, %v6219
      %v6221 = vpop.f32.mrb[0].mxu0
      %6222 = vmatprep.mubr.f32.mxu0 0.0
      %6223 = vmatmul.mubr.f32.gmra.mrb[0].mxu0 %v6023
      %v6224 = vpop.f32.mrb[0].mxu0
      %v6225 = vadd.f32 0.0, %v6224
      %v6226 = vpop.f32.mrb[0].mxu0
      %6227 = vmatprep.mubr.f32.mxu0 0.0
      %6228 = vmatmul.mubr.f32.gmra.mrb[0].mxu0 %v6026
      %v6229 = vpop.f32.mrb[0].mxu0
      %v6230 = vadd.f32 0.0, %v6229
      %v6231 = vpop.f32.mrb[0].mxu0
      %6232 = vmatprep.mubr.f32.mxu0 0.0
      %6233 = vmatmul.mubr.f32.gmra.mrb[0].mxu0 %v6029
      %v6234 = vpop.f32.mrb[0].mxu0
      %v6235 = vadd.f32 0.0, %v6234
      %v6236 = vpop.f32.mrb[0].mxu0
      %6237 = vmatprep.mubr.f32.mxu0 0.0
      %6238 = vmatmul.mubr.f32.gmra.mrb[0].mxu0 %v6032
      %v6239 = vpop.f32.mrb[0].mxu0
      %v6240 = vadd.f32 0.0, %v6239
      %v6241 = vpop.f32.mrb[0].mxu0
      %6242 = vmatprep.mubr.f32.mxu0 0.0
      %6243 = vmatmul.mubr.f32.gmra.mrb[0].mxu0 %v6035
      %v6244 = vpop.f32.mrb[0].mxu0
      %v6245 = vadd.f32 0.0, %v6244
      %v6246 = vpop.f32.mrb[0].mxu0
      %6247 = vmatprep.mubr.f32.mxu0 0.0
      %6248 = vmatmul.mubr.f32.gmra.mrb[0].mxu0 %v6038
      %v6249 = vpop.f32.mrb[0].mxu0
      %v6250 = vadd.f32 0.0, %v6249
      %v6251 = vpop.f32.mrb[0].mxu0
      %6252 = vmatprep.mubr.f32.mxu0 0.0
      %6253 = vmatmul.mubr.f32.gmra.mrb[0].mxu0 %v6041
      %v6254 = vpop.f32.mrb[0].mxu0
      %v6255 = vadd.f32 0.0, %v6254
      %v6256 = vpop.f32.mrb[0].mxu0
      %6257 = vmatprep.mubr.f32.mxu0 0.0
      %6258 = vmatmul.mubr.f32.gmra.mrb[0].mxu0 %v6044
      %v6259 = vpop.f32.mrb[0].mxu0
      %v6260 = vadd.f32 0.0, %v6259
      %v6261 = vpop.f32.mrb[0].mxu0
      %6262 = vmatprep.mubr.f32.mxu0 0.0
      %6263 = vmatmul.mubr.f32.gmra.mrb[0].mxu0 %v6047
      %v6264 = vpop.f32.mrb[0].mxu0
      %v6265 = vadd.f32 0.0, %v6264
      %v6266 = vpop.f32.mrb[0].mxu0
      %6267 = vmatprep.mubr.f32.mxu0 0.0
      %6268 = vmatmul.mubr.f32.gmra.mrb[0].mxu0 %v6050
      %v6269 = vpop.f32.mrb[0].mxu0
      %v6270 = vadd.f32 0.0, %v6269
      %v6271 = vpop.f32.mrb[0].mxu0
      %6272 = vmatprep.mubr.f32.mxu0 0.0
      %6273 = vmatmul.mubr.f32.gmra.mrb[0].mxu0 %v6053
      %v6274 = vpop.f32.mrb[0].mxu0
      %v6275 = vadd.f32 0.0, %v6274
      %v6276 = vpop.f32.mrb[0].mxu0
      %6277 = vmatprep.mubr.f32.mxu0 0.0
      %6278 = vmatmul.mubr.f32.gmra.mrb[0].mxu0 %v6056
      %v6279 = vpop.f32.mrb[0].mxu0
      %v6280 = vadd.f32 0.0, %v6279
      %v6281 = vpop.f32.mrb[0].mxu0
      %6282 = vdwg.mxu0
      %v6283 = vadd.f32 %v5896, %v6125
      %v6284 = vadd.f32 %v5897, %v6130
      %v6285 = vadd.f32 %v5898, %v6135
      %v6286 = vadd.f32 %v5899, %v6140
      %v6287 = vadd.f32 %v5900, %v6145
      %v6288 = vadd.f32 %v5901, %v6150
      %v6289 = vadd.f32 %v5902, %v6155
      %v6290 = vadd.f32 %v5903, %v6160
      %v6291 = vadd.f32 %v5904, %v6165
      %v6292 = vadd.f32 %v5905, %v6170
      %v6293 = vadd.f32 %v5906, %v6175
      %v6294 = vadd.f32 %v5907, %v6180
      %v6295 = vadd.f32 %v5908, %v6185
      %v6296 = vadd.f32 %v5909, %v6190
      %v6297 = vadd.f32 %v5910, %v6195
      %v6298 = vadd.f32 %v5911, %v6200
      %v6299 = vadd.f32 %v5912, %v6205
      %v6300 = vadd.f32 %v5913, %v6210
      %v6301 = vadd.f32 %v5914, %v6215
      %v6302 = vadd.f32 %v5915, %v6220
      %v6303 = vadd.f32 %v5916, %v6225
      %v6304 = vadd.f32 %v5917, %v6230
      %v6305 = vadd.f32 %v5918, %v6235
      %v6306 = vadd.f32 %v5919, %v6240
      %v6307 = vadd.f32 %v5920, %v6245
      %v6308 = vadd.f32 %v5921, %v6250
      %v6309 = vadd.f32 %v5922, %v6255
      %v6310 = vadd.f32 %v5923, %v6260
      %v6311 = vadd.f32 %v5924, %v6265
      %v6312 = vadd.f32 %v5925, %v6270
      %v6313 = vadd.f32 %v5926, %v6275
      %v6314 = vadd.f32 %v5927, %v6280
      %v6315 = vld [vmem:[%s4] sm:$0x1]
      %v6317 = vlaneseq
      %v6318 = vshrl.u32 %v6317, 7
      %v6319 = vsub.s32 0, %v6318
      %v6320 = vrot.slane %v6315, %v6319
      %v6322 = vadd.f32 %v6283, %v6320
      %v6323 = vadd.f32 %v6284, %v6320
      %v6324 = vadd.f32 %v6285, %v6320
      %v6325 = vadd.f32 %v6286, %v6320
      %v6326 = vadd.f32 %v6287, %v6320
      %v6327 = vadd.f32 %v6288, %v6320
      %v6328 = vadd.f32 %v6289, %v6320
      %v6329 = vadd.f32 %v6290, %v6320
      %v6330 = vadd.f32 %v6291, %v6320
      %v6331 = vadd.f32 %v6292, %v6320
      %v6332 = vadd.f32 %v6293, %v6320
      %v6333 = vadd.f32 %v6294, %v6320
      %v6334 = vadd.f32 %v6295, %v6320
      %v6335 = vadd.f32 %v6296, %v6320
      %v6336 = vadd.f32 %v6297, %v6320
      %v6337 = vadd.f32 %v6298, %v6320
      %v6338 = vadd.f32 %v6299, %v6320
      %v6339 = vadd.f32 %v6300, %v6320
      %v6340 = vadd.f32 %v6301, %v6320
      %v6341 = vadd.f32 %v6302, %v6320
      %v6342 = vadd.f32 %v6303, %v6320
      %v6343 = vadd.f32 %v6304, %v6320
      %v6344 = vadd.f32 %v6305, %v6320
      %v6345 = vadd.f32 %v6306, %v6320
      %v6346 = vadd.f32 %v6307, %v6320
      %v6347 = vadd.f32 %v6308, %v6320
      %v6348 = vadd.f32 %v6309, %v6320
      %v6349 = vadd.f32 %v6310, %v6320
      %v6350 = vadd.f32 %v6311, %v6320
      %v6351 = vadd.f32 %v6312, %v6320
      %v6352 = vadd.f32 %v6313, %v6320
      %v6353 = vadd.f32 %v6314, %v6320
      %v6354 = vmax.f32 %v6322, 0.0
      %v6355 = vmax.f32 %v6323, 0.0
      %v6356 = vmax.f32 %v6324, 0.0
      %v6357 = vmax.f32 %v6325, 0.0
      %v6358 = vmax.f32 %v6326, 0.0
      %v6359 = vmax.f32 %v6327, 0.0
      %v6360 = vmax.f32 %v6328, 0.0
      %v6361 = vmax.f32 %v6329, 0.0
      %v6362 = vmax.f32 %v6330, 0.0
      %v6363 = vmax.f32 %v6331, 0.0
      %v6364 = vmax.f32 %v6332, 0.0
      %v6365 = vmax.f32 %v6333, 0.0
      %v6366 = vmax.f32 %v6334, 0.0
      %v6367 = vmax.f32 %v6335, 0.0
      %v6368 = vmax.f32 %v6336, 0.0
      %v6369 = vmax.f32 %v6337, 0.0
      %v6370 = vmax.f32 %v6338, 0.0
      %v6371 = vmax.f32 %v6339, 0.0
      %v6372 = vmax.f32 %v6340, 0.0
      %v6373 = vmax.f32 %v6341, 0.0
      %v6374 = vmax.f32 %v6342, 0.0
      %v6375 = vmax.f32 %v6343, 0.0
      %v6376 = vmax.f32 %v6344, 0.0
      %v6377 = vmax.f32 %v6345, 0.0
      %v6378 = vmax.f32 %v6346, 0.0
      %v6379 = vmax.f32 %v6347, 0.0
      %v6380 = vmax.f32 %v6348, 0.0
      %v6381 = vmax.f32 %v6349, 0.0
      %v6382 = vmax.f32 %v6350, 0.0
      %v6383 = vmax.f32 %v6351, 0.0
      %v6384 = vmax.f32 %v6352, 0.0
      %v6385 = vmax.f32 %v6353, 0.0
      %v6386 = vld [vmem:[%s5] sm:$0xff]
      %v6387 = vld [vmem:[%s5 + $0x8] sm:$0xff]
      %v6388 = vld [vmem:[%s5 + $0x10] sm:$0xff]
      %v6389 = vld [vmem:[%s5 + $0x18] sm:$0xff]
      %v6390 = vld [vmem:[%s5 + $0x20] sm:$0xff]
      %v6391 = vld [vmem:[%s5 + $0x28] sm:$0xff]
      %v6392 = vld [vmem:[%s5 + $0x30] sm:$0xff]
      %v6393 = vld [vmem:[%s5 + $0x38] sm:$0xff]
      %v6394 = vld [vmem:[%s5 + $0x40] sm:$0xff]
      %v6395 = vld [vmem:[%s5 + $0x48] sm:$0xff]
      %v6396 = vld [vmem:[%s5 + $0x50] sm:$0xff]
      %v6397 = vld [vmem:[%s5 + $0x58] sm:$0xff]
      %v6398 = vld [vmem:[%s5 + $0x60] sm:$0xff]
      %v6399 = vld [vmem:[%s5 + $0x68] sm:$0xff]
      %v6400 = vld [vmem:[%s5 + $0x70] sm:$0xff]
      %v6401 = vld [vmem:[%s5 + $0x78] sm:$0xff]
      %v6402 = vld [vmem:[%s5 + $0x80] sm:$0xff]
      %v6403 = vld [vmem:[%s5 + $0x88] sm:$0xff]
      %v6404 = vld [vmem:[%s5 + $0x90] sm:$0xff]
      %v6405 = vld [vmem:[%s5 + $0x98] sm:$0xff]
      %v6406 = vld [vmem:[%s5 + $0xa0] sm:$0xff]
      %v6407 = vld [vmem:[%s5 + $0xa8] sm:$0xff]
      %v6408 = vld [vmem:[%s5 + $0xb0] sm:$0xff]
      %v6409 = vld [vmem:[%s5 + $0xb8] sm:$0xff]
      %6410 = vmatprep.subr.mxu0 0.0
      %6411 = vmatpush1.msra.mxu0 %v6354
      %6412 = vmatprep.subr.mxu0 0.0
      %6413 = vmatpush1.msra.mxu0 %v6355
      %6414 = vmatprep.subr.mxu0 0.0
      %6415 = vmatpush1.msra.mxu0 %v6356
      %6416 = vmatprep.subr.mxu0 0.0
      %6417 = vmatpush1.msra.mxu0 %v6357
      %6418 = vmatprep.subr.mxu0 0.0
      %6419 = vmatpush1.msra.mxu0 %v6358
      %6420 = vmatprep.subr.mxu0 0.0
      %6421 = vmatpush1.msra.mxu0 %v6359
      %6422 = vmatprep.subr.mxu0 0.0
      %6423 = vmatpush1.msra.mxu0 %v6360
      %6424 = vmatprep.subr.mxu0 0.0
      %6425 = vmatpush1.msra.mxu0 %v6361
      %6426 = vmatprep.subr.mxu0 0.0
      %6427 = vmatpush1.msra.mxu0 %v6362
      %6428 = vmatprep.subr.mxu0 0.0
      %6429 = vmatpush1.msra.mxu0 %v6363
      %6430 = vmatprep.subr.mxu0 0.0
      %6431 = vmatpush1.msra.mxu0 %v6364
      %6432 = vmatprep.subr.mxu0 0.0
      %6433 = vmatpush1.msra.mxu0 %v6365
      %6434 = vmatprep.subr.mxu0 0.0
      %6435 = vmatpush1.msra.mxu0 %v6366
      %6436 = vmatprep.subr.mxu0 0.0
      %6437 = vmatpush1.msra.mxu0 %v6367
      %6438 = vmatprep.subr.mxu0 0.0
      %6439 = vmatpush1.msra.mxu0 %v6368
      %6440 = vmatprep.subr.mxu0 0.0
      %6441 = vmatpush1.msra.mxu0 %v6369
      %6442 = vmatprep.subr.mxu0 0.0
      %6443 = vmatpush1.msra.mxu0 %v6370
      %6444 = vmatprep.subr.mxu0 0.0
      %6445 = vmatpush1.msra.mxu0 %v6371
      %6446 = vmatprep.subr.mxu0 0.0
      %6447 = vmatpush1.msra.mxu0 %v6372
      %6448 = vmatprep.subr.mxu0 0.0
      %6449 = vmatpush1.msra.mxu0 %v6373
      %6450 = vmatprep.subr.mxu0 0.0
      %6451 = vmatpush1.msra.mxu0 %v6374
      %6452 = vmatprep.subr.mxu0 0.0
      %6453 = vmatpush1.msra.mxu0 %v6375
      %6454 = vmatprep.subr.mxu0 0.0
      %6455 = vmatpush1.msra.mxu0 %v6376
      %6456 = vmatprep.subr.mxu0 0.0
      %6457 = vmatpush1.msra.mxu0 %v6377
      %6458 = vmatprep.subr.mxu0 0.0
      %6459 = vmatpush1.msra.mxu0 %v6378
      %6460 = vmatprep.subr.mxu0 0.0
      %6461 = vmatpush1.msra.mxu0 %v6379
      %6462 = vmatprep.subr.mxu0 0.0
      %6463 = vmatpush1.msra.mxu0 %v6380
      %6464 = vmatprep.subr.mxu0 0.0
      %6465 = vmatpush1.msra.mxu0 %v6381
      %6466 = vmatprep.subr.mxu0 0.0
      %6467 = vmatpush1.msra.mxu0 %v6382
      %6468 = vmatprep.subr.mxu0 0.0
      %6469 = vmatpush1.msra.mxu0 %v6383
      %6470 = vmatprep.subr.mxu0 0.0
      %6471 = vmatpush1.msra.mxu0 %v6384
      %6472 = vmatprep.subr.mxu0 0.0
      %6473 = vmatpush1.msra.mxu0 %v6385
      %6474 = vmatprep.mubr.f32.mxu0 %v6387
      %6475 = vmatmul.mubr.f32.gmra.mrb[0].mxu0 %v6386
      %v6476 = vpop.f32.mrb[0].mxu0
      %v6477 = vadd.f32 0.0, %v6476
      %v6478 = vpop.f32.mrb[0].mxu0
      %6479 = vmatprep.mubr.f32.mxu0 %v6389
      %6480 = vmatmul.mubr.f32.gmra.mrb[0].mxu0 %v6388
      %v6481 = vpop.f32.mrb[0].mxu0
      %v6482 = vadd.f32 0.0, %v6481
      %v6483 = vpop.f32.mrb[0].mxu0
      %6484 = vmatprep.mubr.f32.mxu0 %v6391
      %6485 = vmatmul.mubr.f32.gmra.mrb[0].mxu0 %v6390
      %v6486 = vpop.f32.mrb[0].mxu0
      %v6487 = vadd.f32 0.0, %v6486
      %v6488 = vpop.f32.mrb[0].mxu0
      %6489 = vmatprep.mubr.f32.mxu0 %v6393
      %6490 = vmatmul.mubr.f32.gmra.mrb[0].mxu0 %v6392
      %v6491 = vpop.f32.mrb[0].mxu0
      %v6492 = vadd.f32 0.0, %v6491
      %v6493 = vpop.f32.mrb[0].mxu0
      %6494 = vmatprep.mubr.f32.mxu0 %v6395
      %6495 = vmatmul.mubr.f32.gmra.mrb[0].mxu0 %v6394
      %v6496 = vpop.f32.mrb[0].mxu0
      %v6497 = vadd.f32 0.0, %v6496
      %v6498 = vpop.f32.mrb[0].mxu0
      %6499 = vmatprep.mubr.f32.mxu0 %v6397
      %6500 = vmatmul.mubr.f32.gmra.mrb[0].mxu0 %v6396
      %v6501 = vpop.f32.mrb[0].mxu0
      %v6502 = vadd.f32 0.0, %v6501
      %v6503 = vpop.f32.mrb[0].mxu0
      %6504 = vmatprep.mubr.f32.mxu0 %v6399
      %6505 = vmatmul.mubr.f32.gmra.mrb[0].mxu0 %v6398
      %v6506 = vpop.f32.mrb[0].mxu0
      %v6507 = vadd.f32 0.0, %v6506
      %v6508 = vpop.f32.mrb[0].mxu0
      %6509 = vmatprep.mubr.f32.mxu0 %v6401
      %6510 = vmatmul.mubr.f32.gmra.mrb[0].mxu0 %v6400
      %v6511 = vpop.f32.mrb[0].mxu0
      %v6512 = vadd.f32 0.0, %v6511
      %v6513 = vpop.f32.mrb[0].mxu0
      %6514 = vmatprep.mubr.f32.mxu0 %v6403
      %6515 = vmatmul.mubr.f32.gmra.mrb[0].mxu0 %v6402
      %v6516 = vpop.f32.mrb[0].mxu0
      %v6517 = vadd.f32 0.0, %v6516
      %v6518 = vpop.f32.mrb[0].mxu0
      %6519 = vmatprep.mubr.f32.mxu0 %v6405
      %6520 = vmatmul.mubr.f32.gmra.mrb[0].mxu0 %v6404
      %v6521 = vpop.f32.mrb[0].mxu0
      %v6522 = vadd.f32 0.0, %v6521
      %v6523 = vpop.f32.mrb[0].mxu0
      %6524 = vmatprep.mubr.f32.mxu0 %v6407
      %6525 = vmatmul.mubr.f32.gmra.mrb[0].mxu0 %v6406
      %v6526 = vpop.f32.mrb[0].mxu0
      %v6527 = vadd.f32 0.0, %v6526
      %v6528 = vpop.f32.mrb[0].mxu0
      %6529 = vmatprep.mubr.f32.mxu0 %v6409
      %6530 = vmatmul.mubr.f32.gmra.mrb[0].mxu0 %v6408
      %v6531 = vpop.f32.mrb[0].mxu0
      %v6532 = vadd.f32 0.0, %v6531
      %v6533 = vpop.f32.mrb[0].mxu0
      %6534 = vdwg.mxu0
      %v6535 = vld [vmem:[%s6] sm:$0xff]
      %v6536 = vld [vmem:[%s6 + $0x8] sm:$0xff]
      %v6537 = vld [vmem:[%s6 + $0x10] sm:$0xff]
      %v6538 = vld [vmem:[%s6 + $0x18] sm:$0xff]
      %v6539 = vld [vmem:[%s6 + $0x20] sm:$0xf]
      %vm6540 = vcmask 785408
      %v6542 = vsel %vm6540, %v6535, 0
      %v6545 = vsel %vm6540, %v6536, 0
      %v6548 = vsel %vm6540, %v6537, 0
      %v6551 = vsel %vm6540, %v6538, 0
      %v6554 = vsel %vm6540, %v6539, 0
      %6556 = vmatprep.subr.mxu0 0.0
      %6557 = vmatpush1.msra.mxu0 %v6477
      %6558 = vmatprep.subr.mxu0 0.0
      %6559 = vmatpush1.msra.mxu0 %v6482
      %6560 = vmatprep.subr.mxu0 0.0
      %6561 = vmatpush1.msra.mxu0 %v6487
      %6562 = vmatprep.subr.mxu0 0.0
      %6563 = vmatpush1.msra.mxu0 %v6492
      %6564 = vmatprep.subr.mxu0 0.0
      %6565 = vmatpush1.msra.mxu0 %v6497
      %6566 = vmatprep.subr.mxu0 0.0
      %6567 = vmatpush1.msra.mxu0 %v6502
      %6568 = vmatprep.subr.mxu0 0.0
      %6569 = vmatpush1.msra.mxu0 %v6507
      %6570 = vmatprep.subr.mxu0 0.0
      %6571 = vmatpush1.msra.mxu0 %v6512
      %6572 = vmatprep.subr.mxu0 0.0
      %6573 = vmatpush1.msra.mxu0 %v6517
      %6574 = vmatprep.subr.mxu0 0.0
      %6575 = vmatpush1.msra.mxu0 %v6522
      %6576 = vmatprep.subr.mxu0 0.0
      %6577 = vmatpush1.msra.mxu0 %v6527
      %6578 = vmatprep.subr.mxu0 0.0
      %6579 = vmatpush1.msra.mxu0 %v6532
      %6580 = vmatprep.subr.mxu0 0.0
      %6581 = vmatpush1.msra.mxu0 0.0
      %6582 = vmatprep.subr.mxu0 0.0
      %6583 = vmatpush1.msra.mxu0 0.0
      %6584 = vmatprep.subr.mxu0 0.0
      %6585 = vmatpush1.msra.mxu0 0.0
      %6586 = vmatprep.subr.mxu0 0.0
      %6587 = vmatpush1.msra.mxu0 0.0
      %6588 = vmatprep.subr.mxu0 0.0
      %6589 = vmatpush1.msra.mxu0 0.0
      %6590 = vmatprep.subr.mxu0 0.0
      %6591 = vmatpush1.msra.mxu0 0.0
      %6592 = vmatprep.subr.mxu0 0.0
      %6593 = vmatpush1.msra.mxu0 0.0
      %6594 = vmatprep.subr.mxu0 0.0
      %6595 = vmatpush1.msra.mxu0 0.0
      %6596 = vmatprep.subr.mxu0 0.0
      %6597 = vmatpush1.msra.mxu0 0.0
      %6598 = vmatprep.subr.mxu0 0.0
      %6599 = vmatpush1.msra.mxu0 0.0
      %6600 = vmatprep.subr.mxu0 0.0
      %6601 = vmatpush1.msra.mxu0 0.0
      %6602 = vmatprep.subr.mxu0 0.0
      %6603 = vmatpush1.msra.mxu0 0.0
      %6604 = vmatprep.subr.mxu0 0.0
      %6605 = vmatpush1.msra.mxu0 0.0
      %6606 = vmatprep.subr.mxu0 0.0
      %6607 = vmatpush1.msra.mxu0 0.0
      %6608 = vmatprep.subr.mxu0 0.0
      %6609 = vmatpush1.msra.mxu0 0.0
      %6610 = vmatprep.subr.mxu0 0.0
      %6611 = vmatpush1.msra.mxu0 0.0
      %6612 = vmatprep.subr.mxu0 0.0
      %6613 = vmatpush1.msra.mxu0 0.0
      %6614 = vmatprep.subr.mxu0 0.0
      %6615 = vmatpush1.msra.mxu0 0.0
      %6616 = vmatprep.subr.mxu0 0.0
      %6617 = vmatpush1.msra.mxu0 0.0
      %6618 = vmatprep.subr.mxu0 0.0
      %6619 = vmatpush1.msra.mxu0 0.0
      %6620 = vmatprep.mubr.f32.mxu0 0.0
      %6621 = vmatmul.mubr.f32.gmra.mrb[0].mxu0 %v6542
      %v6622 = vpop.f32.mrb[0].mxu0
      %v6623 = vadd.f32 0.0, %v6622
      %v6624 = vpop.f32.mrb[0].mxu0
      %6625 = vmatprep.mubr.f32.mxu0 0.0
      %6626 = vmatmul.mubr.f32.gmra.mrb[0].mxu0 %v6545
      %v6627 = vpop.f32.mrb[0].mxu0
      %v6628 = vadd.f32 0.0, %v6627
      %v6629 = vpop.f32.mrb[0].mxu0
      %6630 = vmatprep.mubr.f32.mxu0 0.0
      %6631 = vmatmul.mubr.f32.gmra.mrb[0].mxu0 %v6548
      %v6632 = vpop.f32.mrb[0].mxu0
      %v6633 = vadd.f32 0.0, %v6632
      %v6634 = vpop.f32.mrb[0].mxu0
      %6635 = vmatprep.mubr.f32.mxu0 0.0
      %6636 = vmatmul.mubr.f32.gmra.mrb[0].mxu0 %v6551
      %v6637 = vpop.f32.mrb[0].mxu0
      %v6638 = vadd.f32 0.0, %v6637
      %v6639 = vpop.f32.mrb[0].mxu0
      %6640 = vmatprep.mubr.f32.mxu0 0.0
      %6641 = vmatmul.mubr.f32.gmra.mrb[0].mxu0 %v6554
      %v6642 = vpop.f32.mrb[0].mxu0
      %v6643 = vadd.f32 0.0, %v6642
      %v6644 = vpop.f32.mrb[0].mxu0
      %6645 = vdwg.mxu0
      %vm6646 = vcmask 130048
      %6647 = vst.msk [vmem:[#allocation3] sm:$0xff] %vm6646, %v6623
      %6648 = vst.msk [vmem:[#allocation3 + $0x8] sm:$0xff] %vm6646, %v6628
      %6649 = vst.msk [vmem:[#allocation3 + $0x10] sm:$0xff] %vm6646, %v6633
      %6650 = vst.msk [vmem:[#allocation3 + $0x18] sm:$0xff] %vm6646, %v6638
      %vm6651 = vcmask 125952
      %6652 = vst.msk [vmem:[#allocation3 + $0x20] sm:$0xf] %vm6651, %v6643
      %v6653 = vld [vmem:[%s8] sm:$0xff]
      %v6654 = vld [vmem:[%s8 + $0x8] sm:$0xff]
      %v6655 = vld [vmem:[%s8 + $0x10] sm:$0xff]
      %v6656 = vld [vmem:[%s8 + $0x18] sm:$0xff]
      %v6657 = vld [vmem:[#allocation3] sm:$0xff]
      %v6658 = vld [vmem:[#allocation3 + $0x8] sm:$0xff]
      %v6659 = vld [vmem:[#allocation3 + $0x10] sm:$0xff]
      %v6660 = vld [vmem:[#allocation3 + $0x18] sm:$0xff]
      %v6661 = vld [vmem:[#allocation3 + $0x20] sm:$0xf]
      %vm6662 = vcmask 31744
      %v6663 = vsel %vm6662, %v6657, -inf
      %6664 = vmax.xlane.f32.xlu0 %v6663
      %v6665 = vpop.xlane.xlu0 %6664
      %v6666 = vsel %vm6662, %v6658, -inf
      %6667 = vmax.xlane.f32.xlu0 %v6666
      %v6668 = vpop.xlane.xlu0 %6667
      %v6669 = vsel %vm6662, %v6659, -inf
      %6670 = vmax.xlane.f32.xlu0 %v6669
      %v6671 = vpop.xlane.xlu0 %6670
      %v6672 = vsel %vm6662, %v6660, -inf
      %6673 = vmax.xlane.f32.xlu0 %v6672
      %v6674 = vpop.xlane.xlu0 %6673
      %vm6675 = vcmask 27648
      %v6676 = vsel %vm6675, %v6661, -inf
      %6677 = vmax.xlane.f32.xlu0 %v6676
      %v6678 = vpop.xlane.xlu0 %6677
      %v6679 = vld [vmem:[%s7] sm:$0xff]
      %v6680 = vld [vmem:[%s7 + $0x8] sm:$0xff]
      %v6681 = vld [vmem:[%s7 + $0x10] sm:$0xff]
      %v6682 = vld [vmem:[%s7 + $0x18] sm:$0xff]
      %vm6683 = vcmask 293888
      %v6685 = vsel %vm6683, %v6679, 0
      %v6688 = vsel %vm6683, %v6680, 0
      %v6691 = vsel %vm6683, %v6681, 0
      %v6694 = vsel %vm6683, %v6682, 0
      %vm6696 = vcmask 1043456
      %v6698 = vsel %vm6696, %v6678, 0
      %6700 = vmatprep.subr.mxu0 0.0
      %6701 = vmatpush1.msra.mxu0 %v6665
      %6702 = vmatprep.subr.mxu0 0.0
      %6703 = vmatpush1.msra.mxu0 %v6668
      %6704 = vmatprep.subr.mxu0 0.0
      %6705 = vmatpush1.msra.mxu0 %v6671
      %6706 = vmatprep.subr.mxu0 0.0
      %6707 = vmatpush1.msra.mxu0 %v6674
      %6708 = vmatprep.subr.mxu0 0.0
      %6709 = vmatpush1.msra.mxu0 %v6698
      %6710 = vmatprep.subr.mxu0 0.0
      %6711 = vmatpush1.msra.mxu0 0.0
      %6712 = vmatprep.subr.mxu0 0.0
      %6713 = vmatpush1.msra.mxu0 0.0
      %6714 = vmatprep.subr.mxu0 0.0
      %6715 = vmatpush1.msra.mxu0 0.0
      %6716 = vmatprep.subr.mxu0 0.0
      %6717 = vmatpush1.msra.mxu0 0.0
      %6718 = vmatprep.subr.mxu0 0.0
      %6719 = vmatpush1.msra.mxu0 0.0
      %6720 = vmatprep.subr.mxu0 0.0
      %6721 = vmatpush1.msra.mxu0 0.0
      %6722 = vmatprep.subr.mxu0 0.0
      %6723 = vmatpush1.msra.mxu0 0.0
      %6724 = vmatprep.subr.mxu0 0.0
      %6725 = vmatpush1.msra.mxu0 0.0
      %6726 = vmatprep.subr.mxu0 0.0
      %6727 = vmatpush1.msra.mxu0 0.0
      %6728 = vmatprep.subr.mxu0 0.0
      %6729 = vmatpush1.msra.mxu0 0.0
      %6730 = vmatprep.subr.mxu0 0.0
      %6731 = vmatpush1.msra.mxu0 0.0
      %6732 = vmatprep.subr.mxu0 0.0
      %6733 = vmatpush1.msra.mxu0 0.0
      %6734 = vmatprep.subr.mxu0 0.0
      %6735 = vmatpush1.msra.mxu0 0.0
      %6736 = vmatprep.subr.mxu0 0.0
      %6737 = vmatpush1.msra.mxu0 0.0
      %6738 = vmatprep.subr.mxu0 0.0
      %6739 = vmatpush1.msra.mxu0 0.0
      %6740 = vmatprep.subr.mxu0 0.0
      %6741 = vmatpush1.msra.mxu0 0.0
      %6742 = vmatprep.subr.mxu0 0.0
      %6743 = vmatpush1.msra.mxu0 0.0
      %6744 = vmatprep.subr.mxu0 0.0
      %6745 = vmatpush1.msra.mxu0 0.0
      %6746 = vmatprep.subr.mxu0 0.0
      %6747 = vmatpush1.msra.mxu0 0.0
      %6748 = vmatprep.subr.mxu0 0.0
      %6749 = vmatpush1.msra.mxu0 0.0
      %6750 = vmatprep.subr.mxu0 0.0
      %6751 = vmatpush1.msra.mxu0 0.0
      %6752 = vmatprep.subr.mxu0 0.0
      %6753 = vmatpush1.msra.mxu0 0.0
      %6754 = vmatprep.subr.mxu0 0.0
      %6755 = vmatpush1.msra.mxu0 0.0
      %6756 = vmatprep.subr.mxu0 0.0
      %6757 = vmatpush1.msra.mxu0 0.0
      %6758 = vmatprep.subr.mxu0 0.0
      %6759 = vmatpush1.msra.mxu0 0.0
      %6760 = vmatprep.subr.mxu0 0.0
      %6761 = vmatpush1.msra.mxu0 0.0
      %6762 = vmatprep.subr.mxu0 0.0
      %6763 = vmatpush1.msra.mxu0 0.0
      %6764 = vmatprep.mubr.f32.mxu0 0.0
      %6765 = vmatmul.mubr.f32.gmra.mrb[0].mxu0 %v6685
      %v6766 = vpop.f32.mrb[0].mxu0
      %v6767 = vadd.f32 0.0, %v6766
      %v6768 = vpop.f32.mrb[0].mxu0
      %6769 = vmatprep.mubr.f32.mxu0 0.0
      %6770 = vmatmul.mubr.f32.gmra.mrb[0].mxu0 %v6688
      %v6771 = vpop.f32.mrb[0].mxu0
      %v6772 = vadd.f32 0.0, %v6771
      %v6773 = vpop.f32.mrb[0].mxu0
      %6774 = vmatprep.mubr.f32.mxu0 0.0
      %6775 = vmatmul.mubr.f32.gmra.mrb[0].mxu0 %v6691
      %v6776 = vpop.f32.mrb[0].mxu0
      %v6777 = vadd.f32 0.0, %v6776
      %v6778 = vpop.f32.mrb[0].mxu0
      %6779 = vmatprep.mubr.f32.mxu0 0.0
      %6780 = vmatmul.mubr.f32.gmra.mrb[0].mxu0 %v6694
      %v6781 = vpop.f32.mrb[0].mxu0
      %v6782 = vadd.f32 0.0, %v6781
      %v6783 = vpop.f32.mrb[0].mxu0
      %6784 = vdwg.mxu0
      %v6785 = vadd.f32 %v6653, %v6767
      %v6786 = vadd.f32 %v6654, %v6772
      %v6787 = vadd.f32 %v6655, %v6777
      %v6788 = vadd.f32 %v6656, %v6782
      %vm6789 = vcmask 64544
      %v6790 = vsel %vm6789, %v6657, -inf
      %6791 = vmax.xlane.f32.xlu0 %v6790
      %v6792 = vpop.xlane.xlu0 %6791
      %v6793 = vsel %vm6789, %v6658, -inf
      %6794 = vmax.xlane.f32.xlu0 %v6793
      %v6795 = vpop.xlane.xlu0 %6794
      %v6796 = vsel %vm6789, %v6659, -inf
      %6797 = vmax.xlane.f32.xlu0 %v6796
      %v6798 = vpop.xlane.xlu0 %6797
      %v6799 = vsel %vm6789, %v6660, -inf
      %6800 = vmax.xlane.f32.xlu0 %v6799
      %v6801 = vpop.xlane.xlu0 %6800
      %vm6802 = vcmask 60448
      %v6803 = vsel %vm6802, %v6661, -inf
      %6804 = vmax.xlane.f32.xlu0 %v6803
      %v6805 = vpop.xlane.xlu0 %6804
      %s6806 = scalar_lea.vmem %s7, 32
      %v6807 = vld [vmem:[%s6806] sm:$0xff]
      %v6808 = vld [vmem:[%s6806 + $0x8] sm:$0xff]
      %v6809 = vld [vmem:[%s6806 + $0x10] sm:$0xff]
      %v6810 = vld [vmem:[%s6806 + $0x18] sm:$0xff]
      %v6812 = vsel %vm6683, %v6807, 0
      %v6815 = vsel %vm6683, %v6808, 0
      %v6818 = vsel %vm6683, %v6809, 0
      %v6821 = vsel %vm6683, %v6810, 0
      %v6824 = vsel %vm6696, %v6805, 0
      %6826 = vmatprep.subr.mxu0 0.0
      %6827 = vmatpush1.msra.mxu0 %v6792
      %6828 = vmatprep.subr.mxu0 0.0
      %6829 = vmatpush1.msra.mxu0 %v6795
      %6830 = vmatprep.subr.mxu0 0.0
      %6831 = vmatpush1.msra.mxu0 %v6798
      %6832 = vmatprep.subr.mxu0 0.0
      %6833 = vmatpush1.msra.mxu0 %v6801
      %6834 = vmatprep.subr.mxu0 0.0
      %6835 = vmatpush1.msra.mxu0 %v6824
      %6836 = vmatprep.subr.mxu0 0.0
      %6837 = vmatpush1.msra.mxu0 0.0
      %6838 = vmatprep.subr.mxu0 0.0
      %6839 = vmatpush1.msra.mxu0 0.0
      %6840 = vmatprep.subr.mxu0 0.0
      %6841 = vmatpush1.msra.mxu0 0.0
      %6842 = vmatprep.subr.mxu0 0.0
      %6843 = vmatpush1.msra.mxu0 0.0
      %6844 = vmatprep.subr.mxu0 0.0
      %6845 = vmatpush1.msra.mxu0 0.0
      %6846 = vmatprep.subr.mxu0 0.0
      %6847 = vmatpush1.msra.mxu0 0.0
      %6848 = vmatprep.subr.mxu0 0.0
      %6849 = vmatpush1.msra.mxu0 0.0
      %6850 = vmatprep.subr.mxu0 0.0
      %6851 = vmatpush1.msra.mxu0 0.0
      %6852 = vmatprep.subr.mxu0 0.0
      %6853 = vmatpush1.msra.mxu0 0.0
      %6854 = vmatprep.subr.mxu0 0.0
      %6855 = vmatpush1.msra.mxu0 0.0
      %6856 = vmatprep.subr.mxu0 0.0
      %6857 = vmatpush1.msra.mxu0 0.0
      %6858 = vmatprep.subr.mxu0 0.0
      %6859 = vmatpush1.msra.mxu0 0.0
      %6860 = vmatprep.subr.mxu0 0.0
      %6861 = vmatpush1.msra.mxu0 0.0
      %6862 = vmatprep.subr.mxu0 0.0
      %6863 = vmatpush1.msra.mxu0 0.0
      %6864 = vmatprep.subr.mxu0 0.0
      %6865 = vmatpush1.msra.mxu0 0.0
      %6866 = vmatprep.subr.mxu0 0.0
      %6867 = vmatpush1.msra.mxu0 0.0
      %6868 = vmatprep.subr.mxu0 0.0
      %6869 = vmatpush1.msra.mxu0 0.0
      %6870 = vmatprep.subr.mxu0 0.0
      %6871 = vmatpush1.msra.mxu0 0.0
      %6872 = vmatprep.subr.mxu0 0.0
      %6873 = vmatpush1.msra.mxu0 0.0
      %6874 = vmatprep.subr.mxu0 0.0
      %6875 = vmatpush1.msra.mxu0 0.0
      %6876 = vmatprep.subr.mxu0 0.0
      %6877 = vmatpush1.msra.mxu0 0.0
      %6878 = vmatprep.subr.mxu0 0.0
      %6879 = vmatpush1.msra.mxu0 0.0
      %6880 = vmatprep.subr.mxu0 0.0
      %6881 = vmatpush1.msra.mxu0 0.0
      %6882 = vmatprep.subr.mxu0 0.0
      %6883 = vmatpush1.msra.mxu0 0.0
      %6884 = vmatprep.subr.mxu0 0.0
      %6885 = vmatpush1.msra.mxu0 0.0
      %6886 = vmatprep.subr.mxu0 0.0
      %6887 = vmatpush1.msra.mxu0 0.0
      %6888 = vmatprep.subr.mxu0 0.0
      %6889 = vmatpush1.msra.mxu0 0.0
      %6890 = vmatprep.mubr.f32.mxu0 0.0
      %6891 = vmatmul.mubr.f32.gmra.mrb[0].mxu0 %v6812
      %v6892 = vpop.f32.mrb[0].mxu0
      %v6893 = vadd.f32 0.0, %v6892
      %v6894 = vpop.f32.mrb[0].mxu0
      %6895 = vmatprep.mubr.f32.mxu0 0.0
      %6896 = vmatmul.mubr.f32.gmra.mrb[0].mxu0 %v6815
      %v6897 = vpop.f32.mrb[0].mxu0
      %v6898 = vadd.f32 0.0, %v6897
      %v6899 = vpop.f32.mrb[0].mxu0
      %6900 = vmatprep.mubr.f32.mxu0 0.0
      %6901 = vmatmul.mubr.f32.gmra.mrb[0].mxu0 %v6818
      %v6902 = vpop.f32.mrb[0].mxu0
      %v6903 = vadd.f32 0.0, %v6902
      %v6904 = vpop.f32.mrb[0].mxu0
      %6905 = vmatprep.mubr.f32.mxu0 0.0
      %6906 = vmatmul.mubr.f32.gmra.mrb[0].mxu0 %v6821
      %v6907 = vpop.f32.mrb[0].mxu0
      %v6908 = vadd.f32 0.0, %v6907
      %v6909 = vpop.f32.mrb[0].mxu0
      %6910 = vdwg.mxu0
      %v6911 = vadd.f32 %v6785, %v6893
      %v6912 = vadd.f32 %v6786, %v6898
      %v6913 = vadd.f32 %v6787, %v6903
      %v6914 = vadd.f32 %v6788, %v6908
      %vm6915 = vcmask 97344
      %v6916 = vsel %vm6915, %v6657, -inf
      %6917 = vmax.xlane.f32.xlu0 %v6916
      %v6918 = vpop.xlane.xlu0 %6917
      %v6919 = vsel %vm6915, %v6658, -inf
      %6920 = vmax.xlane.f32.xlu0 %v6919
      %v6921 = vpop.xlane.xlu0 %6920
      %v6922 = vsel %vm6915, %v6659, -inf
      %6923 = vmax.xlane.f32.xlu0 %v6922
      %v6924 = vpop.xlane.xlu0 %6923
      %v6925 = vsel %vm6915, %v6660, -inf
      %6926 = vmax.xlane.f32.xlu0 %v6925
      %v6927 = vpop.xlane.xlu0 %6926
      %vm6928 = vcmask 93248
      %v6929 = vsel %vm6928, %v6661, -inf
      %6930 = vmax.xlane.f32.xlu0 %v6929
      %v6931 = vpop.xlane.xlu0 %6930
      %s6932 = scalar_lea.vmem %s7, 64
      %v6933 = vld [vmem:[%s6932] sm:$0xff]
      %v6934 = vld [vmem:[%s6932 + $0x8] sm:$0xff]
      %v6935 = vld [vmem:[%s6932 + $0x10] sm:$0xff]
      %v6936 = vld [vmem:[%s6932 + $0x18] sm:$0xff]
      %v6938 = vsel %vm6683, %v6933, 0
      %v6941 = vsel %vm6683, %v6934, 0
      %v6944 = vsel %vm6683, %v6935, 0
      %v6947 = vsel %vm6683, %v6936, 0
      %v6950 = vsel %vm6696, %v6931, 0
      %6952 = vmatprep.subr.mxu0 0.0
      %6953 = vmatpush1.msra.mxu0 %v6918
      %6954 = vmatprep.subr.mxu0 0.0
      %6955 = vmatpush1.msra.mxu0 %v6921
      %6956 = vmatprep.subr.mxu0 0.0
      %6957 = vmatpush1.msra.mxu0 %v6924
      %6958 = vmatprep.subr.mxu0 0.0
      %6959 = vmatpush1.msra.mxu0 %v6927
      %6960 = vmatprep.subr.mxu0 0.0
      %6961 = vmatpush1.msra.mxu0 %v6950
      %6962 = vmatprep.subr.mxu0 0.0
      %6963 = vmatpush1.msra.mxu0 0.0
      %6964 = vmatprep.subr.mxu0 0.0
      %6965 = vmatpush1.msra.mxu0 0.0
      %6966 = vmatprep.subr.mxu0 0.0
      %6967 = vmatpush1.msra.mxu0 0.0
      %6968 = vmatprep.subr.mxu0 0.0
      %6969 = vmatpush1.msra.mxu0 0.0
      %6970 = vmatprep.subr.mxu0 0.0
      %6971 = vmatpush1.msra.mxu0 0.0
      %6972 = vmatprep.subr.mxu0 0.0
      %6973 = vmatpush1.msra.mxu0 0.0
      %6974 = vmatprep.subr.mxu0 0.0
      %6975 = vmatpush1.msra.mxu0 0.0
      %6976 = vmatprep.subr.mxu0 0.0
      %6977 = vmatpush1.msra.mxu0 0.0
      %6978 = vmatprep.subr.mxu0 0.0
      %6979 = vmatpush1.msra.mxu0 0.0
      %6980 = vmatprep.subr.mxu0 0.0
      %6981 = vmatpush1.msra.mxu0 0.0
      %6982 = vmatprep.subr.mxu0 0.0
      %6983 = vmatpush1.msra.mxu0 0.0
      %6984 = vmatprep.subr.mxu0 0.0
      %6985 = vmatpush1.msra.mxu0 0.0
      %6986 = vmatprep.subr.mxu0 0.0
      %6987 = vmatpush1.msra.mxu0 0.0
      %6988 = vmatprep.subr.mxu0 0.0
      %6989 = vmatpush1.msra.mxu0 0.0
      %6990 = vmatprep.subr.mxu0 0.0
      %6991 = vmatpush1.msra.mxu0 0.0
      %6992 = vmatprep.subr.mxu0 0.0
      %6993 = vmatpush1.msra.mxu0 0.0
      %6994 = vmatprep.subr.mxu0 0.0
      %6995 = vmatpush1.msra.mxu0 0.0
      %6996 = vmatprep.subr.mxu0 0.0
      %6997 = vmatpush1.msra.mxu0 0.0
      %6998 = vmatprep.subr.mxu0 0.0
      %6999 = vmatpush1.msra.mxu0 0.0
      %7000 = vmatprep.subr.mxu0 0.0
      %7001 = vmatpush1.msra.mxu0 0.0
      %7002 = vmatprep.subr.mxu0 0.0
      %7003 = vmatpush1.msra.mxu0 0.0
      %7004 = vmatprep.subr.mxu0 0.0
      %7005 = vmatpush1.msra.mxu0 0.0
      %7006 = vmatprep.subr.mxu0 0.0
      %7007 = vmatpush1.msra.mxu0 0.0
      %7008 = vmatprep.subr.mxu0 0.0
      %7009 = vmatpush1.msra.mxu0 0.0
      %7010 = vmatprep.subr.mxu0 0.0
      %7011 = vmatpush1.msra.mxu0 0.0
      %7012 = vmatprep.subr.mxu0 0.0
      %7013 = vmatpush1.msra.mxu0 0.0
      %7014 = vmatprep.subr.mxu0 0.0
      %7015 = vmatpush1.msra.mxu0 0.0
      %7016 = vmatprep.mubr.f32.mxu0 0.0
      %7017 = vmatmul.mubr.f32.gmra.mrb[0].mxu0 %v6938
      %v7018 = vpop.f32.mrb[0].mxu0
      %v7019 = vadd.f32 0.0, %v7018
      %v7020 = vpop.f32.mrb[0].mxu0
      %7021 = vmatprep.mubr.f32.mxu0 0.0
      %7022 = vmatmul.mubr.f32.gmra.mrb[0].mxu0 %v6941
      %v7023 = vpop.f32.mrb[0].mxu0
      %v7024 = vadd.f32 0.0, %v7023
      %v7025 = vpop.f32.mrb[0].mxu0
      %7026 = vmatprep.mubr.f32.mxu0 0.0
      %7027 = vmatmul.mubr.f32.gmra.mrb[0].mxu0 %v6944
      %v7028 = vpop.f32.mrb[0].mxu0
      %v7029 = vadd.f32 0.0, %v7028
      %v7030 = vpop.f32.mrb[0].mxu0
      %7031 = vmatprep.mubr.f32.mxu0 0.0
      %7032 = vmatmul.mubr.f32.gmra.mrb[0].mxu0 %v6947
      %v7033 = vpop.f32.mrb[0].mxu0
      %v7034 = vadd.f32 0.0, %v7033
      %v7035 = vpop.f32.mrb[0].mxu0
      %7036 = vdwg.mxu0
      %v7037 = vadd.f32 %v6911, %v7019
      %v7038 = vadd.f32 %v6912, %v7024
      %v7039 = vadd.f32 %v6913, %v7029
      %v7040 = vadd.f32 %v6914, %v7034
      %vm7041 = vcmask 130144
      %v7042 = vsel %vm7041, %v6657, -inf
      %7043 = vmax.xlane.f32.xlu0 %v7042
      %v7044 = vpop.xlane.xlu0 %7043
      %v7045 = vsel %vm7041, %v6658, -inf
      %7046 = vmax.xlane.f32.xlu0 %v7045
      %v7047 = vpop.xlane.xlu0 %7046
      %v7048 = vsel %vm7041, %v6659, -inf
      %7049 = vmax.xlane.f32.xlu0 %v7048
      %v7050 = vpop.xlane.xlu0 %7049
      %v7051 = vsel %vm7041, %v6660, -inf
      %7052 = vmax.xlane.f32.xlu0 %v7051
      %v7053 = vpop.xlane.xlu0 %7052
      %vm7054 = vcmask 126048
      %v7055 = vsel %vm7054, %v6661, -inf
      %7056 = vmax.xlane.f32.xlu0 %v7055
      %v7057 = vpop.xlane.xlu0 %7056
      %s7058 = scalar_lea.vmem %s7, 96
      %v7059 = vld [vmem:[%s7058] sm:$0xff]
      %v7060 = vld [vmem:[%s7058 + $0x8] sm:$0xff]
      %v7061 = vld [vmem:[%s7058 + $0x10] sm:$0xff]
      %v7062 = vld [vmem:[%s7058 + $0x18] sm:$0xff]
      %v7064 = vsel %vm6683, %v7059, 0
      %v7067 = vsel %vm6683, %v7060, 0
      %v7070 = vsel %vm6683, %v7061, 0
      %v7073 = vsel %vm6683, %v7062, 0
      %v7076 = vsel %vm6696, %v7057, 0
      %7078 = vmatprep.subr.mxu0 0.0
      %7079 = vmatpush1.msra.mxu0 %v7044
      %7080 = vmatprep.subr.mxu0 0.0
      %7081 = vmatpush1.msra.mxu0 %v7047
      %7082 = vmatprep.subr.mxu0 0.0
      %7083 = vmatpush1.msra.mxu0 %v7050
      %7084 = vmatprep.subr.mxu0 0.0
      %7085 = vmatpush1.msra.mxu0 %v7053
      %7086 = vmatprep.subr.mxu0 0.0
      %7087 = vmatpush1.msra.mxu0 %v7076
      %7088 = vmatprep.subr.mxu0 0.0
      %7089 = vmatpush1.msra.mxu0 0.0
      %7090 = vmatprep.subr.mxu0 0.0
      %7091 = vmatpush1.msra.mxu0 0.0
      %7092 = vmatprep.subr.mxu0 0.0
      %7093 = vmatpush1.msra.mxu0 0.0
      %7094 = vmatprep.subr.mxu0 0.0
      %7095 = vmatpush1.msra.mxu0 0.0
      %7096 = vmatprep.subr.mxu0 0.0
      %7097 = vmatpush1.msra.mxu0 0.0
      %7098 = vmatprep.subr.mxu0 0.0
      %7099 = vmatpush1.msra.mxu0 0.0
      %7100 = vmatprep.subr.mxu0 0.0
      %7101 = vmatpush1.msra.mxu0 0.0
      %7102 = vmatprep.subr.mxu0 0.0
      %7103 = vmatpush1.msra.mxu0 0.0
      %7104 = vmatprep.subr.mxu0 0.0
      %7105 = vmatpush1.msra.mxu0 0.0
      %7106 = vmatprep.subr.mxu0 0.0
      %7107 = vmatpush1.msra.mxu0 0.0
      %7108 = vmatprep.subr.mxu0 0.0
      %7109 = vmatpush1.msra.mxu0 0.0
      %7110 = vmatprep.subr.mxu0 0.0
      %7111 = vmatpush1.msra.mxu0 0.0
      %7112 = vmatprep.subr.mxu0 0.0
      %7113 = vmatpush1.msra.mxu0 0.0
      %7114 = vmatprep.subr.mxu0 0.0
      %7115 = vmatpush1.msra.mxu0 0.0
      %7116 = vmatprep.subr.mxu0 0.0
      %7117 = vmatpush1.msra.mxu0 0.0
      %7118 = vmatprep.subr.mxu0 0.0
      %7119 = vmatpush1.msra.mxu0 0.0
      %7120 = vmatprep.subr.mxu0 0.0
      %7121 = vmatpush1.msra.mxu0 0.0
      %7122 = vmatprep.subr.mxu0 0.0
      %7123 = vmatpush1.msra.mxu0 0.0
      %7124 = vmatprep.subr.mxu0 0.0
      %7125 = vmatpush1.msra.mxu0 0.0
      %7126 = vmatprep.subr.mxu0 0.0
      %7127 = vmatpush1.msra.mxu0 0.0
      %7128 = vmatprep.subr.mxu0 0.0
      %7129 = vmatpush1.msra.mxu0 0.0
      %7130 = vmatprep.subr.mxu0 0.0
      %7131 = vmatpush1.msra.mxu0 0.0
      %7132 = vmatprep.subr.mxu0 0.0
      %7133 = vmatpush1.msra.mxu0 0.0
      %7134 = vmatprep.subr.mxu0 0.0
      %7135 = vmatpush1.msra.mxu0 0.0
      %7136 = vmatprep.subr.mxu0 0.0
      %7137 = vmatpush1.msra.mxu0 0.0
      %7138 = vmatprep.subr.mxu0 0.0
      %7139 = vmatpush1.msra.mxu0 0.0
      %7140 = vmatprep.subr.mxu0 0.0
      %7141 = vmatpush1.msra.mxu0 0.0
      %7142 = vmatprep.mubr.f32.mxu0 0.0
      %7143 = vmatmul.mubr.f32.gmra.mrb[0].mxu0 %v7064
      %v7144 = vpop.f32.mrb[0].mxu0
      %v7145 = vadd.f32 0.0, %v7144
      %v7146 = vpop.f32.mrb[0].mxu0
      %7147 = vmatprep.mubr.f32.mxu0 0.0
      %7148 = vmatmul.mubr.f32.gmra.mrb[0].mxu0 %v7067
      %v7149 = vpop.f32.mrb[0].mxu0
      %v7150 = vadd.f32 0.0, %v7149
      %v7151 = vpop.f32.mrb[0].mxu0
      %7152 = vmatprep.mubr.f32.mxu0 0.0
      %7153 = vmatmul.mubr.f32.gmra.mrb[0].mxu0 %v7070
      %v7154 = vpop.f32.mrb[0].mxu0
      %v7155 = vadd.f32 0.0, %v7154
      %v7156 = vpop.f32.mrb[0].mxu0
      %7157 = vmatprep.mubr.f32.mxu0 0.0
      %7158 = vmatmul.mubr.f32.gmra.mrb[0].mxu0 %v7073
      %v7159 = vpop.f32.mrb[0].mxu0
      %v7160 = vadd.f32 0.0, %v7159
      %v7161 = vpop.f32.mrb[0].mxu0
      %7162 = vdwg.mxu0
      %v7163 = vadd.f32 %v7037, %v7145
      %v7164 = vadd.f32 %v7038, %v7150
      %v7165 = vadd.f32 %v7039, %v7155
      %v7166 = vadd.f32 %v7040, %v7160
      %v7167 = vmax.f32 %v7163, 0.0
      %v7168 = vmax.f32 %v7164, 0.0
      %v7169 = vmax.f32 %v7165, 0.0
      %v7170 = vmax.f32 %v7166, 0.0
      %v7171 = vld [vmem:[%s9] sm:$0xff]
      %v7172 = vld [vmem:[%s10] sm:$0xff]
      %vm7173 = vcmask 261120
      %v7175 = vsel %vm7173, %v7171, 0
      %7177 = vmatprep.subr.mxu0 0.0
      %7178 = vmatpush1.msra.mxu0 %v7167
      %7179 = vmatprep.subr.mxu0 0.0
      %7180 = vmatpush1.msra.mxu0 %v7168
      %7181 = vmatprep.subr.mxu0 0.0
      %7182 = vmatpush1.msra.mxu0 %v7169
      %7183 = vmatprep.subr.mxu0 0.0
      %7184 = vmatpush1.msra.mxu0 %v7170
      %7185 = vmatprep.subr.mxu0 0.0
      %7186 = vmatpush1.msra.mxu0 0.0
      %7187 = vmatprep.subr.mxu0 0.0
      %7188 = vmatpush1.msra.mxu0 0.0
      %7189 = vmatprep.subr.mxu0 0.0
      %7190 = vmatpush1.msra.mxu0 0.0
      %7191 = vmatprep.subr.mxu0 0.0
      %7192 = vmatpush1.msra.mxu0 0.0
      %7193 = vmatprep.subr.mxu0 0.0
      %7194 = vmatpush1.msra.mxu0 0.0
      %7195 = vmatprep.subr.mxu0 0.0
      %7196 = vmatpush1.msra.mxu0 0.0
      %7197 = vmatprep.subr.mxu0 0.0
      %7198 = vmatpush1.msra.mxu0 0.0
      %7199 = vmatprep.subr.mxu0 0.0
      %7200 = vmatpush1.msra.mxu0 0.0
      %7201 = vmatprep.subr.mxu0 0.0
      %7202 = vmatpush1.msra.mxu0 0.0
      %7203 = vmatprep.subr.mxu0 0.0
      %7204 = vmatpush1.msra.mxu0 0.0
      %7205 = vmatprep.subr.mxu0 0.0
      %7206 = vmatpush1.msra.mxu0 0.0
      %7207 = vmatprep.subr.mxu0 0.0
      %7208 = vmatpush1.msra.mxu0 0.0
      %7209 = vmatprep.subr.mxu0 0.0
      %7210 = vmatpush1.msra.mxu0 0.0
      %7211 = vmatprep.subr.mxu0 0.0
      %7212 = vmatpush1.msra.mxu0 0.0
      %7213 = vmatprep.subr.mxu0 0.0
      %7214 = vmatpush1.msra.mxu0 0.0
      %7215 = vmatprep.subr.mxu0 0.0
      %7216 = vmatpush1.msra.mxu0 0.0
      %7217 = vmatprep.subr.mxu0 0.0
      %7218 = vmatpush1.msra.mxu0 0.0
      %7219 = vmatprep.subr.mxu0 0.0
      %7220 = vmatpush1.msra.mxu0 0.0
      %7221 = vmatprep.subr.mxu0 0.0
      %7222 = vmatpush1.msra.mxu0 0.0
      %7223 = vmatprep.subr.mxu0 0.0
      %7224 = vmatpush1.msra.mxu0 0.0
      %7225 = vmatprep.subr.mxu0 0.0
      %7226 = vmatpush1.msra.mxu0 0.0
      %7227 = vmatprep.subr.mxu0 0.0
      %7228 = vmatpush1.msra.mxu0 0.0
      %7229 = vmatprep.subr.mxu0 0.0
      %7230 = vmatpush1.msra.mxu0 0.0
      %7231 = vmatprep.subr.mxu0 0.0
      %7232 = vmatpush1.msra.mxu0 0.0
      %7233 = vmatprep.subr.mxu0 0.0
      %7234 = vmatpush1.msra.mxu0 0.0
      %7235 = vmatprep.subr.mxu0 0.0
      %7236 = vmatpush1.msra.mxu0 0.0
      %7237 = vmatprep.subr.mxu0 0.0
      %7238 = vmatpush1.msra.mxu0 0.0
      %7239 = vmatprep.subr.mxu0 0.0
      %7240 = vmatpush1.msra.mxu0 0.0
      %7241 = vmatprep.mubr.f32.mxu0 0.0
      %7242 = vmatmul.mubr.f32.gmra.mrb[0].mxu0 %v7175
      %v7243 = vpop.f32.mrb[0].mxu0
      %v7244 = vadd.f32 %v7172, %v7243
      %v7245 = vpop.f32.mrb[0].mxu0
      %7246 = vdwg.mxu0
      %vm7247 = vcmask 7168
      %7248 = vst.msk [vmem:[%s384] sm:$0xff] %vm7247, %v7244
      %p7249 = scmp.lt.s32.totalorder %s22, 1
      %s7250 = scalar_select %p7249, %s22, 1
      %s7251 = smul.addr %s7250, 8
      %s7252 = scalar_lea.vmem %s11, %s7251
      // Predicated region
      $region65: #{_lambda_.1} parent=63 // pred_check
        %p7253 = pneg %p276
      $region66: #{_lambda_.1} parent=63 // pred_check_branch
        %7255 = sbr.rel (%p7253) target = $region68
      $region67: #{_lambda_.1} parent=63 // pred_region
        _
      $region68: #{_lambda_.1} parent=63 // pred_fallthru
        _
    $region64: #{_lambda_.1} parent=5 // pred_fallthru
      _
    %p7256 = scmp.le.s32.totalorder 2, %s17
    // Predicated region
    $region69: #{_lambda_.1} parent=5 // pred_check
      %p7257 = pneg %p7256
    $region70: #{_lambda_.1} parent=5 // pred_check_branch
      %7259 = sbr.rel (%p7257) target = $region72
    $region71: #{_lambda_.1} parent=5 // pred_region
      %s7260 = ssub.s32 %s17, 2
      // Predicated region
      $region73: #{_lambda_.1} parent=71 // pred_check
        %p7261 = pneg %p282
      $region74: #{_lambda_.1} parent=71 // pred_check_branch
        %7263 = sbr.rel (%p7261) target = $region76
      $region75: #{_lambda_.1} parent=71 // pred_region
        %p7264 = scmp.lt.s32.totalorder %s23, 1
        %s7265 = scalar_select %p7264, %s23, 1
        %s7266 = smul.addr %s7265, 8
        %s7267 = scalar_lea.vmem %s11, %s7266
      $region76: #{_lambda_.1} parent=71 // pred_fallthru
        _
    $region72: #{_lambda_.1} parent=5 // pred_fallthru
      _
  $region6: #{_lambda_.1} parent=0 // loop_footer
    %s21 = sadd.s32 1, %s17
  $region7: #{_lambda_.1} parent=0 // loop_footer_branch
    %16 = sbr.rel target = $region3
  $region8: #{_lambda_.1} parent=0 // loop_exit
    _

</llo_original>
